<compile_context>
chip_gen: v6e
topology: v6e:2x2x1
jax: 0.10.0
libtpu: 0.0.40
codegen_flags: <defaults>
</compile_context>

<pallas_src>
import math

import jax
import jax.numpy as jnp
from jax.experimental import pallas as pl
from jax.experimental.pallas import tpu as pltpu


def _round_up(x, m):
    return ((x + m - 1) // m) * m


# ---------------------------------------------------------------------------
# small in-kernel helpers (f32 elementwise math only)
# ---------------------------------------------------------------------------
def _erf(x):
    # Abramowitz & Stegun 7.1.26 rational approximation, |err| <= 1.5e-7.
    # Only uses exp / abs / where / arithmetic, all guaranteed to lower on
    # the Mosaic TPU backend.
    p = 0.3275911
    a1, a2, a3, a4, a5 = (0.254829592, -0.284496736, 1.421413741,
                          -1.453152027, 1.061405429)
    s = jnp.where(x >= 0.0, 1.0, -1.0)
    ax = jnp.abs(x)
    t = 1.0 / (1.0 + p * ax)
    poly = ((((a5 * t + a4) * t + a3) * t + a2) * t + a1) * t
    return s * (1.0 - poly * jnp.exp(-ax * ax))


def _gelu_exact(x):
    # matches torch.nn.GELU() (erf form) to ~1e-7.
    return 0.5 * x * (1.0 + _erf(x * 0.7071067811865475))


def _layer_norm(x, gamma, beta, eps=1e-5):
    mu = jnp.mean(x, axis=-1, keepdims=True)
    xc = x - mu
    var = jnp.mean(xc * xc, axis=-1, keepdims=True)
    return xc * jax.lax.rsqrt(var + eps) * gamma + beta


# ---------------------------------------------------------------------------
# fused transformer kernel (single grid axis over batch tiles)
# ---------------------------------------------------------------------------
def _make_kernel(*, n_layer, seq, seq_pad, bt, d_model, d_hidden):
    M = bt * seq_pad
    bf16 = jnp.bfloat16
    f32 = jnp.float32

    def kernel(oh_ref, emb_ref,
               ln1g_ref, ln1b_ref, wqkv_ref,
               ln2g_ref, ln2b_ref, w1_ref, b1_ref, w2_ref, b2_ref,
               wout_ref, bout_ref, pred_ref):
        # ---- token + position embedding as one MXU matmul (one-hot gather) ----
        h0 = jnp.dot(oh_ref[...], emb_ref[...], preferred_element_type=f32)  # (M, D)

        # mask for padded key columns (built once, hoisted out of the layer loop)
        col = jax.lax.broadcasted_iota(jnp.int32, (seq_pad, seq_pad), 1)
        key_valid = (col < seq)[None]                      # (1, seq_pad, seq_pad)
        neg_big = jnp.float32(-1e30)

        def layer_body(l, h):
            # ---------------- pre-LN attention ----------------
            h1 = _layer_norm(h, ln1g_ref[l], ln1b_ref[l])
            # fused QKV: one full-width MXU pass; 1/sqrt(d) is folded into Wq.
            qkv = jnp.dot(h1.astype(bf16), wqkv_ref[l],
                          preferred_element_type=f32)                  # (M, 3D)
            q = qkv[:, :d_model].reshape(bt, seq_pad, d_model)
            k = qkv[:, d_model:2 * d_model].reshape(bt, seq_pad, d_model)
            v = qkv[:, 2 * d_model:].reshape(bt, seq_pad, d_model)

            # batched q @ k^T with contraction on the last dims (no k.T / XLU)
            logits = jax.lax.dot_general(
                q, k, (((2,), (2,)), ((0,), (0,))),
                preferred_element_type=f32)                            # (bt, sq, sq)
            logits = jnp.where(key_valid, logits, neg_big)
            m = jnp.max(logits, axis=-1, keepdims=True)
            e = jnp.exp(logits - m)
            inv = pl.reciprocal(jnp.sum(e, axis=-1, keepdims=True), approx=True)
            attn = e * inv
            ctx = jax.lax.dot_general(
                attn, v, (((2,), (1,)), ((0,), (0,))),
                preferred_element_type=f32)                            # (bt, sq, D)
            h = h + ctx.reshape(M, d_model)

            # ---------------- pre-LN MLP ----------------
            h2 = _layer_norm(h, ln2g_ref[l], ln2b_ref[l])
            mid = jnp.dot(h2.astype(bf16), w1_ref[l],
                          preferred_element_type=f32) + b1_ref[l]
            mid = _gelu_exact(mid)
            h = h + (jnp.dot(mid.astype(bf16), w2_ref[l],
                             preferred_element_type=f32) + b2_ref[l])
            return h

        h = jax.lax.fori_loop(0, n_layer, layer_body, h0, unroll=True)

        # ---- read-out projection (lane-dense: vocab zero-padded to 128) ----
        pred_ref[...] = (jnp.dot(h.astype(bf16), wout_ref[...],
                                 preferred_element_type=f32) + bout_ref[...])

    return kernel


def conditional_ar_transformer_forward(params, xt, zi):
    """Pallas forward of ConditionalAutoRegressiveTransformer (default flags).

    Returns (prediction[:, n_i_token:, :], guided_layers); guided_layers is
    ([], []) because guide=False in the default configuration.
    """
    f32, bf16 = jnp.float32, jnp.bfloat16

    batch, t1 = xt.shape
    t2 = zi.shape[1]
    seq = t1 + t2
    n_layer, d_model, _ = params["wq"].shape
    d_hidden = params["mlp_w1"].shape[-1]
    vocab = params["w_out"].shape[-1]

    lane = 128
    seq_pad = _round_up(seq, 8)              # sublane alignment inside kernel
    vocab_pad = _round_up(vocab, lane)       # lane-dense read-out

    # batch tile: pack batch rows into the matmul M dimension
    bt = min(batch, max(1, 256 // seq_pad))
    batch_pad = _round_up(batch, bt)
    num_tiles = batch_pad // bt
    M = bt * seq_pad

    # ---- host-side weight prep (pure re-parameterization, bf16 matmul inputs)
    inv_sqrt_d = 1.0 / math.sqrt(d_model)
    wqkv = jnp.concatenate(
        [params["wq"] * inv_sqrt_d, params["wk"], params["wv"]],
        axis=-1).astype(bf16)                                   # (L, D, 3D)
    w1 = params["mlp_w1"].astype(bf16)                          # (L, D, H)
    w2 = params["mlp_w2"].astype(bf16)                          # (L, H, D)
    b1 = params["mlp_b1"].reshape(n_layer, 1, d_hidden).astype(f32)
    b2 = params["mlp_b2"].reshape(n_layer, 1, d_model).astype(f32)
    ln1g = params["ln1_g"].reshape(n_layer, 1, d_model).astype(f32)
    ln1b = params["ln1_b"].reshape(n_layer, 1, d_model).astype(f32)
    ln2g = params["ln2_g"].reshape(n_layer, 1, d_model).astype(f32)
    ln2b = params["ln2_b"].reshape(n_layer, 1, d_model).astype(f32)
    wout = jnp.zeros((d_model, vocab_pad), f32).at[:, :vocab].set(
        params["w_out"]).astype(bf16)
    bout = jnp.zeros((1, vocab_pad), f32).at[:, :vocab].set(params["b_out"])

    # ---- embedding tables + one-hot "gather" matrix --------------------------
    # embedding table rows: [ i-vocab | t-vocab | positions | zero pad ]
    emb_cols = 2 * vocab + seq
    emb_cols_pad = _round_up(emb_cols, lane)
    emb_table = jnp.zeros((emb_cols_pad, d_model), f32)
    emb_table = emb_table.at[:vocab].set(params["i_emb"])
    emb_table = emb_table.at[vocab:2 * vocab].set(params["t_emb"])
    emb_table = emb_table.at[2 * vocab:2 * vocab + seq].set(params["pos_emb"][:seq])
    emb_table = emb_table.astype(bf16)

    # each row of the one-hot selects its token row and its position row;
    # padded (batch / sequence) rows are all-zero -> zero initial hidden state.
    tok_cols = jnp.concatenate(
        [zi.astype(jnp.int32), xt.astype(jnp.int32) + vocab], axis=1)   # (B, seq)
    onehot = (jax.nn.one_hot(tok_cols, emb_cols_pad, dtype=f32) +
              jax.nn.one_hot(2 * vocab + jnp.arange(seq), emb_cols_pad,
                             dtype=f32)[None])
    onehot = jnp.pad(onehot,
                     ((0, batch_pad - batch), (0, seq_pad - seq), (0, 0)))
    onehot = onehot.reshape(batch_pad * seq_pad, emb_cols_pad).astype(bf16)

    kernel = _make_kernel(n_layer=n_layer, seq=seq, seq_pad=seq_pad, bt=bt,
                          d_model=d_model, d_hidden=d_hidden)

    def resident(arr):
        # full-array block, constant index_map -> fetched once, stays in VMEM.
        shape = arr.shape
        return pl.BlockSpec(tuple(shape), lambda i, n=len(shape): (0,) * n)

    in_specs = [
        pl.BlockSpec((M, emb_cols_pad), lambda i: (i, 0)),    # one-hot (per tile)
        resident(emb_table),
        resident(ln1g), resident(ln1b), resident(wqkv),
        resident(ln2g), resident(ln2b),
        resident(w1), resident(b1), resident(w2), resident(b2),
        resident(wout), resident(bout),
    ]
    out_specs = pl.BlockSpec((M, vocab_pad), lambda i: (i, 0))

    pred = pl.pallas_call(
        kernel,
        out_shape=jax.ShapeDtypeStruct((batch_pad * seq_pad, vocab_pad), f32),
        grid=(num_tiles,),
        in_specs=in_specs,
        out_specs=out_specs,
        compiler_params=pltpu.CompilerParams(
            dimension_semantics=("parallel",)),
    )(onehot, emb_table, ln1g, ln1b, wqkv, ln2g, ln2b,
      w1, b1, w2, b2, wout, bout)

    pred = pred.reshape(batch_pad, seq_pad, vocab_pad)[:batch, t2:seq, :vocab]
    # TODO(synk): guide=True / auto_regressive=True / sequential=True branches
    # of the reference module are not implemented (module defaults are False).
    return pred, ([], [])


# ---------------------------------------------------------------------------
# pure-JAX reference (mirrors the torch forward with default flags, f32)
# ---------------------------------------------------------------------------
def reference_forward(params, xt, zi):
    t2 = zi.shape[1]
    n_layer, d_model, _ = params["wq"].shape
    h = jnp.concatenate([params["i_emb"][zi], params["t_emb"][xt]], axis=1)
    h = h + params["pos_emb"][None, : h.shape[1], :]

    def ln(x, g, b):
        mu = x.mean(-1, keepdims=True)
        var = ((x - mu) ** 2).mean(-1, keepdims=True)
        return (x - mu) / jnp.sqrt(var + 1e-5) * g + b

    for l in range(n_layer):
        h1 = ln(h, params["ln1_g"][l], params["ln1_b"][l])
        q = h1 @ params["wq"][l]
        k = h1 @ params["wk"][l]
        v = h1 @ params["wv"][l]
        aw = jnp.einsum("bid,bjd->bij", q, k) / math.sqrt(d_model)
        aw = jax.nn.softmax(aw, axis=-1)
        h = h + jnp.einsum("bij,bjd->bid", aw, v)
        h2 = ln(h, params["ln2_g"][l], params["ln2_b"][l])
        mid = jax.nn.gelu(h2 @ params["mlp_w1"][l] + params["mlp_b1"][l],
                          approximate=False)
        h = h + mid @ params["mlp_w2"][l] + params["mlp_b2"][l]
    pred = h @ params["w_out"] + params["b_out"]
    return pred[:, t2:, :]


if __name__ == "__main__":
    # small shapes consistent with the module defaults:
    # n_token=9 positions = 4 prefix (zi) + 5 text (xt), vocab=10, n_embd=128.
    batch = 2
    n_i_token = 4
    n_t_token = 5
    n_token = n_i_token + n_t_token
    num_class = 10
    n_embd = 128
    n_layer = 4
    n_mlp_hidden = 256

    key = jax.random.PRNGKey(0)
    ks = jax.random.split(key, 14)
    f32 = jnp.float32
    params = {
        "t_emb":   0.02 * jax.random.normal(ks[0], (num_class, n_embd), f32),
        "i_emb":   0.02 * jax.random.normal(ks[1], (num_class, n_embd), f32),
        "pos_emb": 0.02 * jax.random.normal(ks[2], (n_token, n_embd), f32),
        "wq": 0.05 * jax.random.normal(ks[3], (n_layer, n_embd, n_embd), f32),
        "wk": 0.05 * jax.random.normal(ks[4], (n_layer, n_embd, n_embd), f32),
        "wv": 0.05 * jax.random.normal(ks[5], (n_layer, n_embd, n_embd), f32),
        "ln1_g": jnp.ones((n_layer, n_embd), f32),
        "ln1_b": jnp.zeros((n_layer, n_embd), f32),
        "ln2_g": jnp.ones((n_layer, n_embd), f32),
        "ln2_b": jnp.zeros((n_layer, n_embd), f32),
        "mlp_w1": 0.05 * jax.random.normal(ks[6], (n_layer, n_embd, n_mlp_hidden), f32),
        "mlp_b1": 0.02 * jax.random.normal(ks[7], (n_layer, n_mlp_hidden), f32),
        "mlp_w2": 0.04 * jax.random.normal(ks[8], (n_layer, n_mlp_hidden, n_embd), f32),
        "mlp_b2": 0.02 * jax.random.normal(ks[9], (n_layer, n_embd), f32),
        "w_out": 0.05 * jax.random.normal(ks[10], (n_embd, num_class), f32),
        "b_out": 0.02 * jax.random.normal(ks[11], (num_class,), f32),
    }
    xt = jax.random.randint(ks[12], (batch, n_t_token), 0, num_class, dtype=jnp.int32)
    zi = jax.random.randint(ks[13], (batch, n_i_token), 0, num_class, dtype=jnp.int32)

    pred, guided = conditional_ar_transformer_forward(params, xt, zi)
    pred = jax.block_until_ready(pred)
    assert pred.shape == (batch, n_t_token, num_class)

    ref = reference_forward(params, xt, zi)
    max_err = float(jnp.max(jnp.abs(pred - ref)))
    # tolerance covers the explicit bf16 weight/activation matmul inputs
    # (comparable to MXU default-precision bf16 passes on f32 inputs);
    # a structural bug would be >> 1e-1.
    assert max_err < 3e-2, f"max abs diff vs reference: {max_err}"
    print("KERNEL_OK")
</pallas_src>

<mosaic_0001>
module attributes {stable_mosaic.version = 11 : i64} {
  func.func @kernel(%arg0: i32, %arg1: memref<32x128xbf16, #tpu.memory_space<vmem>>, %arg2: memref<128x128xbf16, #tpu.memory_space<vmem>>, %arg3: memref<4x1x128xf32, #tpu.memory_space<vmem>>, %arg4: memref<4x1x128xf32, #tpu.memory_space<vmem>>, %arg5: memref<4x128x384xbf16, #tpu.memory_space<vmem>>, %arg6: memref<4x1x128xf32, #tpu.memory_space<vmem>>, %arg7: memref<4x1x128xf32, #tpu.memory_space<vmem>>, %arg8: memref<4x128x256xbf16, #tpu.memory_space<vmem>>, %arg9: memref<4x1x256xf32, #tpu.memory_space<vmem>>, %arg10: memref<4x256x128xbf16, #tpu.memory_space<vmem>>, %arg11: memref<4x1x128xf32, #tpu.memory_space<vmem>>, %arg12: memref<128x128xbf16, #tpu.memory_space<vmem>>, %arg13: memref<1x128xf32, #tpu.memory_space<vmem>>, %arg14: memref<32x128xf32, #tpu.memory_space<vmem>>) attributes {dimension_semantics = [#tpu.dimension_semantics<parallel>], iteration_bounds = array<i64: 1>, scalar_prefetch = 0 : i64, scratch_operands = 0 : i64, tpu.core_type = #tpu.core_type<tc>, window_params = [{transform_indices = @transform_0, window_bounds = array<i64: 32, 128>}, {pipeline_mode = #tpu.pipeline_mode<synchronous>, transform_indices = @transform_1, window_bounds = array<i64: 128, 128>}, {pipeline_mode = #tpu.pipeline_mode<synchronous>, transform_indices = @transform_2, window_bounds = array<i64: 4, 1, 128>}, {pipeline_mode = #tpu.pipeline_mode<synchronous>, transform_indices = @transform_3, window_bounds = array<i64: 4, 1, 128>}, {pipeline_mode = #tpu.pipeline_mode<synchronous>, transform_indices = @transform_4, window_bounds = array<i64: 4, 128, 384>}, {pipeline_mode = #tpu.pipeline_mode<synchronous>, transform_indices = @transform_5, window_bounds = array<i64: 4, 1, 128>}, {pipeline_mode = #tpu.pipeline_mode<synchronous>, transform_indices = @transform_6, window_bounds = array<i64: 4, 1, 128>}, {pipeline_mode = #tpu.pipeline_mode<synchronous>, transform_indices = @transform_7, window_bounds = array<i64: 4, 128, 256>}, {pipeline_mode = #tpu.pipeline_mode<synchronous>, transform_indices = @transform_8, window_bounds = array<i64: 4, 1, 256>}, {pipeline_mode = #tpu.pipeline_mode<synchronous>, transform_indices = @transform_9, window_bounds = array<i64: 4, 256, 128>}, {pipeline_mode = #tpu.pipeline_mode<synchronous>, transform_indices = @transform_10, window_bounds = array<i64: 4, 1, 128>}, {pipeline_mode = #tpu.pipeline_mode<synchronous>, transform_indices = @transform_11, window_bounds = array<i64: 128, 128>}, {pipeline_mode = #tpu.pipeline_mode<synchronous>, transform_indices = @transform_12, window_bounds = array<i64: 1, 128>}, {transform_indices = @transform_13, window_bounds = array<i64: 32, 128>}]} {
    %c0 = arith.constant 0 : index
    %c0_0 = arith.constant 0 : index
    %0 = vector.load %arg1[%c0, %c0_0] : memref<32x128xbf16, #tpu.memory_space<vmem>>, vector<32x128xbf16>
    %c0_1 = arith.constant 0 : index
    %c0_2 = arith.constant 0 : index
    %1 = vector.load %arg2[%c0_1, %c0_2] : memref<128x128xbf16, #tpu.memory_space<vmem>>, vector<128x128xbf16>
    %cst = arith.constant dense<0.000000e+00> : vector<32x128xf32>
    %2 = tpu.matmul %0, %1, %cst {dimension_numbers = #tpu.dot_dimension_numbers<[1], [0], [0], [1], [0, 0, 1, 1], [], []>} : vector<32x128xbf16>, vector<128x128xbf16>, vector<32x128xf32> -> vector<32x128xf32>
    %3 = tpu.iota {dimensions = array<i32: 1>} : vector<16x16xi32>
    %c9_i32 = arith.constant 9 : i32
    %4 = vector.broadcast %c9_i32 : i32 to vector<16x16xi32>
    %5 = arith.cmpi slt, %3, %4 : vector<16x16xi32>
    %6 = vector.shape_cast %5 : vector<16x16xi1> to vector<1x16x16xi1>
    %cst_3 = arith.constant -1.000000e+30 : f32
    %c0_i32 = arith.constant 0 : i32
    %7 = arith.index_cast %c0_i32 : i32 to index
    %c0_4 = arith.constant 0 : index
    %c0_5 = arith.constant 0 : index
    %8 = vector.load %arg3[%7, %c0_4, %c0_5] : memref<4x1x128xf32, #tpu.memory_space<vmem>>, vector<1x1x128xf32>
    %9 = vector.shape_cast %8 : vector<1x1x128xf32> to vector<1x128xf32>
    %10 = arith.index_cast %c0_i32 : i32 to index
    %c0_6 = arith.constant 0 : index
    %c0_7 = arith.constant 0 : index
    %11 = vector.load %arg4[%10, %c0_6, %c0_7] : memref<4x1x128xf32, #tpu.memory_space<vmem>>, vector<1x1x128xf32>
    %12 = vector.shape_cast %11 : vector<1x1x128xf32> to vector<1x128xf32>
    %cst_8 = arith.constant dense<0.000000e+00> : vector<32xf32>
    %13 = vector.multi_reduction <add>, %2, %cst_8 [1] : vector<32x128xf32> to vector<32xf32>
    %14 = vector.shape_cast %13 : vector<32xf32> to vector<32x1xf32>
    %cst_9 = arith.constant 1.280000e+02 : f32
    %15 = vector.broadcast %cst_9 : f32 to vector<32x1xf32>
    %16 = arith.divf %14, %15 : vector<32x1xf32>
    %17 = vector.broadcast %16 : vector<32x1xf32> to vector<32x128xf32>
    %18 = arith.subf %2, %17 : vector<32x128xf32>
    %19 = arith.mulf %18, %18 : vector<32x128xf32>
    %cst_10 = arith.constant dense<0.000000e+00> : vector<32xf32>
    %20 = vector.multi_reduction <add>, %19, %cst_10 [1] : vector<32x128xf32> to vector<32xf32>
    %21 = vector.shape_cast %20 : vector<32xf32> to vector<32x1xf32>
    %cst_11 = arith.constant 1.280000e+02 : f32
    %22 = vector.broadcast %cst_11 : f32 to vector<32x1xf32>
    %23 = arith.divf %21, %22 : vector<32x1xf32>
    %cst_12 = arith.constant 9.99999974E-6 : f32
    %24 = vector.broadcast %cst_12 : f32 to vector<32x1xf32>
    %25 = arith.addf %23, %24 : vector<32x1xf32>
    %26 = math.rsqrt %25 : vector<32x1xf32>
    %27 = vector.broadcast %26 : vector<32x1xf32> to vector<32x128xf32>
    %28 = arith.mulf %18, %27 : vector<32x128xf32>
    %29 = vector.broadcast %9 : vector<1x128xf32> to vector<32x128xf32>
    %30 = arith.mulf %28, %29 : vector<32x128xf32>
    %31 = vector.broadcast %12 : vector<1x128xf32> to vector<32x128xf32>
    %32 = arith.addf %30, %31 : vector<32x128xf32>
    %33 = arith.truncf %32 : vector<32x128xf32> to vector<32x128xbf16>
    %34 = arith.index_cast %c0_i32 : i32 to index
    %c0_13 = arith.constant 0 : index
    %c0_14 = arith.constant 0 : index
    %35 = vector.load %arg5[%34, %c0_13, %c0_14] : memref<4x128x384xbf16, #tpu.memory_space<vmem>>, vector<1x128x384xbf16>
    %36 = vector.shape_cast %35 : vector<1x128x384xbf16> to vector<128x384xbf16>
    %cst_15 = arith.constant dense<0.000000e+00> : vector<32x384xf32>
    %37 = tpu.matmul %33, %36, %cst_15 {dimension_numbers = #tpu.dot_dimension_numbers<[1], [0], [0], [1], [0, 0, 1, 1], [], []>} : vector<32x128xbf16>, vector<128x384xbf16>, vector<32x384xf32> -> vector<32x384xf32>
    %38 = vector.extract_strided_slice %37 {offsets = [0, 0], sizes = [32, 128], strides = [1, 1]} : vector<32x384xf32> to vector<32x128xf32>
    %39 = vector.shape_cast %38 : vector<32x128xf32> to vector<2x16x128xf32>
    %40 = vector.extract_strided_slice %37 {offsets = [0, 128], sizes = [32, 128], strides = [1, 1]} : vector<32x384xf32> to vector<32x128xf32>
    %41 = vector.shape_cast %40 : vector<32x128xf32> to vector<2x16x128xf32>
    %42 = vector.extract_strided_slice %37 {offsets = [0, 256], sizes = [32, 128], strides = [1, 1]} : vector<32x384xf32> to vector<32x128xf32>
    %43 = vector.shape_cast %42 : vector<32x128xf32> to vector<2x16x128xf32>
    %cst_16 = arith.constant dense<0.000000e+00> : vector<2x16x16xf32>
    %44 = tpu.matmul %39, %41, %cst_16 {dimension_numbers = #tpu.dot_dimension_numbers<[2], [2], [1], [1], [0, 0, 0, 1, 1, 1], [0], [0]>} : vector<2x16x128xf32>, vector<2x16x128xf32>, vector<2x16x16xf32> -> vector<2x16x16xf32>
    %45 = vector.shape_cast %6 : vector<1x16x16xi1> to vector<1x16x16xi1>
    %46 = vector.broadcast %45 : vector<1x16x16xi1> to vector<2x16x16xi1>
    %47 = vector.broadcast %cst_3 : f32 to vector<2x16x16xf32>
    %48 = arith.select %46, %44, %47 : vector<2x16x16xi1>, vector<2x16x16xf32>
    %cst_17 = arith.constant dense<0xFF800000> : vector<2x16xf32>
    %49 = vector.multi_reduction <maximumf>, %48, %cst_17 [2] : vector<2x16x16xf32> to vector<2x16xf32>
    %50 = vector.shape_cast %49 : vector<2x16xf32> to vector<2x16x1xf32>
    %51 = vector.broadcast %50 : vector<2x16x1xf32> to vector<2x16x16xf32>
    %52 = arith.subf %48, %51 : vector<2x16x16xf32>
    %53 = math.exp %52 : vector<2x16x16xf32>
    %cst_18 = arith.constant dense<0.000000e+00> : vector<2x16xf32>
    %54 = vector.multi_reduction <add>, %53, %cst_18 [2] : vector<2x16x16xf32> to vector<2x16xf32>
    %55 = vector.shape_cast %54 : vector<2x16xf32> to vector<2x16x1xf32>
    %56 = tpu.reciprocal %55 {approx = true} : vector<2x16x1xf32> -> vector<2x16x1xf32>
    %57 = vector.broadcast %56 : vector<2x16x1xf32> to vector<2x16x16xf32>
    %58 = arith.mulf %53, %57 : vector<2x16x16xf32>
    %cst_19 = arith.constant dense<0.000000e+00> : vector<2x16x128xf32>
    %59 = tpu.matmul %58, %43, %cst_19 {dimension_numbers = #tpu.dot_dimension_numbers<[2], [1], [1], [2], [0, 0, 0, 1, 1, 2], [0], [0]>} : vector<2x16x16xf32>, vector<2x16x128xf32>, vector<2x16x128xf32> -> vector<2x16x128xf32>
    %60 = vector.shape_cast %59 : vector<2x16x128xf32> to vector<32x128xf32>
    %61 = arith.addf %2, %60 : vector<32x128xf32>
    %62 = arith.index_cast %c0_i32 : i32 to index
    %c0_20 = arith.constant 0 : index
    %c0_21 = arith.constant 0 : index
    %63 = vector.load %arg6[%62, %c0_20, %c0_21] : memref<4x1x128xf32, #tpu.memory_space<vmem>>, vector<1x1x128xf32>
    %64 = vector.shape_cast %63 : vector<1x1x128xf32> to vector<1x128xf32>
    %65 = arith.index_cast %c0_i32 : i32 to index
    %c0_22 = arith.constant 0 : index
    %c0_23 = arith.constant 0 : index
    %66 = vector.load %arg7[%65, %c0_22, %c0_23] : memref<4x1x128xf32, #tpu.memory_space<vmem>>, vector<1x1x128xf32>
    %67 = vector.shape_cast %66 : vector<1x1x128xf32> to vector<1x128xf32>
    %cst_24 = arith.constant dense<0.000000e+00> : vector<32xf32>
    %68 = vector.multi_reduction <add>, %61, %cst_24 [1] : vector<32x128xf32> to vector<32xf32>
    %69 = vector.shape_cast %68 : vector<32xf32> to vector<32x1xf32>
    %cst_25 = arith.constant 1.280000e+02 : f32
    %70 = vector.broadcast %cst_25 : f32 to vector<32x1xf32>
    %71 = arith.divf %69, %70 : vector<32x1xf32>
    %72 = vector.broadcast %71 : vector<32x1xf32> to vector<32x128xf32>
    %73 = arith.subf %61, %72 : vector<32x128xf32>
    %74 = arith.mulf %73, %73 : vector<32x128xf32>
    %cst_26 = arith.constant dense<0.000000e+00> : vector<32xf32>
    %75 = vector.multi_reduction <add>, %74, %cst_26 [1] : vector<32x128xf32> to vector<32xf32>
    %76 = vector.shape_cast %75 : vector<32xf32> to vector<32x1xf32>
    %cst_27 = arith.constant 1.280000e+02 : f32
    %77 = vector.broadcast %cst_27 : f32 to vector<32x1xf32>
    %78 = arith.divf %76, %77 : vector<32x1xf32>
    %cst_28 = arith.constant 9.99999974E-6 : f32
    %79 = vector.broadcast %cst_28 : f32 to vector<32x1xf32>
    %80 = arith.addf %78, %79 : vector<32x1xf32>
    %81 = math.rsqrt %80 : vector<32x1xf32>
    %82 = vector.broadcast %81 : vector<32x1xf32> to vector<32x128xf32>
    %83 = arith.mulf %73, %82 : vector<32x128xf32>
    %84 = vector.broadcast %64 : vector<1x128xf32> to vector<32x128xf32>
    %85 = arith.mulf %83, %84 : vector<32x128xf32>
    %86 = vector.broadcast %67 : vector<1x128xf32> to vector<32x128xf32>
    %87 = arith.addf %85, %86 : vector<32x128xf32>
    %88 = arith.truncf %87 : vector<32x128xf32> to vector<32x128xbf16>
    %89 = arith.index_cast %c0_i32 : i32 to index
    %c0_29 = arith.constant 0 : index
    %c0_30 = arith.constant 0 : index
    %90 = vector.load %arg8[%89, %c0_29, %c0_30] : memref<4x128x256xbf16, #tpu.memory_space<vmem>>, vector<1x128x256xbf16>
    %91 = vector.shape_cast %90 : vector<1x128x256xbf16> to vector<128x256xbf16>
    %cst_31 = arith.constant dense<0.000000e+00> : vector<32x256xf32>
    %92 = tpu.matmul %88, %91, %cst_31 {dimension_numbers = #tpu.dot_dimension_numbers<[1], [0], [0], [1], [0, 0, 1, 1], [], []>} : vector<32x128xbf16>, vector<128x256xbf16>, vector<32x256xf32> -> vector<32x256xf32>
    %93 = arith.index_cast %c0_i32 : i32 to index
    %c0_32 = arith.constant 0 : index
    %c0_33 = arith.constant 0 : index
    %94 = vector.load %arg9[%93, %c0_32, %c0_33] : memref<4x1x256xf32, #tpu.memory_space<vmem>>, vector<1x1x256xf32>
    %95 = vector.shape_cast %94 : vector<1x1x256xf32> to vector<1x256xf32>
    %96 = vector.broadcast %95 : vector<1x256xf32> to vector<32x256xf32>
    %97 = arith.addf %92, %96 : vector<32x256xf32>
    %cst_34 = arith.constant 5.000000e-01 : f32
    %98 = vector.broadcast %cst_34 : f32 to vector<32x256xf32>
    %99 = arith.mulf %98, %97 : vector<32x256xf32>
    %cst_35 = arith.constant 0.707106769 : f32
    %100 = vector.broadcast %cst_35 : f32 to vector<32x256xf32>
    %101 = arith.mulf %97, %100 : vector<32x256xf32>
    %cst_36 = arith.constant 0.000000e+00 : f32
    %102 = vector.broadcast %cst_36 : f32 to vector<32x256xf32>
    %103 = arith.cmpf oge, %101, %102 : vector<32x256xf32>
    %cst_37 = arith.constant 1.000000e+00 : f32
    %cst_38 = arith.constant -1.000000e+00 : f32
    %104 = vector.broadcast %cst_37 : f32 to vector<32x256xf32>
    %105 = vector.broadcast %cst_38 : f32 to vector<32x256xf32>
    %106 = arith.select %103, %104, %105 : vector<32x256xi1>, vector<32x256xf32>
    %107 = math.absf %101 : vector<32x256xf32>
    %cst_39 = arith.constant 0.327591091 : f32
    %108 = vector.broadcast %cst_39 : f32 to vector<32x256xf32>
    %109 = arith.mulf %108, %107 : vector<32x256xf32>
    %cst_40 = arith.constant 1.000000e+00 : f32
    %110 = vector.broadcast %cst_40 : f32 to vector<32x256xf32>
    %111 = arith.addf %110, %109 : vector<32x256xf32>
    %cst_41 = arith.constant 1.000000e+00 : f32
    %112 = vector.broadcast %cst_41 : f32 to vector<32x256xf32>
    %113 = arith.divf %112, %111 : vector<32x256xf32>
    %cst_42 = arith.constant 1.06140542 : f32
    %114 = vector.broadcast %cst_42 : f32 to vector<32x256xf32>
    %115 = arith.mulf %114, %113 : vector<32x256xf32>
    %cst_43 = arith.constant -1.45315206 : f32
    %116 = vector.broadcast %cst_43 : f32 to vector<32x256xf32>
    %117 = arith.addf %115, %116 : vector<32x256xf32>
    %118 = arith.mulf %117, %113 : vector<32x256xf32>
    %cst_44 = arith.constant 1.42141378 : f32
    %119 = vector.broadcast %cst_44 : f32 to vector<32x256xf32>
    %120 = arith.addf %118, %119 : vector<32x256xf32>
    %121 = arith.mulf %120, %113 : vector<32x256xf32>
    %cst_45 = arith.constant -0.284496725 : f32
    %122 = vector.broadcast %cst_45 : f32 to vector<32x256xf32>
    %123 = arith.addf %121, %122 : vector<32x256xf32>
    %124 = arith.mulf %123, %113 : vector<32x256xf32>
    %cst_46 = arith.constant 0.254829586 : f32
    %125 = vector.broadcast %cst_46 : f32 to vector<32x256xf32>
    %126 = arith.addf %124, %125 : vector<32x256xf32>
    %127 = arith.mulf %126, %113 : vector<32x256xf32>
    %cst_47 = arith.constant 0.000000e+00 : f32
    %128 = vector.broadcast %cst_47 : f32 to vector<32x256xf32>
    %129 = arith.subf %128, %107 : vector<32x256xf32>
    %130 = arith.mulf %129, %107 : vector<32x256xf32>
    %131 = math.exp %130 : vector<32x256xf32>
    %132 = arith.mulf %127, %131 : vector<32x256xf32>
    %cst_48 = arith.constant 1.000000e+00 : f32
    %133 = vector.broadcast %cst_48 : f32 to vector<32x256xf32>
    %134 = arith.subf %133, %132 : vector<32x256xf32>
    %135 = arith.mulf %106, %134 : vector<32x256xf32>
    %cst_49 = arith.constant 1.000000e+00 : f32
    %136 = vector.broadcast %cst_49 : f32 to vector<32x256xf32>
    %137 = arith.addf %136, %135 : vector<32x256xf32>
    %138 = arith.mulf %99, %137 : vector<32x256xf32>
    %139 = arith.truncf %138 : vector<32x256xf32> to vector<32x256xbf16>
    %140 = arith.index_cast %c0_i32 : i32 to index
    %c0_50 = arith.constant 0 : index
    %c0_51 = arith.constant 0 : index
    %141 = vector.load %arg10[%140, %c0_50, %c0_51] : memref<4x256x128xbf16, #tpu.memory_space<vmem>>, vector<1x256x128xbf16>
    %142 = vector.shape_cast %141 : vector<1x256x128xbf16> to vector<256x128xbf16>
    %cst_52 = arith.constant dense<0.000000e+00> : vector<32x128xf32>
    %143 = tpu.matmul %139, %142, %cst_52 {dimension_numbers = #tpu.dot_dimension_numbers<[1], [0], [0], [1], [0, 0, 1, 1], [], []>} : vector<32x256xbf16>, vector<256x128xbf16>, vector<32x128xf32> -> vector<32x128xf32>
    %144 = arith.index_cast %c0_i32 : i32 to index
    %c0_53 = arith.constant 0 : index
    %c0_54 = arith.constant 0 : index
    %145 = vector.load %arg11[%144, %c0_53, %c0_54] : memref<4x1x128xf32, #tpu.memory_space<vmem>>, vector<1x1x128xf32>
    %146 = vector.shape_cast %145 : vector<1x1x128xf32> to vector<1x128xf32>
    %147 = vector.broadcast %146 : vector<1x128xf32> to vector<32x128xf32>
    %148 = arith.addf %143, %147 : vector<32x128xf32>
    %149 = arith.addf %61, %148 : vector<32x128xf32>
    %c1_i32 = arith.constant 1 : i32
    %150 = arith.index_cast %c1_i32 : i32 to index
    %c0_55 = arith.constant 0 : index
    %c0_56 = arith.constant 0 : index
    %151 = vector.load %arg3[%150, %c0_55, %c0_56] : memref<4x1x128xf32, #tpu.memory_space<vmem>>, vector<1x1x128xf32>
    %152 = vector.shape_cast %151 : vector<1x1x128xf32> to vector<1x128xf32>
    %153 = arith.index_cast %c1_i32 : i32 to index
    %c0_57 = arith.constant 0 : index
    %c0_58 = arith.constant 0 : index
    %154 = vector.load %arg4[%153, %c0_57, %c0_58] : memref<4x1x128xf32, #tpu.memory_space<vmem>>, vector<1x1x128xf32>
    %155 = vector.shape_cast %154 : vector<1x1x128xf32> to vector<1x128xf32>
    %cst_59 = arith.constant dense<0.000000e+00> : vector<32xf32>
    %156 = vector.multi_reduction <add>, %149, %cst_59 [1] : vector<32x128xf32> to vector<32xf32>
    %157 = vector.shape_cast %156 : vector<32xf32> to vector<32x1xf32>
    %cst_60 = arith.constant 1.280000e+02 : f32
    %158 = vector.broadcast %cst_60 : f32 to vector<32x1xf32>
    %159 = arith.divf %157, %158 : vector<32x1xf32>
    %160 = vector.broadcast %159 : vector<32x1xf32> to vector<32x128xf32>
    %161 = arith.subf %149, %160 : vector<32x128xf32>
    %162 = arith.mulf %161, %161 : vector<32x128xf32>
    %cst_61 = arith.constant dense<0.000000e+00> : vector<32xf32>
    %163 = vector.multi_reduction <add>, %162, %cst_61 [1] : vector<32x128xf32> to vector<32xf32>
    %164 = vector.shape_cast %163 : vector<32xf32> to vector<32x1xf32>
    %cst_62 = arith.constant 1.280000e+02 : f32
    %165 = vector.broadcast %cst_62 : f32 to vector<32x1xf32>
    %166 = arith.divf %164, %165 : vector<32x1xf32>
    %cst_63 = arith.constant 9.99999974E-6 : f32
    %167 = vector.broadcast %cst_63 : f32 to vector<32x1xf32>
    %168 = arith.addf %166, %167 : vector<32x1xf32>
    %169 = math.rsqrt %168 : vector<32x1xf32>
    %170 = vector.broadcast %169 : vector<32x1xf32> to vector<32x128xf32>
    %171 = arith.mulf %161, %170 : vector<32x128xf32>
    %172 = vector.broadcast %152 : vector<1x128xf32> to vector<32x128xf32>
    %173 = arith.mulf %171, %172 : vector<32x128xf32>
    %174 = vector.broadcast %155 : vector<1x128xf32> to vector<32x128xf32>
    %175 = arith.addf %173, %174 : vector<32x128xf32>
    %176 = arith.truncf %175 : vector<32x128xf32> to vector<32x128xbf16>
    %177 = arith.index_cast %c1_i32 : i32 to index
    %c0_64 = arith.constant 0 : index
    %c0_65 = arith.constant 0 : index
    %178 = vector.load %arg5[%177, %c0_64, %c0_65] : memref<4x128x384xbf16, #tpu.memory_space<vmem>>, vector<1x128x384xbf16>
    %179 = vector.shape_cast %178 : vector<1x128x384xbf16> to vector<128x384xbf16>
    %cst_66 = arith.constant dense<0.000000e+00> : vector<32x384xf32>
    %180 = tpu.matmul %176, %179, %cst_66 {dimension_numbers = #tpu.dot_dimension_numbers<[1], [0], [0], [1], [0, 0, 1, 1], [], []>} : vector<32x128xbf16>, vector<128x384xbf16>, vector<32x384xf32> -> vector<32x384xf32>
    %181 = vector.extract_strided_slice %180 {offsets = [0, 0], sizes = [32, 128], strides = [1, 1]} : vector<32x384xf32> to vector<32x128xf32>
    %182 = vector.shape_cast %181 : vector<32x128xf32> to vector<2x16x128xf32>
    %183 = vector.extract_strided_slice %180 {offsets = [0, 128], sizes = [32, 128], strides = [1, 1]} : vector<32x384xf32> to vector<32x128xf32>
    %184 = vector.shape_cast %183 : vector<32x128xf32> to vector<2x16x128xf32>
    %185 = vector.extract_strided_slice %180 {offsets = [0, 256], sizes = [32, 128], strides = [1, 1]} : vector<32x384xf32> to vector<32x128xf32>
    %186 = vector.shape_cast %185 : vector<32x128xf32> to vector<2x16x128xf32>
    %cst_67 = arith.constant dense<0.000000e+00> : vector<2x16x16xf32>
    %187 = tpu.matmul %182, %184, %cst_67 {dimension_numbers = #tpu.dot_dimension_numbers<[2], [2], [1], [1], [0, 0, 0, 1, 1, 1], [0], [0]>} : vector<2x16x128xf32>, vector<2x16x128xf32>, vector<2x16x16xf32> -> vector<2x16x16xf32>
    %188 = vector.shape_cast %6 : vector<1x16x16xi1> to vector<1x16x16xi1>
    %189 = vector.broadcast %188 : vector<1x16x16xi1> to vector<2x16x16xi1>
    %190 = vector.broadcast %cst_3 : f32 to vector<2x16x16xf32>
    %191 = arith.select %189, %187, %190 : vector<2x16x16xi1>, vector<2x16x16xf32>
    %cst_68 = arith.constant dense<0xFF800000> : vector<2x16xf32>
    %192 = vector.multi_reduction <maximumf>, %191, %cst_68 [2] : vector<2x16x16xf32> to vector<2x16xf32>
    %193 = vector.shape_cast %192 : vector<2x16xf32> to vector<2x16x1xf32>
    %194 = vector.broadcast %193 : vector<2x16x1xf32> to vector<2x16x16xf32>
    %195 = arith.subf %191, %194 : vector<2x16x16xf32>
    %196 = math.exp %195 : vector<2x16x16xf32>
    %cst_69 = arith.constant dense<0.000000e+00> : vector<2x16xf32>
    %197 = vector.multi_reduction <add>, %196, %cst_69 [2] : vector<2x16x16xf32> to vector<2x16xf32>
    %198 = vector.shape_cast %197 : vector<2x16xf32> to vector<2x16x1xf32>
    %199 = tpu.reciprocal %198 {approx = true} : vector<2x16x1xf32> -> vector<2x16x1xf32>
    %200 = vector.broadcast %199 : vector<2x16x1xf32> to vector<2x16x16xf32>
    %201 = arith.mulf %196, %200 : vector<2x16x16xf32>
    %cst_70 = arith.constant dense<0.000000e+00> : vector<2x16x128xf32>
    %202 = tpu.matmul %201, %186, %cst_70 {dimension_numbers = #tpu.dot_dimension_numbers<[2], [1], [1], [2], [0, 0, 0, 1, 1, 2], [0], [0]>} : vector<2x16x16xf32>, vector<2x16x128xf32>, vector<2x16x128xf32> -> vector<2x16x128xf32>
    %203 = vector.shape_cast %202 : vector<2x16x128xf32> to vector<32x128xf32>
    %204 = arith.addf %149, %203 : vector<32x128xf32>
    %205 = arith.index_cast %c1_i32 : i32 to index
    %c0_71 = arith.constant 0 : index
    %c0_72 = arith.constant 0 : index
    %206 = vector.load %arg6[%205, %c0_71, %c0_72] : memref<4x1x128xf32, #tpu.memory_space<vmem>>, vector<1x1x128xf32>
    %207 = vector.shape_cast %206 : vector<1x1x128xf32> to vector<1x128xf32>
    %208 = arith.index_cast %c1_i32 : i32 to index
    %c0_73 = arith.constant 0 : index
    %c0_74 = arith.constant 0 : index
    %209 = vector.load %arg7[%208, %c0_73, %c0_74] : memref<4x1x128xf32, #tpu.memory_space<vmem>>, vector<1x1x128xf32>
    %210 = vector.shape_cast %209 : vector<1x1x128xf32> to vector<1x128xf32>
    %cst_75 = arith.constant dense<0.000000e+00> : vector<32xf32>
    %211 = vector.multi_reduction <add>, %204, %cst_75 [1] : vector<32x128xf32> to vector<32xf32>
    %212 = vector.shape_cast %211 : vector<32xf32> to vector<32x1xf32>
    %cst_76 = arith.constant 1.280000e+02 : f32
    %213 = vector.broadcast %cst_76 : f32 to vector<32x1xf32>
    %214 = arith.divf %212, %213 : vector<32x1xf32>
    %215 = vector.broadcast %214 : vector<32x1xf32> to vector<32x128xf32>
    %216 = arith.subf %204, %215 : vector<32x128xf32>
    %217 = arith.mulf %216, %216 : vector<32x128xf32>
    %cst_77 = arith.constant dense<0.000000e+00> : vector<32xf32>
    %218 = vector.multi_reduction <add>, %217, %cst_77 [1] : vector<32x128xf32> to vector<32xf32>
    %219 = vector.shape_cast %218 : vector<32xf32> to vector<32x1xf32>
    %cst_78 = arith.constant 1.280000e+02 : f32
    %220 = vector.broadcast %cst_78 : f32 to vector<32x1xf32>
    %221 = arith.divf %219, %220 : vector<32x1xf32>
    %cst_79 = arith.constant 9.99999974E-6 : f32
    %222 = vector.broadcast %cst_79 : f32 to vector<32x1xf32>
    %223 = arith.addf %221, %222 : vector<32x1xf32>
    %224 = math.rsqrt %223 : vector<32x1xf32>
    %225 = vector.broadcast %224 : vector<32x1xf32> to vector<32x128xf32>
    %226 = arith.mulf %216, %225 : vector<32x128xf32>
    %227 = vector.broadcast %207 : vector<1x128xf32> to vector<32x128xf32>
    %228 = arith.mulf %226, %227 : vector<32x128xf32>
    %229 = vector.broadcast %210 : vector<1x128xf32> to vector<32x128xf32>
    %230 = arith.addf %228, %229 : vector<32x128xf32>
    %231 = arith.truncf %230 : vector<32x128xf32> to vector<32x128xbf16>
    %232 = arith.index_cast %c1_i32 : i32 to index
    %c0_80 = arith.constant 0 : index
    %c0_81 = arith.constant 0 : index
    %233 = vector.load %arg8[%232, %c0_80, %c0_81] : memref<4x128x256xbf16, #tpu.memory_space<vmem>>, vector<1x128x256xbf16>
    %234 = vector.shape_cast %233 : vector<1x128x256xbf16> to vector<128x256xbf16>
    %cst_82 = arith.constant dense<0.000000e+00> : vector<32x256xf32>
    %235 = tpu.matmul %231, %234, %cst_82 {dimension_numbers = #tpu.dot_dimension_numbers<[1], [0], [0], [1], [0, 0, 1, 1], [], []>} : vector<32x128xbf16>, vector<128x256xbf16>, vector<32x256xf32> -> vector<32x256xf32>
    %236 = arith.index_cast %c1_i32 : i32 to index
    %c0_83 = arith.constant 0 : index
    %c0_84 = arith.constant 0 : index
    %237 = vector.load %arg9[%236, %c0_83, %c0_84] : memref<4x1x256xf32, #tpu.memory_space<vmem>>, vector<1x1x256xf32>
    %238 = vector.shape_cast %237 : vector<1x1x256xf32> to vector<1x256xf32>
    %239 = vector.broadcast %238 : vector<1x256xf32> to vector<32x256xf32>
    %240 = arith.addf %235, %239 : vector<32x256xf32>
    %cst_85 = arith.constant 5.000000e-01 : f32
    %241 = vector.broadcast %cst_85 : f32 to vector<32x256xf32>
    %242 = arith.mulf %241, %240 : vector<32x256xf32>
    %cst_86 = arith.constant 0.707106769 : f32
    %243 = vector.broadcast %cst_86 : f32 to vector<32x256xf32>
    %244 = arith.mulf %240, %243 : vector<32x256xf32>
    %cst_87 = arith.constant 0.000000e+00 : f32
    %245 = vector.broadcast %cst_87 : f32 to vector<32x256xf32>
    %246 = arith.cmpf oge, %244, %245 : vector<32x256xf32>
    %cst_88 = arith.constant 1.000000e+00 : f32
    %cst_89 = arith.constant -1.000000e+00 : f32
    %247 = vector.broadcast %cst_88 : f32 to vector<32x256xf32>
    %248 = vector.broadcast %cst_89 : f32 to vector<32x256xf32>
    %249 = arith.select %246, %247, %248 : vector<32x256xi1>, vector<32x256xf32>
    %250 = math.absf %244 : vector<32x256xf32>
    %cst_90 = arith.constant 0.327591091 : f32
    %251 = vector.broadcast %cst_90 : f32 to vector<32x256xf32>
    %252 = arith.mulf %251, %250 : vector<32x256xf32>
    %cst_91 = arith.constant 1.000000e+00 : f32
    %253 = vector.broadcast %cst_91 : f32 to vector<32x256xf32>
    %254 = arith.addf %253, %252 : vector<32x256xf32>
    %cst_92 = arith.constant 1.000000e+00 : f32
    %255 = vector.broadcast %cst_92 : f32 to vector<32x256xf32>
    %256 = arith.divf %255, %254 : vector<32x256xf32>
    %cst_93 = arith.constant 1.06140542 : f32
    %257 = vector.broadcast %cst_93 : f32 to vector<32x256xf32>
    %258 = arith.mulf %257, %256 : vector<32x256xf32>
    %cst_94 = arith.constant -1.45315206 : f32
    %259 = vector.broadcast %cst_94 : f32 to vector<32x256xf32>
    %260 = arith.addf %258, %259 : vector<32x256xf32>
    %261 = arith.mulf %260, %256 : vector<32x256xf32>
    %cst_95 = arith.constant 1.42141378 : f32
    %262 = vector.broadcast %cst_95 : f32 to vector<32x256xf32>
    %263 = arith.addf %261, %262 : vector<32x256xf32>
    %264 = arith.mulf %263, %256 : vector<32x256xf32>
    %cst_96 = arith.constant -0.284496725 : f32
    %265 = vector.broadcast %cst_96 : f32 to vector<32x256xf32>
    %266 = arith.addf %264, %265 : vector<32x256xf32>
    %267 = arith.mulf %266, %256 : vector<32x256xf32>
    %cst_97 = arith.constant 0.254829586 : f32
    %268 = vector.broadcast %cst_97 : f32 to vector<32x256xf32>
    %269 = arith.addf %267, %268 : vector<32x256xf32>
    %270 = arith.mulf %269, %256 : vector<32x256xf32>
    %cst_98 = arith.constant 0.000000e+00 : f32
    %271 = vector.broadcast %cst_98 : f32 to vector<32x256xf32>
    %272 = arith.subf %271, %250 : vector<32x256xf32>
    %273 = arith.mulf %272, %250 : vector<32x256xf32>
    %274 = math.exp %273 : vector<32x256xf32>
    %275 = arith.mulf %270, %274 : vector<32x256xf32>
    %cst_99 = arith.constant 1.000000e+00 : f32
    %276 = vector.broadcast %cst_99 : f32 to vector<32x256xf32>
    %277 = arith.subf %276, %275 : vector<32x256xf32>
    %278 = arith.mulf %249, %277 : vector<32x256xf32>
    %cst_100 = arith.constant 1.000000e+00 : f32
    %279 = vector.broadcast %cst_100 : f32 to vector<32x256xf32>
    %280 = arith.addf %279, %278 : vector<32x256xf32>
    %281 = arith.mulf %242, %280 : vector<32x256xf32>
    %282 = arith.truncf %281 : vector<32x256xf32> to vector<32x256xbf16>
    %283 = arith.index_cast %c1_i32 : i32 to index
    %c0_101 = arith.constant 0 : index
    %c0_102 = arith.constant 0 : index
    %284 = vector.load %arg10[%283, %c0_101, %c0_102] : memref<4x256x128xbf16, #tpu.memory_space<vmem>>, vector<1x256x128xbf16>
    %285 = vector.shape_cast %284 : vector<1x256x128xbf16> to vector<256x128xbf16>
    %cst_103 = arith.constant dense<0.000000e+00> : vector<32x128xf32>
    %286 = tpu.matmul %282, %285, %cst_103 {dimension_numbers = #tpu.dot_dimension_numbers<[1], [0], [0], [1], [0, 0, 1, 1], [], []>} : vector<32x256xbf16>, vector<256x128xbf16>, vector<32x128xf32> -> vector<32x128xf32>
    %287 = arith.index_cast %c1_i32 : i32 to index
    %c0_104 = arith.constant 0 : index
    %c0_105 = arith.constant 0 : index
    %288 = vector.load %arg11[%287, %c0_104, %c0_105] : memref<4x1x128xf32, #tpu.memory_space<vmem>>, vector<1x1x128xf32>
    %289 = vector.shape_cast %288 : vector<1x1x128xf32> to vector<1x128xf32>
    %290 = vector.broadcast %289 : vector<1x128xf32> to vector<32x128xf32>
    %291 = arith.addf %286, %290 : vector<32x128xf32>
    %292 = arith.addf %204, %291 : vector<32x128xf32>
    %c2_i32 = arith.constant 2 : i32
    %293 = arith.index_cast %c2_i32 : i32 to index
    %c0_106 = arith.constant 0 : index
    %c0_107 = arith.constant 0 : index
    %294 = vector.load %arg3[%293, %c0_106, %c0_107] : memref<4x1x128xf32, #tpu.memory_space<vmem>>, vector<1x1x128xf32>
    %295 = vector.shape_cast %294 : vector<1x1x128xf32> to vector<1x128xf32>
    %296 = arith.index_cast %c2_i32 : i32 to index
    %c0_108 = arith.constant 0 : index
    %c0_109 = arith.constant 0 : index
    %297 = vector.load %arg4[%296, %c0_108, %c0_109] : memref<4x1x128xf32, #tpu.memory_space<vmem>>, vector<1x1x128xf32>
    %298 = vector.shape_cast %297 : vector<1x1x128xf32> to vector<1x128xf32>
    %cst_110 = arith.constant dense<0.000000e+00> : vector<32xf32>
    %299 = vector.multi_reduction <add>, %292, %cst_110 [1] : vector<32x128xf32> to vector<32xf32>
    %300 = vector.shape_cast %299 : vector<32xf32> to vector<32x1xf32>
    %cst_111 = arith.constant 1.280000e+02 : f32
    %301 = vector.broadcast %cst_111 : f32 to vector<32x1xf32>
    %302 = arith.divf %300, %301 : vector<32x1xf32>
    %303 = vector.broadcast %302 : vector<32x1xf32> to vector<32x128xf32>
    %304 = arith.subf %292, %303 : vector<32x128xf32>
    %305 = arith.mulf %304, %304 : vector<32x128xf32>
    %cst_112 = arith.constant dense<0.000000e+00> : vector<32xf32>
    %306 = vector.multi_reduction <add>, %305, %cst_112 [1] : vector<32x128xf32> to vector<32xf32>
    %307 = vector.shape_cast %306 : vector<32xf32> to vector<32x1xf32>
    %cst_113 = arith.constant 1.280000e+02 : f32
    %308 = vector.broadcast %cst_113 : f32 to vector<32x1xf32>
    %309 = arith.divf %307, %308 : vector<32x1xf32>
    %cst_114 = arith.constant 9.99999974E-6 : f32
    %310 = vector.broadcast %cst_114 : f32 to vector<32x1xf32>
    %311 = arith.addf %309, %310 : vector<32x1xf32>
    %312 = math.rsqrt %311 : vector<32x1xf32>
    %313 = vector.broadcast %312 : vector<32x1xf32> to vector<32x128xf32>
    %314 = arith.mulf %304, %313 : vector<32x128xf32>
    %315 = vector.broadcast %295 : vector<1x128xf32> to vector<32x128xf32>
    %316 = arith.mulf %314, %315 : vector<32x128xf32>
    %317 = vector.broadcast %298 : vector<1x128xf32> to vector<32x128xf32>
    %318 = arith.addf %316, %317 : vector<32x128xf32>
    %319 = arith.truncf %318 : vector<32x128xf32> to vector<32x128xbf16>
    %320 = arith.index_cast %c2_i32 : i32 to index
    %c0_115 = arith.constant 0 : index
    %c0_116 = arith.constant 0 : index
    %321 = vector.load %arg5[%320, %c0_115, %c0_116] : memref<4x128x384xbf16, #tpu.memory_space<vmem>>, vector<1x128x384xbf16>
    %322 = vector.shape_cast %321 : vector<1x128x384xbf16> to vector<128x384xbf16>
    %cst_117 = arith.constant dense<0.000000e+00> : vector<32x384xf32>
    %323 = tpu.matmul %319, %322, %cst_117 {dimension_numbers = #tpu.dot_dimension_numbers<[1], [0], [0], [1], [0, 0, 1, 1], [], []>} : vector<32x128xbf16>, vector<128x384xbf16>, vector<32x384xf32> -> vector<32x384xf32>
    %324 = vector.extract_strided_slice %323 {offsets = [0, 0], sizes = [32, 128], strides = [1, 1]} : vector<32x384xf32> to vector<32x128xf32>
    %325 = vector.shape_cast %324 : vector<32x128xf32> to vector<2x16x128xf32>
    %326 = vector.extract_strided_slice %323 {offsets = [0, 128], sizes = [32, 128], strides = [1, 1]} : vector<32x384xf32> to vector<32x128xf32>
    %327 = vector.shape_cast %326 : vector<32x128xf32> to vector<2x16x128xf32>
    %328 = vector.extract_strided_slice %323 {offsets = [0, 256], sizes = [32, 128], strides = [1, 1]} : vector<32x384xf32> to vector<32x128xf32>
    %329 = vector.shape_cast %328 : vector<32x128xf32> to vector<2x16x128xf32>
    %cst_118 = arith.constant dense<0.000000e+00> : vector<2x16x16xf32>
    %330 = tpu.matmul %325, %327, %cst_118 {dimension_numbers = #tpu.dot_dimension_numbers<[2], [2], [1], [1], [0, 0, 0, 1, 1, 1], [0], [0]>} : vector<2x16x128xf32>, vector<2x16x128xf32>, vector<2x16x16xf32> -> vector<2x16x16xf32>
    %331 = vector.shape_cast %6 : vector<1x16x16xi1> to vector<1x16x16xi1>
    %332 = vector.broadcast %331 : vector<1x16x16xi1> to vector<2x16x16xi1>
    %333 = vector.broadcast %cst_3 : f32 to vector<2x16x16xf32>
    %334 = arith.select %332, %330, %333 : vector<2x16x16xi1>, vector<2x16x16xf32>
    %cst_119 = arith.constant dense<0xFF800000> : vector<2x16xf32>
    %335 = vector.multi_reduction <maximumf>, %334, %cst_119 [2] : vector<2x16x16xf32> to vector<2x16xf32>
    %336 = vector.shape_cast %335 : vector<2x16xf32> to vector<2x16x1xf32>
    %337 = vector.broadcast %336 : vector<2x16x1xf32> to vector<2x16x16xf32>
    %338 = arith.subf %334, %337 : vector<2x16x16xf32>
    %339 = math.exp %338 : vector<2x16x16xf32>
    %cst_120 = arith.constant dense<0.000000e+00> : vector<2x16xf32>
    %340 = vector.multi_reduction <add>, %339, %cst_120 [2] : vector<2x16x16xf32> to vector<2x16xf32>
    %341 = vector.shape_cast %340 : vector<2x16xf32> to vector<2x16x1xf32>
    %342 = tpu.reciprocal %341 {approx = true} : vector<2x16x1xf32> -> vector<2x16x1xf32>
    %343 = vector.broadcast %342 : vector<2x16x1xf32> to vector<2x16x16xf32>
    %344 = arith.mulf %339, %343 : vector<2x16x16xf32>
    %cst_121 = arith.constant dense<0.000000e+00> : vector<2x16x128xf32>
    %345 = tpu.matmul %344, %329, %cst_121 {dimension_numbers = #tpu.dot_dimension_numbers<[2], [1], [1], [2], [0, 0, 0, 1, 1, 2], [0], [0]>} : vector<2x16x16xf32>, vector<2x16x128xf32>, vector<2x16x128xf32> -> vector<2x16x128xf32>
    %346 = vector.shape_cast %345 : vector<2x16x128xf32> to vector<32x128xf32>
    %347 = arith.addf %292, %346 : vector<32x128xf32>
    %348 = arith.index_cast %c2_i32 : i32 to index
    %c0_122 = arith.constant 0 : index
    %c0_123 = arith.constant 0 : index
    %349 = vector.load %arg6[%348, %c0_122, %c0_123] : memref<4x1x128xf32, #tpu.memory_space<vmem>>, vector<1x1x128xf32>
    %350 = vector.shape_cast %349 : vector<1x1x128xf32> to vector<1x128xf32>
    %351 = arith.index_cast %c2_i32 : i32 to index
    %c0_124 = arith.constant 0 : index
    %c0_125 = arith.constant 0 : index
    %352 = vector.load %arg7[%351, %c0_124, %c0_125] : memref<4x1x128xf32, #tpu.memory_space<vmem>>, vector<1x1x128xf32>
    %353 = vector.shape_cast %352 : vector<1x1x128xf32> to vector<1x128xf32>
    %cst_126 = arith.constant dense<0.000000e+00> : vector<32xf32>
    %354 = vector.multi_reduction <add>, %347, %cst_126 [1] : vector<32x128xf32> to vector<32xf32>
    %355 = vector.shape_cast %354 : vector<32xf32> to vector<32x1xf32>
    %cst_127 = arith.constant 1.280000e+02 : f32
    %356 = vector.broadcast %cst_127 : f32 to vector<32x1xf32>
    %357 = arith.divf %355, %356 : vector<32x1xf32>
    %358 = vector.broadcast %357 : vector<32x1xf32> to vector<32x128xf32>
    %359 = arith.subf %347, %358 : vector<32x128xf32>
    %360 = arith.mulf %359, %359 : vector<32x128xf32>
    %cst_128 = arith.constant dense<0.000000e+00> : vector<32xf32>
    %361 = vector.multi_reduction <add>, %360, %cst_128 [1] : vector<32x128xf32> to vector<32xf32>
    %362 = vector.shape_cast %361 : vector<32xf32> to vector<32x1xf32>
    %cst_129 = arith.constant 1.280000e+02 : f32
    %363 = vector.broadcast %cst_129 : f32 to vector<32x1xf32>
    %364 = arith.divf %362, %363 : vector<32x1xf32>
    %cst_130 = arith.constant 9.99999974E-6 : f32
    %365 = vector.broadcast %cst_130 : f32 to vector<32x1xf32>
    %366 = arith.addf %364, %365 : vector<32x1xf32>
    %367 = math.rsqrt %366 : vector<32x1xf32>
    %368 = vector.broadcast %367 : vector<32x1xf32> to vector<32x128xf32>
    %369 = arith.mulf %359, %368 : vector<32x128xf32>
    %370 = vector.broadcast %350 : vector<1x128xf32> to vector<32x128xf32>
    %371 = arith.mulf %369, %370 : vector<32x128xf32>
    %372 = vector.broadcast %353 : vector<1x128xf32> to vector<32x128xf32>
    %373 = arith.addf %371, %372 : vector<32x128xf32>
    %374 = arith.truncf %373 : vector<32x128xf32> to vector<32x128xbf16>
    %375 = arith.index_cast %c2_i32 : i32 to index
    %c0_131 = arith.constant 0 : index
    %c0_132 = arith.constant 0 : index
    %376 = vector.load %arg8[%375, %c0_131, %c0_132] : memref<4x128x256xbf16, #tpu.memory_space<vmem>>, vector<1x128x256xbf16>
    %377 = vector.shape_cast %376 : vector<1x128x256xbf16> to vector<128x256xbf16>
    %cst_133 = arith.constant dense<0.000000e+00> : vector<32x256xf32>
    %378 = tpu.matmul %374, %377, %cst_133 {dimension_numbers = #tpu.dot_dimension_numbers<[1], [0], [0], [1], [0, 0, 1, 1], [], []>} : vector<32x128xbf16>, vector<128x256xbf16>, vector<32x256xf32> -> vector<32x256xf32>
    %379 = arith.index_cast %c2_i32 : i32 to index
    %c0_134 = arith.constant 0 : index
    %c0_135 = arith.constant 0 : index
    %380 = vector.load %arg9[%379, %c0_134, %c0_135] : memref<4x1x256xf32, #tpu.memory_space<vmem>>, vector<1x1x256xf32>
    %381 = vector.shape_cast %380 : vector<1x1x256xf32> to vector<1x256xf32>
    %382 = vector.broadcast %381 : vector<1x256xf32> to vector<32x256xf32>
    %383 = arith.addf %378, %382 : vector<32x256xf32>
    %cst_136 = arith.constant 5.000000e-01 : f32
    %384 = vector.broadcast %cst_136 : f32 to vector<32x256xf32>
    %385 = arith.mulf %384, %383 : vector<32x256xf32>
    %cst_137 = arith.constant 0.707106769 : f32
    %386 = vector.broadcast %cst_137 : f32 to vector<32x256xf32>
    %387 = arith.mulf %383, %386 : vector<32x256xf32>
    %cst_138 = arith.constant 0.000000e+00 : f32
    %388 = vector.broadcast %cst_138 : f32 to vector<32x256xf32>
    %389 = arith.cmpf oge, %387, %388 : vector<32x256xf32>
    %cst_139 = arith.constant 1.000000e+00 : f32
    %cst_140 = arith.constant -1.000000e+00 : f32
    %390 = vector.broadcast %cst_139 : f32 to vector<32x256xf32>
    %391 = vector.broadcast %cst_140 : f32 to vector<32x256xf32>
    %392 = arith.select %389, %390, %391 : vector<32x256xi1>, vector<32x256xf32>
    %393 = math.absf %387 : vector<32x256xf32>
    %cst_141 = arith.constant 0.327591091 : f32
    %394 = vector.broadcast %cst_141 : f32 to vector<32x256xf32>
    %395 = arith.mulf %394, %393 : vector<32x256xf32>
    %cst_142 = arith.constant 1.000000e+00 : f32
    %396 = vector.broadcast %cst_142 : f32 to vector<32x256xf32>
    %397 = arith.addf %396, %395 : vector<32x256xf32>
    %cst_143 = arith.constant 1.000000e+00 : f32
    %398 = vector.broadcast %cst_143 : f32 to vector<32x256xf32>
    %399 = arith.divf %398, %397 : vector<32x256xf32>
    %cst_144 = arith.constant 1.06140542 : f32
    %400 = vector.broadcast %cst_144 : f32 to vector<32x256xf32>
    %401 = arith.mulf %400, %399 : vector<32x256xf32>
    %cst_145 = arith.constant -1.45315206 : f32
    %402 = vector.broadcast %cst_145 : f32 to vector<32x256xf32>
    %403 = arith.addf %401, %402 : vector<32x256xf32>
    %404 = arith.mulf %403, %399 : vector<32x256xf32>
    %cst_146 = arith.constant 1.42141378 : f32
    %405 = vector.broadcast %cst_146 : f32 to vector<32x256xf32>
    %406 = arith.addf %404, %405 : vector<32x256xf32>
    %407 = arith.mulf %406, %399 : vector<32x256xf32>
    %cst_147 = arith.constant -0.284496725 : f32
    %408 = vector.broadcast %cst_147 : f32 to vector<32x256xf32>
    %409 = arith.addf %407, %408 : vector<32x256xf32>
    %410 = arith.mulf %409, %399 : vector<32x256xf32>
    %cst_148 = arith.constant 0.254829586 : f32
    %411 = vector.broadcast %cst_148 : f32 to vector<32x256xf32>
    %412 = arith.addf %410, %411 : vector<32x256xf32>
    %413 = arith.mulf %412, %399 : vector<32x256xf32>
    %cst_149 = arith.constant 0.000000e+00 : f32
    %414 = vector.broadcast %cst_149 : f32 to vector<32x256xf32>
    %415 = arith.subf %414, %393 : vector<32x256xf32>
    %416 = arith.mulf %415, %393 : vector<32x256xf32>
    %417 = math.exp %416 : vector<32x256xf32>
    %418 = arith.mulf %413, %417 : vector<32x256xf32>
    %cst_150 = arith.constant 1.000000e+00 : f32
    %419 = vector.broadcast %cst_150 : f32 to vector<32x256xf32>
    %420 = arith.subf %419, %418 : vector<32x256xf32>
    %421 = arith.mulf %392, %420 : vector<32x256xf32>
    %cst_151 = arith.constant 1.000000e+00 : f32
    %422 = vector.broadcast %cst_151 : f32 to vector<32x256xf32>
    %423 = arith.addf %422, %421 : vector<32x256xf32>
    %424 = arith.mulf %385, %423 : vector<32x256xf32>
    %425 = arith.truncf %424 : vector<32x256xf32> to vector<32x256xbf16>
    %426 = arith.index_cast %c2_i32 : i32 to index
    %c0_152 = arith.constant 0 : index
    %c0_153 = arith.constant 0 : index
    %427 = vector.load %arg10[%426, %c0_152, %c0_153] : memref<4x256x128xbf16, #tpu.memory_space<vmem>>, vector<1x256x128xbf16>
    %428 = vector.shape_cast %427 : vector<1x256x128xbf16> to vector<256x128xbf16>
    %cst_154 = arith.constant dense<0.000000e+00> : vector<32x128xf32>
    %429 = tpu.matmul %425, %428, %cst_154 {dimension_numbers = #tpu.dot_dimension_numbers<[1], [0], [0], [1], [0, 0, 1, 1], [], []>} : vector<32x256xbf16>, vector<256x128xbf16>, vector<32x128xf32> -> vector<32x128xf32>
    %430 = arith.index_cast %c2_i32 : i32 to index
    %c0_155 = arith.constant 0 : index
    %c0_156 = arith.constant 0 : index
    %431 = vector.load %arg11[%430, %c0_155, %c0_156] : memref<4x1x128xf32, #tpu.memory_space<vmem>>, vector<1x1x128xf32>
    %432 = vector.shape_cast %431 : vector<1x1x128xf32> to vector<1x128xf32>
    %433 = vector.broadcast %432 : vector<1x128xf32> to vector<32x128xf32>
    %434 = arith.addf %429, %433 : vector<32x128xf32>
    %435 = arith.addf %347, %434 : vector<32x128xf32>
    %c3_i32 = arith.constant 3 : i32
    %436 = arith.index_cast %c3_i32 : i32 to index
    %c0_157 = arith.constant 0 : index
    %c0_158 = arith.constant 0 : index
    %437 = vector.load %arg3[%436, %c0_157, %c0_158] : memref<4x1x128xf32, #tpu.memory_space<vmem>>, vector<1x1x128xf32>
    %438 = vector.shape_cast %437 : vector<1x1x128xf32> to vector<1x128xf32>
    %439 = arith.index_cast %c3_i32 : i32 to index
    %c0_159 = arith.constant 0 : index
    %c0_160 = arith.constant 0 : index
    %440 = vector.load %arg4[%439, %c0_159, %c0_160] : memref<4x1x128xf32, #tpu.memory_space<vmem>>, vector<1x1x128xf32>
    %441 = vector.shape_cast %440 : vector<1x1x128xf32> to vector<1x128xf32>
    %cst_161 = arith.constant dense<0.000000e+00> : vector<32xf32>
    %442 = vector.multi_reduction <add>, %435, %cst_161 [1] : vector<32x128xf32> to vector<32xf32>
    %443 = vector.shape_cast %442 : vector<32xf32> to vector<32x1xf32>
    %cst_162 = arith.constant 1.280000e+02 : f32
    %444 = vector.broadcast %cst_162 : f32 to vector<32x1xf32>
    %445 = arith.divf %443, %444 : vector<32x1xf32>
    %446 = vector.broadcast %445 : vector<32x1xf32> to vector<32x128xf32>
    %447 = arith.subf %435, %446 : vector<32x128xf32>
    %448 = arith.mulf %447, %447 : vector<32x128xf32>
    %cst_163 = arith.constant dense<0.000000e+00> : vector<32xf32>
    %449 = vector.multi_reduction <add>, %448, %cst_163 [1] : vector<32x128xf32> to vector<32xf32>
    %450 = vector.shape_cast %449 : vector<32xf32> to vector<32x1xf32>
    %cst_164 = arith.constant 1.280000e+02 : f32
    %451 = vector.broadcast %cst_164 : f32 to vector<32x1xf32>
    %452 = arith.divf %450, %451 : vector<32x1xf32>
    %cst_165 = arith.constant 9.99999974E-6 : f32
    %453 = vector.broadcast %cst_165 : f32 to vector<32x1xf32>
    %454 = arith.addf %452, %453 : vector<32x1xf32>
    %455 = math.rsqrt %454 : vector<32x1xf32>
    %456 = vector.broadcast %455 : vector<32x1xf32> to vector<32x128xf32>
    %457 = arith.mulf %447, %456 : vector<32x128xf32>
    %458 = vector.broadcast %438 : vector<1x128xf32> to vector<32x128xf32>
    %459 = arith.mulf %457, %458 : vector<32x128xf32>
    %460 = vector.broadcast %441 : vector<1x128xf32> to vector<32x128xf32>
    %461 = arith.addf %459, %460 : vector<32x128xf32>
    %462 = arith.truncf %461 : vector<32x128xf32> to vector<32x128xbf16>
    %463 = arith.index_cast %c3_i32 : i32 to index
    %c0_166 = arith.constant 0 : index
    %c0_167 = arith.constant 0 : index
    %464 = vector.load %arg5[%463, %c0_166, %c0_167] : memref<4x128x384xbf16, #tpu.memory_space<vmem>>, vector<1x128x384xbf16>
    %465 = vector.shape_cast %464 : vector<1x128x384xbf16> to vector<128x384xbf16>
    %cst_168 = arith.constant dense<0.000000e+00> : vector<32x384xf32>
    %466 = tpu.matmul %462, %465, %cst_168 {dimension_numbers = #tpu.dot_dimension_numbers<[1], [0], [0], [1], [0, 0, 1, 1], [], []>} : vector<32x128xbf16>, vector<128x384xbf16>, vector<32x384xf32> -> vector<32x384xf32>
    %467 = vector.extract_strided_slice %466 {offsets = [0, 0], sizes = [32, 128], strides = [1, 1]} : vector<32x384xf32> to vector<32x128xf32>
    %468 = vector.shape_cast %467 : vector<32x128xf32> to vector<2x16x128xf32>
    %469 = vector.extract_strided_slice %466 {offsets = [0, 128], sizes = [32, 128], strides = [1, 1]} : vector<32x384xf32> to vector<32x128xf32>
    %470 = vector.shape_cast %469 : vector<32x128xf32> to vector<2x16x128xf32>
    %471 = vector.extract_strided_slice %466 {offsets = [0, 256], sizes = [32, 128], strides = [1, 1]} : vector<32x384xf32> to vector<32x128xf32>
    %472 = vector.shape_cast %471 : vector<32x128xf32> to vector<2x16x128xf32>
    %cst_169 = arith.constant dense<0.000000e+00> : vector<2x16x16xf32>
    %473 = tpu.matmul %468, %470, %cst_169 {dimension_numbers = #tpu.dot_dimension_numbers<[2], [2], [1], [1], [0, 0, 0, 1, 1, 1], [0], [0]>} : vector<2x16x128xf32>, vector<2x16x128xf32>, vector<2x16x16xf32> -> vector<2x16x16xf32>
    %474 = vector.shape_cast %6 : vector<1x16x16xi1> to vector<1x16x16xi1>
    %475 = vector.broadcast %474 : vector<1x16x16xi1> to vector<2x16x16xi1>
    %476 = vector.broadcast %cst_3 : f32 to vector<2x16x16xf32>
    %477 = arith.select %475, %473, %476 : vector<2x16x16xi1>, vector<2x16x16xf32>
    %cst_170 = arith.constant dense<0xFF800000> : vector<2x16xf32>
    %478 = vector.multi_reduction <maximumf>, %477, %cst_170 [2] : vector<2x16x16xf32> to vector<2x16xf32>
    %479 = vector.shape_cast %478 : vector<2x16xf32> to vector<2x16x1xf32>
    %480 = vector.broadcast %479 : vector<2x16x1xf32> to vector<2x16x16xf32>
    %481 = arith.subf %477, %480 : vector<2x16x16xf32>
    %482 = math.exp %481 : vector<2x16x16xf32>
    %cst_171 = arith.constant dense<0.000000e+00> : vector<2x16xf32>
    %483 = vector.multi_reduction <add>, %482, %cst_171 [2] : vector<2x16x16xf32> to vector<2x16xf32>
    %484 = vector.shape_cast %483 : vector<2x16xf32> to vector<2x16x1xf32>
    %485 = tpu.reciprocal %484 {approx = true} : vector<2x16x1xf32> -> vector<2x16x1xf32>
    %486 = vector.broadcast %485 : vector<2x16x1xf32> to vector<2x16x16xf32>
    %487 = arith.mulf %482, %486 : vector<2x16x16xf32>
    %cst_172 = arith.constant dense<0.000000e+00> : vector<2x16x128xf32>
    %488 = tpu.matmul %487, %472, %cst_172 {dimension_numbers = #tpu.dot_dimension_numbers<[2], [1], [1], [2], [0, 0, 0, 1, 1, 2], [0], [0]>} : vector<2x16x16xf32>, vector<2x16x128xf32>, vector<2x16x128xf32> -> vector<2x16x128xf32>
    %489 = vector.shape_cast %488 : vector<2x16x128xf32> to vector<32x128xf32>
    %490 = arith.addf %435, %489 : vector<32x128xf32>
    %491 = arith.index_cast %c3_i32 : i32 to index
    %c0_173 = arith.constant 0 : index
    %c0_174 = arith.constant 0 : index
    %492 = vector.load %arg6[%491, %c0_173, %c0_174] : memref<4x1x128xf32, #tpu.memory_space<vmem>>, vector<1x1x128xf32>
    %493 = vector.shape_cast %492 : vector<1x1x128xf32> to vector<1x128xf32>
    %494 = arith.index_cast %c3_i32 : i32 to index
    %c0_175 = arith.constant 0 : index
    %c0_176 = arith.constant 0 : index
    %495 = vector.load %arg7[%494, %c0_175, %c0_176] : memref<4x1x128xf32, #tpu.memory_space<vmem>>, vector<1x1x128xf32>
    %496 = vector.shape_cast %495 : vector<1x1x128xf32> to vector<1x128xf32>
    %cst_177 = arith.constant dense<0.000000e+00> : vector<32xf32>
    %497 = vector.multi_reduction <add>, %490, %cst_177 [1] : vector<32x128xf32> to vector<32xf32>
    %498 = vector.shape_cast %497 : vector<32xf32> to vector<32x1xf32>
    %cst_178 = arith.constant 1.280000e+02 : f32
    %499 = vector.broadcast %cst_178 : f32 to vector<32x1xf32>
    %500 = arith.divf %498, %499 : vector<32x1xf32>
    %501 = vector.broadcast %500 : vector<32x1xf32> to vector<32x128xf32>
    %502 = arith.subf %490, %501 : vector<32x128xf32>
    %503 = arith.mulf %502, %502 : vector<32x128xf32>
    %cst_179 = arith.constant dense<0.000000e+00> : vector<32xf32>
    %504 = vector.multi_reduction <add>, %503, %cst_179 [1] : vector<32x128xf32> to vector<32xf32>
    %505 = vector.shape_cast %504 : vector<32xf32> to vector<32x1xf32>
    %cst_180 = arith.constant 1.280000e+02 : f32
    %506 = vector.broadcast %cst_180 : f32 to vector<32x1xf32>
    %507 = arith.divf %505, %506 : vector<32x1xf32>
    %cst_181 = arith.constant 9.99999974E-6 : f32
    %508 = vector.broadcast %cst_181 : f32 to vector<32x1xf32>
    %509 = arith.addf %507, %508 : vector<32x1xf32>
    %510 = math.rsqrt %509 : vector<32x1xf32>
    %511 = vector.broadcast %510 : vector<32x1xf32> to vector<32x128xf32>
    %512 = arith.mulf %502, %511 : vector<32x128xf32>
    %513 = vector.broadcast %493 : vector<1x128xf32> to vector<32x128xf32>
    %514 = arith.mulf %512, %513 : vector<32x128xf32>
    %515 = vector.broadcast %496 : vector<1x128xf32> to vector<32x128xf32>
    %516 = arith.addf %514, %515 : vector<32x128xf32>
    %517 = arith.truncf %516 : vector<32x128xf32> to vector<32x128xbf16>
    %518 = arith.index_cast %c3_i32 : i32 to index
    %c0_182 = arith.constant 0 : index
    %c0_183 = arith.constant 0 : index
    %519 = vector.load %arg8[%518, %c0_182, %c0_183] : memref<4x128x256xbf16, #tpu.memory_space<vmem>>, vector<1x128x256xbf16>
    %520 = vector.shape_cast %519 : vector<1x128x256xbf16> to vector<128x256xbf16>
    %cst_184 = arith.constant dense<0.000000e+00> : vector<32x256xf32>
    %521 = tpu.matmul %517, %520, %cst_184 {dimension_numbers = #tpu.dot_dimension_numbers<[1], [0], [0], [1], [0, 0, 1, 1], [], []>} : vector<32x128xbf16>, vector<128x256xbf16>, vector<32x256xf32> -> vector<32x256xf32>
    %522 = arith.index_cast %c3_i32 : i32 to index
    %c0_185 = arith.constant 0 : index
    %c0_186 = arith.constant 0 : index
    %523 = vector.load %arg9[%522, %c0_185, %c0_186] : memref<4x1x256xf32, #tpu.memory_space<vmem>>, vector<1x1x256xf32>
    %524 = vector.shape_cast %523 : vector<1x1x256xf32> to vector<1x256xf32>
    %525 = vector.broadcast %524 : vector<1x256xf32> to vector<32x256xf32>
    %526 = arith.addf %521, %525 : vector<32x256xf32>
    %cst_187 = arith.constant 5.000000e-01 : f32
    %527 = vector.broadcast %cst_187 : f32 to vector<32x256xf32>
    %528 = arith.mulf %527, %526 : vector<32x256xf32>
    %cst_188 = arith.constant 0.707106769 : f32
    %529 = vector.broadcast %cst_188 : f32 to vector<32x256xf32>
    %530 = arith.mulf %526, %529 : vector<32x256xf32>
    %cst_189 = arith.constant 0.000000e+00 : f32
    %531 = vector.broadcast %cst_189 : f32 to vector<32x256xf32>
    %532 = arith.cmpf oge, %530, %531 : vector<32x256xf32>
    %cst_190 = arith.constant 1.000000e+00 : f32
    %cst_191 = arith.constant -1.000000e+00 : f32
    %533 = vector.broadcast %cst_190 : f32 to vector<32x256xf32>
    %534 = vector.broadcast %cst_191 : f32 to vector<32x256xf32>
    %535 = arith.select %532, %533, %534 : vector<32x256xi1>, vector<32x256xf32>
    %536 = math.absf %530 : vector<32x256xf32>
    %cst_192 = arith.constant 0.327591091 : f32
    %537 = vector.broadcast %cst_192 : f32 to vector<32x256xf32>
    %538 = arith.mulf %537, %536 : vector<32x256xf32>
    %cst_193 = arith.constant 1.000000e+00 : f32
    %539 = vector.broadcast %cst_193 : f32 to vector<32x256xf32>
    %540 = arith.addf %539, %538 : vector<32x256xf32>
    %cst_194 = arith.constant 1.000000e+00 : f32
    %541 = vector.broadcast %cst_194 : f32 to vector<32x256xf32>
    %542 = arith.divf %541, %540 : vector<32x256xf32>
    %cst_195 = arith.constant 1.06140542 : f32
    %543 = vector.broadcast %cst_195 : f32 to vector<32x256xf32>
    %544 = arith.mulf %543, %542 : vector<32x256xf32>
    %cst_196 = arith.constant -1.45315206 : f32
    %545 = vector.broadcast %cst_196 : f32 to vector<32x256xf32>
    %546 = arith.addf %544, %545 : vector<32x256xf32>
    %547 = arith.mulf %546, %542 : vector<32x256xf32>
    %cst_197 = arith.constant 1.42141378 : f32
    %548 = vector.broadcast %cst_197 : f32 to vector<32x256xf32>
    %549 = arith.addf %547, %548 : vector<32x256xf32>
    %550 = arith.mulf %549, %542 : vector<32x256xf32>
    %cst_198 = arith.constant -0.284496725 : f32
    %551 = vector.broadcast %cst_198 : f32 to vector<32x256xf32>
    %552 = arith.addf %550, %551 : vector<32x256xf32>
    %553 = arith.mulf %552, %542 : vector<32x256xf32>
    %cst_199 = arith.constant 0.254829586 : f32
    %554 = vector.broadcast %cst_199 : f32 to vector<32x256xf32>
    %555 = arith.addf %553, %554 : vector<32x256xf32>
    %556 = arith.mulf %555, %542 : vector<32x256xf32>
    %cst_200 = arith.constant 0.000000e+00 : f32
    %557 = vector.broadcast %cst_200 : f32 to vector<32x256xf32>
    %558 = arith.subf %557, %536 : vector<32x256xf32>
    %559 = arith.mulf %558, %536 : vector<32x256xf32>
    %560 = math.exp %559 : vector<32x256xf32>
    %561 = arith.mulf %556, %560 : vector<32x256xf32>
    %cst_201 = arith.constant 1.000000e+00 : f32
    %562 = vector.broadcast %cst_201 : f32 to vector<32x256xf32>
    %563 = arith.subf %562, %561 : vector<32x256xf32>
    %564 = arith.mulf %535, %563 : vector<32x256xf32>
    %cst_202 = arith.constant 1.000000e+00 : f32
    %565 = vector.broadcast %cst_202 : f32 to vector<32x256xf32>
    %566 = arith.addf %565, %564 : vector<32x256xf32>
    %567 = arith.mulf %528, %566 : vector<32x256xf32>
    %568 = arith.truncf %567 : vector<32x256xf32> to vector<32x256xbf16>
    %569 = arith.index_cast %c3_i32 : i32 to index
    %c0_203 = arith.constant 0 : index
    %c0_204 = arith.constant 0 : index
    %570 = vector.load %arg10[%569, %c0_203, %c0_204] : memref<4x256x128xbf16, #tpu.memory_space<vmem>>, vector<1x256x128xbf16>
    %571 = vector.shape_cast %570 : vector<1x256x128xbf16> to vector<256x128xbf16>
    %cst_205 = arith.constant dense<0.000000e+00> : vector<32x128xf32>
    %572 = tpu.matmul %568, %571, %cst_205 {dimension_numbers = #tpu.dot_dimension_numbers<[1], [0], [0], [1], [0, 0, 1, 1], [], []>} : vector<32x256xbf16>, vector<256x128xbf16>, vector<32x128xf32> -> vector<32x128xf32>
    %573 = arith.index_cast %c3_i32 : i32 to index
    %c0_206 = arith.constant 0 : index
    %c0_207 = arith.constant 0 : index
    %574 = vector.load %arg11[%573, %c0_206, %c0_207] : memref<4x1x128xf32, #tpu.memory_space<vmem>>, vector<1x1x128xf32>
    %575 = vector.shape_cast %574 : vector<1x1x128xf32> to vector<1x128xf32>
    %576 = vector.broadcast %575 : vector<1x128xf32> to vector<32x128xf32>
    %577 = arith.addf %572, %576 : vector<32x128xf32>
    %578 = arith.addf %490, %577 : vector<32x128xf32>
    %c4_i32 = arith.constant 4 : i32
    %579 = arith.truncf %578 : vector<32x128xf32> to vector<32x128xbf16>
    %c0_208 = arith.constant 0 : index
    %c0_209 = arith.constant 0 : index
    %580 = vector.load %arg12[%c0_208, %c0_209] : memref<128x128xbf16, #tpu.memory_space<vmem>>, vector<128x128xbf16>
    %cst_210 = arith.constant dense<0.000000e+00> : vector<32x128xf32>
    %581 = tpu.matmul %579, %580, %cst_210 {dimension_numbers = #tpu.dot_dimension_numbers<[1], [0], [0], [1], [0, 0, 1, 1], [], []>} : vector<32x128xbf16>, vector<128x128xbf16>, vector<32x128xf32> -> vector<32x128xf32>
    %c0_211 = arith.constant 0 : index
    %c0_212 = arith.constant 0 : index
    %582 = vector.load %arg13[%c0_211, %c0_212] : memref<1x128xf32, #tpu.memory_space<vmem>>, vector<1x128xf32>
    %583 = vector.broadcast %582 : vector<1x128xf32> to vector<32x128xf32>
    %584 = arith.addf %581, %583 : vector<32x128xf32>
    %c0_213 = arith.constant 0 : index
    %c0_214 = arith.constant 0 : index
    %585 = vector.load %arg14[%c0_213, %c0_214] : memref<32x128xf32, #tpu.memory_space<vmem>>, vector<32x128xf32>
    tpu.vector_store %arg14[%c0_213, %c0_214], %584 {strides = array<i32>} : memref<32x128xf32, #tpu.memory_space<vmem>>, vector<32x128xf32>,
    return
  }
  func.func @transform_0(%arg0: i32) -> (i32, i32) {
    %c0_i32 = arith.constant 0 : i32
    %c0_i32_0 = arith.constant 0 : i32
    return %arg0, %c0_i32 : i32, i32
  }
  func.func @transform_1(%arg0: i32) -> (i32, i32) {
    %c0_i32 = arith.constant 0 : i32
    %c0_i32_0 = arith.constant 0 : i32
    %c0_i32_1 = arith.constant 0 : i32
    return %c0_i32, %c0_i32_0 : i32, i32
  }
  func.func @transform_2(%arg0: i32) -> (i32, i32, i32) {
    %c0_i32 = arith.constant 0 : i32
    %c0_i32_0 = arith.constant 0 : i32
    %c0_i32_1 = arith.constant 0 : i32
    %c0_i32_2 = arith.constant 0 : i32
    return %c0_i32, %c0_i32_0, %c0_i32_1 : i32, i32, i32
  }
  func.func @transform_3(%arg0: i32) -> (i32, i32, i32) {
    %c0_i32 = arith.constant 0 : i32
    %c0_i32_0 = arith.constant 0 : i32
    %c0_i32_1 = arith.constant 0 : i32
    %c0_i32_2 = arith.constant 0 : i32
    return %c0_i32, %c0_i32_0, %c0_i32_1 : i32, i32, i32
  }
  func.func @transform_4(%arg0: i32) -> (i32, i32, i32) {
    %c0_i32 = arith.constant 0 : i32
    %c0_i32_0 = arith.constant 0 : i32
    %c0_i32_1 = arith.constant 0 : i32
    %c0_i32_2 = arith.constant 0 : i32
    return %c0_i32, %c0_i32_0, %c0_i32_1 : i32, i32, i32
  }
  func.func @transform_5(%arg0: i32) -> (i32, i32, i32) {
    %c0_i32 = arith.constant 0 : i32
    %c0_i32_0 = arith.constant 0 : i32
    %c0_i32_1 = arith.constant 0 : i32
    %c0_i32_2 = arith.constant 0 : i32
    return %c0_i32, %c0_i32_0, %c0_i32_1 : i32, i32, i32
  }
  func.func @transform_6(%arg0: i32) -> (i32, i32, i32) {
    %c0_i32 = arith.constant 0 : i32
    %c0_i32_0 = arith.constant 0 : i32
    %c0_i32_1 = arith.constant 0 : i32
    %c0_i32_2 = arith.constant 0 : i32
    return %c0_i32, %c0_i32_0, %c0_i32_1 : i32, i32, i32
  }
  func.func @transform_7(%arg0: i32) -> (i32, i32, i32) {
    %c0_i32 = arith.constant 0 : i32
    %c0_i32_0 = arith.constant 0 : i32
    %c0_i32_1 = arith.constant 0 : i32
    %c0_i32_2 = arith.constant 0 : i32
    return %c0_i32, %c0_i32_0, %c0_i32_1 : i32, i32, i32
  }
  func.func @transform_8(%arg0: i32) -> (i32, i32, i32) {
    %c0_i32 = arith.constant 0 : i32
    %c0_i32_0 = arith.constant 0 : i32
    %c0_i32_1 = arith.constant 0 : i32
    %c0_i32_2 = arith.constant 0 : i32
    return %c0_i32, %c0_i32_0, %c0_i32_1 : i32, i32, i32
  }
  func.func @transform_9(%arg0: i32) -> (i32, i32, i32) {
    %c0_i32 = arith.constant 0 : i32
    %c0_i32_0 = arith.constant 0 : i32
    %c0_i32_1 = arith.constant 0 : i32
    %c0_i32_2 = arith.constant 0 : i32
    return %c0_i32, %c0_i32_0, %c0_i32_1 : i32, i32, i32
  }
  func.func @transform_10(%arg0: i32) -> (i32, i32, i32) {
    %c0_i32 = arith.constant 0 : i32
    %c0_i32_0 = arith.constant 0 : i32
    %c0_i32_1 = arith.constant 0 : i32
    %c0_i32_2 = arith.constant 0 : i32
    return %c0_i32, %c0_i32_0, %c0_i32_1 : i32, i32, i32
  }
  func.func @transform_11(%arg0: i32) -> (i32, i32) {
    %c0_i32 = arith.constant 0 : i32
    %c0_i32_0 = arith.constant 0 : i32
    %c0_i32_1 = arith.constant 0 : i32
    return %c0_i32, %c0_i32_0 : i32, i32
  }
  func.func @transform_12(%arg0: i32) -> (i32, i32) {
    %c0_i32 = arith.constant 0 : i32
    %c0_i32_0 = arith.constant 0 : i32
    %c0_i32_1 = arith.constant 0 : i32
    return %c0_i32, %c0_i32_0 : i32, i32
  }
  func.func @transform_13(%arg0: i32) -> (i32, i32) {
    %c0_i32 = arith.constant 0 : i32
    %c0_i32_0 = arith.constant 0 : i32
    return %arg0, %c0_i32 : i32, i32
  }
}

</mosaic_0001>

<llo_original>
// kernel: tpu_custom_call.1
$region0: #{tpu_custom_call.1}
  #allocation0 [shape = 'u32[]', space=smem, size = 0x4, offset = 0x4, fixed_abs, tag = 'smem constant byte address 0x4 - core index']
  #allocation1 [shape = 'u32[144,128]{1,0:T(1,128)}', space=vmem, size = 0x12000, scoped, tag = 'internal scratch']
  %s0 = inlined_call_operand.hbm [shape: bf16[32,128], index: 0, kind: input, shape index: {}]
  %s1 = inlined_call_operand.hbm [shape: bf16[128,128], index: 1, kind: input, shape index: {}]
  %s2 = inlined_call_operand.hbm [shape: f32[4,1,128], index: 2, kind: input, shape index: {}]
  %s3 = inlined_call_operand.vmem [shape: f32[4,1,128], index: 3, kind: input, shape index: {}]
  %s4 = inlined_call_operand.hbm [shape: bf16[4,128,384], index: 4, kind: input, shape index: {}]
  %s5 = inlined_call_operand.hbm [shape: f32[4,1,128], index: 5, kind: input, shape index: {}]
  %s6 = inlined_call_operand.hbm [shape: f32[4,1,128], index: 6, kind: input, shape index: {}]
  %s7 = inlined_call_operand.hbm [shape: bf16[4,128,256], index: 7, kind: input, shape index: {}]
  %s8 = inlined_call_operand.vmem [shape: f32[4,1,256], index: 8, kind: input, shape index: {}]
  %s9 = inlined_call_operand.hbm [shape: bf16[4,256,128], index: 9, kind: input, shape index: {}]
  %s10 = inlined_call_operand.vmem [shape: f32[4,1,128], index: 10, kind: input, shape index: {}]
  %s11 = inlined_call_operand.hbm [shape: bf16[128,128], index: 11, kind: input, shape index: {}]
  %s12 = inlined_call_operand.vmem [shape: f32[1,128], index: 12, kind: input, shape index: {}]
  %s13 = inlined_call_operand.hbm [shape: f32[32,128], index: 13, kind: output, shape index: {}]
  %s14 = sld [smem:[#allocation0]]
  $region98: #{tpu_custom_call.1} parent=0
    _
  %s16 = ssub.s32 1, %s14
  %s17 = scalar_select 0, %s16, %s14
  $region1: #{tpu_custom_call.1} parent=0
    #allocation2 [shape = 'u8[8192]{0}', space=vmem, size = 0x2000, scoped, tag = 'input window, operand 0, single buffered']
    #allocation3 [shape = 's32[1]{0}', space=sflag, size = 0x4, scoped, tag = 'scoped memory for tpu_custom_call.1']
    #allocation4 [shape = 's32[1]{0}', space=sflag, size = 0x4, scoped, tag = 'scoped memory for tpu_custom_call.1']
    #allocation5 [shape = 'u8[32768]{0}', space=vmem, size = 0x8000, scoped, tag = 'input window, operand 1, single buffered']
    #allocation6 [shape = 's32[1]{0}', space=sflag, size = 0x4, scoped, tag = 'scoped memory for tpu_custom_call.1']
    #allocation7 [shape = 'u8[2048]{0}', space=vmem, size = 0x800, scoped, tag = 'input window, operand 2, single buffered']
    #allocation8 [shape = 'u8[393216]{0}', space=vmem, size = 0x60000, scoped, tag = 'input window, operand 4, single buffered']
    #allocation9 [shape = 's32[1]{0}', space=sflag, size = 0x4, scoped, tag = 'scoped memory for tpu_custom_call.1']
    #allocation10 [shape = 'u8[2048]{0}', space=vmem, size = 0x800, scoped, tag = 'input window, operand 5, single buffered']
    #allocation11 [shape = 'u8[2048]{0}', space=vmem, size = 0x800, scoped, tag = 'input window, operand 6, single buffered']
    #allocation12 [shape = 's32[1]{0}', space=sflag, size = 0x4, scoped, tag = 'scoped memory for tpu_custom_call.1']
    #allocation13 [shape = 'u8[262144]{0}', space=vmem, size = 0x40000, scoped, tag = 'input window, operand 7, single buffered']
    #allocation14 [shape = 'u8[262144]{0}', space=vmem, size = 0x40000, scoped, tag = 'input window, operand 9, single buffered']
    #allocation15 [shape = 's32[1]{0}', space=sflag, size = 0x4, scoped, tag = 'scoped memory for tpu_custom_call.1']
    #allocation16 [shape = 'u8[32768]{0}', space=vmem, size = 0x8000, scoped, tag = 'input window, operand 11, single buffered']
    #allocation17 [shape = 'u8[16384]{0}', space=vmem, size = 0x4000, scoped, tag = 'output window, operand 0, single buffered']
    %18 = vsyncpa [#allocation3], 0
    %19 = vsyncpa [#allocation6], 0
    %20 = vsyncpa [#allocation9], 0
    %21 = vsyncpa [#allocation12], 0
    %22 = vsyncpa [#allocation15], 0
    %23 = vsyncpa [#allocation4], 0
    // Predicated region
    $region2: #{tpu_custom_call.1} parent=1 // pred_check
      _
    $region3: #{tpu_custom_call.1} parent=1 // pred_check_branch
      %25 = sbr.rel (0) target = $region5
    $region4: #{tpu_custom_call.1} parent=1 // pred_region
      %s27 = ssub.s32 256, 256
      %28 = vsyncadd [#allocation3], %s27
      %s29 = sshll.u32 [#allocation2], 4
      %s30 = int_to_ptr.vmem [resolvable:$true] %s29
      %35 = dma.hbm_to_vmem [thread:$0]  %s0, 256, %s30, [#allocation3], 64, 64, 4
    $region5: #{tpu_custom_call.1} parent=1 // pred_fallthru
      _
    // Predicated region
    $region6: #{tpu_custom_call.1} parent=1 // pred_check
      _
    $region7: #{tpu_custom_call.1} parent=1 // pred_check_branch
      %37 = sbr.rel (0) target = $region9
    $region8: #{tpu_custom_call.1} parent=1 // pred_region
      %s39 = ssub.s32 1024, 1024
      %40 = vsyncadd [#allocation6], %s39
      %s41 = sshll.u32 [#allocation5], 4
      %s42 = int_to_ptr.vmem [resolvable:$true] %s41
      %47 = dma.hbm_to_vmem [thread:$0]  %s1, 1024, %s42, [#allocation6], 64, 64, 4
    $region9: #{tpu_custom_call.1} parent=1 // pred_fallthru
      _
    // Predicated region
    $region10: #{tpu_custom_call.1} parent=1 // pred_check
      _
    $region11: #{tpu_custom_call.1} parent=1 // pred_check_branch
      %49 = sbr.rel (0) target = $region13
    $region12: #{tpu_custom_call.1} parent=1 // pred_region
      %s51 = ssub.s32 64, 64
      %52 = vsyncadd [#allocation6], %s51
      %s53 = sshll.u32 [#allocation7], 4
      %s54 = int_to_ptr.vmem [resolvable:$true] %s53
      %59 = dma.hbm_to_vmem [thread:$0]  %s2, 64, %s54, [#allocation6], 16, 16, 1
    $region13: #{tpu_custom_call.1} parent=1 // pred_fallthru
      _
    // Predicated region
    $region14: #{tpu_custom_call.1} parent=1 // pred_check
      _
    $region15: #{tpu_custom_call.1} parent=1 // pred_check_branch
      %61 = sbr.rel (0) target = $region17
    $region16: #{tpu_custom_call.1} parent=1 // pred_region
      _
    $region17: #{tpu_custom_call.1} parent=1 // pred_fallthru
      _
    // Predicated region
    $region18: #{tpu_custom_call.1} parent=1 // pred_check
      _
    $region19: #{tpu_custom_call.1} parent=1 // pred_check_branch
      %63 = sbr.rel (0) target = $region21
    $region20: #{tpu_custom_call.1} parent=1 // pred_region
      %s65 = ssub.s32 12288, 12288
      %66 = vsyncadd [#allocation9], %s65
      %s67 = sshll.u32 [#allocation8], 4
      %s68 = int_to_ptr.vmem [resolvable:$true] %s67
      %73 = dma.hbm_to_vmem [thread:$0]  %s4, 12288, %s68, [#allocation9], 192, 192, 12
    $region21: #{tpu_custom_call.1} parent=1 // pred_fallthru
      _
    // Predicated region
    $region22: #{tpu_custom_call.1} parent=1 // pred_check
      _
    $region23: #{tpu_custom_call.1} parent=1 // pred_check_branch
      %75 = sbr.rel (0) target = $region25
    $region24: #{tpu_custom_call.1} parent=1 // pred_region
      %s77 = ssub.s32 64, 64
      %78 = vsyncadd [#allocation9], %s77
      %s79 = sshll.u32 [#allocation10], 4
      %s80 = int_to_ptr.vmem [resolvable:$true] %s79
      %85 = dma.hbm_to_vmem [thread:$0]  %s5, 64, %s80, [#allocation9], 16, 16, 1
    $region25: #{tpu_custom_call.1} parent=1 // pred_fallthru
      _
    // Predicated region
    $region26: #{tpu_custom_call.1} parent=1 // pred_check
      _
    $region27: #{tpu_custom_call.1} parent=1 // pred_check_branch
      %87 = sbr.rel (0) target = $region29
    $region28: #{tpu_custom_call.1} parent=1 // pred_region
      %s89 = ssub.s32 64, 64
      %90 = vsyncadd [#allocation12], %s89
      %s91 = sshll.u32 [#allocation11], 4
      %s92 = int_to_ptr.vmem [resolvable:$true] %s91
      %97 = dma.hbm_to_vmem [thread:$0]  %s6, 64, %s92, [#allocation12], 16, 16, 1
    $region29: #{tpu_custom_call.1} parent=1 // pred_fallthru
      _
    // Predicated region
    $region30: #{tpu_custom_call.1} parent=1 // pred_check
      _
    $region31: #{tpu_custom_call.1} parent=1 // pred_check_branch
      %99 = sbr.rel (0) target = $region33
    $region32: #{tpu_custom_call.1} parent=1 // pred_region
      %s101 = ssub.s32 8192, 8192
      %102 = vsyncadd [#allocation12], %s101
      %s103 = sshll.u32 [#allocation13], 4
      %s104 = int_to_ptr.vmem [resolvable:$true] %s103
      %109 = dma.hbm_to_vmem [thread:$0]  %s7, 8192, %s104, [#allocation12], 128, 128, 8
    $region33: #{tpu_custom_call.1} parent=1 // pred_fallthru
      _
    // Predicated region
    $region34: #{tpu_custom_call.1} parent=1 // pred_check
      _
    $region35: #{tpu_custom_call.1} parent=1 // pred_check_branch
      %111 = sbr.rel (0) target = $region37
    $region36: #{tpu_custom_call.1} parent=1 // pred_region
      _
    $region37: #{tpu_custom_call.1} parent=1 // pred_fallthru
      _
    // Predicated region
    $region38: #{tpu_custom_call.1} parent=1 // pred_check
      _
    $region39: #{tpu_custom_call.1} parent=1 // pred_check_branch
      %113 = sbr.rel (0) target = $region41
    $region40: #{tpu_custom_call.1} parent=1 // pred_region
      %s115 = ssub.s32 8192, 8192
      %116 = vsyncadd [#allocation15], %s115
      %s117 = sshll.u32 [#allocation14], 4
      %s118 = int_to_ptr.vmem [resolvable:$true] %s117
      %123 = dma.hbm_to_vmem [thread:$0]  %s9, 8192, %s118, [#allocation15], 64, 64, 4
    $region41: #{tpu_custom_call.1} parent=1 // pred_fallthru
      _
    // Predicated region
    $region42: #{tpu_custom_call.1} parent=1 // pred_check
      _
    $region43: #{tpu_custom_call.1} parent=1 // pred_check_branch
      %125 = sbr.rel (0) target = $region45
    $region44: #{tpu_custom_call.1} parent=1 // pred_region
      _
    $region45: #{tpu_custom_call.1} parent=1 // pred_fallthru
      _
    // Predicated region
    $region46: #{tpu_custom_call.1} parent=1 // pred_check
      _
    $region47: #{tpu_custom_call.1} parent=1 // pred_check_branch
      %127 = sbr.rel (0) target = $region49
    $region48: #{tpu_custom_call.1} parent=1 // pred_region
      %s129 = ssub.s32 1024, 1024
      %130 = vsyncadd [#allocation15], %s129
      %s131 = sshll.u32 [#allocation16], 4
      %s132 = int_to_ptr.vmem [resolvable:$true] %s131
      %137 = dma.hbm_to_vmem [thread:$0]  %s11, 1024, %s132, [#allocation15], 64, 64, 4
    $region49: #{tpu_custom_call.1} parent=1 // pred_fallthru
      _
    // Predicated region
    $region50: #{tpu_custom_call.1} parent=1 // pred_check
      _
    $region51: #{tpu_custom_call.1} parent=1 // pred_check_branch
      %139 = sbr.rel (0) target = $region53
    $region52: #{tpu_custom_call.1} parent=1 // pred_region
      _
    $region53: #{tpu_custom_call.1} parent=1 // pred_fallthru
      _
    // Predicated region
    $region54: #{tpu_custom_call.1} parent=1 // pred_check
      _
    $region55: #{tpu_custom_call.1} parent=1 // pred_check_branch
      %141 = sbr.rel (0) target = $region57
    $region56: #{tpu_custom_call.1} parent=1 // pred_region
      %142 = dma.done [#allocation3], 256
    $region57: #{tpu_custom_call.1} parent=1 // pred_fallthru
      _
    // Predicated region
    $region58: #{tpu_custom_call.1} parent=1 // pred_check
      _
    $region59: #{tpu_custom_call.1} parent=1 // pred_check_branch
      %144 = sbr.rel (0) target = $region61
    $region60: #{tpu_custom_call.1} parent=1 // pred_region
      %145 = dma.done [#allocation6], 1024
    $region61: #{tpu_custom_call.1} parent=1 // pred_fallthru
      _
    // Predicated region
    $region62: #{tpu_custom_call.1} parent=1 // pred_check
      _
    $region63: #{tpu_custom_call.1} parent=1 // pred_check_branch
      %147 = sbr.rel (0) target = $region65
    $region64: #{tpu_custom_call.1} parent=1 // pred_region
      %148 = dma.done [#allocation6], 64
    $region65: #{tpu_custom_call.1} parent=1 // pred_fallthru
      _
    // Predicated region
    $region66: #{tpu_custom_call.1} parent=1 // pred_check
      _
    $region67: #{tpu_custom_call.1} parent=1 // pred_check_branch
      %150 = sbr.rel (0) target = $region69
    $region68: #{tpu_custom_call.1} parent=1 // pred_region
      %151 = dma.done [#allocation9], 12288
    $region69: #{tpu_custom_call.1} parent=1 // pred_fallthru
      _
    // Predicated region
    $region70: #{tpu_custom_call.1} parent=1 // pred_check
      _
    $region71: #{tpu_custom_call.1} parent=1 // pred_check_branch
      %153 = sbr.rel (0) target = $region73
    $region72: #{tpu_custom_call.1} parent=1 // pred_region
      %154 = dma.done [#allocation9], 64
    $region73: #{tpu_custom_call.1} parent=1 // pred_fallthru
      _
    // Predicated region
    $region74: #{tpu_custom_call.1} parent=1 // pred_check
      _
    $region75: #{tpu_custom_call.1} parent=1 // pred_check_branch
      %156 = sbr.rel (0) target = $region77
    $region76: #{tpu_custom_call.1} parent=1 // pred_region
      %157 = dma.done [#allocation12], 64
    $region77: #{tpu_custom_call.1} parent=1 // pred_fallthru
      _
    // Predicated region
    $region78: #{tpu_custom_call.1} parent=1 // pred_check
      _
    $region79: #{tpu_custom_call.1} parent=1 // pred_check_branch
      %159 = sbr.rel (0) target = $region81
    $region80: #{tpu_custom_call.1} parent=1 // pred_region
      %160 = dma.done [#allocation12], 8192
    $region81: #{tpu_custom_call.1} parent=1 // pred_fallthru
      _
    // Predicated region
    $region82: #{tpu_custom_call.1} parent=1 // pred_check
      _
    $region83: #{tpu_custom_call.1} parent=1 // pred_check_branch
      %162 = sbr.rel (0) target = $region85
    $region84: #{tpu_custom_call.1} parent=1 // pred_region
      %163 = dma.done [#allocation15], 8192
    $region85: #{tpu_custom_call.1} parent=1 // pred_fallthru
      _
    // Predicated region
    $region86: #{tpu_custom_call.1} parent=1 // pred_check
      _
    $region87: #{tpu_custom_call.1} parent=1 // pred_check_branch
      %165 = sbr.rel (0) target = $region89
    $region88: #{tpu_custom_call.1} parent=1 // pred_region
      %166 = dma.done [#allocation15], 1024
    $region89: #{tpu_custom_call.1} parent=1 // pred_fallthru
      _
    %v168 = vld [vmem:[#allocation2] sm:$0xf]
    %v169 = vld [vmem:[#allocation2 + $0x4] sm:$0xf]
    %v170 = vld [vmem:[#allocation2 + $0x8] sm:$0xf]
    %v171 = vld [vmem:[#allocation2 + $0xc] sm:$0xf]
    %v172 = vld [vmem:[#allocation5] sm:$0xf]
    %v173 = vld [vmem:[#allocation5 + $0x4] sm:$0xf]
    %v174 = vld [vmem:[#allocation5 + $0x8] sm:$0xf]
    %v175 = vld [vmem:[#allocation5 + $0xc] sm:$0xf]
    %v176 = vld [vmem:[#allocation5 + $0x10] sm:$0xf]
    %v177 = vld [vmem:[#allocation5 + $0x14] sm:$0xf]
    %v178 = vld [vmem:[#allocation5 + $0x18] sm:$0xf]
    %v179 = vld [vmem:[#allocation5 + $0x1c] sm:$0xf]
    %v180 = vld [vmem:[#allocation5 + $0x20] sm:$0xf]
    %v181 = vld [vmem:[#allocation5 + $0x24] sm:$0xf]
    %v182 = vld [vmem:[#allocation5 + $0x28] sm:$0xf]
    %v183 = vld [vmem:[#allocation5 + $0x2c] sm:$0xf]
    %v184 = vld [vmem:[#allocation5 + $0x30] sm:$0xf]
    %v185 = vld [vmem:[#allocation5 + $0x34] sm:$0xf]
    %v186 = vld [vmem:[#allocation5 + $0x38] sm:$0xf]
    %v187 = vld [vmem:[#allocation5 + $0x3c] sm:$0xf]
    %v192 = vunpack.c.l.b16 %v168
    %v193 = vunpack.c.l.b16 %v169
    %v194 = vunpack.c.l.b16 %v170
    %v195 = vunpack.c.l.b16 %v171
    %v196 = vpack.c.b16 %v193, %v192
    %v197 = vpack.c.b16 %v195, %v194
    %v216 = vunpack.c.l.b16 %v172
    %v217 = vunpack.c.l.b16 %v173
    %v218 = vunpack.c.l.b16 %v174
    %v219 = vunpack.c.l.b16 %v175
    %v220 = vunpack.c.l.b16 %v176
    %v221 = vunpack.c.l.b16 %v177
    %v222 = vunpack.c.l.b16 %v178
    %v223 = vunpack.c.l.b16 %v179
    %v224 = vunpack.c.l.b16 %v180
    %v225 = vunpack.c.l.b16 %v181
    %v226 = vunpack.c.l.b16 %v182
    %v227 = vunpack.c.l.b16 %v183
    %v228 = vunpack.c.l.b16 %v184
    %v229 = vunpack.c.l.b16 %v185
    %v230 = vunpack.c.l.b16 %v186
    %v231 = vunpack.c.l.b16 %v187
    %v232 = vpack.c.b16 %v217, %v216
    %v233 = vpack.c.b16 %v219, %v218
    %v234 = vpack.c.b16 %v221, %v220
    %v235 = vpack.c.b16 %v223, %v222
    %v236 = vpack.c.b16 %v225, %v224
    %v237 = vpack.c.b16 %v227, %v226
    %v238 = vpack.c.b16 %v229, %v228
    %v239 = vpack.c.b16 %v231, %v230
    %248 = vmatprep.subr.bf16.mxu0 0
    %249 = vmatpush1.bf16.msra.mxu0 %v239
    %250 = vmatprep.subr.bf16.mxu0 0
    %251 = vmatpush1.bf16.msra.mxu0 %v238
    %252 = vmatprep.subr.bf16.mxu0 0
    %253 = vmatpush1.bf16.msra.mxu0 %v237
    %254 = vmatprep.subr.bf16.mxu0 0
    %255 = vmatpush1.bf16.msra.mxu0 %v236
    %256 = vmatprep.subr.bf16.mxu0 0
    %257 = vmatpush1.bf16.msra.mxu0 %v235
    %258 = vmatprep.subr.bf16.mxu0 0
    %259 = vmatpush1.bf16.msra.mxu0 %v234
    %260 = vmatprep.subr.bf16.mxu0 0
    %261 = vmatpush1.bf16.msra.mxu0 %v233
    %262 = vmatprep.subr.bf16.mxu0 0
    %263 = vmatpush1.bf16.msra.mxu0 %v232
    %264 = vmatprep.subr.bf16.mxu0 0
    %265 = vmatpush2.bf16.msra.mxu0 0
    %266 = vmatprep.subr.bf16.mxu0 0
    %267 = vmatpush2.bf16.msra.mxu0 0
    %268 = vmatprep.subr.bf16.mxu0 0
    %269 = vmatpush2.bf16.msra.mxu0 0
    %270 = vmatprep.subr.bf16.mxu0 0
    %271 = vmatpush2.bf16.msra.mxu0 0
    %272 = vmatprep.subr.bf16.mxu0 0
    %273 = vmatpush2.bf16.msra.mxu0 0
    %274 = vmatprep.subr.bf16.mxu0 0
    %275 = vmatpush2.bf16.msra.mxu0 0
    %276 = vmatprep.subr.bf16.mxu0 0
    %277 = vmatpush2.bf16.msra.mxu0 0
    %278 = vmatprep.subr.bf16.mxu0 0
    %279 = vmatpush2.bf16.msra.mxu0 0
    %280 = vmatprep.mubr.bf16.mxu0 0
    %281 = vmatmul.mubr.bf16.gmra.mxu0 %v196
    %v282 = vpop.f32.mrf.mxu0
    %v283 = vadd.f32 0.0, %v282
    %v284 = vpop.f32.mrf.mxu0
    %v285 = vpop.f32.mrf.mxu0
    %v286 = vadd.f32 0.0, %v285
    %v287 = vpop.f32.mrf.mxu0
    %288 = vmatprep.mubr.bf16.mxu0 0
    %289 = vmatmul.mubr.bf16.gmra.mxu0 %v197
    %v290 = vpop.f32.mrf.mxu0
    %v291 = vadd.f32 0.0, %v290
    %v292 = vpop.f32.mrf.mxu0
    %v293 = vpop.f32.mrf.mxu0
    %v294 = vadd.f32 0.0, %v293
    %v295 = vpop.f32.mrf.mxu0
    %296 = vdwg.mxu0
    %v297 = vlaneseq
    %v298 = vand.u32 %v297, 127
    %vm299 = vcmp.lt.s32.totalorder %v298, 9
    %v300 = vld [vmem:[#allocation7] sm:$0x1]
    %v301 = vld [vmem:[%s3] sm:$0x1]
    %302 = vadd.xlane.f32.xlu0 %v283
    %v303 = vpop.xlane.xlu0 %302
    %304 = vadd.xlane.f32.xlu0 %v286
    %v305 = vpop.xlane.xlu0 %304
    %306 = vadd.xlane.f32.xlu0 %v291
    %v307 = vpop.xlane.xlu0 %306
    %308 = vadd.xlane.f32.xlu0 %v294
    %v309 = vpop.xlane.xlu0 %308
    %v310 = vrcp.pop 128.0
    %v311 = vmul.f32 %v303, %v310
    %v312 = vmul.f32 %v305, %v310
    %v313 = vmul.f32 %v307, %v310
    %v314 = vmul.f32 %v309, %v310
    %v315 = vsub.f32 %v283, %v311
    %v316 = vsub.f32 %v286, %v312
    %v317 = vsub.f32 %v291, %v313
    %v318 = vsub.f32 %v294, %v314
    %v319 = vmul.f32 %v315, %v315
    %v320 = vmul.f32 %v316, %v316
    %v321 = vmul.f32 %v317, %v317
    %v322 = vmul.f32 %v318, %v318
    %323 = vadd.xlane.f32.xlu0 %v319
    %v324 = vpop.xlane.xlu0 %323
    %325 = vadd.xlane.f32.xlu0 %v320
    %v326 = vpop.xlane.xlu0 %325
    %327 = vadd.xlane.f32.xlu0 %v321
    %v328 = vpop.xlane.xlu0 %327
    %329 = vadd.xlane.f32.xlu0 %v322
    %v330 = vpop.xlane.xlu0 %329
    %v331 = vmul.f32 %v324, %v310
    %v332 = vmul.f32 %v326, %v310
    %v333 = vmul.f32 %v328, %v310
    %v334 = vmul.f32 %v330, %v310
    %v335 = vadd.f32 %v331, 1e-05
    %v336 = vadd.f32 %v332, 1e-05
    %v337 = vadd.f32 %v333, 1e-05
    %v338 = vadd.f32 %v334, 1e-05
    %v339 = vrsqrt.pop %v335
    %v340 = vrsqrt.pop %v336
    %v341 = vrsqrt.pop %v337
    %v342 = vrsqrt.pop %v338
    %v343 = vmul.f32 %v315, %v339
    %v344 = vmul.f32 %v316, %v340
    %v345 = vmul.f32 %v317, %v341
    %v346 = vmul.f32 %v318, %v342
    %v348 = vlaneseq
    %v349 = vshrl.u32 %v348, 7
    %v350 = vsub.s32 0, %v349
    %v351 = vrot.slane %v300, %v350
    %v353 = vmul.f32 %v343, %v351
    %v354 = vmul.f32 %v344, %v351
    %v355 = vmul.f32 %v345, %v351
    %v356 = vmul.f32 %v346, %v351
    %v358 = vlaneseq
    %v359 = vshrl.u32 %v358, 7
    %v360 = vsub.s32 0, %v359
    %v361 = vrot.slane %v301, %v360
    %v363 = vadd.f32 %v353, %v361
    %v364 = vadd.f32 %v354, %v361
    %v365 = vadd.f32 %v355, %v361
    %v366 = vadd.f32 %v356, %v361
    %v367 = vpack.c.bf16 %v364, %v363
    %v368 = vpack.c.bf16 %v366, %v365
    %v369 = vld [vmem:[#allocation8] sm:$0xff]
    %v370 = vld [vmem:[#allocation8 + $0x8] sm:$0xf]
    %v371 = vld [vmem:[#allocation8 + $0xc] sm:$0xff]
    %v372 = vld [vmem:[#allocation8 + $0x14] sm:$0xf]
    %v373 = vld [vmem:[#allocation8 + $0x18] sm:$0xff]
    %v374 = vld [vmem:[#allocation8 + $0x20] sm:$0xf]
    %v375 = vld [vmem:[#allocation8 + $0x24] sm:$0xff]
    %v376 = vld [vmem:[#allocation8 + $0x2c] sm:$0xf]
    %v377 = vld [vmem:[#allocation8 + $0x30] sm:$0xff]
    %v378 = vld [vmem:[#allocation8 + $0x38] sm:$0xf]
    %v379 = vld [vmem:[#allocation8 + $0x3c] sm:$0xff]
    %v380 = vld [vmem:[#allocation8 + $0x44] sm:$0xf]
    %v381 = vld [vmem:[#allocation8 + $0x48] sm:$0xff]
    %v382 = vld [vmem:[#allocation8 + $0x50] sm:$0xf]
    %v383 = vld [vmem:[#allocation8 + $0x54] sm:$0xff]
    %v384 = vld [vmem:[#allocation8 + $0x5c] sm:$0xf]
    %v385 = vld [vmem:[#allocation8 + $0x60] sm:$0xff]
    %v386 = vld [vmem:[#allocation8 + $0x68] sm:$0xf]
    %v387 = vld [vmem:[#allocation8 + $0x6c] sm:$0xff]
    %v388 = vld [vmem:[#allocation8 + $0x74] sm:$0xf]
    %v389 = vld [vmem:[#allocation8 + $0x78] sm:$0xff]
    %v390 = vld [vmem:[#allocation8 + $0x80] sm:$0xf]
    %v391 = vld [vmem:[#allocation8 + $0x84] sm:$0xff]
    %v392 = vld [vmem:[#allocation8 + $0x8c] sm:$0xf]
    %v393 = vld [vmem:[#allocation8 + $0x90] sm:$0xff]
    %v394 = vld [vmem:[#allocation8 + $0x98] sm:$0xf]
    %v395 = vld [vmem:[#allocation8 + $0x9c] sm:$0xff]
    %v396 = vld [vmem:[#allocation8 + $0xa4] sm:$0xf]
    %v397 = vld [vmem:[#allocation8 + $0xa8] sm:$0xff]
    %v398 = vld [vmem:[#allocation8 + $0xb0] sm:$0xf]
    %v399 = vld [vmem:[#allocation8 + $0xb4] sm:$0xff]
    %v400 = vld [vmem:[#allocation8 + $0xbc] sm:$0xf]
    %v433 = vunpack.c.l.b16 %v369
    %v434 = vunpack.c.h.b16 %v369
    %v435 = vunpack.c.l.b16 %v370
    %v436 = vunpack.c.l.b16 %v371
    %v437 = vunpack.c.h.b16 %v371
    %v438 = vunpack.c.l.b16 %v372
    %v439 = vunpack.c.l.b16 %v373
    %v440 = vunpack.c.h.b16 %v373
    %v441 = vunpack.c.l.b16 %v374
    %v442 = vunpack.c.l.b16 %v375
    %v443 = vunpack.c.h.b16 %v375
    %v444 = vunpack.c.l.b16 %v376
    %v445 = vunpack.c.l.b16 %v377
    %v446 = vunpack.c.h.b16 %v377
    %v447 = vunpack.c.l.b16 %v378
    %v448 = vunpack.c.l.b16 %v379
    %v449 = vunpack.c.h.b16 %v379
    %v450 = vunpack.c.l.b16 %v380
    %v451 = vunpack.c.l.b16 %v381
    %v452 = vunpack.c.h.b16 %v381
    %v453 = vunpack.c.l.b16 %v382
    %v454 = vunpack.c.l.b16 %v383
    %v455 = vunpack.c.h.b16 %v383
    %v456 = vunpack.c.l.b16 %v384
    %v457 = vunpack.c.l.b16 %v385
    %v458 = vunpack.c.h.b16 %v385
    %v459 = vunpack.c.l.b16 %v386
    %v460 = vunpack.c.l.b16 %v387
    %v461 = vunpack.c.h.b16 %v387
    %v462 = vunpack.c.l.b16 %v388
    %v463 = vunpack.c.l.b16 %v389
    %v464 = vunpack.c.h.b16 %v389
    %v465 = vunpack.c.l.b16 %v390
    %v466 = vunpack.c.l.b16 %v391
    %v467 = vunpack.c.h.b16 %v391
    %v468 = vunpack.c.l.b16 %v392
    %v469 = vunpack.c.l.b16 %v393
    %v470 = vunpack.c.h.b16 %v393
    %v471 = vunpack.c.l.b16 %v394
    %v472 = vunpack.c.l.b16 %v395
    %v473 = vunpack.c.h.b16 %v395
    %v474 = vunpack.c.l.b16 %v396
    %v475 = vunpack.c.l.b16 %v397
    %v476 = vunpack.c.h.b16 %v397
    %v477 = vunpack.c.l.b16 %v398
    %v478 = vunpack.c.l.b16 %v399
    %v479 = vunpack.c.h.b16 %v399
    %v480 = vunpack.c.l.b16 %v400
    %v481 = vpack.c.b16 %v436, %v433
    %v482 = vpack.c.b16 %v437, %v434
    %v483 = vpack.c.b16 %v438, %v435
    %v484 = vpack.c.b16 %v442, %v439
    %v485 = vpack.c.b16 %v443, %v440
    %v486 = vpack.c.b16 %v444, %v441
    %v487 = vpack.c.b16 %v448, %v445
    %v488 = vpack.c.b16 %v449, %v446
    %v489 = vpack.c.b16 %v450, %v447
    %v490 = vpack.c.b16 %v454, %v451
    %v491 = vpack.c.b16 %v455, %v452
    %v492 = vpack.c.b16 %v456, %v453
    %v493 = vpack.c.b16 %v460, %v457
    %v494 = vpack.c.b16 %v461, %v458
    %v495 = vpack.c.b16 %v462, %v459
    %v496 = vpack.c.b16 %v466, %v463
    %v497 = vpack.c.b16 %v467, %v464
    %v498 = vpack.c.b16 %v468, %v465
    %v499 = vpack.c.b16 %v472, %v469
    %v500 = vpack.c.b16 %v473, %v470
    %v501 = vpack.c.b16 %v474, %v471
    %v502 = vpack.c.b16 %v478, %v475
    %v503 = vpack.c.b16 %v479, %v476
    %v504 = vpack.c.b16 %v480, %v477
    %529 = vmatprep.subr.bf16.mxu0 %v503
    %530 = vmatpush1.bf16.msra.mxu0 %v502
    %531 = vmatprep.subr.bf16.mxu0 %v500
    %532 = vmatpush1.bf16.msra.mxu0 %v499
    %533 = vmatprep.subr.bf16.mxu0 %v497
    %534 = vmatpush1.bf16.msra.mxu0 %v496
    %535 = vmatprep.subr.bf16.mxu0 %v494
    %536 = vmatpush1.bf16.msra.mxu0 %v493
    %537 = vmatprep.subr.bf16.mxu0 %v491
    %538 = vmatpush1.bf16.msra.mxu0 %v490
    %539 = vmatprep.subr.bf16.mxu0 %v488
    %540 = vmatpush1.bf16.msra.mxu0 %v487
    %541 = vmatprep.subr.bf16.mxu0 %v485
    %542 = vmatpush1.bf16.msra.mxu0 %v484
    %543 = vmatprep.subr.bf16.mxu0 %v482
    %544 = vmatpush1.bf16.msra.mxu0 %v481
    %545 = vmatprep.subr.bf16.mxu0 0
    %546 = vmatpush2.bf16.msra.mxu0 0
    %547 = vmatprep.subr.bf16.mxu0 0
    %548 = vmatpush2.bf16.msra.mxu0 0
    %549 = vmatprep.subr.bf16.mxu0 0
    %550 = vmatpush2.bf16.msra.mxu0 0
    %551 = vmatprep.subr.bf16.mxu0 0
    %552 = vmatpush2.bf16.msra.mxu0 0
    %553 = vmatprep.subr.bf16.mxu0 0
    %554 = vmatpush2.bf16.msra.mxu0 0
    %555 = vmatprep.subr.bf16.mxu0 0
    %556 = vmatpush2.bf16.msra.mxu0 0
    %557 = vmatprep.subr.bf16.mxu0 0
    %558 = vmatpush2.bf16.msra.mxu0 0
    %559 = vmatprep.subr.bf16.mxu0 0
    %560 = vmatpush2.bf16.msra.mxu0 0
    %561 = vmatprep.mubr.bf16.mxu0 0
    %562 = vmatmul.mubr.bf16.gmra.mxu0 %v367
    %v563 = vpop.f32.mrf.mxu0
    %v564 = vadd.f32 0.0, %v563
    %v565 = vpop.f32.mrf.mxu0
    %v566 = vadd.f32 0.0, %v565
    %v567 = vpop.f32.mrf.mxu0
    %v568 = vadd.f32 0.0, %v567
    %v569 = vpop.f32.mrf.mxu0
    %v570 = vadd.f32 0.0, %v569
    %571 = vmatprep.mubr.bf16.mxu0 0
    %572 = vmatmul.mubr.bf16.gmra.mxu0 %v368
    %v573 = vpop.f32.mrf.mxu0
    %v574 = vadd.f32 0.0, %v573
    %v575 = vpop.f32.mrf.mxu0
    %v576 = vadd.f32 0.0, %v575
    %v577 = vpop.f32.mrf.mxu0
    %v578 = vadd.f32 0.0, %v577
    %v579 = vpop.f32.mrf.mxu0
    %v580 = vadd.f32 0.0, %v579
    %581 = vdwg.mxu0
    %582 = vmatprep.subr.bf16.mxu0 0
    %583 = vmatpush1.bf16.msra.mxu0 %v504
    %584 = vmatprep.subr.bf16.mxu0 0
    %585 = vmatpush1.bf16.msra.mxu0 %v501
    %586 = vmatprep.subr.bf16.mxu0 0
    %587 = vmatpush1.bf16.msra.mxu0 %v498
    %588 = vmatprep.subr.bf16.mxu0 0
    %589 = vmatpush1.bf16.msra.mxu0 %v495
    %590 = vmatprep.subr.bf16.mxu0 0
    %591 = vmatpush1.bf16.msra.mxu0 %v492
    %592 = vmatprep.subr.bf16.mxu0 0
    %593 = vmatpush1.bf16.msra.mxu0 %v489
    %594 = vmatprep.subr.bf16.mxu0 0
    %595 = vmatpush1.bf16.msra.mxu0 %v486
    %596 = vmatprep.subr.bf16.mxu0 0
    %597 = vmatpush1.bf16.msra.mxu0 %v483
    %598 = vmatprep.subr.bf16.mxu0 0
    %599 = vmatpush2.bf16.msra.mxu0 0
    %600 = vmatprep.subr.bf16.mxu0 0
    %601 = vmatpush2.bf16.msra.mxu0 0
    %602 = vmatprep.subr.bf16.mxu0 0
    %603 = vmatpush2.bf16.msra.mxu0 0
    %604 = vmatprep.subr.bf16.mxu0 0
    %605 = vmatpush2.bf16.msra.mxu0 0
    %606 = vmatprep.subr.bf16.mxu0 0
    %607 = vmatpush2.bf16.msra.mxu0 0
    %608 = vmatprep.subr.bf16.mxu0 0
    %609 = vmatpush2.bf16.msra.mxu0 0
    %610 = vmatprep.subr.bf16.mxu0 0
    %611 = vmatpush2.bf16.msra.mxu0 0
    %612 = vmatprep.subr.bf16.mxu0 0
    %613 = vmatpush2.bf16.msra.mxu0 0
    %614 = vmatprep.mubr.bf16.mxu0 0
    %615 = vmatmul.mubr.bf16.gmra.mxu0 %v367
    %v616 = vpop.f32.mrf.mxu0
    %v617 = vadd.f32 0.0, %v616
    %v618 = vpop.f32.mrf.mxu0
    %v619 = vpop.f32.mrf.mxu0
    %v620 = vadd.f32 0.0, %v619
    %v621 = vpop.f32.mrf.mxu0
    %622 = vmatprep.mubr.bf16.mxu0 0
    %623 = vmatmul.mubr.bf16.gmra.mxu0 %v368
    %v624 = vpop.f32.mrf.mxu0
    %v625 = vadd.f32 0.0, %v624
    %v626 = vpop.f32.mrf.mxu0
    %v627 = vpop.f32.mrf.mxu0
    %v628 = vadd.f32 0.0, %v627
    %v629 = vpop.f32.mrf.mxu0
    %630 = vdwg.mxu0
    %631 = vmatprep.subr.mxu0 0.0
    %632 = vmatpush1.xpose.msra.mxu0 0.0
    %633 = vmatprep.subr.mxu0 0.0
    %634 = vmatpush1.xpose.msra.mxu0 0.0
    %635 = vmatprep.subr.mxu0 0.0
    %636 = vmatpush1.xpose.msra.mxu0 0.0
    %637 = vmatprep.subr.mxu0 0.0
    %638 = vmatpush1.xpose.msra.mxu0 0.0
    %639 = vmatprep.subr.mxu0 0.0
    %640 = vmatpush1.xpose.msra.mxu0 0.0
    %641 = vmatprep.subr.mxu0 0.0
    %642 = vmatpush1.xpose.msra.mxu0 0.0
    %643 = vmatprep.subr.mxu0 0.0
    %644 = vmatpush1.xpose.msra.mxu0 0.0
    %645 = vmatprep.subr.mxu0 0.0
    %646 = vmatpush1.xpose.msra.mxu0 0.0
    %647 = vmatprep.subr.mxu0 0.0
    %648 = vmatpush1.xpose.msra.mxu0 0.0
    %649 = vmatprep.subr.mxu0 0.0
    %650 = vmatpush1.xpose.msra.mxu0 0.0
    %651 = vmatprep.subr.mxu0 0.0
    %652 = vmatpush1.xpose.msra.mxu0 0.0
    %653 = vmatprep.subr.mxu0 0.0
    %654 = vmatpush1.xpose.msra.mxu0 0.0
    %655 = vmatprep.subr.mxu0 0.0
    %656 = vmatpush1.xpose.msra.mxu0 0.0
    %657 = vmatprep.subr.mxu0 0.0
    %658 = vmatpush1.xpose.msra.mxu0 0.0
    %659 = vmatprep.subr.mxu0 0.0
    %660 = vmatpush1.xpose.msra.mxu0 %v570
    %661 = vmatprep.subr.mxu0 0.0
    %662 = vmatpush1.xpose.msra.mxu0 %v566
    %663 = vmatprep.subr.mxu0 0.0
    %664 = vmatpush2.xpose.msra.mxu0 0.0
    %665 = vmatprep.subr.mxu0 0.0
    %666 = vmatpush2.xpose.msra.mxu0 0.0
    %667 = vmatprep.subr.mxu0 0.0
    %668 = vmatpush2.xpose.msra.mxu0 0.0
    %669 = vmatprep.subr.mxu0 0.0
    %670 = vmatpush2.xpose.msra.mxu0 0.0
    %671 = vmatprep.subr.mxu0 0.0
    %672 = vmatpush2.xpose.msra.mxu0 0.0
    %673 = vmatprep.subr.mxu0 0.0
    %674 = vmatpush2.xpose.msra.mxu0 0.0
    %675 = vmatprep.subr.mxu0 0.0
    %676 = vmatpush2.xpose.msra.mxu0 0.0
    %677 = vmatprep.subr.mxu0 0.0
    %678 = vmatpush2.xpose.msra.mxu0 0.0
    %679 = vmatprep.subr.mxu0 0.0
    %680 = vmatpush2.xpose.msra.mxu0 0.0
    %681 = vmatprep.subr.mxu0 0.0
    %682 = vmatpush2.xpose.msra.mxu0 0.0
    %683 = vmatprep.subr.mxu0 0.0
    %684 = vmatpush2.xpose.msra.mxu0 0.0
    %685 = vmatprep.subr.mxu0 0.0
    %686 = vmatpush2.xpose.msra.mxu0 0.0
    %687 = vmatprep.subr.mxu0 0.0
    %688 = vmatpush2.xpose.msra.mxu0 0.0
    %689 = vmatprep.subr.mxu0 0.0
    %690 = vmatpush2.xpose.msra.mxu0 0.0
    %691 = vmatprep.subr.mxu0 0.0
    %692 = vmatpush2.xpose.msra.mxu0 0.0
    %693 = vmatprep.subr.mxu0 0.0
    %694 = vmatpush2.xpose.msra.mxu0 0.0
    %695 = vmatprep.mubr.f32.mxu0 0.0
    %696 = vmatmul.mubr.f32.gmra.mxu0 %v564
    %v697 = vpop.f32.mrf.mxu0
    %v698 = vadd.f32 0.0, %v697
    %v699 = vpop.f32.mrf.mxu0
    %700 = vmatprep.mubr.f32.mxu0 0.0
    %701 = vmatmul.mubr.f32.gmra.mxu0 %v568
    %v702 = vpop.f32.mrf.mxu0
    %v703 = vadd.f32 0.0, %v702
    %v704 = vpop.f32.mrf.mxu0
    %705 = vdwg.mxu0
    %706 = vmatprep.subr.mxu0 0.0
    %707 = vmatpush1.xpose.msra.mxu0 0.0
    %708 = vmatprep.subr.mxu0 0.0
    %709 = vmatpush1.xpose.msra.mxu0 0.0
    %710 = vmatprep.subr.mxu0 0.0
    %711 = vmatpush1.xpose.msra.mxu0 0.0
    %712 = vmatprep.subr.mxu0 0.0
    %713 = vmatpush1.xpose.msra.mxu0 0.0
    %714 = vmatprep.subr.mxu0 0.0
    %715 = vmatpush1.xpose.msra.mxu0 0.0
    %716 = vmatprep.subr.mxu0 0.0
    %717 = vmatpush1.xpose.msra.mxu0 0.0
    %718 = vmatprep.subr.mxu0 0.0
    %719 = vmatpush1.xpose.msra.mxu0 0.0
    %720 = vmatprep.subr.mxu0 0.0
    %721 = vmatpush1.xpose.msra.mxu0 0.0
    %722 = vmatprep.subr.mxu0 0.0
    %723 = vmatpush1.xpose.msra.mxu0 0.0
    %724 = vmatprep.subr.mxu0 0.0
    %725 = vmatpush1.xpose.msra.mxu0 0.0
    %726 = vmatprep.subr.mxu0 0.0
    %727 = vmatpush1.xpose.msra.mxu0 0.0
    %728 = vmatprep.subr.mxu0 0.0
    %729 = vmatpush1.xpose.msra.mxu0 0.0
    %730 = vmatprep.subr.mxu0 0.0
    %731 = vmatpush1.xpose.msra.mxu0 0.0
    %732 = vmatprep.subr.mxu0 0.0
    %733 = vmatpush1.xpose.msra.mxu0 0.0
    %734 = vmatprep.subr.mxu0 0.0
    %735 = vmatpush1.xpose.msra.mxu0 %v580
    %736 = vmatprep.subr.mxu0 0.0
    %737 = vmatpush1.xpose.msra.mxu0 %v576
    %738 = vmatprep.subr.mxu0 0.0
    %739 = vmatpush2.xpose.msra.mxu0 0.0
    %740 = vmatprep.subr.mxu0 0.0
    %741 = vmatpush2.xpose.msra.mxu0 0.0
    %742 = vmatprep.subr.mxu0 0.0
    %743 = vmatpush2.xpose.msra.mxu0 0.0
    %744 = vmatprep.subr.mxu0 0.0
    %745 = vmatpush2.xpose.msra.mxu0 0.0
    %746 = vmatprep.subr.mxu0 0.0
    %747 = vmatpush2.xpose.msra.mxu0 0.0
    %748 = vmatprep.subr.mxu0 0.0
    %749 = vmatpush2.xpose.msra.mxu0 0.0
    %750 = vmatprep.subr.mxu0 0.0
    %751 = vmatpush2.xpose.msra.mxu0 0.0
    %752 = vmatprep.subr.mxu0 0.0
    %753 = vmatpush2.xpose.msra.mxu0 0.0
    %754 = vmatprep.subr.mxu0 0.0
    %755 = vmatpush2.xpose.msra.mxu0 0.0
    %756 = vmatprep.subr.mxu0 0.0
    %757 = vmatpush2.xpose.msra.mxu0 0.0
    %758 = vmatprep.subr.mxu0 0.0
    %759 = vmatpush2.xpose.msra.mxu0 0.0
    %760 = vmatprep.subr.mxu0 0.0
    %761 = vmatpush2.xpose.msra.mxu0 0.0
    %762 = vmatprep.subr.mxu0 0.0
    %763 = vmatpush2.xpose.msra.mxu0 0.0
    %764 = vmatprep.subr.mxu0 0.0
    %765 = vmatpush2.xpose.msra.mxu0 0.0
    %766 = vmatprep.subr.mxu0 0.0
    %767 = vmatpush2.xpose.msra.mxu0 0.0
    %768 = vmatprep.subr.mxu0 0.0
    %769 = vmatpush2.xpose.msra.mxu0 0.0
    %770 = vmatprep.mubr.f32.mxu0 0.0
    %771 = vmatmul.mubr.f32.gmra.mxu0 %v574
    %v772 = vpop.f32.mrf.mxu0
    %v773 = vadd.f32 0.0, %v772
    %v774 = vpop.f32.mrf.mxu0
    %775 = vmatprep.mubr.f32.mxu0 0.0
    %776 = vmatmul.mubr.f32.gmra.mxu0 %v578
    %v777 = vpop.f32.mrf.mxu0
    %v778 = vadd.f32 0.0, %v777
    %v779 = vpop.f32.mrf.mxu0
    %780 = vdwg.mxu0
    %v781 = vsel %vm299, 1, 0
    %vm782 = vcmp.eq.s32.totalorder %v781, 1
    %v783 = vsel %vm782, %v698, -1e+30
    %v784 = vsel %vm782, %v703, -1e+30
    %v785 = vsel %vm782, %v773, -1e+30
    %v786 = vsel %vm782, %v778, -1e+30
    %vm787 = vcmask 130048
    %v788 = vsel %vm787, %v783, -inf
    %789 = vmax.xlane.f32.xlu0 %v788
    %v790 = vpop.xlane.xlu0 %789
    %v791 = vsel %vm787, %v784, -inf
    %792 = vmax.xlane.f32.xlu0 %v791
    %v793 = vpop.xlane.xlu0 %792
    %v794 = vsel %vm787, %v785, -inf
    %795 = vmax.xlane.f32.xlu0 %v794
    %v796 = vpop.xlane.xlu0 %795
    %v797 = vsel %vm787, %v786, -inf
    %798 = vmax.xlane.f32.xlu0 %v797
    %v799 = vpop.xlane.xlu0 %798
    %v800 = vsub.f32 %v783, %v790
    %v801 = vsub.f32 %v784, %v793
    %v802 = vsub.f32 %v785, %v796
    %v803 = vsub.f32 %v786, %v799
    %v804 = vmul.f32 %v800, 1.442695
    %v805 = vpow.pop %v804
    %v806 = vmul.f32 %v801, 1.442695
    %v807 = vpow.pop %v806
    %v808 = vmul.f32 %v802, 1.442695
    %v809 = vpow.pop %v808
    %v810 = vmul.f32 %v803, 1.442695
    %v811 = vpow.pop %v810
    %v812 = vsel %vm787, %v805, 0.0
    %813 = vadd.xlane.f32.xlu0 %v812
    %v814 = vpop.xlane.xlu0 %813
    %v815 = vsel %vm787, %v807, 0.0
    %816 = vadd.xlane.f32.xlu0 %v815
    %v817 = vpop.xlane.xlu0 %816
    %v818 = vsel %vm787, %v809, 0.0
    %819 = vadd.xlane.f32.xlu0 %v818
    %v820 = vpop.xlane.xlu0 %819
    %v821 = vsel %vm787, %v811, 0.0
    %822 = vadd.xlane.f32.xlu0 %v821
    %v823 = vpop.xlane.xlu0 %822
    %v824 = vrcp.pop %v814
    %v825 = vrcp.pop %v817
    %v826 = vrcp.pop %v820
    %v827 = vrcp.pop %v823
    %v828 = vmul.f32 %v805, %v824
    %v829 = vmul.f32 %v807, %v825
    %v830 = vmul.f32 %v809, %v826
    %v831 = vmul.f32 %v811, %v827
    %v833 = vsel %vm787, %v828, 0
    %v836 = vsel %vm787, %v829, 0
    %838 = vmatprep.subr.mxu0 0.0
    %839 = vmatpush1.msra.mxu0 0.0
    %840 = vmatprep.subr.mxu0 0.0
    %841 = vmatpush1.msra.mxu0 0.0
    %842 = vmatprep.subr.mxu0 0.0
    %843 = vmatpush1.msra.mxu0 0.0
    %844 = vmatprep.subr.mxu0 0.0
    %845 = vmatpush1.msra.mxu0 0.0
    %846 = vmatprep.subr.mxu0 0.0
    %847 = vmatpush1.msra.mxu0 0.0
    %848 = vmatprep.subr.mxu0 0.0
    %849 = vmatpush1.msra.mxu0 0.0
    %850 = vmatprep.subr.mxu0 0.0
    %851 = vmatpush1.msra.mxu0 0.0
    %852 = vmatprep.subr.mxu0 0.0
    %853 = vmatpush1.msra.mxu0 0.0
    %854 = vmatprep.subr.mxu0 0.0
    %855 = vmatpush1.msra.mxu0 0.0
    %856 = vmatprep.subr.mxu0 0.0
    %857 = vmatpush1.msra.mxu0 0.0
    %858 = vmatprep.subr.mxu0 0.0
    %859 = vmatpush1.msra.mxu0 0.0
    %860 = vmatprep.subr.mxu0 0.0
    %861 = vmatpush1.msra.mxu0 0.0
    %862 = vmatprep.subr.mxu0 0.0
    %863 = vmatpush1.msra.mxu0 0.0
    %864 = vmatprep.subr.mxu0 0.0
    %865 = vmatpush1.msra.mxu0 0.0
    %866 = vmatprep.subr.mxu0 0.0
    %867 = vmatpush1.msra.mxu0 %v620
    %868 = vmatprep.subr.mxu0 0.0
    %869 = vmatpush1.msra.mxu0 %v617
    %870 = vmatprep.subr.mxu0 0.0
    %871 = vmatpush2.msra.mxu0 0.0
    %872 = vmatprep.subr.mxu0 0.0
    %873 = vmatpush2.msra.mxu0 0.0
    %874 = vmatprep.subr.mxu0 0.0
    %875 = vmatpush2.msra.mxu0 0.0
    %876 = vmatprep.subr.mxu0 0.0
    %877 = vmatpush2.msra.mxu0 0.0
    %878 = vmatprep.subr.mxu0 0.0
    %879 = vmatpush2.msra.mxu0 0.0
    %880 = vmatprep.subr.mxu0 0.0
    %881 = vmatpush2.msra.mxu0 0.0
    %882 = vmatprep.subr.mxu0 0.0
    %883 = vmatpush2.msra.mxu0 0.0
    %884 = vmatprep.subr.mxu0 0.0
    %885 = vmatpush2.msra.mxu0 0.0
    %886 = vmatprep.subr.mxu0 0.0
    %887 = vmatpush2.msra.mxu0 0.0
    %888 = vmatprep.subr.mxu0 0.0
    %889 = vmatpush2.msra.mxu0 0.0
    %890 = vmatprep.subr.mxu0 0.0
    %891 = vmatpush2.msra.mxu0 0.0
    %892 = vmatprep.subr.mxu0 0.0
    %893 = vmatpush2.msra.mxu0 0.0
    %894 = vmatprep.subr.mxu0 0.0
    %895 = vmatpush2.msra.mxu0 0.0
    %896 = vmatprep.subr.mxu0 0.0
    %897 = vmatpush2.msra.mxu0 0.0
    %898 = vmatprep.subr.mxu0 0.0
    %899 = vmatpush2.msra.mxu0 0.0
    %900 = vmatprep.subr.mxu0 0.0
    %901 = vmatpush2.msra.mxu0 0.0
    %902 = vmatprep.mubr.f32.mxu0 0.0
    %903 = vmatmul.mubr.f32.gmra.mxu0 %v833
    %v904 = vpop.f32.mrf.mxu0
    %v905 = vadd.f32 0.0, %v904
    %v906 = vpop.f32.mrf.mxu0
    %907 = vmatprep.mubr.f32.mxu0 0.0
    %908 = vmatmul.mubr.f32.gmra.mxu0 %v836
    %v909 = vpop.f32.mrf.mxu0
    %v910 = vadd.f32 0.0, %v909
    %v911 = vpop.f32.mrf.mxu0
    %912 = vdwg.mxu0
    %v914 = vsel %vm787, %v830, 0
    %v917 = vsel %vm787, %v831, 0
    %919 = vmatprep.subr.mxu0 0.0
    %920 = vmatpush1.msra.mxu0 0.0
    %921 = vmatprep.subr.mxu0 0.0
    %922 = vmatpush1.msra.mxu0 0.0
    %923 = vmatprep.subr.mxu0 0.0
    %924 = vmatpush1.msra.mxu0 0.0
    %925 = vmatprep.subr.mxu0 0.0
    %926 = vmatpush1.msra.mxu0 0.0
    %927 = vmatprep.subr.mxu0 0.0
    %928 = vmatpush1.msra.mxu0 0.0
    %929 = vmatprep.subr.mxu0 0.0
    %930 = vmatpush1.msra.mxu0 0.0
    %931 = vmatprep.subr.mxu0 0.0
    %932 = vmatpush1.msra.mxu0 0.0
    %933 = vmatprep.subr.mxu0 0.0
    %934 = vmatpush1.msra.mxu0 0.0
    %935 = vmatprep.subr.mxu0 0.0
    %936 = vmatpush1.msra.mxu0 0.0
    %937 = vmatprep.subr.mxu0 0.0
    %938 = vmatpush1.msra.mxu0 0.0
    %939 = vmatprep.subr.mxu0 0.0
    %940 = vmatpush1.msra.mxu0 0.0
    %941 = vmatprep.subr.mxu0 0.0
    %942 = vmatpush1.msra.mxu0 0.0
    %943 = vmatprep.subr.mxu0 0.0
    %944 = vmatpush1.msra.mxu0 0.0
    %945 = vmatprep.subr.mxu0 0.0
    %946 = vmatpush1.msra.mxu0 0.0
    %947 = vmatprep.subr.mxu0 0.0
    %948 = vmatpush1.msra.mxu0 %v628
    %949 = vmatprep.subr.mxu0 0.0
    %950 = vmatpush1.msra.mxu0 %v625
    %951 = vmatprep.subr.mxu0 0.0
    %952 = vmatpush2.msra.mxu0 0.0
    %953 = vmatprep.subr.mxu0 0.0
    %954 = vmatpush2.msra.mxu0 0.0
    %955 = vmatprep.subr.mxu0 0.0
    %956 = vmatpush2.msra.mxu0 0.0
    %957 = vmatprep.subr.mxu0 0.0
    %958 = vmatpush2.msra.mxu0 0.0
    %959 = vmatprep.subr.mxu0 0.0
    %960 = vmatpush2.msra.mxu0 0.0
    %961 = vmatprep.subr.mxu0 0.0
    %962 = vmatpush2.msra.mxu0 0.0
    %963 = vmatprep.subr.mxu0 0.0
    %964 = vmatpush2.msra.mxu0 0.0
    %965 = vmatprep.subr.mxu0 0.0
    %966 = vmatpush2.msra.mxu0 0.0
    %967 = vmatprep.subr.mxu0 0.0
    %968 = vmatpush2.msra.mxu0 0.0
    %969 = vmatprep.subr.mxu0 0.0
    %970 = vmatpush2.msra.mxu0 0.0
    %971 = vmatprep.subr.mxu0 0.0
    %972 = vmatpush2.msra.mxu0 0.0
    %973 = vmatprep.subr.mxu0 0.0
    %974 = vmatpush2.msra.mxu0 0.0
    %975 = vmatprep.subr.mxu0 0.0
    %976 = vmatpush2.msra.mxu0 0.0
    %977 = vmatprep.subr.mxu0 0.0
    %978 = vmatpush2.msra.mxu0 0.0
    %979 = vmatprep.subr.mxu0 0.0
    %980 = vmatpush2.msra.mxu0 0.0
    %981 = vmatprep.subr.mxu0 0.0
    %982 = vmatpush2.msra.mxu0 0.0
    %983 = vmatprep.mubr.f32.mxu0 0.0
    %984 = vmatmul.mubr.f32.gmra.mxu0 %v914
    %v985 = vpop.f32.mrf.mxu0
    %v986 = vadd.f32 0.0, %v985
    %v987 = vpop.f32.mrf.mxu0
    %988 = vmatprep.mubr.f32.mxu0 0.0
    %989 = vmatmul.mubr.f32.gmra.mxu0 %v917
    %v990 = vpop.f32.mrf.mxu0
    %v991 = vadd.f32 0.0, %v990
    %v992 = vpop.f32.mrf.mxu0
    %993 = vdwg.mxu0
    %v994 = vadd.f32 %v283, %v905
    %v995 = vadd.f32 %v286, %v910
    %v996 = vadd.f32 %v291, %v986
    %v997 = vadd.f32 %v294, %v991
    %v998 = vld [vmem:[#allocation10] sm:$0x1]
    %v999 = vld [vmem:[#allocation11] sm:$0x1]
    %1000 = vadd.xlane.f32.xlu0 %v994
    %v1001 = vpop.xlane.xlu0 %1000
    %1002 = vadd.xlane.f32.xlu0 %v995
    %v1003 = vpop.xlane.xlu0 %1002
    %1004 = vadd.xlane.f32.xlu0 %v996
    %v1005 = vpop.xlane.xlu0 %1004
    %1006 = vadd.xlane.f32.xlu0 %v997
    %v1007 = vpop.xlane.xlu0 %1006
    %v1008 = vmul.f32 %v1001, %v310
    %v1009 = vmul.f32 %v1003, %v310
    %v1010 = vmul.f32 %v1005, %v310
    %v1011 = vmul.f32 %v1007, %v310
    %v1012 = vsub.f32 %v994, %v1008
    %v1013 = vsub.f32 %v995, %v1009
    %v1014 = vsub.f32 %v996, %v1010
    %v1015 = vsub.f32 %v997, %v1011
    %v1016 = vmul.f32 %v1012, %v1012
    %v1017 = vmul.f32 %v1013, %v1013
    %v1018 = vmul.f32 %v1014, %v1014
    %v1019 = vmul.f32 %v1015, %v1015
    %1020 = vadd.xlane.f32.xlu0 %v1016
    %v1021 = vpop.xlane.xlu0 %1020
    %1022 = vadd.xlane.f32.xlu0 %v1017
    %v1023 = vpop.xlane.xlu0 %1022
    %1024 = vadd.xlane.f32.xlu0 %v1018
    %v1025 = vpop.xlane.xlu0 %1024
    %1026 = vadd.xlane.f32.xlu0 %v1019
    %v1027 = vpop.xlane.xlu0 %1026
    %v1028 = vmul.f32 %v1021, %v310
    %v1029 = vmul.f32 %v1023, %v310
    %v1030 = vmul.f32 %v1025, %v310
    %v1031 = vmul.f32 %v1027, %v310
    %v1032 = vadd.f32 %v1028, 1e-05
    %v1033 = vadd.f32 %v1029, 1e-05
    %v1034 = vadd.f32 %v1030, 1e-05
    %v1035 = vadd.f32 %v1031, 1e-05
    %v1036 = vrsqrt.pop %v1032
    %v1037 = vrsqrt.pop %v1033
    %v1038 = vrsqrt.pop %v1034
    %v1039 = vrsqrt.pop %v1035
    %v1040 = vmul.f32 %v1012, %v1036
    %v1041 = vmul.f32 %v1013, %v1037
    %v1042 = vmul.f32 %v1014, %v1038
    %v1043 = vmul.f32 %v1015, %v1039
    %v1045 = vlaneseq
    %v1046 = vshrl.u32 %v1045, 7
    %v1047 = vsub.s32 0, %v1046
    %v1048 = vrot.slane %v998, %v1047
    %v1050 = vmul.f32 %v1040, %v1048
    %v1051 = vmul.f32 %v1041, %v1048
    %v1052 = vmul.f32 %v1042, %v1048
    %v1053 = vmul.f32 %v1043, %v1048
    %v1055 = vlaneseq
    %v1056 = vshrl.u32 %v1055, 7
    %v1057 = vsub.s32 0, %v1056
    %v1058 = vrot.slane %v999, %v1057
    %v1060 = vadd.f32 %v1050, %v1058
    %v1061 = vadd.f32 %v1051, %v1058
    %v1062 = vadd.f32 %v1052, %v1058
    %v1063 = vadd.f32 %v1053, %v1058
    %v1064 = vpack.c.bf16 %v1061, %v1060
    %v1065 = vpack.c.bf16 %v1063, %v1062
    %v1066 = vld [vmem:[#allocation13] sm:$0xff]
    %v1067 = vld [vmem:[#allocation13 + $0x8] sm:$0xff]
    %v1068 = vld [vmem:[#allocation13 + $0x10] sm:$0xff]
    %v1069 = vld [vmem:[#allocation13 + $0x18] sm:$0xff]
    %v1070 = vld [vmem:[#allocation13 + $0x20] sm:$0xff]
    %v1071 = vld [vmem:[#allocation13 + $0x28] sm:$0xff]
    %v1072 = vld [vmem:[#allocation13 + $0x30] sm:$0xff]
    %v1073 = vld [vmem:[#allocation13 + $0x38] sm:$0xff]
    %v1074 = vld [vmem:[#allocation13 + $0x40] sm:$0xff]
    %v1075 = vld [vmem:[#allocation13 + $0x48] sm:$0xff]
    %v1076 = vld [vmem:[#allocation13 + $0x50] sm:$0xff]
    %v1077 = vld [vmem:[#allocation13 + $0x58] sm:$0xff]
    %v1078 = vld [vmem:[#allocation13 + $0x60] sm:$0xff]
    %v1079 = vld [vmem:[#allocation13 + $0x68] sm:$0xff]
    %v1080 = vld [vmem:[#allocation13 + $0x70] sm:$0xff]
    %v1081 = vld [vmem:[#allocation13 + $0x78] sm:$0xff]
    %v1082 = vld [vmem:[%s8] sm:$0x3]
    %v1084 = vlaneseq
    %v1085 = vshrl.u32 %v1084, 7
    %v1086 = vsub.s32 0, %v1085
    %v1087 = vrot.slane %v1082, %v1086
    %v1088 = vlaneseq
    %v1089 = vshrl.u32 %v1088, 7
    %v1090 = vsub.s32 1, %v1089
    %v1091 = vrot.slane %v1082, %v1090
    %v1110 = vunpack.c.l.b16 %v1066
    %v1111 = vunpack.c.h.b16 %v1066
    %v1112 = vunpack.c.l.b16 %v1067
    %v1113 = vunpack.c.h.b16 %v1067
    %v1114 = vunpack.c.l.b16 %v1068
    %v1115 = vunpack.c.h.b16 %v1068
    %v1116 = vunpack.c.l.b16 %v1069
    %v1117 = vunpack.c.h.b16 %v1069
    %v1118 = vunpack.c.l.b16 %v1070
    %v1119 = vunpack.c.h.b16 %v1070
    %v1120 = vunpack.c.l.b16 %v1071
    %v1121 = vunpack.c.h.b16 %v1071
    %v1122 = vunpack.c.l.b16 %v1072
    %v1123 = vunpack.c.h.b16 %v1072
    %v1124 = vunpack.c.l.b16 %v1073
    %v1125 = vunpack.c.h.b16 %v1073
    %v1126 = vunpack.c.l.b16 %v1074
    %v1127 = vunpack.c.h.b16 %v1074
    %v1128 = vunpack.c.l.b16 %v1075
    %v1129 = vunpack.c.h.b16 %v1075
    %v1130 = vunpack.c.l.b16 %v1076
    %v1131 = vunpack.c.h.b16 %v1076
    %v1132 = vunpack.c.l.b16 %v1077
    %v1133 = vunpack.c.h.b16 %v1077
    %v1134 = vunpack.c.l.b16 %v1078
    %v1135 = vunpack.c.h.b16 %v1078
    %v1136 = vunpack.c.l.b16 %v1079
    %v1137 = vunpack.c.h.b16 %v1079
    %v1138 = vunpack.c.l.b16 %v1080
    %v1139 = vunpack.c.h.b16 %v1080
    %v1140 = vunpack.c.l.b16 %v1081
    %v1141 = vunpack.c.h.b16 %v1081
    %v1142 = vpack.c.b16 %v1112, %v1110
    %v1143 = vpack.c.b16 %v1113, %v1111
    %v1144 = vpack.c.b16 %v1116, %v1114
    %v1145 = vpack.c.b16 %v1117, %v1115
    %v1146 = vpack.c.b16 %v1120, %v1118
    %v1147 = vpack.c.b16 %v1121, %v1119
    %v1148 = vpack.c.b16 %v1124, %v1122
    %v1149 = vpack.c.b16 %v1125, %v1123
    %v1150 = vpack.c.b16 %v1128, %v1126
    %v1151 = vpack.c.b16 %v1129, %v1127
    %v1152 = vpack.c.b16 %v1132, %v1130
    %v1153 = vpack.c.b16 %v1133, %v1131
    %v1154 = vpack.c.b16 %v1136, %v1134
    %v1155 = vpack.c.b16 %v1137, %v1135
    %v1156 = vpack.c.b16 %v1140, %v1138
    %v1157 = vpack.c.b16 %v1141, %v1139
    %1174 = vmatprep.subr.bf16.mxu0 %v1157
    %1175 = vmatpush1.bf16.msra.mxu0 %v1156
    %1176 = vmatprep.subr.bf16.mxu0 %v1155
    %1177 = vmatpush1.bf16.msra.mxu0 %v1154
    %1178 = vmatprep.subr.bf16.mxu0 %v1153
    %1179 = vmatpush1.bf16.msra.mxu0 %v1152
    %1180 = vmatprep.subr.bf16.mxu0 %v1151
    %1181 = vmatpush1.bf16.msra.mxu0 %v1150
    %1182 = vmatprep.subr.bf16.mxu0 %v1149
    %1183 = vmatpush1.bf16.msra.mxu0 %v1148
    %1184 = vmatprep.subr.bf16.mxu0 %v1147
    %1185 = vmatpush1.bf16.msra.mxu0 %v1146
    %1186 = vmatprep.subr.bf16.mxu0 %v1145
    %1187 = vmatpush1.bf16.msra.mxu0 %v1144
    %1188 = vmatprep.subr.bf16.mxu0 %v1143
    %1189 = vmatpush1.bf16.msra.mxu0 %v1142
    %1190 = vmatprep.subr.bf16.mxu0 0
    %1191 = vmatpush2.bf16.msra.mxu0 0
    %1192 = vmatprep.subr.bf16.mxu0 0
    %1193 = vmatpush2.bf16.msra.mxu0 0
    %1194 = vmatprep.subr.bf16.mxu0 0
    %1195 = vmatpush2.bf16.msra.mxu0 0
    %1196 = vmatprep.subr.bf16.mxu0 0
    %1197 = vmatpush2.bf16.msra.mxu0 0
    %1198 = vmatprep.subr.bf16.mxu0 0
    %1199 = vmatpush2.bf16.msra.mxu0 0
    %1200 = vmatprep.subr.bf16.mxu0 0
    %1201 = vmatpush2.bf16.msra.mxu0 0
    %1202 = vmatprep.subr.bf16.mxu0 0
    %1203 = vmatpush2.bf16.msra.mxu0 0
    %1204 = vmatprep.subr.bf16.mxu0 0
    %1205 = vmatpush2.bf16.msra.mxu0 0
    %1206 = vmatprep.mubr.bf16.mxu0 0
    %1207 = vmatmul.mubr.bf16.gmra.mxu0 %v1064
    %v1208 = vpop.f32.mrf.mxu0
    %v1209 = vadd.f32 %v1087, %v1208
    %v1210 = vpop.f32.mrf.mxu0
    %v1211 = vadd.f32 %v1091, %v1210
    %v1212 = vpop.f32.mrf.mxu0
    %v1213 = vadd.f32 %v1087, %v1212
    %v1214 = vpop.f32.mrf.mxu0
    %v1215 = vadd.f32 %v1091, %v1214
    %1216 = vmatprep.mubr.bf16.mxu0 0
    %1217 = vmatmul.mubr.bf16.gmra.mxu0 %v1065
    %v1218 = vpop.f32.mrf.mxu0
    %v1219 = vadd.f32 %v1087, %v1218
    %v1220 = vpop.f32.mrf.mxu0
    %v1221 = vadd.f32 %v1091, %v1220
    %v1222 = vpop.f32.mrf.mxu0
    %v1223 = vadd.f32 %v1087, %v1222
    %v1224 = vpop.f32.mrf.mxu0
    %v1225 = vadd.f32 %v1091, %v1224
    %1226 = vdwg.mxu0
    %v1227 = vmul.f32 %v1209, 0.5
    %v1228 = vmul.f32 %v1211, 0.5
    %v1229 = vmul.f32 %v1213, 0.5
    %v1230 = vmul.f32 %v1215, 0.5
    %v1231 = vmul.f32 %v1219, 0.5
    %v1232 = vmul.f32 %v1221, 0.5
    %v1233 = vmul.f32 %v1223, 0.5
    %v1234 = vmul.f32 %v1225, 0.5
    %v1235 = vmul.f32 %v1209, 0.70710677
    %v1236 = vmul.f32 %v1211, 0.70710677
    %v1237 = vmul.f32 %v1213, 0.70710677
    %v1238 = vmul.f32 %v1215, 0.70710677
    %v1239 = vmul.f32 %v1219, 0.70710677
    %v1240 = vmul.f32 %v1221, 0.70710677
    %v1241 = vmul.f32 %v1223, 0.70710677
    %v1242 = vmul.f32 %v1225, 0.70710677
    %vm1243 = vcmp.ge.f32.partialorder %v1235, 0.0
    %vm1244 = vcmp.ge.f32.partialorder %v1236, 0.0
    %vm1245 = vcmp.ge.f32.partialorder %v1237, 0.0
    %vm1246 = vcmp.ge.f32.partialorder %v1238, 0.0
    %vm1247 = vcmp.ge.f32.partialorder %v1239, 0.0
    %vm1248 = vcmp.ge.f32.partialorder %v1240, 0.0
    %vm1249 = vcmp.ge.f32.partialorder %v1241, 0.0
    %vm1250 = vcmp.ge.f32.partialorder %v1242, 0.0
    %v1251 = vsel %vm1243, 1.0, -1.0
    %v1252 = vsel %vm1244, 1.0, -1.0
    %v1253 = vsel %vm1245, 1.0, -1.0
    %v1254 = vsel %vm1246, 1.0, -1.0
    %v1255 = vsel %vm1247, 1.0, -1.0
    %v1256 = vsel %vm1248, 1.0, -1.0
    %v1257 = vsel %vm1249, 1.0, -1.0
    %v1258 = vsel %vm1250, 1.0, -1.0
    %v1259 = vand.u32 2147483647, %v1235
    %v1260 = vand.u32 2147483647, %v1236
    %v1261 = vand.u32 2147483647, %v1237
    %v1262 = vand.u32 2147483647, %v1238
    %v1263 = vand.u32 2147483647, %v1239
    %v1264 = vand.u32 2147483647, %v1240
    %v1265 = vand.u32 2147483647, %v1241
    %v1266 = vand.u32 2147483647, %v1242
    %v1267 = vmul.f32 %v1259, 0.3275911
    %v1268 = vmul.f32 %v1260, 0.3275911
    %v1269 = vmul.f32 %v1261, 0.3275911
    %v1270 = vmul.f32 %v1262, 0.3275911
    %v1271 = vmul.f32 %v1263, 0.3275911
    %v1272 = vmul.f32 %v1264, 0.3275911
    %v1273 = vmul.f32 %v1265, 0.3275911
    %v1274 = vmul.f32 %v1266, 0.3275911
    %v1275 = vadd.f32 %v1267, 1.0
    %v1276 = vadd.f32 %v1268, 1.0
    %v1277 = vadd.f32 %v1269, 1.0
    %v1278 = vadd.f32 %v1270, 1.0
    %v1279 = vadd.f32 %v1271, 1.0
    %v1280 = vadd.f32 %v1272, 1.0
    %v1281 = vadd.f32 %v1273, 1.0
    %v1282 = vadd.f32 %v1274, 1.0
    %v1283 = vrcp.pop %v1275
    %v1284 = vmul.f32 1.0, %v1283
    %v1285 = vrcp.pop %v1276
    %v1286 = vmul.f32 1.0, %v1285
    %v1287 = vrcp.pop %v1277
    %v1288 = vmul.f32 1.0, %v1287
    %v1289 = vrcp.pop %v1278
    %v1290 = vmul.f32 1.0, %v1289
    %v1291 = vrcp.pop %v1279
    %v1292 = vmul.f32 1.0, %v1291
    %v1293 = vrcp.pop %v1280
    %v1294 = vmul.f32 1.0, %v1293
    %v1295 = vrcp.pop %v1281
    %v1296 = vmul.f32 1.0, %v1295
    %v1297 = vrcp.pop %v1282
    %v1298 = vmul.f32 1.0, %v1297
    %v1299 = vmul.f32 %v1284, 1.0614054
    %v1300 = vmul.f32 %v1286, 1.0614054
    %v1301 = vmul.f32 %v1288, 1.0614054
    %v1302 = vmul.f32 %v1290, 1.0614054
    %v1303 = vmul.f32 %v1292, 1.0614054
    %v1304 = vmul.f32 %v1294, 1.0614054
    %v1305 = vmul.f32 %v1296, 1.0614054
    %v1306 = vmul.f32 %v1298, 1.0614054
    %v1307 = vadd.f32 %v1299, -1.4531521
    %v1308 = vadd.f32 %v1300, -1.4531521
    %v1309 = vadd.f32 %v1301, -1.4531521
    %v1310 = vadd.f32 %v1302, -1.4531521
    %v1311 = vadd.f32 %v1303, -1.4531521
    %v1312 = vadd.f32 %v1304, -1.4531521
    %v1313 = vadd.f32 %v1305, -1.4531521
    %v1314 = vadd.f32 %v1306, -1.4531521
    %v1315 = vmul.f32 %v1307, %v1284
    %v1316 = vmul.f32 %v1308, %v1286
    %v1317 = vmul.f32 %v1309, %v1288
    %v1318 = vmul.f32 %v1310, %v1290
    %v1319 = vmul.f32 %v1311, %v1292
    %v1320 = vmul.f32 %v1312, %v1294
    %v1321 = vmul.f32 %v1313, %v1296
    %v1322 = vmul.f32 %v1314, %v1298
    %v1323 = vadd.f32 %v1315, 1.4214138
    %v1324 = vadd.f32 %v1316, 1.4214138
    %v1325 = vadd.f32 %v1317, 1.4214138
    %v1326 = vadd.f32 %v1318, 1.4214138
    %v1327 = vadd.f32 %v1319, 1.4214138
    %v1328 = vadd.f32 %v1320, 1.4214138
    %v1329 = vadd.f32 %v1321, 1.4214138
    %v1330 = vadd.f32 %v1322, 1.4214138
    %v1331 = vmul.f32 %v1323, %v1284
    %v1332 = vmul.f32 %v1324, %v1286
    %v1333 = vmul.f32 %v1325, %v1288
    %v1334 = vmul.f32 %v1326, %v1290
    %v1335 = vmul.f32 %v1327, %v1292
    %v1336 = vmul.f32 %v1328, %v1294
    %v1337 = vmul.f32 %v1329, %v1296
    %v1338 = vmul.f32 %v1330, %v1298
    %v1339 = vadd.f32 %v1331, -0.28449672
    %v1340 = vadd.f32 %v1332, -0.28449672
    %v1341 = vadd.f32 %v1333, -0.28449672
    %v1342 = vadd.f32 %v1334, -0.28449672
    %v1343 = vadd.f32 %v1335, -0.28449672
    %v1344 = vadd.f32 %v1336, -0.28449672
    %v1345 = vadd.f32 %v1337, -0.28449672
    %v1346 = vadd.f32 %v1338, -0.28449672
    %v1347 = vmul.f32 %v1339, %v1284
    %v1348 = vmul.f32 %v1340, %v1286
    %v1349 = vmul.f32 %v1341, %v1288
    %v1350 = vmul.f32 %v1342, %v1290
    %v1351 = vmul.f32 %v1343, %v1292
    %v1352 = vmul.f32 %v1344, %v1294
    %v1353 = vmul.f32 %v1345, %v1296
    %v1354 = vmul.f32 %v1346, %v1298
    %v1355 = vadd.f32 %v1347, 0.2548296
    %v1356 = vadd.f32 %v1348, 0.2548296
    %v1357 = vadd.f32 %v1349, 0.2548296
    %v1358 = vadd.f32 %v1350, 0.2548296
    %v1359 = vadd.f32 %v1351, 0.2548296
    %v1360 = vadd.f32 %v1352, 0.2548296
    %v1361 = vadd.f32 %v1353, 0.2548296
    %v1362 = vadd.f32 %v1354, 0.2548296
    %v1363 = vmul.f32 %v1355, %v1284
    %v1364 = vmul.f32 %v1356, %v1286
    %v1365 = vmul.f32 %v1357, %v1288
    %v1366 = vmul.f32 %v1358, %v1290
    %v1367 = vmul.f32 %v1359, %v1292
    %v1368 = vmul.f32 %v1360, %v1294
    %v1369 = vmul.f32 %v1361, %v1296
    %v1370 = vmul.f32 %v1362, %v1298
    %v1371 = vsub.f32 0.0, %v1259
    %v1372 = vsub.f32 0.0, %v1260
    %v1373 = vsub.f32 0.0, %v1261
    %v1374 = vsub.f32 0.0, %v1262
    %v1375 = vsub.f32 0.0, %v1263
    %v1376 = vsub.f32 0.0, %v1264
    %v1377 = vsub.f32 0.0, %v1265
    %v1378 = vsub.f32 0.0, %v1266
    %v1379 = vmul.f32 %v1371, %v1259
    %v1380 = vmul.f32 %v1372, %v1260
    %v1381 = vmul.f32 %v1373, %v1261
    %v1382 = vmul.f32 %v1374, %v1262
    %v1383 = vmul.f32 %v1375, %v1263
    %v1384 = vmul.f32 %v1376, %v1264
    %v1385 = vmul.f32 %v1377, %v1265
    %v1386 = vmul.f32 %v1378, %v1266
    %v1387 = vmul.f32 %v1379, 1.442695
    %v1388 = vpow.pop %v1387
    %v1389 = vmul.f32 %v1380, 1.442695
    %v1390 = vpow.pop %v1389
    %v1391 = vmul.f32 %v1381, 1.442695
    %v1392 = vpow.pop %v1391
    %v1393 = vmul.f32 %v1382, 1.442695
    %v1394 = vpow.pop %v1393
    %v1395 = vmul.f32 %v1383, 1.442695
    %v1396 = vpow.pop %v1395
    %v1397 = vmul.f32 %v1384, 1.442695
    %v1398 = vpow.pop %v1397
    %v1399 = vmul.f32 %v1385, 1.442695
    %v1400 = vpow.pop %v1399
    %v1401 = vmul.f32 %v1386, 1.442695
    %v1402 = vpow.pop %v1401
    %v1403 = vmul.f32 %v1363, %v1388
    %v1404 = vmul.f32 %v1364, %v1390
    %v1405 = vmul.f32 %v1365, %v1392
    %v1406 = vmul.f32 %v1366, %v1394
    %v1407 = vmul.f32 %v1367, %v1396
    %v1408 = vmul.f32 %v1368, %v1398
    %v1409 = vmul.f32 %v1369, %v1400
    %v1410 = vmul.f32 %v1370, %v1402
    %v1411 = vsub.f32 1.0, %v1403
    %v1412 = vsub.f32 1.0, %v1404
    %v1413 = vsub.f32 1.0, %v1405
    %v1414 = vsub.f32 1.0, %v1406
    %v1415 = vsub.f32 1.0, %v1407
    %v1416 = vsub.f32 1.0, %v1408
    %v1417 = vsub.f32 1.0, %v1409
    %v1418 = vsub.f32 1.0, %v1410
    %v1419 = vmul.f32 %v1251, %v1411
    %v1420 = vmul.f32 %v1252, %v1412
    %v1421 = vmul.f32 %v1253, %v1413
    %v1422 = vmul.f32 %v1254, %v1414
    %v1423 = vmul.f32 %v1255, %v1415
    %v1424 = vmul.f32 %v1256, %v1416
    %v1425 = vmul.f32 %v1257, %v1417
    %v1426 = vmul.f32 %v1258, %v1418
    %v1427 = vadd.f32 %v1419, 1.0
    %v1428 = vadd.f32 %v1420, 1.0
    %v1429 = vadd.f32 %v1421, 1.0
    %v1430 = vadd.f32 %v1422, 1.0
    %v1431 = vadd.f32 %v1423, 1.0
    %v1432 = vadd.f32 %v1424, 1.0
    %v1433 = vadd.f32 %v1425, 1.0
    %v1434 = vadd.f32 %v1426, 1.0
    %v1435 = vmul.f32 %v1227, %v1427
    %v1436 = vmul.f32 %v1228, %v1428
    %v1437 = vmul.f32 %v1229, %v1429
    %v1438 = vmul.f32 %v1230, %v1430
    %v1439 = vmul.f32 %v1231, %v1431
    %v1440 = vmul.f32 %v1232, %v1432
    %v1441 = vmul.f32 %v1233, %v1433
    %v1442 = vmul.f32 %v1234, %v1434
    %v1443 = vpack.c.bf16 %v1437, %v1435
    %v1444 = vpack.c.bf16 %v1438, %v1436
    %v1445 = vpack.c.bf16 %v1441, %v1439
    %v1446 = vpack.c.bf16 %v1442, %v1440
    %v1447 = vld [vmem:[#allocation14] sm:$0xf]
    %v1448 = vld [vmem:[#allocation14 + $0x4] sm:$0xf]
    %v1449 = vld [vmem:[#allocation14 + $0x8] sm:$0xf]
    %v1450 = vld [vmem:[#allocation14 + $0xc] sm:$0xf]
    %v1451 = vld [vmem:[#allocation14 + $0x10] sm:$0xf]
    %v1452 = vld [vmem:[#allocation14 + $0x14] sm:$0xf]
    %v1453 = vld [vmem:[#allocation14 + $0x18] sm:$0xf]
    %v1454 = vld [vmem:[#allocation14 + $0x1c] sm:$0xf]
    %v1455 = vld [vmem:[#allocation14 + $0x20] sm:$0xf]
    %v1456 = vld [vmem:[#allocation14 + $0x24] sm:$0xf]
    %v1457 = vld [vmem:[#allocation14 + $0x28] sm:$0xf]
    %v1458 = vld [vmem:[#allocation14 + $0x2c] sm:$0xf]
    %v1459 = vld [vmem:[#allocation14 + $0x30] sm:$0xf]
    %v1460 = vld [vmem:[#allocation14 + $0x34] sm:$0xf]
    %v1461 = vld [vmem:[#allocation14 + $0x38] sm:$0xf]
    %v1462 = vld [vmem:[#allocation14 + $0x3c] sm:$0xf]
    %v1463 = vld [vmem:[#allocation14 + $0x40] sm:$0xf]
    %v1464 = vld [vmem:[#allocation14 + $0x44] sm:$0xf]
    %v1465 = vld [vmem:[#allocation14 + $0x48] sm:$0xf]
    %v1466 = vld [vmem:[#allocation14 + $0x4c] sm:$0xf]
    %v1467 = vld [vmem:[#allocation14 + $0x50] sm:$0xf]
    %v1468 = vld [vmem:[#allocation14 + $0x54] sm:$0xf]
    %v1469 = vld [vmem:[#allocation14 + $0x58] sm:$0xf]
    %v1470 = vld [vmem:[#allocation14 + $0x5c] sm:$0xf]
    %v1471 = vld [vmem:[#allocation14 + $0x60] sm:$0xf]
    %v1472 = vld [vmem:[#allocation14 + $0x64] sm:$0xf]
    %v1473 = vld [vmem:[#allocation14 + $0x68] sm:$0xf]
    %v1474 = vld [vmem:[#allocation14 + $0x6c] sm:$0xf]
    %v1475 = vld [vmem:[#allocation14 + $0x70] sm:$0xf]
    %v1476 = vld [vmem:[#allocation14 + $0x74] sm:$0xf]
    %v1477 = vld [vmem:[#allocation14 + $0x78] sm:$0xf]
    %v1478 = vld [vmem:[#allocation14 + $0x7c] sm:$0xf]
    %v1479 = vld [vmem:[%s10] sm:$0x1]
    %v1481 = vlaneseq
    %v1482 = vshrl.u32 %v1481, 7
    %v1483 = vsub.s32 0, %v1482
    %v1484 = vrot.slane %v1479, %v1483
    %v1518 = vunpack.c.l.b16 %v1447
    %v1519 = vunpack.c.l.b16 %v1448
    %v1520 = vunpack.c.l.b16 %v1449
    %v1521 = vunpack.c.l.b16 %v1450
    %v1522 = vunpack.c.l.b16 %v1451
    %v1523 = vunpack.c.l.b16 %v1452
    %v1524 = vunpack.c.l.b16 %v1453
    %v1525 = vunpack.c.l.b16 %v1454
    %v1526 = vunpack.c.l.b16 %v1455
    %v1527 = vunpack.c.l.b16 %v1456
    %v1528 = vunpack.c.l.b16 %v1457
    %v1529 = vunpack.c.l.b16 %v1458
    %v1530 = vunpack.c.l.b16 %v1459
    %v1531 = vunpack.c.l.b16 %v1460
    %v1532 = vunpack.c.l.b16 %v1461
    %v1533 = vunpack.c.l.b16 %v1462
    %v1534 = vunpack.c.l.b16 %v1463
    %v1535 = vunpack.c.l.b16 %v1464
    %v1536 = vunpack.c.l.b16 %v1465
    %v1537 = vunpack.c.l.b16 %v1466
    %v1538 = vunpack.c.l.b16 %v1467
    %v1539 = vunpack.c.l.b16 %v1468
    %v1540 = vunpack.c.l.b16 %v1469
    %v1541 = vunpack.c.l.b16 %v1470
    %v1542 = vunpack.c.l.b16 %v1471
    %v1543 = vunpack.c.l.b16 %v1472
    %v1544 = vunpack.c.l.b16 %v1473
    %v1545 = vunpack.c.l.b16 %v1474
    %v1546 = vunpack.c.l.b16 %v1475
    %v1547 = vunpack.c.l.b16 %v1476
    %v1548 = vunpack.c.l.b16 %v1477
    %v1549 = vunpack.c.l.b16 %v1478
    %v1550 = vpack.c.b16 %v1519, %v1518
    %v1551 = vpack.c.b16 %v1521, %v1520
    %v1552 = vpack.c.b16 %v1523, %v1522
    %v1553 = vpack.c.b16 %v1525, %v1524
    %v1554 = vpack.c.b16 %v1527, %v1526
    %v1555 = vpack.c.b16 %v1529, %v1528
    %v1556 = vpack.c.b16 %v1531, %v1530
    %v1557 = vpack.c.b16 %v1533, %v1532
    %v1558 = vpack.c.b16 %v1535, %v1534
    %v1559 = vpack.c.b16 %v1537, %v1536
    %v1560 = vpack.c.b16 %v1539, %v1538
    %v1561 = vpack.c.b16 %v1541, %v1540
    %v1562 = vpack.c.b16 %v1543, %v1542
    %v1563 = vpack.c.b16 %v1545, %v1544
    %v1564 = vpack.c.b16 %v1547, %v1546
    %v1565 = vpack.c.b16 %v1549, %v1548
    %1582 = vmatprep.subr.bf16.mxu0 0
    %1583 = vmatpush1.bf16.msra.mxu0 %v1557
    %1584 = vmatprep.subr.bf16.mxu0 0
    %1585 = vmatpush1.bf16.msra.mxu0 %v1556
    %1586 = vmatprep.subr.bf16.mxu0 0
    %1587 = vmatpush1.bf16.msra.mxu0 %v1555
    %1588 = vmatprep.subr.bf16.mxu0 0
    %1589 = vmatpush1.bf16.msra.mxu0 %v1554
    %1590 = vmatprep.subr.bf16.mxu0 0
    %1591 = vmatpush1.bf16.msra.mxu0 %v1553
    %1592 = vmatprep.subr.bf16.mxu0 0
    %1593 = vmatpush1.bf16.msra.mxu0 %v1552
    %1594 = vmatprep.subr.bf16.mxu0 0
    %1595 = vmatpush1.bf16.msra.mxu0 %v1551
    %1596 = vmatprep.subr.bf16.mxu0 0
    %1597 = vmatpush1.bf16.msra.mxu0 %v1550
    %1598 = vmatprep.subr.bf16.mxu0 0
    %1599 = vmatpush2.bf16.msra.mxu0 %v1565
    %1600 = vmatprep.subr.bf16.mxu0 0
    %1601 = vmatpush2.bf16.msra.mxu0 %v1564
    %1602 = vmatprep.subr.bf16.mxu0 0
    %1603 = vmatpush2.bf16.msra.mxu0 %v1563
    %1604 = vmatprep.subr.bf16.mxu0 0
    %1605 = vmatpush2.bf16.msra.mxu0 %v1562
    %1606 = vmatprep.subr.bf16.mxu0 0
    %1607 = vmatpush2.bf16.msra.mxu0 %v1561
    %1608 = vmatprep.subr.bf16.mxu0 0
    %1609 = vmatpush2.bf16.msra.mxu0 %v1560
    %1610 = vmatprep.subr.bf16.mxu0 0
    %1611 = vmatpush2.bf16.msra.mxu0 %v1559
    %1612 = vmatprep.subr.bf16.mxu0 0
    %1613 = vmatpush2.bf16.msra.mxu0 %v1558
    %1614 = vmatprep.mubr.bf16.mxu0 %v1444
    %1615 = vmatmul.mubr.bf16.gmra.mxu0 %v1443
    %v1616 = vpop.f32.mrf.mxu0
    %v1617 = vadd.f32 %v1484, %v1616
    %v1618 = vpop.f32.mrf.mxu0
    %v1619 = vpop.f32.mrf.mxu0
    %v1620 = vadd.f32 %v1484, %v1619
    %v1621 = vpop.f32.mrf.mxu0
    %1622 = vmatprep.mubr.bf16.mxu0 %v1446
    %1623 = vmatmul.mubr.bf16.gmra.mxu0 %v1445
    %v1624 = vpop.f32.mrf.mxu0
    %v1625 = vadd.f32 %v1484, %v1624
    %v1626 = vpop.f32.mrf.mxu0
    %v1627 = vpop.f32.mrf.mxu0
    %v1628 = vadd.f32 %v1484, %v1627
    %v1629 = vpop.f32.mrf.mxu0
    %1630 = vdwg.mxu0
    %v1631 = vadd.f32 %v994, %v1617
    %v1632 = vadd.f32 %v995, %v1620
    %v1633 = vadd.f32 %v996, %v1625
    %v1634 = vadd.f32 %v997, %v1628
    %s1635 = scalar_lea.vmem [#allocation7], 1
    %v1636 = vld [vmem:[%s1635] sm:$0x1]
    %s1637 = scalar_lea.vmem %s3, 1
    %v1638 = vld [vmem:[%s1637] sm:$0x1]
    %1639 = vadd.xlane.f32.xlu0 %v1631
    %v1640 = vpop.xlane.xlu0 %1639
    %1641 = vadd.xlane.f32.xlu0 %v1632
    %v1642 = vpop.xlane.xlu0 %1641
    %1643 = vadd.xlane.f32.xlu0 %v1633
    %v1644 = vpop.xlane.xlu0 %1643
    %1645 = vadd.xlane.f32.xlu0 %v1634
    %v1646 = vpop.xlane.xlu0 %1645
    %v1647 = vmul.f32 %v1640, %v310
    %v1648 = vmul.f32 %v1642, %v310
    %v1649 = vmul.f32 %v1644, %v310
    %v1650 = vmul.f32 %v1646, %v310
    %v1651 = vsub.f32 %v1631, %v1647
    %v1652 = vsub.f32 %v1632, %v1648
    %v1653 = vsub.f32 %v1633, %v1649
    %v1654 = vsub.f32 %v1634, %v1650
    %v1655 = vmul.f32 %v1651, %v1651
    %v1656 = vmul.f32 %v1652, %v1652
    %v1657 = vmul.f32 %v1653, %v1653
    %v1658 = vmul.f32 %v1654, %v1654
    %1659 = vadd.xlane.f32.xlu0 %v1655
    %v1660 = vpop.xlane.xlu0 %1659
    %1661 = vadd.xlane.f32.xlu0 %v1656
    %v1662 = vpop.xlane.xlu0 %1661
    %1663 = vadd.xlane.f32.xlu0 %v1657
    %v1664 = vpop.xlane.xlu0 %1663
    %1665 = vadd.xlane.f32.xlu0 %v1658
    %v1666 = vpop.xlane.xlu0 %1665
    %v1667 = vmul.f32 %v1660, %v310
    %v1668 = vmul.f32 %v1662, %v310
    %v1669 = vmul.f32 %v1664, %v310
    %v1670 = vmul.f32 %v1666, %v310
    %v1671 = vadd.f32 %v1667, 1e-05
    %v1672 = vadd.f32 %v1668, 1e-05
    %v1673 = vadd.f32 %v1669, 1e-05
    %v1674 = vadd.f32 %v1670, 1e-05
    %v1675 = vrsqrt.pop %v1671
    %v1676 = vrsqrt.pop %v1672
    %v1677 = vrsqrt.pop %v1673
    %v1678 = vrsqrt.pop %v1674
    %v1679 = vmul.f32 %v1651, %v1675
    %v1680 = vmul.f32 %v1652, %v1676
    %v1681 = vmul.f32 %v1653, %v1677
    %v1682 = vmul.f32 %v1654, %v1678
    %v1684 = vlaneseq
    %v1685 = vshrl.u32 %v1684, 7
    %v1686 = vsub.s32 0, %v1685
    %v1687 = vrot.slane %v1636, %v1686
    %v1689 = vmul.f32 %v1679, %v1687
    %v1690 = vmul.f32 %v1680, %v1687
    %v1691 = vmul.f32 %v1681, %v1687
    %v1692 = vmul.f32 %v1682, %v1687
    %v1694 = vlaneseq
    %v1695 = vshrl.u32 %v1694, 7
    %v1696 = vsub.s32 0, %v1695
    %v1697 = vrot.slane %v1638, %v1696
    %v1699 = vadd.f32 %v1689, %v1697
    %v1700 = vadd.f32 %v1690, %v1697
    %v1701 = vadd.f32 %v1691, %v1697
    %v1702 = vadd.f32 %v1692, %v1697
    %v1703 = vpack.c.bf16 %v1700, %v1699
    %v1704 = vpack.c.bf16 %v1702, %v1701
    %s1705 = scalar_lea.vmem [#allocation8], 192
    %v1706 = vld [vmem:[%s1705] sm:$0xff]
    %v1707 = vld [vmem:[%s1705 + $0x8] sm:$0xf]
    %v1708 = vld [vmem:[%s1705 + $0xc] sm:$0xff]
    %v1709 = vld [vmem:[%s1705 + $0x14] sm:$0xf]
    %v1710 = vld [vmem:[%s1705 + $0x18] sm:$0xff]
    %v1711 = vld [vmem:[%s1705 + $0x20] sm:$0xf]
    %v1712 = vld [vmem:[%s1705 + $0x24] sm:$0xff]
    %v1713 = vld [vmem:[%s1705 + $0x2c] sm:$0xf]
    %v1714 = vld [vmem:[%s1705 + $0x30] sm:$0xff]
    %v1715 = vld [vmem:[%s1705 + $0x38] sm:$0xf]
    %v1716 = vld [vmem:[%s1705 + $0x3c] sm:$0xff]
    %v1717 = vld [vmem:[%s1705 + $0x44] sm:$0xf]
    %v1718 = vld [vmem:[%s1705 + $0x48] sm:$0xff]
    %v1719 = vld [vmem:[%s1705 + $0x50] sm:$0xf]
    %v1720 = vld [vmem:[%s1705 + $0x54] sm:$0xff]
    %v1721 = vld [vmem:[%s1705 + $0x5c] sm:$0xf]
    %v1722 = vld [vmem:[%s1705 + $0x60] sm:$0xff]
    %v1723 = vld [vmem:[%s1705 + $0x68] sm:$0xf]
    %v1724 = vld [vmem:[%s1705 + $0x6c] sm:$0xff]
    %v1725 = vld [vmem:[%s1705 + $0x74] sm:$0xf]
    %v1726 = vld [vmem:[%s1705 + $0x78] sm:$0xff]
    %v1727 = vld [vmem:[%s1705 + $0x80] sm:$0xf]
    %v1728 = vld [vmem:[%s1705 + $0x84] sm:$0xff]
    %v1729 = vld [vmem:[%s1705 + $0x8c] sm:$0xf]
    %v1730 = vld [vmem:[%s1705 + $0x90] sm:$0xff]
    %v1731 = vld [vmem:[%s1705 + $0x98] sm:$0xf]
    %v1732 = vld [vmem:[%s1705 + $0x9c] sm:$0xff]
    %v1733 = vld [vmem:[%s1705 + $0xa4] sm:$0xf]
    %v1734 = vld [vmem:[%s1705 + $0xa8] sm:$0xff]
    %v1735 = vld [vmem:[%s1705 + $0xb0] sm:$0xf]
    %v1736 = vld [vmem:[%s1705 + $0xb4] sm:$0xff]
    %v1737 = vld [vmem:[%s1705 + $0xbc] sm:$0xf]
    %v1770 = vunpack.c.l.b16 %v1706
    %v1771 = vunpack.c.h.b16 %v1706
    %v1772 = vunpack.c.l.b16 %v1707
    %v1773 = vunpack.c.l.b16 %v1708
    %v1774 = vunpack.c.h.b16 %v1708
    %v1775 = vunpack.c.l.b16 %v1709
    %v1776 = vunpack.c.l.b16 %v1710
    %v1777 = vunpack.c.h.b16 %v1710
    %v1778 = vunpack.c.l.b16 %v1711
    %v1779 = vunpack.c.l.b16 %v1712
    %v1780 = vunpack.c.h.b16 %v1712
    %v1781 = vunpack.c.l.b16 %v1713
    %v1782 = vunpack.c.l.b16 %v1714
    %v1783 = vunpack.c.h.b16 %v1714
    %v1784 = vunpack.c.l.b16 %v1715
    %v1785 = vunpack.c.l.b16 %v1716
    %v1786 = vunpack.c.h.b16 %v1716
    %v1787 = vunpack.c.l.b16 %v1717
    %v1788 = vunpack.c.l.b16 %v1718
    %v1789 = vunpack.c.h.b16 %v1718
    %v1790 = vunpack.c.l.b16 %v1719
    %v1791 = vunpack.c.l.b16 %v1720
    %v1792 = vunpack.c.h.b16 %v1720
    %v1793 = vunpack.c.l.b16 %v1721
    %v1794 = vunpack.c.l.b16 %v1722
    %v1795 = vunpack.c.h.b16 %v1722
    %v1796 = vunpack.c.l.b16 %v1723
    %v1797 = vunpack.c.l.b16 %v1724
    %v1798 = vunpack.c.h.b16 %v1724
    %v1799 = vunpack.c.l.b16 %v1725
    %v1800 = vunpack.c.l.b16 %v1726
    %v1801 = vunpack.c.h.b16 %v1726
    %v1802 = vunpack.c.l.b16 %v1727
    %v1803 = vunpack.c.l.b16 %v1728
    %v1804 = vunpack.c.h.b16 %v1728
    %v1805 = vunpack.c.l.b16 %v1729
    %v1806 = vunpack.c.l.b16 %v1730
    %v1807 = vunpack.c.h.b16 %v1730
    %v1808 = vunpack.c.l.b16 %v1731
    %v1809 = vunpack.c.l.b16 %v1732
    %v1810 = vunpack.c.h.b16 %v1732
    %v1811 = vunpack.c.l.b16 %v1733
    %v1812 = vunpack.c.l.b16 %v1734
    %v1813 = vunpack.c.h.b16 %v1734
    %v1814 = vunpack.c.l.b16 %v1735
    %v1815 = vunpack.c.l.b16 %v1736
    %v1816 = vunpack.c.h.b16 %v1736
    %v1817 = vunpack.c.l.b16 %v1737
    %v1818 = vpack.c.b16 %v1773, %v1770
    %v1819 = vpack.c.b16 %v1774, %v1771
    %v1820 = vpack.c.b16 %v1775, %v1772
    %v1821 = vpack.c.b16 %v1779, %v1776
    %v1822 = vpack.c.b16 %v1780, %v1777
    %v1823 = vpack.c.b16 %v1781, %v1778
    %v1824 = vpack.c.b16 %v1785, %v1782
    %v1825 = vpack.c.b16 %v1786, %v1783
    %v1826 = vpack.c.b16 %v1787, %v1784
    %v1827 = vpack.c.b16 %v1791, %v1788
    %v1828 = vpack.c.b16 %v1792, %v1789
    %v1829 = vpack.c.b16 %v1793, %v1790
    %v1830 = vpack.c.b16 %v1797, %v1794
    %v1831 = vpack.c.b16 %v1798, %v1795
    %v1832 = vpack.c.b16 %v1799, %v1796
    %v1833 = vpack.c.b16 %v1803, %v1800
    %v1834 = vpack.c.b16 %v1804, %v1801
    %v1835 = vpack.c.b16 %v1805, %v1802
    %v1836 = vpack.c.b16 %v1809, %v1806
    %v1837 = vpack.c.b16 %v1810, %v1807
    %v1838 = vpack.c.b16 %v1811, %v1808
    %v1839 = vpack.c.b16 %v1815, %v1812
    %v1840 = vpack.c.b16 %v1816, %v1813
    %v1841 = vpack.c.b16 %v1817, %v1814
    %1866 = vmatprep.subr.bf16.mxu0 %v1840
    %1867 = vmatpush1.bf16.msra.mxu0 %v1839
    %1868 = vmatprep.subr.bf16.mxu0 %v1837
    %1869 = vmatpush1.bf16.msra.mxu0 %v1836
    %1870 = vmatprep.subr.bf16.mxu0 %v1834
    %1871 = vmatpush1.bf16.msra.mxu0 %v1833
    %1872 = vmatprep.subr.bf16.mxu0 %v1831
    %1873 = vmatpush1.bf16.msra.mxu0 %v1830
    %1874 = vmatprep.subr.bf16.mxu0 %v1828
    %1875 = vmatpush1.bf16.msra.mxu0 %v1827
    %1876 = vmatprep.subr.bf16.mxu0 %v1825
    %1877 = vmatpush1.bf16.msra.mxu0 %v1824
    %1878 = vmatprep.subr.bf16.mxu0 %v1822
    %1879 = vmatpush1.bf16.msra.mxu0 %v1821
    %1880 = vmatprep.subr.bf16.mxu0 %v1819
    %1881 = vmatpush1.bf16.msra.mxu0 %v1818
    %1882 = vmatprep.subr.bf16.mxu0 0
    %1883 = vmatpush2.bf16.msra.mxu0 0
    %1884 = vmatprep.subr.bf16.mxu0 0
    %1885 = vmatpush2.bf16.msra.mxu0 0
    %1886 = vmatprep.subr.bf16.mxu0 0
    %1887 = vmatpush2.bf16.msra.mxu0 0
    %1888 = vmatprep.subr.bf16.mxu0 0
    %1889 = vmatpush2.bf16.msra.mxu0 0
    %1890 = vmatprep.subr.bf16.mxu0 0
    %1891 = vmatpush2.bf16.msra.mxu0 0
    %1892 = vmatprep.subr.bf16.mxu0 0
    %1893 = vmatpush2.bf16.msra.mxu0 0
    %1894 = vmatprep.subr.bf16.mxu0 0
    %1895 = vmatpush2.bf16.msra.mxu0 0
    %1896 = vmatprep.subr.bf16.mxu0 0
    %1897 = vmatpush2.bf16.msra.mxu0 0
    %1898 = vmatprep.mubr.bf16.mxu0 0
    %1899 = vmatmul.mubr.bf16.gmra.mxu0 %v1703
    %v1900 = vpop.f32.mrf.mxu0
    %v1901 = vadd.f32 0.0, %v1900
    %v1902 = vpop.f32.mrf.mxu0
    %v1903 = vadd.f32 0.0, %v1902
    %v1904 = vpop.f32.mrf.mxu0
    %v1905 = vadd.f32 0.0, %v1904
    %v1906 = vpop.f32.mrf.mxu0
    %v1907 = vadd.f32 0.0, %v1906
    %1908 = vmatprep.mubr.bf16.mxu0 0
    %1909 = vmatmul.mubr.bf16.gmra.mxu0 %v1704
    %v1910 = vpop.f32.mrf.mxu0
    %v1911 = vadd.f32 0.0, %v1910
    %v1912 = vpop.f32.mrf.mxu0
    %v1913 = vadd.f32 0.0, %v1912
    %v1914 = vpop.f32.mrf.mxu0
    %v1915 = vadd.f32 0.0, %v1914
    %v1916 = vpop.f32.mrf.mxu0
    %v1917 = vadd.f32 0.0, %v1916
    %1918 = vdwg.mxu0
    %1919 = vmatprep.subr.bf16.mxu0 0
    %1920 = vmatpush1.bf16.msra.mxu0 %v1841
    %1921 = vmatprep.subr.bf16.mxu0 0
    %1922 = vmatpush1.bf16.msra.mxu0 %v1838
    %1923 = vmatprep.subr.bf16.mxu0 0
    %1924 = vmatpush1.bf16.msra.mxu0 %v1835
    %1925 = vmatprep.subr.bf16.mxu0 0
    %1926 = vmatpush1.bf16.msra.mxu0 %v1832
    %1927 = vmatprep.subr.bf16.mxu0 0
    %1928 = vmatpush1.bf16.msra.mxu0 %v1829
    %1929 = vmatprep.subr.bf16.mxu0 0
    %1930 = vmatpush1.bf16.msra.mxu0 %v1826
    %1931 = vmatprep.subr.bf16.mxu0 0
    %1932 = vmatpush1.bf16.msra.mxu0 %v1823
    %1933 = vmatprep.subr.bf16.mxu0 0
    %1934 = vmatpush1.bf16.msra.mxu0 %v1820
    %1935 = vmatprep.subr.bf16.mxu0 0
    %1936 = vmatpush2.bf16.msra.mxu0 0
    %1937 = vmatprep.subr.bf16.mxu0 0
    %1938 = vmatpush2.bf16.msra.mxu0 0
    %1939 = vmatprep.subr.bf16.mxu0 0
    %1940 = vmatpush2.bf16.msra.mxu0 0
    %1941 = vmatprep.subr.bf16.mxu0 0
    %1942 = vmatpush2.bf16.msra.mxu0 0
    %1943 = vmatprep.subr.bf16.mxu0 0
    %1944 = vmatpush2.bf16.msra.mxu0 0
    %1945 = vmatprep.subr.bf16.mxu0 0
    %1946 = vmatpush2.bf16.msra.mxu0 0
    %1947 = vmatprep.subr.bf16.mxu0 0
    %1948 = vmatpush2.bf16.msra.mxu0 0
    %1949 = vmatprep.subr.bf16.mxu0 0
    %1950 = vmatpush2.bf16.msra.mxu0 0
    %1951 = vmatprep.mubr.bf16.mxu0 0
    %1952 = vmatmul.mubr.bf16.gmra.mxu0 %v1703
    %v1953 = vpop.f32.mrf.mxu0
    %v1954 = vadd.f32 0.0, %v1953
    %v1955 = vpop.f32.mrf.mxu0
    %v1956 = vpop.f32.mrf.mxu0
    %v1957 = vadd.f32 0.0, %v1956
    %v1958 = vpop.f32.mrf.mxu0
    %1959 = vmatprep.mubr.bf16.mxu0 0
    %1960 = vmatmul.mubr.bf16.gmra.mxu0 %v1704
    %v1961 = vpop.f32.mrf.mxu0
    %v1962 = vadd.f32 0.0, %v1961
    %v1963 = vpop.f32.mrf.mxu0
    %v1964 = vpop.f32.mrf.mxu0
    %v1965 = vadd.f32 0.0, %v1964
    %v1966 = vpop.f32.mrf.mxu0
    %1967 = vdwg.mxu0
    %1968 = vmatprep.subr.mxu0 0.0
    %1969 = vmatpush1.xpose.msra.mxu0 0.0
    %1970 = vmatprep.subr.mxu0 0.0
    %1971 = vmatpush1.xpose.msra.mxu0 0.0
    %1972 = vmatprep.subr.mxu0 0.0
    %1973 = vmatpush1.xpose.msra.mxu0 0.0
    %1974 = vmatprep.subr.mxu0 0.0
    %1975 = vmatpush1.xpose.msra.mxu0 0.0
    %1976 = vmatprep.subr.mxu0 0.0
    %1977 = vmatpush1.xpose.msra.mxu0 0.0
    %1978 = vmatprep.subr.mxu0 0.0
    %1979 = vmatpush1.xpose.msra.mxu0 0.0
    %1980 = vmatprep.subr.mxu0 0.0
    %1981 = vmatpush1.xpose.msra.mxu0 0.0
    %1982 = vmatprep.subr.mxu0 0.0
    %1983 = vmatpush1.xpose.msra.mxu0 0.0
    %1984 = vmatprep.subr.mxu0 0.0
    %1985 = vmatpush1.xpose.msra.mxu0 0.0
    %1986 = vmatprep.subr.mxu0 0.0
    %1987 = vmatpush1.xpose.msra.mxu0 0.0
    %1988 = vmatprep.subr.mxu0 0.0
    %1989 = vmatpush1.xpose.msra.mxu0 0.0
    %1990 = vmatprep.subr.mxu0 0.0
    %1991 = vmatpush1.xpose.msra.mxu0 0.0
    %1992 = vmatprep.subr.mxu0 0.0
    %1993 = vmatpush1.xpose.msra.mxu0 0.0
    %1994 = vmatprep.subr.mxu0 0.0
    %1995 = vmatpush1.xpose.msra.mxu0 0.0
    %1996 = vmatprep.subr.mxu0 0.0
    %1997 = vmatpush1.xpose.msra.mxu0 %v1907
    %1998 = vmatprep.subr.mxu0 0.0
    %1999 = vmatpush1.xpose.msra.mxu0 %v1903
    %2000 = vmatprep.subr.mxu0 0.0
    %2001 = vmatpush2.xpose.msra.mxu0 0.0
    %2002 = vmatprep.subr.mxu0 0.0
    %2003 = vmatpush2.xpose.msra.mxu0 0.0
    %2004 = vmatprep.subr.mxu0 0.0
    %2005 = vmatpush2.xpose.msra.mxu0 0.0
    %2006 = vmatprep.subr.mxu0 0.0
    %2007 = vmatpush2.xpose.msra.mxu0 0.0
    %2008 = vmatprep.subr.mxu0 0.0
    %2009 = vmatpush2.xpose.msra.mxu0 0.0
    %2010 = vmatprep.subr.mxu0 0.0
    %2011 = vmatpush2.xpose.msra.mxu0 0.0
    %2012 = vmatprep.subr.mxu0 0.0
    %2013 = vmatpush2.xpose.msra.mxu0 0.0
    %2014 = vmatprep.subr.mxu0 0.0
    %2015 = vmatpush2.xpose.msra.mxu0 0.0
    %2016 = vmatprep.subr.mxu0 0.0
    %2017 = vmatpush2.xpose.msra.mxu0 0.0
    %2018 = vmatprep.subr.mxu0 0.0
    %2019 = vmatpush2.xpose.msra.mxu0 0.0
    %2020 = vmatprep.subr.mxu0 0.0
    %2021 = vmatpush2.xpose.msra.mxu0 0.0
    %2022 = vmatprep.subr.mxu0 0.0
    %2023 = vmatpush2.xpose.msra.mxu0 0.0
    %2024 = vmatprep.subr.mxu0 0.0
    %2025 = vmatpush2.xpose.msra.mxu0 0.0
    %2026 = vmatprep.subr.mxu0 0.0
    %2027 = vmatpush2.xpose.msra.mxu0 0.0
    %2028 = vmatprep.subr.mxu0 0.0
    %2029 = vmatpush2.xpose.msra.mxu0 0.0
    %2030 = vmatprep.subr.mxu0 0.0
    %2031 = vmatpush2.xpose.msra.mxu0 0.0
    %2032 = vmatprep.mubr.f32.mxu0 0.0
    %2033 = vmatmul.mubr.f32.gmra.mxu0 %v1901
    %v2034 = vpop.f32.mrf.mxu0
    %v2035 = vadd.f32 0.0, %v2034
    %v2036 = vpop.f32.mrf.mxu0
    %2037 = vmatprep.mubr.f32.mxu0 0.0
    %2038 = vmatmul.mubr.f32.gmra.mxu0 %v1905
    %v2039 = vpop.f32.mrf.mxu0
    %v2040 = vadd.f32 0.0, %v2039
    %v2041 = vpop.f32.mrf.mxu0
    %2042 = vdwg.mxu0
    %2043 = vmatprep.subr.mxu0 0.0
    %2044 = vmatpush1.xpose.msra.mxu0 0.0
    %2045 = vmatprep.subr.mxu0 0.0
    %2046 = vmatpush1.xpose.msra.mxu0 0.0
    %2047 = vmatprep.subr.mxu0 0.0
    %2048 = vmatpush1.xpose.msra.mxu0 0.0
    %2049 = vmatprep.subr.mxu0 0.0
    %2050 = vmatpush1.xpose.msra.mxu0 0.0
    %2051 = vmatprep.subr.mxu0 0.0
    %2052 = vmatpush1.xpose.msra.mxu0 0.0
    %2053 = vmatprep.subr.mxu0 0.0
    %2054 = vmatpush1.xpose.msra.mxu0 0.0
    %2055 = vmatprep.subr.mxu0 0.0
    %2056 = vmatpush1.xpose.msra.mxu0 0.0
    %2057 = vmatprep.subr.mxu0 0.0
    %2058 = vmatpush1.xpose.msra.mxu0 0.0
    %2059 = vmatprep.subr.mxu0 0.0
    %2060 = vmatpush1.xpose.msra.mxu0 0.0
    %2061 = vmatprep.subr.mxu0 0.0
    %2062 = vmatpush1.xpose.msra.mxu0 0.0
    %2063 = vmatprep.subr.mxu0 0.0
    %2064 = vmatpush1.xpose.msra.mxu0 0.0
    %2065 = vmatprep.subr.mxu0 0.0
    %2066 = vmatpush1.xpose.msra.mxu0 0.0
    %2067 = vmatprep.subr.mxu0 0.0
    %2068 = vmatpush1.xpose.msra.mxu0 0.0
    %2069 = vmatprep.subr.mxu0 0.0
    %2070 = vmatpush1.xpose.msra.mxu0 0.0
    %2071 = vmatprep.subr.mxu0 0.0
    %2072 = vmatpush1.xpose.msra.mxu0 %v1917
    %2073 = vmatprep.subr.mxu0 0.0
    %2074 = vmatpush1.xpose.msra.mxu0 %v1913
    %2075 = vmatprep.subr.mxu0 0.0
    %2076 = vmatpush2.xpose.msra.mxu0 0.0
    %2077 = vmatprep.subr.mxu0 0.0
    %2078 = vmatpush2.xpose.msra.mxu0 0.0
    %2079 = vmatprep.subr.mxu0 0.0
    %2080 = vmatpush2.xpose.msra.mxu0 0.0
    %2081 = vmatprep.subr.mxu0 0.0
    %2082 = vmatpush2.xpose.msra.mxu0 0.0
    %2083 = vmatprep.subr.mxu0 0.0
    %2084 = vmatpush2.xpose.msra.mxu0 0.0
    %2085 = vmatprep.subr.mxu0 0.0
    %2086 = vmatpush2.xpose.msra.mxu0 0.0
    %2087 = vmatprep.subr.mxu0 0.0
    %2088 = vmatpush2.xpose.msra.mxu0 0.0
    %2089 = vmatprep.subr.mxu0 0.0
    %2090 = vmatpush2.xpose.msra.mxu0 0.0
    %2091 = vmatprep.subr.mxu0 0.0
    %2092 = vmatpush2.xpose.msra.mxu0 0.0
    %2093 = vmatprep.subr.mxu0 0.0
    %2094 = vmatpush2.xpose.msra.mxu0 0.0
    %2095 = vmatprep.subr.mxu0 0.0
    %2096 = vmatpush2.xpose.msra.mxu0 0.0
    %2097 = vmatprep.subr.mxu0 0.0
    %2098 = vmatpush2.xpose.msra.mxu0 0.0
    %2099 = vmatprep.subr.mxu0 0.0
    %2100 = vmatpush2.xpose.msra.mxu0 0.0
    %2101 = vmatprep.subr.mxu0 0.0
    %2102 = vmatpush2.xpose.msra.mxu0 0.0
    %2103 = vmatprep.subr.mxu0 0.0
    %2104 = vmatpush2.xpose.msra.mxu0 0.0
    %2105 = vmatprep.subr.mxu0 0.0
    %2106 = vmatpush2.xpose.msra.mxu0 0.0
    %2107 = vmatprep.mubr.f32.mxu0 0.0
    %2108 = vmatmul.mubr.f32.gmra.mxu0 %v1911
    %v2109 = vpop.f32.mrf.mxu0
    %v2110 = vadd.f32 0.0, %v2109
    %v2111 = vpop.f32.mrf.mxu0
    %2112 = vmatprep.mubr.f32.mxu0 0.0
    %2113 = vmatmul.mubr.f32.gmra.mxu0 %v1915
    %v2114 = vpop.f32.mrf.mxu0
    %v2115 = vadd.f32 0.0, %v2114
    %v2116 = vpop.f32.mrf.mxu0
    %2117 = vdwg.mxu0
    %v2118 = vsel %vm782, %v2035, -1e+30
    %v2119 = vsel %vm782, %v2040, -1e+30
    %v2120 = vsel %vm782, %v2110, -1e+30
    %v2121 = vsel %vm782, %v2115, -1e+30
    %v2122 = vsel %vm787, %v2118, -inf
    %2123 = vmax.xlane.f32.xlu0 %v2122
    %v2124 = vpop.xlane.xlu0 %2123
    %v2125 = vsel %vm787, %v2119, -inf
    %2126 = vmax.xlane.f32.xlu0 %v2125
    %v2127 = vpop.xlane.xlu0 %2126
    %v2128 = vsel %vm787, %v2120, -inf
    %2129 = vmax.xlane.f32.xlu0 %v2128
    %v2130 = vpop.xlane.xlu0 %2129
    %v2131 = vsel %vm787, %v2121, -inf
    %2132 = vmax.xlane.f32.xlu0 %v2131
    %v2133 = vpop.xlane.xlu0 %2132
    %v2134 = vsub.f32 %v2118, %v2124
    %v2135 = vsub.f32 %v2119, %v2127
    %v2136 = vsub.f32 %v2120, %v2130
    %v2137 = vsub.f32 %v2121, %v2133
    %v2138 = vmul.f32 %v2134, 1.442695
    %v2139 = vpow.pop %v2138
    %v2140 = vmul.f32 %v2135, 1.442695
    %v2141 = vpow.pop %v2140
    %v2142 = vmul.f32 %v2136, 1.442695
    %v2143 = vpow.pop %v2142
    %v2144 = vmul.f32 %v2137, 1.442695
    %v2145 = vpow.pop %v2144
    %v2146 = vsel %vm787, %v2139, 0.0
    %2147 = vadd.xlane.f32.xlu0 %v2146
    %v2148 = vpop.xlane.xlu0 %2147
    %v2149 = vsel %vm787, %v2141, 0.0
    %2150 = vadd.xlane.f32.xlu0 %v2149
    %v2151 = vpop.xlane.xlu0 %2150
    %v2152 = vsel %vm787, %v2143, 0.0
    %2153 = vadd.xlane.f32.xlu0 %v2152
    %v2154 = vpop.xlane.xlu0 %2153
    %v2155 = vsel %vm787, %v2145, 0.0
    %2156 = vadd.xlane.f32.xlu0 %v2155
    %v2157 = vpop.xlane.xlu0 %2156
    %v2158 = vrcp.pop %v2148
    %v2159 = vrcp.pop %v2151
    %v2160 = vrcp.pop %v2154
    %v2161 = vrcp.pop %v2157
    %v2162 = vmul.f32 %v2139, %v2158
    %v2163 = vmul.f32 %v2141, %v2159
    %v2164 = vmul.f32 %v2143, %v2160
    %v2165 = vmul.f32 %v2145, %v2161
    %v2167 = vsel %vm787, %v2162, 0
    %v2170 = vsel %vm787, %v2163, 0
    %2172 = vmatprep.subr.mxu0 0.0
    %2173 = vmatpush1.msra.mxu0 0.0
    %2174 = vmatprep.subr.mxu0 0.0
    %2175 = vmatpush1.msra.mxu0 0.0
    %2176 = vmatprep.subr.mxu0 0.0
    %2177 = vmatpush1.msra.mxu0 0.0
    %2178 = vmatprep.subr.mxu0 0.0
    %2179 = vmatpush1.msra.mxu0 0.0
    %2180 = vmatprep.subr.mxu0 0.0
    %2181 = vmatpush1.msra.mxu0 0.0
    %2182 = vmatprep.subr.mxu0 0.0
    %2183 = vmatpush1.msra.mxu0 0.0
    %2184 = vmatprep.subr.mxu0 0.0
    %2185 = vmatpush1.msra.mxu0 0.0
    %2186 = vmatprep.subr.mxu0 0.0
    %2187 = vmatpush1.msra.mxu0 0.0
    %2188 = vmatprep.subr.mxu0 0.0
    %2189 = vmatpush1.msra.mxu0 0.0
    %2190 = vmatprep.subr.mxu0 0.0
    %2191 = vmatpush1.msra.mxu0 0.0
    %2192 = vmatprep.subr.mxu0 0.0
    %2193 = vmatpush1.msra.mxu0 0.0
    %2194 = vmatprep.subr.mxu0 0.0
    %2195 = vmatpush1.msra.mxu0 0.0
    %2196 = vmatprep.subr.mxu0 0.0
    %2197 = vmatpush1.msra.mxu0 0.0
    %2198 = vmatprep.subr.mxu0 0.0
    %2199 = vmatpush1.msra.mxu0 0.0
    %2200 = vmatprep.subr.mxu0 0.0
    %2201 = vmatpush1.msra.mxu0 %v1957
    %2202 = vmatprep.subr.mxu0 0.0
    %2203 = vmatpush1.msra.mxu0 %v1954
    %2204 = vmatprep.subr.mxu0 0.0
    %2205 = vmatpush2.msra.mxu0 0.0
    %2206 = vmatprep.subr.mxu0 0.0
    %2207 = vmatpush2.msra.mxu0 0.0
    %2208 = vmatprep.subr.mxu0 0.0
    %2209 = vmatpush2.msra.mxu0 0.0
    %2210 = vmatprep.subr.mxu0 0.0
    %2211 = vmatpush2.msra.mxu0 0.0
    %2212 = vmatprep.subr.mxu0 0.0
    %2213 = vmatpush2.msra.mxu0 0.0
    %2214 = vmatprep.subr.mxu0 0.0
    %2215 = vmatpush2.msra.mxu0 0.0
    %2216 = vmatprep.subr.mxu0 0.0
    %2217 = vmatpush2.msra.mxu0 0.0
    %2218 = vmatprep.subr.mxu0 0.0
    %2219 = vmatpush2.msra.mxu0 0.0
    %2220 = vmatprep.subr.mxu0 0.0
    %2221 = vmatpush2.msra.mxu0 0.0
    %2222 = vmatprep.subr.mxu0 0.0
    %2223 = vmatpush2.msra.mxu0 0.0
    %2224 = vmatprep.subr.mxu0 0.0
    %2225 = vmatpush2.msra.mxu0 0.0
    %2226 = vmatprep.subr.mxu0 0.0
    %2227 = vmatpush2.msra.mxu0 0.0
    %2228 = vmatprep.subr.mxu0 0.0
    %2229 = vmatpush2.msra.mxu0 0.0
    %2230 = vmatprep.subr.mxu0 0.0
    %2231 = vmatpush2.msra.mxu0 0.0
    %2232 = vmatprep.subr.mxu0 0.0
    %2233 = vmatpush2.msra.mxu0 0.0
    %2234 = vmatprep.subr.mxu0 0.0
    %2235 = vmatpush2.msra.mxu0 0.0
    %2236 = vmatprep.mubr.f32.mxu0 0.0
    %2237 = vmatmul.mubr.f32.gmra.mxu0 %v2167
    %v2238 = vpop.f32.mrf.mxu0
    %v2239 = vadd.f32 0.0, %v2238
    %v2240 = vpop.f32.mrf.mxu0
    %2241 = vmatprep.mubr.f32.mxu0 0.0
    %2242 = vmatmul.mubr.f32.gmra.mxu0 %v2170
    %v2243 = vpop.f32.mrf.mxu0
    %v2244 = vadd.f32 0.0, %v2243
    %v2245 = vpop.f32.mrf.mxu0
    %2246 = vdwg.mxu0
    %v2248 = vsel %vm787, %v2164, 0
    %v2251 = vsel %vm787, %v2165, 0
    %2253 = vmatprep.subr.mxu0 0.0
    %2254 = vmatpush1.msra.mxu0 0.0
    %2255 = vmatprep.subr.mxu0 0.0
    %2256 = vmatpush1.msra.mxu0 0.0
    %2257 = vmatprep.subr.mxu0 0.0
    %2258 = vmatpush1.msra.mxu0 0.0
    %2259 = vmatprep.subr.mxu0 0.0
    %2260 = vmatpush1.msra.mxu0 0.0
    %2261 = vmatprep.subr.mxu0 0.0
    %2262 = vmatpush1.msra.mxu0 0.0
    %2263 = vmatprep.subr.mxu0 0.0
    %2264 = vmatpush1.msra.mxu0 0.0
    %2265 = vmatprep.subr.mxu0 0.0
    %2266 = vmatpush1.msra.mxu0 0.0
    %2267 = vmatprep.subr.mxu0 0.0
    %2268 = vmatpush1.msra.mxu0 0.0
    %2269 = vmatprep.subr.mxu0 0.0
    %2270 = vmatpush1.msra.mxu0 0.0
    %2271 = vmatprep.subr.mxu0 0.0
    %2272 = vmatpush1.msra.mxu0 0.0
    %2273 = vmatprep.subr.mxu0 0.0
    %2274 = vmatpush1.msra.mxu0 0.0
    %2275 = vmatprep.subr.mxu0 0.0
    %2276 = vmatpush1.msra.mxu0 0.0
    %2277 = vmatprep.subr.mxu0 0.0
    %2278 = vmatpush1.msra.mxu0 0.0
    %2279 = vmatprep.subr.mxu0 0.0
    %2280 = vmatpush1.msra.mxu0 0.0
    %2281 = vmatprep.subr.mxu0 0.0
    %2282 = vmatpush1.msra.mxu0 %v1965
    %2283 = vmatprep.subr.mxu0 0.0
    %2284 = vmatpush1.msra.mxu0 %v1962
    %2285 = vmatprep.subr.mxu0 0.0
    %2286 = vmatpush2.msra.mxu0 0.0
    %2287 = vmatprep.subr.mxu0 0.0
    %2288 = vmatpush2.msra.mxu0 0.0
    %2289 = vmatprep.subr.mxu0 0.0
    %2290 = vmatpush2.msra.mxu0 0.0
    %2291 = vmatprep.subr.mxu0 0.0
    %2292 = vmatpush2.msra.mxu0 0.0
    %2293 = vmatprep.subr.mxu0 0.0
    %2294 = vmatpush2.msra.mxu0 0.0
    %2295 = vmatprep.subr.mxu0 0.0
    %2296 = vmatpush2.msra.mxu0 0.0
    %2297 = vmatprep.subr.mxu0 0.0
    %2298 = vmatpush2.msra.mxu0 0.0
    %2299 = vmatprep.subr.mxu0 0.0
    %2300 = vmatpush2.msra.mxu0 0.0
    %2301 = vmatprep.subr.mxu0 0.0
    %2302 = vmatpush2.msra.mxu0 0.0
    %2303 = vmatprep.subr.mxu0 0.0
    %2304 = vmatpush2.msra.mxu0 0.0
    %2305 = vmatprep.subr.mxu0 0.0
    %2306 = vmatpush2.msra.mxu0 0.0
    %2307 = vmatprep.subr.mxu0 0.0
    %2308 = vmatpush2.msra.mxu0 0.0
    %2309 = vmatprep.subr.mxu0 0.0
    %2310 = vmatpush2.msra.mxu0 0.0
    %2311 = vmatprep.subr.mxu0 0.0
    %2312 = vmatpush2.msra.mxu0 0.0
    %2313 = vmatprep.subr.mxu0 0.0
    %2314 = vmatpush2.msra.mxu0 0.0
    %2315 = vmatprep.subr.mxu0 0.0
    %2316 = vmatpush2.msra.mxu0 0.0
    %2317 = vmatprep.mubr.f32.mxu0 0.0
    %2318 = vmatmul.mubr.f32.gmra.mxu0 %v2248
    %v2319 = vpop.f32.mrf.mxu0
    %v2320 = vadd.f32 0.0, %v2319
    %v2321 = vpop.f32.mrf.mxu0
    %2322 = vmatprep.mubr.f32.mxu0 0.0
    %2323 = vmatmul.mubr.f32.gmra.mxu0 %v2251
    %v2324 = vpop.f32.mrf.mxu0
    %v2325 = vadd.f32 0.0, %v2324
    %v2326 = vpop.f32.mrf.mxu0
    %2327 = vdwg.mxu0
    %v2328 = vadd.f32 %v1631, %v2239
    %v2329 = vadd.f32 %v1632, %v2244
    %v2330 = vadd.f32 %v1633, %v2320
    %v2331 = vadd.f32 %v1634, %v2325
    %s2332 = scalar_lea.vmem [#allocation10], 1
    %v2333 = vld [vmem:[%s2332] sm:$0x1]
    %s2334 = scalar_lea.vmem [#allocation11], 1
    %v2335 = vld [vmem:[%s2334] sm:$0x1]
    %2336 = vadd.xlane.f32.xlu0 %v2328
    %v2337 = vpop.xlane.xlu0 %2336
    %2338 = vadd.xlane.f32.xlu0 %v2329
    %v2339 = vpop.xlane.xlu0 %2338
    %2340 = vadd.xlane.f32.xlu0 %v2330
    %v2341 = vpop.xlane.xlu0 %2340
    %2342 = vadd.xlane.f32.xlu0 %v2331
    %v2343 = vpop.xlane.xlu0 %2342
    %v2344 = vmul.f32 %v2337, %v310
    %v2345 = vmul.f32 %v2339, %v310
    %v2346 = vmul.f32 %v2341, %v310
    %v2347 = vmul.f32 %v2343, %v310
    %v2348 = vsub.f32 %v2328, %v2344
    %v2349 = vsub.f32 %v2329, %v2345
    %v2350 = vsub.f32 %v2330, %v2346
    %v2351 = vsub.f32 %v2331, %v2347
    %v2352 = vmul.f32 %v2348, %v2348
    %v2353 = vmul.f32 %v2349, %v2349
    %v2354 = vmul.f32 %v2350, %v2350
    %v2355 = vmul.f32 %v2351, %v2351
    %2356 = vadd.xlane.f32.xlu0 %v2352
    %v2357 = vpop.xlane.xlu0 %2356
    %2358 = vadd.xlane.f32.xlu0 %v2353
    %v2359 = vpop.xlane.xlu0 %2358
    %2360 = vadd.xlane.f32.xlu0 %v2354
    %v2361 = vpop.xlane.xlu0 %2360
    %2362 = vadd.xlane.f32.xlu0 %v2355
    %v2363 = vpop.xlane.xlu0 %2362
    %v2364 = vmul.f32 %v2357, %v310
    %v2365 = vmul.f32 %v2359, %v310
    %v2366 = vmul.f32 %v2361, %v310
    %v2367 = vmul.f32 %v2363, %v310
    %v2368 = vadd.f32 %v2364, 1e-05
    %v2369 = vadd.f32 %v2365, 1e-05
    %v2370 = vadd.f32 %v2366, 1e-05
    %v2371 = vadd.f32 %v2367, 1e-05
    %v2372 = vrsqrt.pop %v2368
    %v2373 = vrsqrt.pop %v2369
    %v2374 = vrsqrt.pop %v2370
    %v2375 = vrsqrt.pop %v2371
    %v2376 = vmul.f32 %v2348, %v2372
    %v2377 = vmul.f32 %v2349, %v2373
    %v2378 = vmul.f32 %v2350, %v2374
    %v2379 = vmul.f32 %v2351, %v2375
    %v2381 = vlaneseq
    %v2382 = vshrl.u32 %v2381, 7
    %v2383 = vsub.s32 0, %v2382
    %v2384 = vrot.slane %v2333, %v2383
    %v2386 = vmul.f32 %v2376, %v2384
    %v2387 = vmul.f32 %v2377, %v2384
    %v2388 = vmul.f32 %v2378, %v2384
    %v2389 = vmul.f32 %v2379, %v2384
    %v2391 = vlaneseq
    %v2392 = vshrl.u32 %v2391, 7
    %v2393 = vsub.s32 0, %v2392
    %v2394 = vrot.slane %v2335, %v2393
    %v2396 = vadd.f32 %v2386, %v2394
    %v2397 = vadd.f32 %v2387, %v2394
    %v2398 = vadd.f32 %v2388, %v2394
    %v2399 = vadd.f32 %v2389, %v2394
    %v2400 = vpack.c.bf16 %v2397, %v2396
    %v2401 = vpack.c.bf16 %v2399, %v2398
    %s2402 = scalar_lea.vmem [#allocation13], 128
    %v2403 = vld [vmem:[%s2402] sm:$0xff]
    %v2404 = vld [vmem:[%s2402 + $0x8] sm:$0xff]
    %v2405 = vld [vmem:[%s2402 + $0x10] sm:$0xff]
    %v2406 = vld [vmem:[%s2402 + $0x18] sm:$0xff]
    %v2407 = vld [vmem:[%s2402 + $0x20] sm:$0xff]
    %v2408 = vld [vmem:[%s2402 + $0x28] sm:$0xff]
    %v2409 = vld [vmem:[%s2402 + $0x30] sm:$0xff]
    %v2410 = vld [vmem:[%s2402 + $0x38] sm:$0xff]
    %v2411 = vld [vmem:[%s2402 + $0x40] sm:$0xff]
    %v2412 = vld [vmem:[%s2402 + $0x48] sm:$0xff]
    %v2413 = vld [vmem:[%s2402 + $0x50] sm:$0xff]
    %v2414 = vld [vmem:[%s2402 + $0x58] sm:$0xff]
    %v2415 = vld [vmem:[%s2402 + $0x60] sm:$0xff]
    %v2416 = vld [vmem:[%s2402 + $0x68] sm:$0xff]
    %v2417 = vld [vmem:[%s2402 + $0x70] sm:$0xff]
    %v2418 = vld [vmem:[%s2402 + $0x78] sm:$0xff]
    %s2419 = scalar_lea.vmem %s8, 2
    %v2420 = vld [vmem:[%s2419] sm:$0x3]
    %v2422 = vlaneseq
    %v2423 = vshrl.u32 %v2422, 7
    %v2424 = vsub.s32 0, %v2423
    %v2425 = vrot.slane %v2420, %v2424
    %v2426 = vlaneseq
    %v2427 = vshrl.u32 %v2426, 7
    %v2428 = vsub.s32 1, %v2427
    %v2429 = vrot.slane %v2420, %v2428
    %v2448 = vunpack.c.l.b16 %v2403
    %v2449 = vunpack.c.h.b16 %v2403
    %v2450 = vunpack.c.l.b16 %v2404
    %v2451 = vunpack.c.h.b16 %v2404
    %v2452 = vunpack.c.l.b16 %v2405
    %v2453 = vunpack.c.h.b16 %v2405
    %v2454 = vunpack.c.l.b16 %v2406
    %v2455 = vunpack.c.h.b16 %v2406
    %v2456 = vunpack.c.l.b16 %v2407
    %v2457 = vunpack.c.h.b16 %v2407
    %v2458 = vunpack.c.l.b16 %v2408
    %v2459 = vunpack.c.h.b16 %v2408
    %v2460 = vunpack.c.l.b16 %v2409
    %v2461 = vunpack.c.h.b16 %v2409
    %v2462 = vunpack.c.l.b16 %v2410
    %v2463 = vunpack.c.h.b16 %v2410
    %v2464 = vunpack.c.l.b16 %v2411
    %v2465 = vunpack.c.h.b16 %v2411
    %v2466 = vunpack.c.l.b16 %v2412
    %v2467 = vunpack.c.h.b16 %v2412
    %v2468 = vunpack.c.l.b16 %v2413
    %v2469 = vunpack.c.h.b16 %v2413
    %v2470 = vunpack.c.l.b16 %v2414
    %v2471 = vunpack.c.h.b16 %v2414
    %v2472 = vunpack.c.l.b16 %v2415
    %v2473 = vunpack.c.h.b16 %v2415
    %v2474 = vunpack.c.l.b16 %v2416
    %v2475 = vunpack.c.h.b16 %v2416
    %v2476 = vunpack.c.l.b16 %v2417
    %v2477 = vunpack.c.h.b16 %v2417
    %v2478 = vunpack.c.l.b16 %v2418
    %v2479 = vunpack.c.h.b16 %v2418
    %v2480 = vpack.c.b16 %v2450, %v2448
    %v2481 = vpack.c.b16 %v2451, %v2449
    %v2482 = vpack.c.b16 %v2454, %v2452
    %v2483 = vpack.c.b16 %v2455, %v2453
    %v2484 = vpack.c.b16 %v2458, %v2456
    %v2485 = vpack.c.b16 %v2459, %v2457
    %v2486 = vpack.c.b16 %v2462, %v2460
    %v2487 = vpack.c.b16 %v2463, %v2461
    %v2488 = vpack.c.b16 %v2466, %v2464
    %v2489 = vpack.c.b16 %v2467, %v2465
    %v2490 = vpack.c.b16 %v2470, %v2468
    %v2491 = vpack.c.b16 %v2471, %v2469
    %v2492 = vpack.c.b16 %v2474, %v2472
    %v2493 = vpack.c.b16 %v2475, %v2473
    %v2494 = vpack.c.b16 %v2478, %v2476
    %v2495 = vpack.c.b16 %v2479, %v2477
    %2512 = vmatprep.subr.bf16.mxu0 %v2495
    %2513 = vmatpush1.bf16.msra.mxu0 %v2494
    %2514 = vmatprep.subr.bf16.mxu0 %v2493
    %2515 = vmatpush1.bf16.msra.mxu0 %v2492
    %2516 = vmatprep.subr.bf16.mxu0 %v2491
    %2517 = vmatpush1.bf16.msra.mxu0 %v2490
    %2518 = vmatprep.subr.bf16.mxu0 %v2489
    %2519 = vmatpush1.bf16.msra.mxu0 %v2488
    %2520 = vmatprep.subr.bf16.mxu0 %v2487
    %2521 = vmatpush1.bf16.msra.mxu0 %v2486
    %2522 = vmatprep.subr.bf16.mxu0 %v2485
    %2523 = vmatpush1.bf16.msra.mxu0 %v2484
    %2524 = vmatprep.subr.bf16.mxu0 %v2483
    %2525 = vmatpush1.bf16.msra.mxu0 %v2482
    %2526 = vmatprep.subr.bf16.mxu0 %v2481
    %2527 = vmatpush1.bf16.msra.mxu0 %v2480
    %2528 = vmatprep.subr.bf16.mxu0 0
    %2529 = vmatpush2.bf16.msra.mxu0 0
    %2530 = vmatprep.subr.bf16.mxu0 0
    %2531 = vmatpush2.bf16.msra.mxu0 0
    %2532 = vmatprep.subr.bf16.mxu0 0
    %2533 = vmatpush2.bf16.msra.mxu0 0
    %2534 = vmatprep.subr.bf16.mxu0 0
    %2535 = vmatpush2.bf16.msra.mxu0 0
    %2536 = vmatprep.subr.bf16.mxu0 0
    %2537 = vmatpush2.bf16.msra.mxu0 0
    %2538 = vmatprep.subr.bf16.mxu0 0
    %2539 = vmatpush2.bf16.msra.mxu0 0
    %2540 = vmatprep.subr.bf16.mxu0 0
    %2541 = vmatpush2.bf16.msra.mxu0 0
    %2542 = vmatprep.subr.bf16.mxu0 0
    %2543 = vmatpush2.bf16.msra.mxu0 0
    %2544 = vmatprep.mubr.bf16.mxu0 0
    %2545 = vmatmul.mubr.bf16.gmra.mxu0 %v2400
    %v2546 = vpop.f32.mrf.mxu0
    %v2547 = vadd.f32 %v2425, %v2546
    %v2548 = vpop.f32.mrf.mxu0
    %v2549 = vadd.f32 %v2429, %v2548
    %v2550 = vpop.f32.mrf.mxu0
    %v2551 = vadd.f32 %v2425, %v2550
    %v2552 = vpop.f32.mrf.mxu0
    %v2553 = vadd.f32 %v2429, %v2552
    %2554 = vmatprep.mubr.bf16.mxu0 0
    %2555 = vmatmul.mubr.bf16.gmra.mxu0 %v2401
    %v2556 = vpop.f32.mrf.mxu0
    %v2557 = vadd.f32 %v2425, %v2556
    %v2558 = vpop.f32.mrf.mxu0
    %v2559 = vadd.f32 %v2429, %v2558
    %v2560 = vpop.f32.mrf.mxu0
    %v2561 = vadd.f32 %v2425, %v2560
    %v2562 = vpop.f32.mrf.mxu0
    %v2563 = vadd.f32 %v2429, %v2562
    %2564 = vdwg.mxu0
    %v2565 = vmul.f32 %v2547, 0.5
    %v2566 = vmul.f32 %v2549, 0.5
    %v2567 = vmul.f32 %v2551, 0.5
    %v2568 = vmul.f32 %v2553, 0.5
    %v2569 = vmul.f32 %v2557, 0.5
    %v2570 = vmul.f32 %v2559, 0.5
    %v2571 = vmul.f32 %v2561, 0.5
    %v2572 = vmul.f32 %v2563, 0.5
    %v2573 = vmul.f32 %v2547, 0.70710677
    %v2574 = vmul.f32 %v2549, 0.70710677
    %v2575 = vmul.f32 %v2551, 0.70710677
    %v2576 = vmul.f32 %v2553, 0.70710677
    %v2577 = vmul.f32 %v2557, 0.70710677
    %v2578 = vmul.f32 %v2559, 0.70710677
    %v2579 = vmul.f32 %v2561, 0.70710677
    %v2580 = vmul.f32 %v2563, 0.70710677
    %vm2581 = vcmp.ge.f32.partialorder %v2573, 0.0
    %vm2582 = vcmp.ge.f32.partialorder %v2574, 0.0
    %vm2583 = vcmp.ge.f32.partialorder %v2575, 0.0
    %vm2584 = vcmp.ge.f32.partialorder %v2576, 0.0
    %vm2585 = vcmp.ge.f32.partialorder %v2577, 0.0
    %vm2586 = vcmp.ge.f32.partialorder %v2578, 0.0
    %vm2587 = vcmp.ge.f32.partialorder %v2579, 0.0
    %vm2588 = vcmp.ge.f32.partialorder %v2580, 0.0
    %v2589 = vsel %vm2581, 1.0, -1.0
    %v2590 = vsel %vm2582, 1.0, -1.0
    %v2591 = vsel %vm2583, 1.0, -1.0
    %v2592 = vsel %vm2584, 1.0, -1.0
    %v2593 = vsel %vm2585, 1.0, -1.0
    %v2594 = vsel %vm2586, 1.0, -1.0
    %v2595 = vsel %vm2587, 1.0, -1.0
    %v2596 = vsel %vm2588, 1.0, -1.0
    %v2597 = vand.u32 2147483647, %v2573
    %v2598 = vand.u32 2147483647, %v2574
    %v2599 = vand.u32 2147483647, %v2575
    %v2600 = vand.u32 2147483647, %v2576
    %v2601 = vand.u32 2147483647, %v2577
    %v2602 = vand.u32 2147483647, %v2578
    %v2603 = vand.u32 2147483647, %v2579
    %v2604 = vand.u32 2147483647, %v2580
    %v2605 = vmul.f32 %v2597, 0.3275911
    %v2606 = vmul.f32 %v2598, 0.3275911
    %v2607 = vmul.f32 %v2599, 0.3275911
    %v2608 = vmul.f32 %v2600, 0.3275911
    %v2609 = vmul.f32 %v2601, 0.3275911
    %v2610 = vmul.f32 %v2602, 0.3275911
    %v2611 = vmul.f32 %v2603, 0.3275911
    %v2612 = vmul.f32 %v2604, 0.3275911
    %v2613 = vadd.f32 %v2605, 1.0
    %v2614 = vadd.f32 %v2606, 1.0
    %v2615 = vadd.f32 %v2607, 1.0
    %v2616 = vadd.f32 %v2608, 1.0
    %v2617 = vadd.f32 %v2609, 1.0
    %v2618 = vadd.f32 %v2610, 1.0
    %v2619 = vadd.f32 %v2611, 1.0
    %v2620 = vadd.f32 %v2612, 1.0
    %v2621 = vrcp.pop %v2613
    %v2622 = vmul.f32 1.0, %v2621
    %v2623 = vrcp.pop %v2614
    %v2624 = vmul.f32 1.0, %v2623
    %v2625 = vrcp.pop %v2615
    %v2626 = vmul.f32 1.0, %v2625
    %v2627 = vrcp.pop %v2616
    %v2628 = vmul.f32 1.0, %v2627
    %v2629 = vrcp.pop %v2617
    %v2630 = vmul.f32 1.0, %v2629
    %v2631 = vrcp.pop %v2618
    %v2632 = vmul.f32 1.0, %v2631
    %v2633 = vrcp.pop %v2619
    %v2634 = vmul.f32 1.0, %v2633
    %v2635 = vrcp.pop %v2620
    %v2636 = vmul.f32 1.0, %v2635
    %v2637 = vmul.f32 %v2622, 1.0614054
    %v2638 = vmul.f32 %v2624, 1.0614054
    %v2639 = vmul.f32 %v2626, 1.0614054
    %v2640 = vmul.f32 %v2628, 1.0614054
    %v2641 = vmul.f32 %v2630, 1.0614054
    %v2642 = vmul.f32 %v2632, 1.0614054
    %v2643 = vmul.f32 %v2634, 1.0614054
    %v2644 = vmul.f32 %v2636, 1.0614054
    %v2645 = vadd.f32 %v2637, -1.4531521
    %v2646 = vadd.f32 %v2638, -1.4531521
    %v2647 = vadd.f32 %v2639, -1.4531521
    %v2648 = vadd.f32 %v2640, -1.4531521
    %v2649 = vadd.f32 %v2641, -1.4531521
    %v2650 = vadd.f32 %v2642, -1.4531521
    %v2651 = vadd.f32 %v2643, -1.4531521
    %v2652 = vadd.f32 %v2644, -1.4531521
    %v2653 = vmul.f32 %v2645, %v2622
    %v2654 = vmul.f32 %v2646, %v2624
    %v2655 = vmul.f32 %v2647, %v2626
    %v2656 = vmul.f32 %v2648, %v2628
    %v2657 = vmul.f32 %v2649, %v2630
    %v2658 = vmul.f32 %v2650, %v2632
    %v2659 = vmul.f32 %v2651, %v2634
    %v2660 = vmul.f32 %v2652, %v2636
    %v2661 = vadd.f32 %v2653, 1.4214138
    %v2662 = vadd.f32 %v2654, 1.4214138
    %v2663 = vadd.f32 %v2655, 1.4214138
    %v2664 = vadd.f32 %v2656, 1.4214138
    %v2665 = vadd.f32 %v2657, 1.4214138
    %v2666 = vadd.f32 %v2658, 1.4214138
    %v2667 = vadd.f32 %v2659, 1.4214138
    %v2668 = vadd.f32 %v2660, 1.4214138
    %v2669 = vmul.f32 %v2661, %v2622
    %v2670 = vmul.f32 %v2662, %v2624
    %v2671 = vmul.f32 %v2663, %v2626
    %v2672 = vmul.f32 %v2664, %v2628
    %v2673 = vmul.f32 %v2665, %v2630
    %v2674 = vmul.f32 %v2666, %v2632
    %v2675 = vmul.f32 %v2667, %v2634
    %v2676 = vmul.f32 %v2668, %v2636
    %v2677 = vadd.f32 %v2669, -0.28449672
    %v2678 = vadd.f32 %v2670, -0.28449672
    %v2679 = vadd.f32 %v2671, -0.28449672
    %v2680 = vadd.f32 %v2672, -0.28449672
    %v2681 = vadd.f32 %v2673, -0.28449672
    %v2682 = vadd.f32 %v2674, -0.28449672
    %v2683 = vadd.f32 %v2675, -0.28449672
    %v2684 = vadd.f32 %v2676, -0.28449672
    %v2685 = vmul.f32 %v2677, %v2622
    %v2686 = vmul.f32 %v2678, %v2624
    %v2687 = vmul.f32 %v2679, %v2626
    %v2688 = vmul.f32 %v2680, %v2628
    %v2689 = vmul.f32 %v2681, %v2630
    %v2690 = vmul.f32 %v2682, %v2632
    %v2691 = vmul.f32 %v2683, %v2634
    %v2692 = vmul.f32 %v2684, %v2636
    %v2693 = vadd.f32 %v2685, 0.2548296
    %v2694 = vadd.f32 %v2686, 0.2548296
    %v2695 = vadd.f32 %v2687, 0.2548296
    %v2696 = vadd.f32 %v2688, 0.2548296
    %v2697 = vadd.f32 %v2689, 0.2548296
    %v2698 = vadd.f32 %v2690, 0.2548296
    %v2699 = vadd.f32 %v2691, 0.2548296
    %v2700 = vadd.f32 %v2692, 0.2548296
    %v2701 = vmul.f32 %v2693, %v2622
    %v2702 = vmul.f32 %v2694, %v2624
    %v2703 = vmul.f32 %v2695, %v2626
    %v2704 = vmul.f32 %v2696, %v2628
    %v2705 = vmul.f32 %v2697, %v2630
    %v2706 = vmul.f32 %v2698, %v2632
    %v2707 = vmul.f32 %v2699, %v2634
    %v2708 = vmul.f32 %v2700, %v2636
    %v2709 = vsub.f32 0.0, %v2597
    %v2710 = vsub.f32 0.0, %v2598
    %v2711 = vsub.f32 0.0, %v2599
    %v2712 = vsub.f32 0.0, %v2600
    %v2713 = vsub.f32 0.0, %v2601
    %v2714 = vsub.f32 0.0, %v2602
    %v2715 = vsub.f32 0.0, %v2603
    %v2716 = vsub.f32 0.0, %v2604
    %v2717 = vmul.f32 %v2709, %v2597
    %v2718 = vmul.f32 %v2710, %v2598
    %v2719 = vmul.f32 %v2711, %v2599
    %v2720 = vmul.f32 %v2712, %v2600
    %v2721 = vmul.f32 %v2713, %v2601
    %v2722 = vmul.f32 %v2714, %v2602
    %v2723 = vmul.f32 %v2715, %v2603
    %v2724 = vmul.f32 %v2716, %v2604
    %v2725 = vmul.f32 %v2717, 1.442695
    %v2726 = vpow.pop %v2725
    %v2727 = vmul.f32 %v2718, 1.442695
    %v2728 = vpow.pop %v2727
    %v2729 = vmul.f32 %v2719, 1.442695
    %v2730 = vpow.pop %v2729
    %v2731 = vmul.f32 %v2720, 1.442695
    %v2732 = vpow.pop %v2731
    %v2733 = vmul.f32 %v2721, 1.442695
    %v2734 = vpow.pop %v2733
    %v2735 = vmul.f32 %v2722, 1.442695
    %v2736 = vpow.pop %v2735
    %v2737 = vmul.f32 %v2723, 1.442695
    %v2738 = vpow.pop %v2737
    %v2739 = vmul.f32 %v2724, 1.442695
    %v2740 = vpow.pop %v2739
    %v2741 = vmul.f32 %v2701, %v2726
    %v2742 = vmul.f32 %v2702, %v2728
    %v2743 = vmul.f32 %v2703, %v2730
    %v2744 = vmul.f32 %v2704, %v2732
    %v2745 = vmul.f32 %v2705, %v2734
    %v2746 = vmul.f32 %v2706, %v2736
    %v2747 = vmul.f32 %v2707, %v2738
    %v2748 = vmul.f32 %v2708, %v2740
    %v2749 = vsub.f32 1.0, %v2741
    %v2750 = vsub.f32 1.0, %v2742
    %v2751 = vsub.f32 1.0, %v2743
    %v2752 = vsub.f32 1.0, %v2744
    %v2753 = vsub.f32 1.0, %v2745
    %v2754 = vsub.f32 1.0, %v2746
    %v2755 = vsub.f32 1.0, %v2747
    %v2756 = vsub.f32 1.0, %v2748
    %v2757 = vmul.f32 %v2589, %v2749
    %v2758 = vmul.f32 %v2590, %v2750
    %v2759 = vmul.f32 %v2591, %v2751
    %v2760 = vmul.f32 %v2592, %v2752
    %v2761 = vmul.f32 %v2593, %v2753
    %v2762 = vmul.f32 %v2594, %v2754
    %v2763 = vmul.f32 %v2595, %v2755
    %v2764 = vmul.f32 %v2596, %v2756
    %v2765 = vadd.f32 %v2757, 1.0
    %v2766 = vadd.f32 %v2758, 1.0
    %v2767 = vadd.f32 %v2759, 1.0
    %v2768 = vadd.f32 %v2760, 1.0
    %v2769 = vadd.f32 %v2761, 1.0
    %v2770 = vadd.f32 %v2762, 1.0
    %v2771 = vadd.f32 %v2763, 1.0
    %v2772 = vadd.f32 %v2764, 1.0
    %v2773 = vmul.f32 %v2565, %v2765
    %v2774 = vmul.f32 %v2566, %v2766
    %v2775 = vmul.f32 %v2567, %v2767
    %v2776 = vmul.f32 %v2568, %v2768
    %v2777 = vmul.f32 %v2569, %v2769
    %v2778 = vmul.f32 %v2570, %v2770
    %v2779 = vmul.f32 %v2571, %v2771
    %v2780 = vmul.f32 %v2572, %v2772
    %v2781 = vpack.c.bf16 %v2775, %v2773
    %v2782 = vpack.c.bf16 %v2776, %v2774
    %v2783 = vpack.c.bf16 %v2779, %v2777
    %v2784 = vpack.c.bf16 %v2780, %v2778
    %s2785 = scalar_lea.vmem [#allocation14], 128
    %v2786 = vld [vmem:[%s2785] sm:$0xf]
    %v2787 = vld [vmem:[%s2785 + $0x4] sm:$0xf]
    %v2788 = vld [vmem:[%s2785 + $0x8] sm:$0xf]
    %v2789 = vld [vmem:[%s2785 + $0xc] sm:$0xf]
    %v2790 = vld [vmem:[%s2785 + $0x10] sm:$0xf]
    %v2791 = vld [vmem:[%s2785 + $0x14] sm:$0xf]
    %v2792 = vld [vmem:[%s2785 + $0x18] sm:$0xf]
    %v2793 = vld [vmem:[%s2785 + $0x1c] sm:$0xf]
    %v2794 = vld [vmem:[%s2785 + $0x20] sm:$0xf]
    %v2795 = vld [vmem:[%s2785 + $0x24] sm:$0xf]
    %v2796 = vld [vmem:[%s2785 + $0x28] sm:$0xf]
    %v2797 = vld [vmem:[%s2785 + $0x2c] sm:$0xf]
    %v2798 = vld [vmem:[%s2785 + $0x30] sm:$0xf]
    %v2799 = vld [vmem:[%s2785 + $0x34] sm:$0xf]
    %v2800 = vld [vmem:[%s2785 + $0x38] sm:$0xf]
    %v2801 = vld [vmem:[%s2785 + $0x3c] sm:$0xf]
    %v2802 = vld [vmem:[%s2785 + $0x40] sm:$0xf]
    %v2803 = vld [vmem:[%s2785 + $0x44] sm:$0xf]
    %v2804 = vld [vmem:[%s2785 + $0x48] sm:$0xf]
    %v2805 = vld [vmem:[%s2785 + $0x4c] sm:$0xf]
    %v2806 = vld [vmem:[%s2785 + $0x50] sm:$0xf]
    %v2807 = vld [vmem:[%s2785 + $0x54] sm:$0xf]
    %v2808 = vld [vmem:[%s2785 + $0x58] sm:$0xf]
    %v2809 = vld [vmem:[%s2785 + $0x5c] sm:$0xf]
    %v2810 = vld [vmem:[%s2785 + $0x60] sm:$0xf]
    %v2811 = vld [vmem:[%s2785 + $0x64] sm:$0xf]
    %v2812 = vld [vmem:[%s2785 + $0x68] sm:$0xf]
    %v2813 = vld [vmem:[%s2785 + $0x6c] sm:$0xf]
    %v2814 = vld [vmem:[%s2785 + $0x70] sm:$0xf]
    %v2815 = vld [vmem:[%s2785 + $0x74] sm:$0xf]
    %v2816 = vld [vmem:[%s2785 + $0x78] sm:$0xf]
    %v2817 = vld [vmem:[%s2785 + $0x7c] sm:$0xf]
    %s2818 = scalar_lea.vmem %s10, 1
    %v2819 = vld [vmem:[%s2818] sm:$0x1]
    %v2821 = vlaneseq
    %v2822 = vshrl.u32 %v2821, 7
    %v2823 = vsub.s32 0, %v2822
    %v2824 = vrot.slane %v2819, %v2823
    %v2858 = vunpack.c.l.b16 %v2786
    %v2859 = vunpack.c.l.b16 %v2787
    %v2860 = vunpack.c.l.b16 %v2788
    %v2861 = vunpack.c.l.b16 %v2789
    %v2862 = vunpack.c.l.b16 %v2790
    %v2863 = vunpack.c.l.b16 %v2791
    %v2864 = vunpack.c.l.b16 %v2792
    %v2865 = vunpack.c.l.b16 %v2793
    %v2866 = vunpack.c.l.b16 %v2794
    %v2867 = vunpack.c.l.b16 %v2795
    %v2868 = vunpack.c.l.b16 %v2796
    %v2869 = vunpack.c.l.b16 %v2797
    %v2870 = vunpack.c.l.b16 %v2798
    %v2871 = vunpack.c.l.b16 %v2799
    %v2872 = vunpack.c.l.b16 %v2800
    %v2873 = vunpack.c.l.b16 %v2801
    %v2874 = vunpack.c.l.b16 %v2802
    %v2875 = vunpack.c.l.b16 %v2803
    %v2876 = vunpack.c.l.b16 %v2804
    %v2877 = vunpack.c.l.b16 %v2805
    %v2878 = vunpack.c.l.b16 %v2806
    %v2879 = vunpack.c.l.b16 %v2807
    %v2880 = vunpack.c.l.b16 %v2808
    %v2881 = vunpack.c.l.b16 %v2809
    %v2882 = vunpack.c.l.b16 %v2810
    %v2883 = vunpack.c.l.b16 %v2811
    %v2884 = vunpack.c.l.b16 %v2812
    %v2885 = vunpack.c.l.b16 %v2813
    %v2886 = vunpack.c.l.b16 %v2814
    %v2887 = vunpack.c.l.b16 %v2815
    %v2888 = vunpack.c.l.b16 %v2816
    %v2889 = vunpack.c.l.b16 %v2817
    %v2890 = vpack.c.b16 %v2859, %v2858
    %v2891 = vpack.c.b16 %v2861, %v2860
    %v2892 = vpack.c.b16 %v2863, %v2862
    %v2893 = vpack.c.b16 %v2865, %v2864
    %v2894 = vpack.c.b16 %v2867, %v2866
    %v2895 = vpack.c.b16 %v2869, %v2868
    %v2896 = vpack.c.b16 %v2871, %v2870
    %v2897 = vpack.c.b16 %v2873, %v2872
    %v2898 = vpack.c.b16 %v2875, %v2874
    %v2899 = vpack.c.b16 %v2877, %v2876
    %v2900 = vpack.c.b16 %v2879, %v2878
    %v2901 = vpack.c.b16 %v2881, %v2880
    %v2902 = vpack.c.b16 %v2883, %v2882
    %v2903 = vpack.c.b16 %v2885, %v2884
    %v2904 = vpack.c.b16 %v2887, %v2886
    %v2905 = vpack.c.b16 %v2889, %v2888
    %2922 = vmatprep.subr.bf16.mxu0 0
    %2923 = vmatpush1.bf16.msra.mxu0 %v2897
    %2924 = vmatprep.subr.bf16.mxu0 0
    %2925 = vmatpush1.bf16.msra.mxu0 %v2896
    %2926 = vmatprep.subr.bf16.mxu0 0
    %2927 = vmatpush1.bf16.msra.mxu0 %v2895
    %2928 = vmatprep.subr.bf16.mxu0 0
    %2929 = vmatpush1.bf16.msra.mxu0 %v2894
    %2930 = vmatprep.subr.bf16.mxu0 0
    %2931 = vmatpush1.bf16.msra.mxu0 %v2893
    %2932 = vmatprep.subr.bf16.mxu0 0
    %2933 = vmatpush1.bf16.msra.mxu0 %v2892
    %2934 = vmatprep.subr.bf16.mxu0 0
    %2935 = vmatpush1.bf16.msra.mxu0 %v2891
    %2936 = vmatprep.subr.bf16.mxu0 0
    %2937 = vmatpush1.bf16.msra.mxu0 %v2890
    %2938 = vmatprep.subr.bf16.mxu0 0
    %2939 = vmatpush2.bf16.msra.mxu0 %v2905
    %2940 = vmatprep.subr.bf16.mxu0 0
    %2941 = vmatpush2.bf16.msra.mxu0 %v2904
    %2942 = vmatprep.subr.bf16.mxu0 0
    %2943 = vmatpush2.bf16.msra.mxu0 %v2903
    %2944 = vmatprep.subr.bf16.mxu0 0
    %2945 = vmatpush2.bf16.msra.mxu0 %v2902
    %2946 = vmatprep.subr.bf16.mxu0 0
    %2947 = vmatpush2.bf16.msra.mxu0 %v2901
    %2948 = vmatprep.subr.bf16.mxu0 0
    %2949 = vmatpush2.bf16.msra.mxu0 %v2900
    %2950 = vmatprep.subr.bf16.mxu0 0
    %2951 = vmatpush2.bf16.msra.mxu0 %v2899
    %2952 = vmatprep.subr.bf16.mxu0 0
    %2953 = vmatpush2.bf16.msra.mxu0 %v2898
    %2954 = vmatprep.mubr.bf16.mxu0 %v2782
    %2955 = vmatmul.mubr.bf16.gmra.mxu0 %v2781
    %v2956 = vpop.f32.mrf.mxu0
    %v2957 = vadd.f32 %v2824, %v2956
    %v2958 = vpop.f32.mrf.mxu0
    %v2959 = vpop.f32.mrf.mxu0
    %v2960 = vadd.f32 %v2824, %v2959
    %v2961 = vpop.f32.mrf.mxu0
    %2962 = vmatprep.mubr.bf16.mxu0 %v2784
    %2963 = vmatmul.mubr.bf16.gmra.mxu0 %v2783
    %v2964 = vpop.f32.mrf.mxu0
    %v2965 = vadd.f32 %v2824, %v2964
    %v2966 = vpop.f32.mrf.mxu0
    %v2967 = vpop.f32.mrf.mxu0
    %v2968 = vadd.f32 %v2824, %v2967
    %v2969 = vpop.f32.mrf.mxu0
    %2970 = vdwg.mxu0
    %v2971 = vadd.f32 %v2328, %v2957
    %v2972 = vadd.f32 %v2329, %v2960
    %v2973 = vadd.f32 %v2330, %v2965
    %v2974 = vadd.f32 %v2331, %v2968
    %s2975 = scalar_lea.vmem [#allocation7], 2
    %v2976 = vld [vmem:[%s2975] sm:$0x1]
    %s2977 = scalar_lea.vmem %s3, 2
    %v2978 = vld [vmem:[%s2977] sm:$0x1]
    %2979 = vadd.xlane.f32.xlu0 %v2971
    %v2980 = vpop.xlane.xlu0 %2979
    %2981 = vadd.xlane.f32.xlu0 %v2972
    %v2982 = vpop.xlane.xlu0 %2981
    %2983 = vadd.xlane.f32.xlu0 %v2973
    %v2984 = vpop.xlane.xlu0 %2983
    %2985 = vadd.xlane.f32.xlu0 %v2974
    %v2986 = vpop.xlane.xlu0 %2985
    %v2987 = vmul.f32 %v2980, %v310
    %v2988 = vmul.f32 %v2982, %v310
    %v2989 = vmul.f32 %v2984, %v310
    %v2990 = vmul.f32 %v2986, %v310
    %v2991 = vsub.f32 %v2971, %v2987
    %v2992 = vsub.f32 %v2972, %v2988
    %v2993 = vsub.f32 %v2973, %v2989
    %v2994 = vsub.f32 %v2974, %v2990
    %v2995 = vmul.f32 %v2991, %v2991
    %v2996 = vmul.f32 %v2992, %v2992
    %v2997 = vmul.f32 %v2993, %v2993
    %v2998 = vmul.f32 %v2994, %v2994
    %2999 = vadd.xlane.f32.xlu0 %v2995
    %v3000 = vpop.xlane.xlu0 %2999
    %3001 = vadd.xlane.f32.xlu0 %v2996
    %v3002 = vpop.xlane.xlu0 %3001
    %3003 = vadd.xlane.f32.xlu0 %v2997
    %v3004 = vpop.xlane.xlu0 %3003
    %3005 = vadd.xlane.f32.xlu0 %v2998
    %v3006 = vpop.xlane.xlu0 %3005
    %v3007 = vmul.f32 %v3000, %v310
    %v3008 = vmul.f32 %v3002, %v310
    %v3009 = vmul.f32 %v3004, %v310
    %v3010 = vmul.f32 %v3006, %v310
    %v3011 = vadd.f32 %v3007, 1e-05
    %v3012 = vadd.f32 %v3008, 1e-05
    %v3013 = vadd.f32 %v3009, 1e-05
    %v3014 = vadd.f32 %v3010, 1e-05
    %v3015 = vrsqrt.pop %v3011
    %v3016 = vrsqrt.pop %v3012
    %v3017 = vrsqrt.pop %v3013
    %v3018 = vrsqrt.pop %v3014
    %v3019 = vmul.f32 %v2991, %v3015
    %v3020 = vmul.f32 %v2992, %v3016
    %v3021 = vmul.f32 %v2993, %v3017
    %v3022 = vmul.f32 %v2994, %v3018
    %v3024 = vlaneseq
    %v3025 = vshrl.u32 %v3024, 7
    %v3026 = vsub.s32 0, %v3025
    %v3027 = vrot.slane %v2976, %v3026
    %v3029 = vmul.f32 %v3019, %v3027
    %v3030 = vmul.f32 %v3020, %v3027
    %v3031 = vmul.f32 %v3021, %v3027
    %v3032 = vmul.f32 %v3022, %v3027
    %v3034 = vlaneseq
    %v3035 = vshrl.u32 %v3034, 7
    %v3036 = vsub.s32 0, %v3035
    %v3037 = vrot.slane %v2978, %v3036
    %v3039 = vadd.f32 %v3029, %v3037
    %v3040 = vadd.f32 %v3030, %v3037
    %v3041 = vadd.f32 %v3031, %v3037
    %v3042 = vadd.f32 %v3032, %v3037
    %v3043 = vpack.c.bf16 %v3040, %v3039
    %v3044 = vpack.c.bf16 %v3042, %v3041
    %s3045 = scalar_lea.vmem [#allocation8], 384
    %v3046 = vld [vmem:[%s3045] sm:$0xff]
    %v3047 = vld [vmem:[%s3045 + $0x8] sm:$0xf]
    %v3048 = vld [vmem:[%s3045 + $0xc] sm:$0xff]
    %v3049 = vld [vmem:[%s3045 + $0x14] sm:$0xf]
    %v3050 = vld [vmem:[%s3045 + $0x18] sm:$0xff]
    %v3051 = vld [vmem:[%s3045 + $0x20] sm:$0xf]
    %v3052 = vld [vmem:[%s3045 + $0x24] sm:$0xff]
    %v3053 = vld [vmem:[%s3045 + $0x2c] sm:$0xf]
    %v3054 = vld [vmem:[%s3045 + $0x30] sm:$0xff]
    %v3055 = vld [vmem:[%s3045 + $0x38] sm:$0xf]
    %v3056 = vld [vmem:[%s3045 + $0x3c] sm:$0xff]
    %v3057 = vld [vmem:[%s3045 + $0x44] sm:$0xf]
    %v3058 = vld [vmem:[%s3045 + $0x48] sm:$0xff]
    %v3059 = vld [vmem:[%s3045 + $0x50] sm:$0xf]
    %v3060 = vld [vmem:[%s3045 + $0x54] sm:$0xff]
    %v3061 = vld [vmem:[%s3045 + $0x5c] sm:$0xf]
    %v3062 = vld [vmem:[%s3045 + $0x60] sm:$0xff]
    %v3063 = vld [vmem:[%s3045 + $0x68] sm:$0xf]
    %v3064 = vld [vmem:[%s3045 + $0x6c] sm:$0xff]
    %v3065 = vld [vmem:[%s3045 + $0x74] sm:$0xf]
    %v3066 = vld [vmem:[%s3045 + $0x78] sm:$0xff]
    %v3067 = vld [vmem:[%s3045 + $0x80] sm:$0xf]
    %v3068 = vld [vmem:[%s3045 + $0x84] sm:$0xff]
    %v3069 = vld [vmem:[%s3045 + $0x8c] sm:$0xf]
    %v3070 = vld [vmem:[%s3045 + $0x90] sm:$0xff]
    %v3071 = vld [vmem:[%s3045 + $0x98] sm:$0xf]
    %v3072 = vld [vmem:[%s3045 + $0x9c] sm:$0xff]
    %v3073 = vld [vmem:[%s3045 + $0xa4] sm:$0xf]
    %v3074 = vld [vmem:[%s3045 + $0xa8] sm:$0xff]
    %v3075 = vld [vmem:[%s3045 + $0xb0] sm:$0xf]
    %v3076 = vld [vmem:[%s3045 + $0xb4] sm:$0xff]
    %v3077 = vld [vmem:[%s3045 + $0xbc] sm:$0xf]
    %v3110 = vunpack.c.l.b16 %v3046
    %v3111 = vunpack.c.h.b16 %v3046
    %v3112 = vunpack.c.l.b16 %v3047
    %v3113 = vunpack.c.l.b16 %v3048
    %v3114 = vunpack.c.h.b16 %v3048
    %v3115 = vunpack.c.l.b16 %v3049
    %v3116 = vunpack.c.l.b16 %v3050
    %v3117 = vunpack.c.h.b16 %v3050
    %v3118 = vunpack.c.l.b16 %v3051
    %v3119 = vunpack.c.l.b16 %v3052
    %v3120 = vunpack.c.h.b16 %v3052
    %v3121 = vunpack.c.l.b16 %v3053
    %v3122 = vunpack.c.l.b16 %v3054
    %v3123 = vunpack.c.h.b16 %v3054
    %v3124 = vunpack.c.l.b16 %v3055
    %v3125 = vunpack.c.l.b16 %v3056
    %v3126 = vunpack.c.h.b16 %v3056
    %v3127 = vunpack.c.l.b16 %v3057
    %v3128 = vunpack.c.l.b16 %v3058
    %v3129 = vunpack.c.h.b16 %v3058
    %v3130 = vunpack.c.l.b16 %v3059
    %v3131 = vunpack.c.l.b16 %v3060
    %v3132 = vunpack.c.h.b16 %v3060
    %v3133 = vunpack.c.l.b16 %v3061
    %v3134 = vunpack.c.l.b16 %v3062
    %v3135 = vunpack.c.h.b16 %v3062
    %v3136 = vunpack.c.l.b16 %v3063
    %v3137 = vunpack.c.l.b16 %v3064
    %v3138 = vunpack.c.h.b16 %v3064
    %v3139 = vunpack.c.l.b16 %v3065
    %v3140 = vunpack.c.l.b16 %v3066
    %v3141 = vunpack.c.h.b16 %v3066
    %v3142 = vunpack.c.l.b16 %v3067
    %v3143 = vunpack.c.l.b16 %v3068
    %v3144 = vunpack.c.h.b16 %v3068
    %v3145 = vunpack.c.l.b16 %v3069
    %v3146 = vunpack.c.l.b16 %v3070
    %v3147 = vunpack.c.h.b16 %v3070
    %v3148 = vunpack.c.l.b16 %v3071
    %v3149 = vunpack.c.l.b16 %v3072
    %v3150 = vunpack.c.h.b16 %v3072
    %v3151 = vunpack.c.l.b16 %v3073
    %v3152 = vunpack.c.l.b16 %v3074
    %v3153 = vunpack.c.h.b16 %v3074
    %v3154 = vunpack.c.l.b16 %v3075
    %v3155 = vunpack.c.l.b16 %v3076
    %v3156 = vunpack.c.h.b16 %v3076
    %v3157 = vunpack.c.l.b16 %v3077
    %v3158 = vpack.c.b16 %v3113, %v3110
    %v3159 = vpack.c.b16 %v3114, %v3111
    %v3160 = vpack.c.b16 %v3115, %v3112
    %v3161 = vpack.c.b16 %v3119, %v3116
    %v3162 = vpack.c.b16 %v3120, %v3117
    %v3163 = vpack.c.b16 %v3121, %v3118
    %v3164 = vpack.c.b16 %v3125, %v3122
    %v3165 = vpack.c.b16 %v3126, %v3123
    %v3166 = vpack.c.b16 %v3127, %v3124
    %v3167 = vpack.c.b16 %v3131, %v3128
    %v3168 = vpack.c.b16 %v3132, %v3129
    %v3169 = vpack.c.b16 %v3133, %v3130
    %v3170 = vpack.c.b16 %v3137, %v3134
    %v3171 = vpack.c.b16 %v3138, %v3135
    %v3172 = vpack.c.b16 %v3139, %v3136
    %v3173 = vpack.c.b16 %v3143, %v3140
    %v3174 = vpack.c.b16 %v3144, %v3141
    %v3175 = vpack.c.b16 %v3145, %v3142
    %v3176 = vpack.c.b16 %v3149, %v3146
    %v3177 = vpack.c.b16 %v3150, %v3147
    %v3178 = vpack.c.b16 %v3151, %v3148
    %v3179 = vpack.c.b16 %v3155, %v3152
    %v3180 = vpack.c.b16 %v3156, %v3153
    %v3181 = vpack.c.b16 %v3157, %v3154
    %3206 = vmatprep.subr.bf16.mxu0 %v3180
    %3207 = vmatpush1.bf16.msra.mxu0 %v3179
    %3208 = vmatprep.subr.bf16.mxu0 %v3177
    %3209 = vmatpush1.bf16.msra.mxu0 %v3176
    %3210 = vmatprep.subr.bf16.mxu0 %v3174
    %3211 = vmatpush1.bf16.msra.mxu0 %v3173
    %3212 = vmatprep.subr.bf16.mxu0 %v3171
    %3213 = vmatpush1.bf16.msra.mxu0 %v3170
    %3214 = vmatprep.subr.bf16.mxu0 %v3168
    %3215 = vmatpush1.bf16.msra.mxu0 %v3167
    %3216 = vmatprep.subr.bf16.mxu0 %v3165
    %3217 = vmatpush1.bf16.msra.mxu0 %v3164
    %3218 = vmatprep.subr.bf16.mxu0 %v3162
    %3219 = vmatpush1.bf16.msra.mxu0 %v3161
    %3220 = vmatprep.subr.bf16.mxu0 %v3159
    %3221 = vmatpush1.bf16.msra.mxu0 %v3158
    %3222 = vmatprep.subr.bf16.mxu0 0
    %3223 = vmatpush2.bf16.msra.mxu0 0
    %3224 = vmatprep.subr.bf16.mxu0 0
    %3225 = vmatpush2.bf16.msra.mxu0 0
    %3226 = vmatprep.subr.bf16.mxu0 0
    %3227 = vmatpush2.bf16.msra.mxu0 0
    %3228 = vmatprep.subr.bf16.mxu0 0
    %3229 = vmatpush2.bf16.msra.mxu0 0
    %3230 = vmatprep.subr.bf16.mxu0 0
    %3231 = vmatpush2.bf16.msra.mxu0 0
    %3232 = vmatprep.subr.bf16.mxu0 0
    %3233 = vmatpush2.bf16.msra.mxu0 0
    %3234 = vmatprep.subr.bf16.mxu0 0
    %3235 = vmatpush2.bf16.msra.mxu0 0
    %3236 = vmatprep.subr.bf16.mxu0 0
    %3237 = vmatpush2.bf16.msra.mxu0 0
    %3238 = vmatprep.mubr.bf16.mxu0 0
    %3239 = vmatmul.mubr.bf16.gmra.mxu0 %v3043
    %v3240 = vpop.f32.mrf.mxu0
    %v3241 = vadd.f32 0.0, %v3240
    %v3242 = vpop.f32.mrf.mxu0
    %v3243 = vadd.f32 0.0, %v3242
    %v3244 = vpop.f32.mrf.mxu0
    %v3245 = vadd.f32 0.0, %v3244
    %v3246 = vpop.f32.mrf.mxu0
    %v3247 = vadd.f32 0.0, %v3246
    %3248 = vmatprep.mubr.bf16.mxu0 0
    %3249 = vmatmul.mubr.bf16.gmra.mxu0 %v3044
    %v3250 = vpop.f32.mrf.mxu0
    %v3251 = vadd.f32 0.0, %v3250
    %v3252 = vpop.f32.mrf.mxu0
    %v3253 = vadd.f32 0.0, %v3252
    %v3254 = vpop.f32.mrf.mxu0
    %v3255 = vadd.f32 0.0, %v3254
    %v3256 = vpop.f32.mrf.mxu0
    %v3257 = vadd.f32 0.0, %v3256
    %3258 = vdwg.mxu0
    %3259 = vmatprep.subr.bf16.mxu0 0
    %3260 = vmatpush1.bf16.msra.mxu0 %v3181
    %3261 = vmatprep.subr.bf16.mxu0 0
    %3262 = vmatpush1.bf16.msra.mxu0 %v3178
    %3263 = vmatprep.subr.bf16.mxu0 0
    %3264 = vmatpush1.bf16.msra.mxu0 %v3175
    %3265 = vmatprep.subr.bf16.mxu0 0
    %3266 = vmatpush1.bf16.msra.mxu0 %v3172
    %3267 = vmatprep.subr.bf16.mxu0 0
    %3268 = vmatpush1.bf16.msra.mxu0 %v3169
    %3269 = vmatprep.subr.bf16.mxu0 0
    %3270 = vmatpush1.bf16.msra.mxu0 %v3166
    %3271 = vmatprep.subr.bf16.mxu0 0
    %3272 = vmatpush1.bf16.msra.mxu0 %v3163
    %3273 = vmatprep.subr.bf16.mxu0 0
    %3274 = vmatpush1.bf16.msra.mxu0 %v3160
    %3275 = vmatprep.subr.bf16.mxu0 0
    %3276 = vmatpush2.bf16.msra.mxu0 0
    %3277 = vmatprep.subr.bf16.mxu0 0
    %3278 = vmatpush2.bf16.msra.mxu0 0
    %3279 = vmatprep.subr.bf16.mxu0 0
    %3280 = vmatpush2.bf16.msra.mxu0 0
    %3281 = vmatprep.subr.bf16.mxu0 0
    %3282 = vmatpush2.bf16.msra.mxu0 0
    %3283 = vmatprep.subr.bf16.mxu0 0
    %3284 = vmatpush2.bf16.msra.mxu0 0
    %3285 = vmatprep.subr.bf16.mxu0 0
    %3286 = vmatpush2.bf16.msra.mxu0 0
    %3287 = vmatprep.subr.bf16.mxu0 0
    %3288 = vmatpush2.bf16.msra.mxu0 0
    %3289 = vmatprep.subr.bf16.mxu0 0
    %3290 = vmatpush2.bf16.msra.mxu0 0
    %3291 = vmatprep.mubr.bf16.mxu0 0
    %3292 = vmatmul.mubr.bf16.gmra.mxu0 %v3043
    %v3293 = vpop.f32.mrf.mxu0
    %v3294 = vadd.f32 0.0, %v3293
    %v3295 = vpop.f32.mrf.mxu0
    %v3296 = vpop.f32.mrf.mxu0
    %v3297 = vadd.f32 0.0, %v3296
    %v3298 = vpop.f32.mrf.mxu0
    %3299 = vmatprep.mubr.bf16.mxu0 0
    %3300 = vmatmul.mubr.bf16.gmra.mxu0 %v3044
    %v3301 = vpop.f32.mrf.mxu0
    %v3302 = vadd.f32 0.0, %v3301
    %v3303 = vpop.f32.mrf.mxu0
    %v3304 = vpop.f32.mrf.mxu0
    %v3305 = vadd.f32 0.0, %v3304
    %v3306 = vpop.f32.mrf.mxu0
    %3307 = vdwg.mxu0
    %3308 = vmatprep.subr.mxu0 0.0
    %3309 = vmatpush1.xpose.msra.mxu0 0.0
    %3310 = vmatprep.subr.mxu0 0.0
    %3311 = vmatpush1.xpose.msra.mxu0 0.0
    %3312 = vmatprep.subr.mxu0 0.0
    %3313 = vmatpush1.xpose.msra.mxu0 0.0
    %3314 = vmatprep.subr.mxu0 0.0
    %3315 = vmatpush1.xpose.msra.mxu0 0.0
    %3316 = vmatprep.subr.mxu0 0.0
    %3317 = vmatpush1.xpose.msra.mxu0 0.0
    %3318 = vmatprep.subr.mxu0 0.0
    %3319 = vmatpush1.xpose.msra.mxu0 0.0
    %3320 = vmatprep.subr.mxu0 0.0
    %3321 = vmatpush1.xpose.msra.mxu0 0.0
    %3322 = vmatprep.subr.mxu0 0.0
    %3323 = vmatpush1.xpose.msra.mxu0 0.0
    %3324 = vmatprep.subr.mxu0 0.0
    %3325 = vmatpush1.xpose.msra.mxu0 0.0
    %3326 = vmatprep.subr.mxu0 0.0
    %3327 = vmatpush1.xpose.msra.mxu0 0.0
    %3328 = vmatprep.subr.mxu0 0.0
    %3329 = vmatpush1.xpose.msra.mxu0 0.0
    %3330 = vmatprep.subr.mxu0 0.0
    %3331 = vmatpush1.xpose.msra.mxu0 0.0
    %3332 = vmatprep.subr.mxu0 0.0
    %3333 = vmatpush1.xpose.msra.mxu0 0.0
    %3334 = vmatprep.subr.mxu0 0.0
    %3335 = vmatpush1.xpose.msra.mxu0 0.0
    %3336 = vmatprep.subr.mxu0 0.0
    %3337 = vmatpush1.xpose.msra.mxu0 %v3247
    %3338 = vmatprep.subr.mxu0 0.0
    %3339 = vmatpush1.xpose.msra.mxu0 %v3243
    %3340 = vmatprep.subr.mxu0 0.0
    %3341 = vmatpush2.xpose.msra.mxu0 0.0
    %3342 = vmatprep.subr.mxu0 0.0
    %3343 = vmatpush2.xpose.msra.mxu0 0.0
    %3344 = vmatprep.subr.mxu0 0.0
    %3345 = vmatpush2.xpose.msra.mxu0 0.0
    %3346 = vmatprep.subr.mxu0 0.0
    %3347 = vmatpush2.xpose.msra.mxu0 0.0
    %3348 = vmatprep.subr.mxu0 0.0
    %3349 = vmatpush2.xpose.msra.mxu0 0.0
    %3350 = vmatprep.subr.mxu0 0.0
    %3351 = vmatpush2.xpose.msra.mxu0 0.0
    %3352 = vmatprep.subr.mxu0 0.0
    %3353 = vmatpush2.xpose.msra.mxu0 0.0
    %3354 = vmatprep.subr.mxu0 0.0
    %3355 = vmatpush2.xpose.msra.mxu0 0.0
    %3356 = vmatprep.subr.mxu0 0.0
    %3357 = vmatpush2.xpose.msra.mxu0 0.0
    %3358 = vmatprep.subr.mxu0 0.0
    %3359 = vmatpush2.xpose.msra.mxu0 0.0
    %3360 = vmatprep.subr.mxu0 0.0
    %3361 = vmatpush2.xpose.msra.mxu0 0.0
    %3362 = vmatprep.subr.mxu0 0.0
    %3363 = vmatpush2.xpose.msra.mxu0 0.0
    %3364 = vmatprep.subr.mxu0 0.0
    %3365 = vmatpush2.xpose.msra.mxu0 0.0
    %3366 = vmatprep.subr.mxu0 0.0
    %3367 = vmatpush2.xpose.msra.mxu0 0.0
    %3368 = vmatprep.subr.mxu0 0.0
    %3369 = vmatpush2.xpose.msra.mxu0 0.0
    %3370 = vmatprep.subr.mxu0 0.0
    %3371 = vmatpush2.xpose.msra.mxu0 0.0
    %3372 = vmatprep.mubr.f32.mxu0 0.0
    %3373 = vmatmul.mubr.f32.gmra.mxu0 %v3241
    %v3374 = vpop.f32.mrf.mxu0
    %v3375 = vadd.f32 0.0, %v3374
    %v3376 = vpop.f32.mrf.mxu0
    %3377 = vmatprep.mubr.f32.mxu0 0.0
    %3378 = vmatmul.mubr.f32.gmra.mxu0 %v3245
    %v3379 = vpop.f32.mrf.mxu0
    %v3380 = vadd.f32 0.0, %v3379
    %v3381 = vpop.f32.mrf.mxu0
    %3382 = vdwg.mxu0
    %3383 = vmatprep.subr.mxu0 0.0
    %3384 = vmatpush1.xpose.msra.mxu0 0.0
    %3385 = vmatprep.subr.mxu0 0.0
    %3386 = vmatpush1.xpose.msra.mxu0 0.0
    %3387 = vmatprep.subr.mxu0 0.0
    %3388 = vmatpush1.xpose.msra.mxu0 0.0
    %3389 = vmatprep.subr.mxu0 0.0
    %3390 = vmatpush1.xpose.msra.mxu0 0.0
    %3391 = vmatprep.subr.mxu0 0.0
    %3392 = vmatpush1.xpose.msra.mxu0 0.0
    %3393 = vmatprep.subr.mxu0 0.0
    %3394 = vmatpush1.xpose.msra.mxu0 0.0
    %3395 = vmatprep.subr.mxu0 0.0
    %3396 = vmatpush1.xpose.msra.mxu0 0.0
    %3397 = vmatprep.subr.mxu0 0.0
    %3398 = vmatpush1.xpose.msra.mxu0 0.0
    %3399 = vmatprep.subr.mxu0 0.0
    %3400 = vmatpush1.xpose.msra.mxu0 0.0
    %3401 = vmatprep.subr.mxu0 0.0
    %3402 = vmatpush1.xpose.msra.mxu0 0.0
    %3403 = vmatprep.subr.mxu0 0.0
    %3404 = vmatpush1.xpose.msra.mxu0 0.0
    %3405 = vmatprep.subr.mxu0 0.0
    %3406 = vmatpush1.xpose.msra.mxu0 0.0
    %3407 = vmatprep.subr.mxu0 0.0
    %3408 = vmatpush1.xpose.msra.mxu0 0.0
    %3409 = vmatprep.subr.mxu0 0.0
    %3410 = vmatpush1.xpose.msra.mxu0 0.0
    %3411 = vmatprep.subr.mxu0 0.0
    %3412 = vmatpush1.xpose.msra.mxu0 %v3257
    %3413 = vmatprep.subr.mxu0 0.0
    %3414 = vmatpush1.xpose.msra.mxu0 %v3253
    %3415 = vmatprep.subr.mxu0 0.0
    %3416 = vmatpush2.xpose.msra.mxu0 0.0
    %3417 = vmatprep.subr.mxu0 0.0
    %3418 = vmatpush2.xpose.msra.mxu0 0.0
    %3419 = vmatprep.subr.mxu0 0.0
    %3420 = vmatpush2.xpose.msra.mxu0 0.0
    %3421 = vmatprep.subr.mxu0 0.0
    %3422 = vmatpush2.xpose.msra.mxu0 0.0
    %3423 = vmatprep.subr.mxu0 0.0
    %3424 = vmatpush2.xpose.msra.mxu0 0.0
    %3425 = vmatprep.subr.mxu0 0.0
    %3426 = vmatpush2.xpose.msra.mxu0 0.0
    %3427 = vmatprep.subr.mxu0 0.0
    %3428 = vmatpush2.xpose.msra.mxu0 0.0
    %3429 = vmatprep.subr.mxu0 0.0
    %3430 = vmatpush2.xpose.msra.mxu0 0.0
    %3431 = vmatprep.subr.mxu0 0.0
    %3432 = vmatpush2.xpose.msra.mxu0 0.0
    %3433 = vmatprep.subr.mxu0 0.0
    %3434 = vmatpush2.xpose.msra.mxu0 0.0
    %3435 = vmatprep.subr.mxu0 0.0
    %3436 = vmatpush2.xpose.msra.mxu0 0.0
    %3437 = vmatprep.subr.mxu0 0.0
    %3438 = vmatpush2.xpose.msra.mxu0 0.0
    %3439 = vmatprep.subr.mxu0 0.0
    %3440 = vmatpush2.xpose.msra.mxu0 0.0
    %3441 = vmatprep.subr.mxu0 0.0
    %3442 = vmatpush2.xpose.msra.mxu0 0.0
    %3443 = vmatprep.subr.mxu0 0.0
    %3444 = vmatpush2.xpose.msra.mxu0 0.0
    %3445 = vmatprep.subr.mxu0 0.0
    %3446 = vmatpush2.xpose.msra.mxu0 0.0
    %3447 = vmatprep.mubr.f32.mxu0 0.0
    %3448 = vmatmul.mubr.f32.gmra.mxu0 %v3251
    %v3449 = vpop.f32.mrf.mxu0
    %v3450 = vadd.f32 0.0, %v3449
    %v3451 = vpop.f32.mrf.mxu0
    %3452 = vmatprep.mubr.f32.mxu0 0.0
    %3453 = vmatmul.mubr.f32.gmra.mxu0 %v3255
    %v3454 = vpop.f32.mrf.mxu0
    %v3455 = vadd.f32 0.0, %v3454
    %v3456 = vpop.f32.mrf.mxu0
    %3457 = vdwg.mxu0
    %v3458 = vsel %vm782, %v3375, -1e+30
    %v3459 = vsel %vm782, %v3380, -1e+30
    %v3460 = vsel %vm782, %v3450, -1e+30
    %v3461 = vsel %vm782, %v3455, -1e+30
    %v3462 = vsel %vm787, %v3458, -inf
    %3463 = vmax.xlane.f32.xlu0 %v3462
    %v3464 = vpop.xlane.xlu0 %3463
    %v3465 = vsel %vm787, %v3459, -inf
    %3466 = vmax.xlane.f32.xlu0 %v3465
    %v3467 = vpop.xlane.xlu0 %3466
    %v3468 = vsel %vm787, %v3460, -inf
    %3469 = vmax.xlane.f32.xlu0 %v3468
    %v3470 = vpop.xlane.xlu0 %3469
    %v3471 = vsel %vm787, %v3461, -inf
    %3472 = vmax.xlane.f32.xlu0 %v3471
    %v3473 = vpop.xlane.xlu0 %3472
    %v3474 = vsub.f32 %v3458, %v3464
    %v3475 = vsub.f32 %v3459, %v3467
    %v3476 = vsub.f32 %v3460, %v3470
    %v3477 = vsub.f32 %v3461, %v3473
    %v3478 = vmul.f32 %v3474, 1.442695
    %v3479 = vpow.pop %v3478
    %v3480 = vmul.f32 %v3475, 1.442695
    %v3481 = vpow.pop %v3480
    %v3482 = vmul.f32 %v3476, 1.442695
    %v3483 = vpow.pop %v3482
    %v3484 = vmul.f32 %v3477, 1.442695
    %v3485 = vpow.pop %v3484
    %v3486 = vsel %vm787, %v3479, 0.0
    %3487 = vadd.xlane.f32.xlu0 %v3486
    %v3488 = vpop.xlane.xlu0 %3487
    %v3489 = vsel %vm787, %v3481, 0.0
    %3490 = vadd.xlane.f32.xlu0 %v3489
    %v3491 = vpop.xlane.xlu0 %3490
    %v3492 = vsel %vm787, %v3483, 0.0
    %3493 = vadd.xlane.f32.xlu0 %v3492
    %v3494 = vpop.xlane.xlu0 %3493
    %v3495 = vsel %vm787, %v3485, 0.0
    %3496 = vadd.xlane.f32.xlu0 %v3495
    %v3497 = vpop.xlane.xlu0 %3496
    %v3498 = vrcp.pop %v3488
    %v3499 = vrcp.pop %v3491
    %v3500 = vrcp.pop %v3494
    %v3501 = vrcp.pop %v3497
    %v3502 = vmul.f32 %v3479, %v3498
    %v3503 = vmul.f32 %v3481, %v3499
    %v3504 = vmul.f32 %v3483, %v3500
    %v3505 = vmul.f32 %v3485, %v3501
    %v3507 = vsel %vm787, %v3502, 0
    %v3510 = vsel %vm787, %v3503, 0
    %3512 = vmatprep.subr.mxu0 0.0
    %3513 = vmatpush1.msra.mxu0 0.0
    %3514 = vmatprep.subr.mxu0 0.0
    %3515 = vmatpush1.msra.mxu0 0.0
    %3516 = vmatprep.subr.mxu0 0.0
    %3517 = vmatpush1.msra.mxu0 0.0
    %3518 = vmatprep.subr.mxu0 0.0
    %3519 = vmatpush1.msra.mxu0 0.0
    %3520 = vmatprep.subr.mxu0 0.0
    %3521 = vmatpush1.msra.mxu0 0.0
    %3522 = vmatprep.subr.mxu0 0.0
    %3523 = vmatpush1.msra.mxu0 0.0
    %3524 = vmatprep.subr.mxu0 0.0
    %3525 = vmatpush1.msra.mxu0 0.0
    %3526 = vmatprep.subr.mxu0 0.0
    %3527 = vmatpush1.msra.mxu0 0.0
    %3528 = vmatprep.subr.mxu0 0.0
    %3529 = vmatpush1.msra.mxu0 0.0
    %3530 = vmatprep.subr.mxu0 0.0
    %3531 = vmatpush1.msra.mxu0 0.0
    %3532 = vmatprep.subr.mxu0 0.0
    %3533 = vmatpush1.msra.mxu0 0.0
    %3534 = vmatprep.subr.mxu0 0.0
    %3535 = vmatpush1.msra.mxu0 0.0
    %3536 = vmatprep.subr.mxu0 0.0
    %3537 = vmatpush1.msra.mxu0 0.0
    %3538 = vmatprep.subr.mxu0 0.0
    %3539 = vmatpush1.msra.mxu0 0.0
    %3540 = vmatprep.subr.mxu0 0.0
    %3541 = vmatpush1.msra.mxu0 %v3297
    %3542 = vmatprep.subr.mxu0 0.0
    %3543 = vmatpush1.msra.mxu0 %v3294
    %3544 = vmatprep.subr.mxu0 0.0
    %3545 = vmatpush2.msra.mxu0 0.0
    %3546 = vmatprep.subr.mxu0 0.0
    %3547 = vmatpush2.msra.mxu0 0.0
    %3548 = vmatprep.subr.mxu0 0.0
    %3549 = vmatpush2.msra.mxu0 0.0
    %3550 = vmatprep.subr.mxu0 0.0
    %3551 = vmatpush2.msra.mxu0 0.0
    %3552 = vmatprep.subr.mxu0 0.0
    %3553 = vmatpush2.msra.mxu0 0.0
    %3554 = vmatprep.subr.mxu0 0.0
    %3555 = vmatpush2.msra.mxu0 0.0
    %3556 = vmatprep.subr.mxu0 0.0
    %3557 = vmatpush2.msra.mxu0 0.0
    %3558 = vmatprep.subr.mxu0 0.0
    %3559 = vmatpush2.msra.mxu0 0.0
    %3560 = vmatprep.subr.mxu0 0.0
    %3561 = vmatpush2.msra.mxu0 0.0
    %3562 = vmatprep.subr.mxu0 0.0
    %3563 = vmatpush2.msra.mxu0 0.0
    %3564 = vmatprep.subr.mxu0 0.0
    %3565 = vmatpush2.msra.mxu0 0.0
    %3566 = vmatprep.subr.mxu0 0.0
    %3567 = vmatpush2.msra.mxu0 0.0
    %3568 = vmatprep.subr.mxu0 0.0
    %3569 = vmatpush2.msra.mxu0 0.0
    %3570 = vmatprep.subr.mxu0 0.0
    %3571 = vmatpush2.msra.mxu0 0.0
    %3572 = vmatprep.subr.mxu0 0.0
    %3573 = vmatpush2.msra.mxu0 0.0
    %3574 = vmatprep.subr.mxu0 0.0
    %3575 = vmatpush2.msra.mxu0 0.0
    %3576 = vmatprep.mubr.f32.mxu0 0.0
    %3577 = vmatmul.mubr.f32.gmra.mxu0 %v3507
    %v3578 = vpop.f32.mrf.mxu0
    %v3579 = vadd.f32 0.0, %v3578
    %v3580 = vpop.f32.mrf.mxu0
    %3581 = vmatprep.mubr.f32.mxu0 0.0
    %3582 = vmatmul.mubr.f32.gmra.mxu0 %v3510
    %v3583 = vpop.f32.mrf.mxu0
    %v3584 = vadd.f32 0.0, %v3583
    %v3585 = vpop.f32.mrf.mxu0
    %3586 = vdwg.mxu0
    %v3588 = vsel %vm787, %v3504, 0
    %v3591 = vsel %vm787, %v3505, 0
    %3593 = vmatprep.subr.mxu0 0.0
    %3594 = vmatpush1.msra.mxu0 0.0
    %3595 = vmatprep.subr.mxu0 0.0
    %3596 = vmatpush1.msra.mxu0 0.0
    %3597 = vmatprep.subr.mxu0 0.0
    %3598 = vmatpush1.msra.mxu0 0.0
    %3599 = vmatprep.subr.mxu0 0.0
    %3600 = vmatpush1.msra.mxu0 0.0
    %3601 = vmatprep.subr.mxu0 0.0
    %3602 = vmatpush1.msra.mxu0 0.0
    %3603 = vmatprep.subr.mxu0 0.0
    %3604 = vmatpush1.msra.mxu0 0.0
    %3605 = vmatprep.subr.mxu0 0.0
    %3606 = vmatpush1.msra.mxu0 0.0
    %3607 = vmatprep.subr.mxu0 0.0
    %3608 = vmatpush1.msra.mxu0 0.0
    %3609 = vmatprep.subr.mxu0 0.0
    %3610 = vmatpush1.msra.mxu0 0.0
    %3611 = vmatprep.subr.mxu0 0.0
    %3612 = vmatpush1.msra.mxu0 0.0
    %3613 = vmatprep.subr.mxu0 0.0
    %3614 = vmatpush1.msra.mxu0 0.0
    %3615 = vmatprep.subr.mxu0 0.0
    %3616 = vmatpush1.msra.mxu0 0.0
    %3617 = vmatprep.subr.mxu0 0.0
    %3618 = vmatpush1.msra.mxu0 0.0
    %3619 = vmatprep.subr.mxu0 0.0
    %3620 = vmatpush1.msra.mxu0 0.0
    %3621 = vmatprep.subr.mxu0 0.0
    %3622 = vmatpush1.msra.mxu0 %v3305
    %3623 = vmatprep.subr.mxu0 0.0
    %3624 = vmatpush1.msra.mxu0 %v3302
    %3625 = vmatprep.subr.mxu0 0.0
    %3626 = vmatpush2.msra.mxu0 0.0
    %3627 = vmatprep.subr.mxu0 0.0
    %3628 = vmatpush2.msra.mxu0 0.0
    %3629 = vmatprep.subr.mxu0 0.0
    %3630 = vmatpush2.msra.mxu0 0.0
    %3631 = vmatprep.subr.mxu0 0.0
    %3632 = vmatpush2.msra.mxu0 0.0
    %3633 = vmatprep.subr.mxu0 0.0
    %3634 = vmatpush2.msra.mxu0 0.0
    %3635 = vmatprep.subr.mxu0 0.0
    %3636 = vmatpush2.msra.mxu0 0.0
    %3637 = vmatprep.subr.mxu0 0.0
    %3638 = vmatpush2.msra.mxu0 0.0
    %3639 = vmatprep.subr.mxu0 0.0
    %3640 = vmatpush2.msra.mxu0 0.0
    %3641 = vmatprep.subr.mxu0 0.0
    %3642 = vmatpush2.msra.mxu0 0.0
    %3643 = vmatprep.subr.mxu0 0.0
    %3644 = vmatpush2.msra.mxu0 0.0
    %3645 = vmatprep.subr.mxu0 0.0
    %3646 = vmatpush2.msra.mxu0 0.0
    %3647 = vmatprep.subr.mxu0 0.0
    %3648 = vmatpush2.msra.mxu0 0.0
    %3649 = vmatprep.subr.mxu0 0.0
    %3650 = vmatpush2.msra.mxu0 0.0
    %3651 = vmatprep.subr.mxu0 0.0
    %3652 = vmatpush2.msra.mxu0 0.0
    %3653 = vmatprep.subr.mxu0 0.0
    %3654 = vmatpush2.msra.mxu0 0.0
    %3655 = vmatprep.subr.mxu0 0.0
    %3656 = vmatpush2.msra.mxu0 0.0
    %3657 = vmatprep.mubr.f32.mxu0 0.0
    %3658 = vmatmul.mubr.f32.gmra.mxu0 %v3588
    %v3659 = vpop.f32.mrf.mxu0
    %v3660 = vadd.f32 0.0, %v3659
    %v3661 = vpop.f32.mrf.mxu0
    %3662 = vmatprep.mubr.f32.mxu0 0.0
    %3663 = vmatmul.mubr.f32.gmra.mxu0 %v3591
    %v3664 = vpop.f32.mrf.mxu0
    %v3665 = vadd.f32 0.0, %v3664
    %v3666 = vpop.f32.mrf.mxu0
    %3667 = vdwg.mxu0
    %v3668 = vadd.f32 %v2971, %v3579
    %v3669 = vadd.f32 %v2972, %v3584
    %v3670 = vadd.f32 %v2973, %v3660
    %v3671 = vadd.f32 %v2974, %v3665
    %s3672 = scalar_lea.vmem [#allocation10], 2
    %v3673 = vld [vmem:[%s3672] sm:$0x1]
    %s3674 = scalar_lea.vmem [#allocation11], 2
    %v3675 = vld [vmem:[%s3674] sm:$0x1]
    %3676 = vadd.xlane.f32.xlu0 %v3668
    %v3677 = vpop.xlane.xlu0 %3676
    %3678 = vadd.xlane.f32.xlu0 %v3669
    %v3679 = vpop.xlane.xlu0 %3678
    %3680 = vadd.xlane.f32.xlu0 %v3670
    %v3681 = vpop.xlane.xlu0 %3680
    %3682 = vadd.xlane.f32.xlu0 %v3671
    %v3683 = vpop.xlane.xlu0 %3682
    %v3684 = vmul.f32 %v3677, %v310
    %v3685 = vmul.f32 %v3679, %v310
    %v3686 = vmul.f32 %v3681, %v310
    %v3687 = vmul.f32 %v3683, %v310
    %v3688 = vsub.f32 %v3668, %v3684
    %v3689 = vsub.f32 %v3669, %v3685
    %v3690 = vsub.f32 %v3670, %v3686
    %v3691 = vsub.f32 %v3671, %v3687
    %v3692 = vmul.f32 %v3688, %v3688
    %v3693 = vmul.f32 %v3689, %v3689
    %v3694 = vmul.f32 %v3690, %v3690
    %v3695 = vmul.f32 %v3691, %v3691
    %3696 = vadd.xlane.f32.xlu0 %v3692
    %v3697 = vpop.xlane.xlu0 %3696
    %3698 = vadd.xlane.f32.xlu0 %v3693
    %v3699 = vpop.xlane.xlu0 %3698
    %3700 = vadd.xlane.f32.xlu0 %v3694
    %v3701 = vpop.xlane.xlu0 %3700
    %3702 = vadd.xlane.f32.xlu0 %v3695
    %v3703 = vpop.xlane.xlu0 %3702
    %v3704 = vmul.f32 %v3697, %v310
    %v3705 = vmul.f32 %v3699, %v310
    %v3706 = vmul.f32 %v3701, %v310
    %v3707 = vmul.f32 %v3703, %v310
    %v3708 = vadd.f32 %v3704, 1e-05
    %v3709 = vadd.f32 %v3705, 1e-05
    %v3710 = vadd.f32 %v3706, 1e-05
    %v3711 = vadd.f32 %v3707, 1e-05
    %v3712 = vrsqrt.pop %v3708
    %v3713 = vrsqrt.pop %v3709
    %v3714 = vrsqrt.pop %v3710
    %v3715 = vrsqrt.pop %v3711
    %v3716 = vmul.f32 %v3688, %v3712
    %v3717 = vmul.f32 %v3689, %v3713
    %v3718 = vmul.f32 %v3690, %v3714
    %v3719 = vmul.f32 %v3691, %v3715
    %v3721 = vlaneseq
    %v3722 = vshrl.u32 %v3721, 7
    %v3723 = vsub.s32 0, %v3722
    %v3724 = vrot.slane %v3673, %v3723
    %v3726 = vmul.f32 %v3716, %v3724
    %v3727 = vmul.f32 %v3717, %v3724
    %v3728 = vmul.f32 %v3718, %v3724
    %v3729 = vmul.f32 %v3719, %v3724
    %v3731 = vlaneseq
    %v3732 = vshrl.u32 %v3731, 7
    %v3733 = vsub.s32 0, %v3732
    %v3734 = vrot.slane %v3675, %v3733
    %v3736 = vadd.f32 %v3726, %v3734
    %v3737 = vadd.f32 %v3727, %v3734
    %v3738 = vadd.f32 %v3728, %v3734
    %v3739 = vadd.f32 %v3729, %v3734
    %v3740 = vpack.c.bf16 %v3737, %v3736
    %v3741 = vpack.c.bf16 %v3739, %v3738
    %s3742 = scalar_lea.vmem [#allocation13], 256
    %v3743 = vld [vmem:[%s3742] sm:$0xff]
    %v3744 = vld [vmem:[%s3742 + $0x8] sm:$0xff]
    %v3745 = vld [vmem:[%s3742 + $0x10] sm:$0xff]
    %v3746 = vld [vmem:[%s3742 + $0x18] sm:$0xff]
    %v3747 = vld [vmem:[%s3742 + $0x20] sm:$0xff]
    %v3748 = vld [vmem:[%s3742 + $0x28] sm:$0xff]
    %v3749 = vld [vmem:[%s3742 + $0x30] sm:$0xff]
    %v3750 = vld [vmem:[%s3742 + $0x38] sm:$0xff]
    %v3751 = vld [vmem:[%s3742 + $0x40] sm:$0xff]
    %v3752 = vld [vmem:[%s3742 + $0x48] sm:$0xff]
    %v3753 = vld [vmem:[%s3742 + $0x50] sm:$0xff]
    %v3754 = vld [vmem:[%s3742 + $0x58] sm:$0xff]
    %v3755 = vld [vmem:[%s3742 + $0x60] sm:$0xff]
    %v3756 = vld [vmem:[%s3742 + $0x68] sm:$0xff]
    %v3757 = vld [vmem:[%s3742 + $0x70] sm:$0xff]
    %v3758 = vld [vmem:[%s3742 + $0x78] sm:$0xff]
    %s3759 = scalar_lea.vmem %s8, 4
    %v3760 = vld [vmem:[%s3759] sm:$0x3]
    %v3762 = vlaneseq
    %v3763 = vshrl.u32 %v3762, 7
    %v3764 = vsub.s32 0, %v3763
    %v3765 = vrot.slane %v3760, %v3764
    %v3766 = vlaneseq
    %v3767 = vshrl.u32 %v3766, 7
    %v3768 = vsub.s32 1, %v3767
    %v3769 = vrot.slane %v3760, %v3768
    %v3788 = vunpack.c.l.b16 %v3743
    %v3789 = vunpack.c.h.b16 %v3743
    %v3790 = vunpack.c.l.b16 %v3744
    %v3791 = vunpack.c.h.b16 %v3744
    %v3792 = vunpack.c.l.b16 %v3745
    %v3793 = vunpack.c.h.b16 %v3745
    %v3794 = vunpack.c.l.b16 %v3746
    %v3795 = vunpack.c.h.b16 %v3746
    %v3796 = vunpack.c.l.b16 %v3747
    %v3797 = vunpack.c.h.b16 %v3747
    %v3798 = vunpack.c.l.b16 %v3748
    %v3799 = vunpack.c.h.b16 %v3748
    %v3800 = vunpack.c.l.b16 %v3749
    %v3801 = vunpack.c.h.b16 %v3749
    %v3802 = vunpack.c.l.b16 %v3750
    %v3803 = vunpack.c.h.b16 %v3750
    %v3804 = vunpack.c.l.b16 %v3751
    %v3805 = vunpack.c.h.b16 %v3751
    %v3806 = vunpack.c.l.b16 %v3752
    %v3807 = vunpack.c.h.b16 %v3752
    %v3808 = vunpack.c.l.b16 %v3753
    %v3809 = vunpack.c.h.b16 %v3753
    %v3810 = vunpack.c.l.b16 %v3754
    %v3811 = vunpack.c.h.b16 %v3754
    %v3812 = vunpack.c.l.b16 %v3755
    %v3813 = vunpack.c.h.b16 %v3755
    %v3814 = vunpack.c.l.b16 %v3756
    %v3815 = vunpack.c.h.b16 %v3756
    %v3816 = vunpack.c.l.b16 %v3757
    %v3817 = vunpack.c.h.b16 %v3757
    %v3818 = vunpack.c.l.b16 %v3758
    %v3819 = vunpack.c.h.b16 %v3758
    %v3820 = vpack.c.b16 %v3790, %v3788
    %v3821 = vpack.c.b16 %v3791, %v3789
    %v3822 = vpack.c.b16 %v3794, %v3792
    %v3823 = vpack.c.b16 %v3795, %v3793
    %v3824 = vpack.c.b16 %v3798, %v3796
    %v3825 = vpack.c.b16 %v3799, %v3797
    %v3826 = vpack.c.b16 %v3802, %v3800
    %v3827 = vpack.c.b16 %v3803, %v3801
    %v3828 = vpack.c.b16 %v3806, %v3804
    %v3829 = vpack.c.b16 %v3807, %v3805
    %v3830 = vpack.c.b16 %v3810, %v3808
    %v3831 = vpack.c.b16 %v3811, %v3809
    %v3832 = vpack.c.b16 %v3814, %v3812
    %v3833 = vpack.c.b16 %v3815, %v3813
    %v3834 = vpack.c.b16 %v3818, %v3816
    %v3835 = vpack.c.b16 %v3819, %v3817
    %3852 = vmatprep.subr.bf16.mxu0 %v3835
    %3853 = vmatpush1.bf16.msra.mxu0 %v3834
    %3854 = vmatprep.subr.bf16.mxu0 %v3833
    %3855 = vmatpush1.bf16.msra.mxu0 %v3832
    %3856 = vmatprep.subr.bf16.mxu0 %v3831
    %3857 = vmatpush1.bf16.msra.mxu0 %v3830
    %3858 = vmatprep.subr.bf16.mxu0 %v3829
    %3859 = vmatpush1.bf16.msra.mxu0 %v3828
    %3860 = vmatprep.subr.bf16.mxu0 %v3827
    %3861 = vmatpush1.bf16.msra.mxu0 %v3826
    %3862 = vmatprep.subr.bf16.mxu0 %v3825
    %3863 = vmatpush1.bf16.msra.mxu0 %v3824
    %3864 = vmatprep.subr.bf16.mxu0 %v3823
    %3865 = vmatpush1.bf16.msra.mxu0 %v3822
    %3866 = vmatprep.subr.bf16.mxu0 %v3821
    %3867 = vmatpush1.bf16.msra.mxu0 %v3820
    %3868 = vmatprep.subr.bf16.mxu0 0
    %3869 = vmatpush2.bf16.msra.mxu0 0
    %3870 = vmatprep.subr.bf16.mxu0 0
    %3871 = vmatpush2.bf16.msra.mxu0 0
    %3872 = vmatprep.subr.bf16.mxu0 0
    %3873 = vmatpush2.bf16.msra.mxu0 0
    %3874 = vmatprep.subr.bf16.mxu0 0
    %3875 = vmatpush2.bf16.msra.mxu0 0
    %3876 = vmatprep.subr.bf16.mxu0 0
    %3877 = vmatpush2.bf16.msra.mxu0 0
    %3878 = vmatprep.subr.bf16.mxu0 0
    %3879 = vmatpush2.bf16.msra.mxu0 0
    %3880 = vmatprep.subr.bf16.mxu0 0
    %3881 = vmatpush2.bf16.msra.mxu0 0
    %3882 = vmatprep.subr.bf16.mxu0 0
    %3883 = vmatpush2.bf16.msra.mxu0 0
    %3884 = vmatprep.mubr.bf16.mxu0 0
    %3885 = vmatmul.mubr.bf16.gmra.mxu0 %v3740
    %v3886 = vpop.f32.mrf.mxu0
    %v3887 = vadd.f32 %v3765, %v3886
    %v3888 = vpop.f32.mrf.mxu0
    %v3889 = vadd.f32 %v3769, %v3888
    %v3890 = vpop.f32.mrf.mxu0
    %v3891 = vadd.f32 %v3765, %v3890
    %v3892 = vpop.f32.mrf.mxu0
    %v3893 = vadd.f32 %v3769, %v3892
    %3894 = vmatprep.mubr.bf16.mxu0 0
    %3895 = vmatmul.mubr.bf16.gmra.mxu0 %v3741
    %v3896 = vpop.f32.mrf.mxu0
    %v3897 = vadd.f32 %v3765, %v3896
    %v3898 = vpop.f32.mrf.mxu0
    %v3899 = vadd.f32 %v3769, %v3898
    %v3900 = vpop.f32.mrf.mxu0
    %v3901 = vadd.f32 %v3765, %v3900
    %v3902 = vpop.f32.mrf.mxu0
    %v3903 = vadd.f32 %v3769, %v3902
    %3904 = vdwg.mxu0
    %v3905 = vmul.f32 %v3887, 0.5
    %v3906 = vmul.f32 %v3889, 0.5
    %v3907 = vmul.f32 %v3891, 0.5
    %v3908 = vmul.f32 %v3893, 0.5
    %v3909 = vmul.f32 %v3897, 0.5
    %v3910 = vmul.f32 %v3899, 0.5
    %v3911 = vmul.f32 %v3901, 0.5
    %v3912 = vmul.f32 %v3903, 0.5
    %v3913 = vmul.f32 %v3887, 0.70710677
    %v3914 = vmul.f32 %v3889, 0.70710677
    %v3915 = vmul.f32 %v3891, 0.70710677
    %v3916 = vmul.f32 %v3893, 0.70710677
    %v3917 = vmul.f32 %v3897, 0.70710677
    %v3918 = vmul.f32 %v3899, 0.70710677
    %v3919 = vmul.f32 %v3901, 0.70710677
    %v3920 = vmul.f32 %v3903, 0.70710677
    %vm3921 = vcmp.ge.f32.partialorder %v3913, 0.0
    %vm3922 = vcmp.ge.f32.partialorder %v3914, 0.0
    %vm3923 = vcmp.ge.f32.partialorder %v3915, 0.0
    %vm3924 = vcmp.ge.f32.partialorder %v3916, 0.0
    %vm3925 = vcmp.ge.f32.partialorder %v3917, 0.0
    %vm3926 = vcmp.ge.f32.partialorder %v3918, 0.0
    %vm3927 = vcmp.ge.f32.partialorder %v3919, 0.0
    %vm3928 = vcmp.ge.f32.partialorder %v3920, 0.0
    %v3929 = vsel %vm3921, 1.0, -1.0
    %v3930 = vsel %vm3922, 1.0, -1.0
    %v3931 = vsel %vm3923, 1.0, -1.0
    %v3932 = vsel %vm3924, 1.0, -1.0
    %v3933 = vsel %vm3925, 1.0, -1.0
    %v3934 = vsel %vm3926, 1.0, -1.0
    %v3935 = vsel %vm3927, 1.0, -1.0
    %v3936 = vsel %vm3928, 1.0, -1.0
    %v3937 = vand.u32 2147483647, %v3913
    %v3938 = vand.u32 2147483647, %v3914
    %v3939 = vand.u32 2147483647, %v3915
    %v3940 = vand.u32 2147483647, %v3916
    %v3941 = vand.u32 2147483647, %v3917
    %v3942 = vand.u32 2147483647, %v3918
    %v3943 = vand.u32 2147483647, %v3919
    %v3944 = vand.u32 2147483647, %v3920
    %v3945 = vmul.f32 %v3937, 0.3275911
    %v3946 = vmul.f32 %v3938, 0.3275911
    %v3947 = vmul.f32 %v3939, 0.3275911
    %v3948 = vmul.f32 %v3940, 0.3275911
    %v3949 = vmul.f32 %v3941, 0.3275911
    %v3950 = vmul.f32 %v3942, 0.3275911
    %v3951 = vmul.f32 %v3943, 0.3275911
    %v3952 = vmul.f32 %v3944, 0.3275911
    %v3953 = vadd.f32 %v3945, 1.0
    %v3954 = vadd.f32 %v3946, 1.0
    %v3955 = vadd.f32 %v3947, 1.0
    %v3956 = vadd.f32 %v3948, 1.0
    %v3957 = vadd.f32 %v3949, 1.0
    %v3958 = vadd.f32 %v3950, 1.0
    %v3959 = vadd.f32 %v3951, 1.0
    %v3960 = vadd.f32 %v3952, 1.0
    %v3961 = vrcp.pop %v3953
    %v3962 = vmul.f32 1.0, %v3961
    %v3963 = vrcp.pop %v3954
    %v3964 = vmul.f32 1.0, %v3963
    %v3965 = vrcp.pop %v3955
    %v3966 = vmul.f32 1.0, %v3965
    %v3967 = vrcp.pop %v3956
    %v3968 = vmul.f32 1.0, %v3967
    %v3969 = vrcp.pop %v3957
    %v3970 = vmul.f32 1.0, %v3969
    %v3971 = vrcp.pop %v3958
    %v3972 = vmul.f32 1.0, %v3971
    %v3973 = vrcp.pop %v3959
    %v3974 = vmul.f32 1.0, %v3973
    %v3975 = vrcp.pop %v3960
    %v3976 = vmul.f32 1.0, %v3975
    %v3977 = vmul.f32 %v3962, 1.0614054
    %v3978 = vmul.f32 %v3964, 1.0614054
    %v3979 = vmul.f32 %v3966, 1.0614054
    %v3980 = vmul.f32 %v3968, 1.0614054
    %v3981 = vmul.f32 %v3970, 1.0614054
    %v3982 = vmul.f32 %v3972, 1.0614054
    %v3983 = vmul.f32 %v3974, 1.0614054
    %v3984 = vmul.f32 %v3976, 1.0614054
    %v3985 = vadd.f32 %v3977, -1.4531521
    %v3986 = vadd.f32 %v3978, -1.4531521
    %v3987 = vadd.f32 %v3979, -1.4531521
    %v3988 = vadd.f32 %v3980, -1.4531521
    %v3989 = vadd.f32 %v3981, -1.4531521
    %v3990 = vadd.f32 %v3982, -1.4531521
    %v3991 = vadd.f32 %v3983, -1.4531521
    %v3992 = vadd.f32 %v3984, -1.4531521
    %v3993 = vmul.f32 %v3985, %v3962
    %v3994 = vmul.f32 %v3986, %v3964
    %v3995 = vmul.f32 %v3987, %v3966
    %v3996 = vmul.f32 %v3988, %v3968
    %v3997 = vmul.f32 %v3989, %v3970
    %v3998 = vmul.f32 %v3990, %v3972
    %v3999 = vmul.f32 %v3991, %v3974
    %v4000 = vmul.f32 %v3992, %v3976
    %v4001 = vadd.f32 %v3993, 1.4214138
    %v4002 = vadd.f32 %v3994, 1.4214138
    %v4003 = vadd.f32 %v3995, 1.4214138
    %v4004 = vadd.f32 %v3996, 1.4214138
    %v4005 = vadd.f32 %v3997, 1.4214138
    %v4006 = vadd.f32 %v3998, 1.4214138
    %v4007 = vadd.f32 %v3999, 1.4214138
    %v4008 = vadd.f32 %v4000, 1.4214138
    %v4009 = vmul.f32 %v4001, %v3962
    %v4010 = vmul.f32 %v4002, %v3964
    %v4011 = vmul.f32 %v4003, %v3966
    %v4012 = vmul.f32 %v4004, %v3968
    %v4013 = vmul.f32 %v4005, %v3970
    %v4014 = vmul.f32 %v4006, %v3972
    %v4015 = vmul.f32 %v4007, %v3974
    %v4016 = vmul.f32 %v4008, %v3976
    %v4017 = vadd.f32 %v4009, -0.28449672
    %v4018 = vadd.f32 %v4010, -0.28449672
    %v4019 = vadd.f32 %v4011, -0.28449672
    %v4020 = vadd.f32 %v4012, -0.28449672
    %v4021 = vadd.f32 %v4013, -0.28449672
    %v4022 = vadd.f32 %v4014, -0.28449672
    %v4023 = vadd.f32 %v4015, -0.28449672
    %v4024 = vadd.f32 %v4016, -0.28449672
    %v4025 = vmul.f32 %v4017, %v3962
    %v4026 = vmul.f32 %v4018, %v3964
    %v4027 = vmul.f32 %v4019, %v3966
    %v4028 = vmul.f32 %v4020, %v3968
    %v4029 = vmul.f32 %v4021, %v3970
    %v4030 = vmul.f32 %v4022, %v3972
    %v4031 = vmul.f32 %v4023, %v3974
    %v4032 = vmul.f32 %v4024, %v3976
    %v4033 = vadd.f32 %v4025, 0.2548296
    %v4034 = vadd.f32 %v4026, 0.2548296
    %v4035 = vadd.f32 %v4027, 0.2548296
    %v4036 = vadd.f32 %v4028, 0.2548296
    %v4037 = vadd.f32 %v4029, 0.2548296
    %v4038 = vadd.f32 %v4030, 0.2548296
    %v4039 = vadd.f32 %v4031, 0.2548296
    %v4040 = vadd.f32 %v4032, 0.2548296
    %v4041 = vmul.f32 %v4033, %v3962
    %v4042 = vmul.f32 %v4034, %v3964
    %v4043 = vmul.f32 %v4035, %v3966
    %v4044 = vmul.f32 %v4036, %v3968
    %v4045 = vmul.f32 %v4037, %v3970
    %v4046 = vmul.f32 %v4038, %v3972
    %v4047 = vmul.f32 %v4039, %v3974
    %v4048 = vmul.f32 %v4040, %v3976
    %v4049 = vsub.f32 0.0, %v3937
    %v4050 = vsub.f32 0.0, %v3938
    %v4051 = vsub.f32 0.0, %v3939
    %v4052 = vsub.f32 0.0, %v3940
    %v4053 = vsub.f32 0.0, %v3941
    %v4054 = vsub.f32 0.0, %v3942
    %v4055 = vsub.f32 0.0, %v3943
    %v4056 = vsub.f32 0.0, %v3944
    %v4057 = vmul.f32 %v4049, %v3937
    %v4058 = vmul.f32 %v4050, %v3938
    %v4059 = vmul.f32 %v4051, %v3939
    %v4060 = vmul.f32 %v4052, %v3940
    %v4061 = vmul.f32 %v4053, %v3941
    %v4062 = vmul.f32 %v4054, %v3942
    %v4063 = vmul.f32 %v4055, %v3943
    %v4064 = vmul.f32 %v4056, %v3944
    %v4065 = vmul.f32 %v4057, 1.442695
    %v4066 = vpow.pop %v4065
    %v4067 = vmul.f32 %v4058, 1.442695
    %v4068 = vpow.pop %v4067
    %v4069 = vmul.f32 %v4059, 1.442695
    %v4070 = vpow.pop %v4069
    %v4071 = vmul.f32 %v4060, 1.442695
    %v4072 = vpow.pop %v4071
    %v4073 = vmul.f32 %v4061, 1.442695
    %v4074 = vpow.pop %v4073
    %v4075 = vmul.f32 %v4062, 1.442695
    %v4076 = vpow.pop %v4075
    %v4077 = vmul.f32 %v4063, 1.442695
    %v4078 = vpow.pop %v4077
    %v4079 = vmul.f32 %v4064, 1.442695
    %v4080 = vpow.pop %v4079
    %v4081 = vmul.f32 %v4041, %v4066
    %v4082 = vmul.f32 %v4042, %v4068
    %v4083 = vmul.f32 %v4043, %v4070
    %v4084 = vmul.f32 %v4044, %v4072
    %v4085 = vmul.f32 %v4045, %v4074
    %v4086 = vmul.f32 %v4046, %v4076
    %v4087 = vmul.f32 %v4047, %v4078
    %v4088 = vmul.f32 %v4048, %v4080
    %v4089 = vsub.f32 1.0, %v4081
    %v4090 = vsub.f32 1.0, %v4082
    %v4091 = vsub.f32 1.0, %v4083
    %v4092 = vsub.f32 1.0, %v4084
    %v4093 = vsub.f32 1.0, %v4085
    %v4094 = vsub.f32 1.0, %v4086
    %v4095 = vsub.f32 1.0, %v4087
    %v4096 = vsub.f32 1.0, %v4088
    %v4097 = vmul.f32 %v3929, %v4089
    %v4098 = vmul.f32 %v3930, %v4090
    %v4099 = vmul.f32 %v3931, %v4091
    %v4100 = vmul.f32 %v3932, %v4092
    %v4101 = vmul.f32 %v3933, %v4093
    %v4102 = vmul.f32 %v3934, %v4094
    %v4103 = vmul.f32 %v3935, %v4095
    %v4104 = vmul.f32 %v3936, %v4096
    %v4105 = vadd.f32 %v4097, 1.0
    %v4106 = vadd.f32 %v4098, 1.0
    %v4107 = vadd.f32 %v4099, 1.0
    %v4108 = vadd.f32 %v4100, 1.0
    %v4109 = vadd.f32 %v4101, 1.0
    %v4110 = vadd.f32 %v4102, 1.0
    %v4111 = vadd.f32 %v4103, 1.0
    %v4112 = vadd.f32 %v4104, 1.0
    %v4113 = vmul.f32 %v3905, %v4105
    %v4114 = vmul.f32 %v3906, %v4106
    %v4115 = vmul.f32 %v3907, %v4107
    %v4116 = vmul.f32 %v3908, %v4108
    %v4117 = vmul.f32 %v3909, %v4109
    %v4118 = vmul.f32 %v3910, %v4110
    %v4119 = vmul.f32 %v3911, %v4111
    %v4120 = vmul.f32 %v3912, %v4112
    %v4121 = vpack.c.bf16 %v4115, %v4113
    %v4122 = vpack.c.bf16 %v4116, %v4114
    %v4123 = vpack.c.bf16 %v4119, %v4117
    %v4124 = vpack.c.bf16 %v4120, %v4118
    %s4125 = scalar_lea.vmem [#allocation14], 256
    %v4126 = vld [vmem:[%s4125] sm:$0xf]
    %v4127 = vld [vmem:[%s4125 + $0x4] sm:$0xf]
    %v4128 = vld [vmem:[%s4125 + $0x8] sm:$0xf]
    %v4129 = vld [vmem:[%s4125 + $0xc] sm:$0xf]
    %v4130 = vld [vmem:[%s4125 + $0x10] sm:$0xf]
    %v4131 = vld [vmem:[%s4125 + $0x14] sm:$0xf]
    %v4132 = vld [vmem:[%s4125 + $0x18] sm:$0xf]
    %v4133 = vld [vmem:[%s4125 + $0x1c] sm:$0xf]
    %v4134 = vld [vmem:[%s4125 + $0x20] sm:$0xf]
    %v4135 = vld [vmem:[%s4125 + $0x24] sm:$0xf]
    %v4136 = vld [vmem:[%s4125 + $0x28] sm:$0xf]
    %v4137 = vld [vmem:[%s4125 + $0x2c] sm:$0xf]
    %v4138 = vld [vmem:[%s4125 + $0x30] sm:$0xf]
    %v4139 = vld [vmem:[%s4125 + $0x34] sm:$0xf]
    %v4140 = vld [vmem:[%s4125 + $0x38] sm:$0xf]
    %v4141 = vld [vmem:[%s4125 + $0x3c] sm:$0xf]
    %v4142 = vld [vmem:[%s4125 + $0x40] sm:$0xf]
    %v4143 = vld [vmem:[%s4125 + $0x44] sm:$0xf]
    %v4144 = vld [vmem:[%s4125 + $0x48] sm:$0xf]
    %v4145 = vld [vmem:[%s4125 + $0x4c] sm:$0xf]
    %v4146 = vld [vmem:[%s4125 + $0x50] sm:$0xf]
    %v4147 = vld [vmem:[%s4125 + $0x54] sm:$0xf]
    %v4148 = vld [vmem:[%s4125 + $0x58] sm:$0xf]
    %v4149 = vld [vmem:[%s4125 + $0x5c] sm:$0xf]
    %v4150 = vld [vmem:[%s4125 + $0x60] sm:$0xf]
    %v4151 = vld [vmem:[%s4125 + $0x64] sm:$0xf]
    %v4152 = vld [vmem:[%s4125 + $0x68] sm:$0xf]
    %v4153 = vld [vmem:[%s4125 + $0x6c] sm:$0xf]
    %v4154 = vld [vmem:[%s4125 + $0x70] sm:$0xf]
    %v4155 = vld [vmem:[%s4125 + $0x74] sm:$0xf]
    %v4156 = vld [vmem:[%s4125 + $0x78] sm:$0xf]
    %v4157 = vld [vmem:[%s4125 + $0x7c] sm:$0xf]
    %s4158 = scalar_lea.vmem %s10, 2
    %v4159 = vld [vmem:[%s4158] sm:$0x1]
    %v4161 = vlaneseq
    %v4162 = vshrl.u32 %v4161, 7
    %v4163 = vsub.s32 0, %v4162
    %v4164 = vrot.slane %v4159, %v4163
    %v4198 = vunpack.c.l.b16 %v4126
    %v4199 = vunpack.c.l.b16 %v4127
    %v4200 = vunpack.c.l.b16 %v4128
    %v4201 = vunpack.c.l.b16 %v4129
    %v4202 = vunpack.c.l.b16 %v4130
    %v4203 = vunpack.c.l.b16 %v4131
    %v4204 = vunpack.c.l.b16 %v4132
    %v4205 = vunpack.c.l.b16 %v4133
    %v4206 = vunpack.c.l.b16 %v4134
    %v4207 = vunpack.c.l.b16 %v4135
    %v4208 = vunpack.c.l.b16 %v4136
    %v4209 = vunpack.c.l.b16 %v4137
    %v4210 = vunpack.c.l.b16 %v4138
    %v4211 = vunpack.c.l.b16 %v4139
    %v4212 = vunpack.c.l.b16 %v4140
    %v4213 = vunpack.c.l.b16 %v4141
    %v4214 = vunpack.c.l.b16 %v4142
    %v4215 = vunpack.c.l.b16 %v4143
    %v4216 = vunpack.c.l.b16 %v4144
    %v4217 = vunpack.c.l.b16 %v4145
    %v4218 = vunpack.c.l.b16 %v4146
    %v4219 = vunpack.c.l.b16 %v4147
    %v4220 = vunpack.c.l.b16 %v4148
    %v4221 = vunpack.c.l.b16 %v4149
    %v4222 = vunpack.c.l.b16 %v4150
    %v4223 = vunpack.c.l.b16 %v4151
    %v4224 = vunpack.c.l.b16 %v4152
    %v4225 = vunpack.c.l.b16 %v4153
    %v4226 = vunpack.c.l.b16 %v4154
    %v4227 = vunpack.c.l.b16 %v4155
    %v4228 = vunpack.c.l.b16 %v4156
    %v4229 = vunpack.c.l.b16 %v4157
    %v4230 = vpack.c.b16 %v4199, %v4198
    %v4231 = vpack.c.b16 %v4201, %v4200
    %v4232 = vpack.c.b16 %v4203, %v4202
    %v4233 = vpack.c.b16 %v4205, %v4204
    %v4234 = vpack.c.b16 %v4207, %v4206
    %v4235 = vpack.c.b16 %v4209, %v4208
    %v4236 = vpack.c.b16 %v4211, %v4210
    %v4237 = vpack.c.b16 %v4213, %v4212
    %v4238 = vpack.c.b16 %v4215, %v4214
    %v4239 = vpack.c.b16 %v4217, %v4216
    %v4240 = vpack.c.b16 %v4219, %v4218
    %v4241 = vpack.c.b16 %v4221, %v4220
    %v4242 = vpack.c.b16 %v4223, %v4222
    %v4243 = vpack.c.b16 %v4225, %v4224
    %v4244 = vpack.c.b16 %v4227, %v4226
    %v4245 = vpack.c.b16 %v4229, %v4228
    %4262 = vmatprep.subr.bf16.mxu0 0
    %4263 = vmatpush1.bf16.msra.mxu0 %v4237
    %4264 = vmatprep.subr.bf16.mxu0 0
    %4265 = vmatpush1.bf16.msra.mxu0 %v4236
    %4266 = vmatprep.subr.bf16.mxu0 0
    %4267 = vmatpush1.bf16.msra.mxu0 %v4235
    %4268 = vmatprep.subr.bf16.mxu0 0
    %4269 = vmatpush1.bf16.msra.mxu0 %v4234
    %4270 = vmatprep.subr.bf16.mxu0 0
    %4271 = vmatpush1.bf16.msra.mxu0 %v4233
    %4272 = vmatprep.subr.bf16.mxu0 0
    %4273 = vmatpush1.bf16.msra.mxu0 %v4232
    %4274 = vmatprep.subr.bf16.mxu0 0
    %4275 = vmatpush1.bf16.msra.mxu0 %v4231
    %4276 = vmatprep.subr.bf16.mxu0 0
    %4277 = vmatpush1.bf16.msra.mxu0 %v4230
    %4278 = vmatprep.subr.bf16.mxu0 0
    %4279 = vmatpush2.bf16.msra.mxu0 %v4245
    %4280 = vmatprep.subr.bf16.mxu0 0
    %4281 = vmatpush2.bf16.msra.mxu0 %v4244
    %4282 = vmatprep.subr.bf16.mxu0 0
    %4283 = vmatpush2.bf16.msra.mxu0 %v4243
    %4284 = vmatprep.subr.bf16.mxu0 0
    %4285 = vmatpush2.bf16.msra.mxu0 %v4242
    %4286 = vmatprep.subr.bf16.mxu0 0
    %4287 = vmatpush2.bf16.msra.mxu0 %v4241
    %4288 = vmatprep.subr.bf16.mxu0 0
    %4289 = vmatpush2.bf16.msra.mxu0 %v4240
    %4290 = vmatprep.subr.bf16.mxu0 0
    %4291 = vmatpush2.bf16.msra.mxu0 %v4239
    %4292 = vmatprep.subr.bf16.mxu0 0
    %4293 = vmatpush2.bf16.msra.mxu0 %v4238
    %4294 = vmatprep.mubr.bf16.mxu0 %v4122
    %4295 = vmatmul.mubr.bf16.gmra.mxu0 %v4121
    %v4296 = vpop.f32.mrf.mxu0
    %v4297 = vadd.f32 %v4164, %v4296
    %v4298 = vpop.f32.mrf.mxu0
    %v4299 = vpop.f32.mrf.mxu0
    %v4300 = vadd.f32 %v4164, %v4299
    %v4301 = vpop.f32.mrf.mxu0
    %4302 = vmatprep.mubr.bf16.mxu0 %v4124
    %4303 = vmatmul.mubr.bf16.gmra.mxu0 %v4123
    %v4304 = vpop.f32.mrf.mxu0
    %v4305 = vadd.f32 %v4164, %v4304
    %v4306 = vpop.f32.mrf.mxu0
    %v4307 = vpop.f32.mrf.mxu0
    %v4308 = vadd.f32 %v4164, %v4307
    %v4309 = vpop.f32.mrf.mxu0
    %4310 = vdwg.mxu0
    %v4311 = vadd.f32 %v3668, %v4297
    %v4312 = vadd.f32 %v3669, %v4300
    %v4313 = vadd.f32 %v3670, %v4305
    %v4314 = vadd.f32 %v3671, %v4308
    %s4315 = scalar_lea.vmem [#allocation7], 3
    %v4316 = vld [vmem:[%s4315] sm:$0x1]
    %s4317 = scalar_lea.vmem %s3, 3
    %v4318 = vld [vmem:[%s4317] sm:$0x1]
    %4319 = vadd.xlane.f32.xlu0 %v4311
    %v4320 = vpop.xlane.xlu0 %4319
    %4321 = vadd.xlane.f32.xlu0 %v4312
    %v4322 = vpop.xlane.xlu0 %4321
    %4323 = vadd.xlane.f32.xlu0 %v4313
    %v4324 = vpop.xlane.xlu0 %4323
    %4325 = vadd.xlane.f32.xlu0 %v4314
    %v4326 = vpop.xlane.xlu0 %4325
    %v4327 = vmul.f32 %v4320, %v310
    %v4328 = vmul.f32 %v4322, %v310
    %v4329 = vmul.f32 %v4324, %v310
    %v4330 = vmul.f32 %v4326, %v310
    %v4331 = vsub.f32 %v4311, %v4327
    %v4332 = vsub.f32 %v4312, %v4328
    %v4333 = vsub.f32 %v4313, %v4329
    %v4334 = vsub.f32 %v4314, %v4330
    %v4335 = vmul.f32 %v4331, %v4331
    %v4336 = vmul.f32 %v4332, %v4332
    %v4337 = vmul.f32 %v4333, %v4333
    %v4338 = vmul.f32 %v4334, %v4334
    %4339 = vadd.xlane.f32.xlu0 %v4335
    %v4340 = vpop.xlane.xlu0 %4339
    %4341 = vadd.xlane.f32.xlu0 %v4336
    %v4342 = vpop.xlane.xlu0 %4341
    %4343 = vadd.xlane.f32.xlu0 %v4337
    %v4344 = vpop.xlane.xlu0 %4343
    %4345 = vadd.xlane.f32.xlu0 %v4338
    %v4346 = vpop.xlane.xlu0 %4345
    %v4347 = vmul.f32 %v4340, %v310
    %v4348 = vmul.f32 %v4342, %v310
    %v4349 = vmul.f32 %v4344, %v310
    %v4350 = vmul.f32 %v4346, %v310
    %v4351 = vadd.f32 %v4347, 1e-05
    %v4352 = vadd.f32 %v4348, 1e-05
    %v4353 = vadd.f32 %v4349, 1e-05
    %v4354 = vadd.f32 %v4350, 1e-05
    %v4355 = vrsqrt.pop %v4351
    %v4356 = vrsqrt.pop %v4352
    %v4357 = vrsqrt.pop %v4353
    %v4358 = vrsqrt.pop %v4354
    %v4359 = vmul.f32 %v4331, %v4355
    %v4360 = vmul.f32 %v4332, %v4356
    %v4361 = vmul.f32 %v4333, %v4357
    %v4362 = vmul.f32 %v4334, %v4358
    %v4364 = vlaneseq
    %v4365 = vshrl.u32 %v4364, 7
    %v4366 = vsub.s32 0, %v4365
    %v4367 = vrot.slane %v4316, %v4366
    %v4369 = vmul.f32 %v4359, %v4367
    %v4370 = vmul.f32 %v4360, %v4367
    %v4371 = vmul.f32 %v4361, %v4367
    %v4372 = vmul.f32 %v4362, %v4367
    %v4374 = vlaneseq
    %v4375 = vshrl.u32 %v4374, 7
    %v4376 = vsub.s32 0, %v4375
    %v4377 = vrot.slane %v4318, %v4376
    %v4379 = vadd.f32 %v4369, %v4377
    %v4380 = vadd.f32 %v4370, %v4377
    %v4381 = vadd.f32 %v4371, %v4377
    %v4382 = vadd.f32 %v4372, %v4377
    %v4383 = vpack.c.bf16 %v4380, %v4379
    %v4384 = vpack.c.bf16 %v4382, %v4381
    %s4385 = scalar_lea.vmem [#allocation8], 576
    %v4386 = vld [vmem:[%s4385] sm:$0xff]
    %v4387 = vld [vmem:[%s4385 + $0x8] sm:$0xf]
    %v4388 = vld [vmem:[%s4385 + $0xc] sm:$0xff]
    %v4389 = vld [vmem:[%s4385 + $0x14] sm:$0xf]
    %v4390 = vld [vmem:[%s4385 + $0x18] sm:$0xff]
    %v4391 = vld [vmem:[%s4385 + $0x20] sm:$0xf]
    %v4392 = vld [vmem:[%s4385 + $0x24] sm:$0xff]
    %v4393 = vld [vmem:[%s4385 + $0x2c] sm:$0xf]
    %v4394 = vld [vmem:[%s4385 + $0x30] sm:$0xff]
    %v4395 = vld [vmem:[%s4385 + $0x38] sm:$0xf]
    %v4396 = vld [vmem:[%s4385 + $0x3c] sm:$0xff]
    %v4397 = vld [vmem:[%s4385 + $0x44] sm:$0xf]
    %v4398 = vld [vmem:[%s4385 + $0x48] sm:$0xff]
    %v4399 = vld [vmem:[%s4385 + $0x50] sm:$0xf]
    %v4400 = vld [vmem:[%s4385 + $0x54] sm:$0xff]
    %v4401 = vld [vmem:[%s4385 + $0x5c] sm:$0xf]
    %v4402 = vld [vmem:[%s4385 + $0x60] sm:$0xff]
    %v4403 = vld [vmem:[%s4385 + $0x68] sm:$0xf]
    %v4404 = vld [vmem:[%s4385 + $0x6c] sm:$0xff]
    %v4405 = vld [vmem:[%s4385 + $0x74] sm:$0xf]
    %v4406 = vld [vmem:[%s4385 + $0x78] sm:$0xff]
    %v4407 = vld [vmem:[%s4385 + $0x80] sm:$0xf]
    %v4408 = vld [vmem:[%s4385 + $0x84] sm:$0xff]
    %v4409 = vld [vmem:[%s4385 + $0x8c] sm:$0xf]
    %v4410 = vld [vmem:[%s4385 + $0x90] sm:$0xff]
    %v4411 = vld [vmem:[%s4385 + $0x98] sm:$0xf]
    %v4412 = vld [vmem:[%s4385 + $0x9c] sm:$0xff]
    %v4413 = vld [vmem:[%s4385 + $0xa4] sm:$0xf]
    %v4414 = vld [vmem:[%s4385 + $0xa8] sm:$0xff]
    %v4415 = vld [vmem:[%s4385 + $0xb0] sm:$0xf]
    %v4416 = vld [vmem:[%s4385 + $0xb4] sm:$0xff]
    %v4417 = vld [vmem:[%s4385 + $0xbc] sm:$0xf]
    %v4450 = vunpack.c.l.b16 %v4386
    %v4451 = vunpack.c.h.b16 %v4386
    %v4452 = vunpack.c.l.b16 %v4387
    %v4453 = vunpack.c.l.b16 %v4388
    %v4454 = vunpack.c.h.b16 %v4388
    %v4455 = vunpack.c.l.b16 %v4389
    %v4456 = vunpack.c.l.b16 %v4390
    %v4457 = vunpack.c.h.b16 %v4390
    %v4458 = vunpack.c.l.b16 %v4391
    %v4459 = vunpack.c.l.b16 %v4392
    %v4460 = vunpack.c.h.b16 %v4392
    %v4461 = vunpack.c.l.b16 %v4393
    %v4462 = vunpack.c.l.b16 %v4394
    %v4463 = vunpack.c.h.b16 %v4394
    %v4464 = vunpack.c.l.b16 %v4395
    %v4465 = vunpack.c.l.b16 %v4396
    %v4466 = vunpack.c.h.b16 %v4396
    %v4467 = vunpack.c.l.b16 %v4397
    %v4468 = vunpack.c.l.b16 %v4398
    %v4469 = vunpack.c.h.b16 %v4398
    %v4470 = vunpack.c.l.b16 %v4399
    %v4471 = vunpack.c.l.b16 %v4400
    %v4472 = vunpack.c.h.b16 %v4400
    %v4473 = vunpack.c.l.b16 %v4401
    %v4474 = vunpack.c.l.b16 %v4402
    %v4475 = vunpack.c.h.b16 %v4402
    %v4476 = vunpack.c.l.b16 %v4403
    %v4477 = vunpack.c.l.b16 %v4404
    %v4478 = vunpack.c.h.b16 %v4404
    %v4479 = vunpack.c.l.b16 %v4405
    %v4480 = vunpack.c.l.b16 %v4406
    %v4481 = vunpack.c.h.b16 %v4406
    %v4482 = vunpack.c.l.b16 %v4407
    %v4483 = vunpack.c.l.b16 %v4408
    %v4484 = vunpack.c.h.b16 %v4408
    %v4485 = vunpack.c.l.b16 %v4409
    %v4486 = vunpack.c.l.b16 %v4410
    %v4487 = vunpack.c.h.b16 %v4410
    %v4488 = vunpack.c.l.b16 %v4411
    %v4489 = vunpack.c.l.b16 %v4412
    %v4490 = vunpack.c.h.b16 %v4412
    %v4491 = vunpack.c.l.b16 %v4413
    %v4492 = vunpack.c.l.b16 %v4414
    %v4493 = vunpack.c.h.b16 %v4414
    %v4494 = vunpack.c.l.b16 %v4415
    %v4495 = vunpack.c.l.b16 %v4416
    %v4496 = vunpack.c.h.b16 %v4416
    %v4497 = vunpack.c.l.b16 %v4417
    %v4498 = vpack.c.b16 %v4453, %v4450
    %v4499 = vpack.c.b16 %v4454, %v4451
    %v4500 = vpack.c.b16 %v4455, %v4452
    %v4501 = vpack.c.b16 %v4459, %v4456
    %v4502 = vpack.c.b16 %v4460, %v4457
    %v4503 = vpack.c.b16 %v4461, %v4458
    %v4504 = vpack.c.b16 %v4465, %v4462
    %v4505 = vpack.c.b16 %v4466, %v4463
    %v4506 = vpack.c.b16 %v4467, %v4464
    %v4507 = vpack.c.b16 %v4471, %v4468
    %v4508 = vpack.c.b16 %v4472, %v4469
    %v4509 = vpack.c.b16 %v4473, %v4470
    %v4510 = vpack.c.b16 %v4477, %v4474
    %v4511 = vpack.c.b16 %v4478, %v4475
    %v4512 = vpack.c.b16 %v4479, %v4476
    %v4513 = vpack.c.b16 %v4483, %v4480
    %v4514 = vpack.c.b16 %v4484, %v4481
    %v4515 = vpack.c.b16 %v4485, %v4482
    %v4516 = vpack.c.b16 %v4489, %v4486
    %v4517 = vpack.c.b16 %v4490, %v4487
    %v4518 = vpack.c.b16 %v4491, %v4488
    %v4519 = vpack.c.b16 %v4495, %v4492
    %v4520 = vpack.c.b16 %v4496, %v4493
    %v4521 = vpack.c.b16 %v4497, %v4494
    %4546 = vmatprep.subr.bf16.mxu0 %v4520
    %4547 = vmatpush1.bf16.msra.mxu0 %v4519
    %4548 = vmatprep.subr.bf16.mxu0 %v4517
    %4549 = vmatpush1.bf16.msra.mxu0 %v4516
    %4550 = vmatprep.subr.bf16.mxu0 %v4514
    %4551 = vmatpush1.bf16.msra.mxu0 %v4513
    %4552 = vmatprep.subr.bf16.mxu0 %v4511
    %4553 = vmatpush1.bf16.msra.mxu0 %v4510
    %4554 = vmatprep.subr.bf16.mxu0 %v4508
    %4555 = vmatpush1.bf16.msra.mxu0 %v4507
    %4556 = vmatprep.subr.bf16.mxu0 %v4505
    %4557 = vmatpush1.bf16.msra.mxu0 %v4504
    %4558 = vmatprep.subr.bf16.mxu0 %v4502
    %4559 = vmatpush1.bf16.msra.mxu0 %v4501
    %4560 = vmatprep.subr.bf16.mxu0 %v4499
    %4561 = vmatpush1.bf16.msra.mxu0 %v4498
    %4562 = vmatprep.subr.bf16.mxu0 0
    %4563 = vmatpush2.bf16.msra.mxu0 0
    %4564 = vmatprep.subr.bf16.mxu0 0
    %4565 = vmatpush2.bf16.msra.mxu0 0
    %4566 = vmatprep.subr.bf16.mxu0 0
    %4567 = vmatpush2.bf16.msra.mxu0 0
    %4568 = vmatprep.subr.bf16.mxu0 0
    %4569 = vmatpush2.bf16.msra.mxu0 0
    %4570 = vmatprep.subr.bf16.mxu0 0
    %4571 = vmatpush2.bf16.msra.mxu0 0
    %4572 = vmatprep.subr.bf16.mxu0 0
    %4573 = vmatpush2.bf16.msra.mxu0 0
    %4574 = vmatprep.subr.bf16.mxu0 0
    %4575 = vmatpush2.bf16.msra.mxu0 0
    %4576 = vmatprep.subr.bf16.mxu0 0
    %4577 = vmatpush2.bf16.msra.mxu0 0
    %4578 = vmatprep.mubr.bf16.mxu0 0
    %4579 = vmatmul.mubr.bf16.gmra.mxu0 %v4383
    %v4580 = vpop.f32.mrf.mxu0
    %v4581 = vadd.f32 0.0, %v4580
    %v4582 = vpop.f32.mrf.mxu0
    %v4583 = vadd.f32 0.0, %v4582
    %v4584 = vpop.f32.mrf.mxu0
    %v4585 = vadd.f32 0.0, %v4584
    %v4586 = vpop.f32.mrf.mxu0
    %v4587 = vadd.f32 0.0, %v4586
    %4588 = vmatprep.mubr.bf16.mxu0 0
    %4589 = vmatmul.mubr.bf16.gmra.mxu0 %v4384
    %v4590 = vpop.f32.mrf.mxu0
    %v4591 = vadd.f32 0.0, %v4590
    %v4592 = vpop.f32.mrf.mxu0
    %v4593 = vadd.f32 0.0, %v4592
    %v4594 = vpop.f32.mrf.mxu0
    %v4595 = vadd.f32 0.0, %v4594
    %v4596 = vpop.f32.mrf.mxu0
    %v4597 = vadd.f32 0.0, %v4596
    %4598 = vdwg.mxu0
    %4599 = vmatprep.subr.bf16.mxu0 0
    %4600 = vmatpush1.bf16.msra.mxu0 %v4521
    %4601 = vmatprep.subr.bf16.mxu0 0
    %4602 = vmatpush1.bf16.msra.mxu0 %v4518
    %4603 = vmatprep.subr.bf16.mxu0 0
    %4604 = vmatpush1.bf16.msra.mxu0 %v4515
    %4605 = vmatprep.subr.bf16.mxu0 0
    %4606 = vmatpush1.bf16.msra.mxu0 %v4512
    %4607 = vmatprep.subr.bf16.mxu0 0
    %4608 = vmatpush1.bf16.msra.mxu0 %v4509
    %4609 = vmatprep.subr.bf16.mxu0 0
    %4610 = vmatpush1.bf16.msra.mxu0 %v4506
    %4611 = vmatprep.subr.bf16.mxu0 0
    %4612 = vmatpush1.bf16.msra.mxu0 %v4503
    %4613 = vmatprep.subr.bf16.mxu0 0
    %4614 = vmatpush1.bf16.msra.mxu0 %v4500
    %4615 = vmatprep.subr.bf16.mxu0 0
    %4616 = vmatpush2.bf16.msra.mxu0 0
    %4617 = vmatprep.subr.bf16.mxu0 0
    %4618 = vmatpush2.bf16.msra.mxu0 0
    %4619 = vmatprep.subr.bf16.mxu0 0
    %4620 = vmatpush2.bf16.msra.mxu0 0
    %4621 = vmatprep.subr.bf16.mxu0 0
    %4622 = vmatpush2.bf16.msra.mxu0 0
    %4623 = vmatprep.subr.bf16.mxu0 0
    %4624 = vmatpush2.bf16.msra.mxu0 0
    %4625 = vmatprep.subr.bf16.mxu0 0
    %4626 = vmatpush2.bf16.msra.mxu0 0
    %4627 = vmatprep.subr.bf16.mxu0 0
    %4628 = vmatpush2.bf16.msra.mxu0 0
    %4629 = vmatprep.subr.bf16.mxu0 0
    %4630 = vmatpush2.bf16.msra.mxu0 0
    %4631 = vmatprep.mubr.bf16.mxu0 0
    %4632 = vmatmul.mubr.bf16.gmra.mxu0 %v4383
    %v4633 = vpop.f32.mrf.mxu0
    %v4634 = vadd.f32 0.0, %v4633
    %v4635 = vpop.f32.mrf.mxu0
    %v4636 = vpop.f32.mrf.mxu0
    %v4637 = vadd.f32 0.0, %v4636
    %v4638 = vpop.f32.mrf.mxu0
    %4639 = vmatprep.mubr.bf16.mxu0 0
    %4640 = vmatmul.mubr.bf16.gmra.mxu0 %v4384
    %v4641 = vpop.f32.mrf.mxu0
    %v4642 = vadd.f32 0.0, %v4641
    %v4643 = vpop.f32.mrf.mxu0
    %v4644 = vpop.f32.mrf.mxu0
    %v4645 = vadd.f32 0.0, %v4644
    %v4646 = vpop.f32.mrf.mxu0
    %4647 = vdwg.mxu0
    %4648 = vmatprep.subr.mxu0 0.0
    %4649 = vmatpush1.xpose.msra.mxu0 0.0
    %4650 = vmatprep.subr.mxu0 0.0
    %4651 = vmatpush1.xpose.msra.mxu0 0.0
    %4652 = vmatprep.subr.mxu0 0.0
    %4653 = vmatpush1.xpose.msra.mxu0 0.0
    %4654 = vmatprep.subr.mxu0 0.0
    %4655 = vmatpush1.xpose.msra.mxu0 0.0
    %4656 = vmatprep.subr.mxu0 0.0
    %4657 = vmatpush1.xpose.msra.mxu0 0.0
    %4658 = vmatprep.subr.mxu0 0.0
    %4659 = vmatpush1.xpose.msra.mxu0 0.0
    %4660 = vmatprep.subr.mxu0 0.0
    %4661 = vmatpush1.xpose.msra.mxu0 0.0
    %4662 = vmatprep.subr.mxu0 0.0
    %4663 = vmatpush1.xpose.msra.mxu0 0.0
    %4664 = vmatprep.subr.mxu0 0.0
    %4665 = vmatpush1.xpose.msra.mxu0 0.0
    %4666 = vmatprep.subr.mxu0 0.0
    %4667 = vmatpush1.xpose.msra.mxu0 0.0
    %4668 = vmatprep.subr.mxu0 0.0
    %4669 = vmatpush1.xpose.msra.mxu0 0.0
    %4670 = vmatprep.subr.mxu0 0.0
    %4671 = vmatpush1.xpose.msra.mxu0 0.0
    %4672 = vmatprep.subr.mxu0 0.0
    %4673 = vmatpush1.xpose.msra.mxu0 0.0
    %4674 = vmatprep.subr.mxu0 0.0
    %4675 = vmatpush1.xpose.msra.mxu0 0.0
    %4676 = vmatprep.subr.mxu0 0.0
    %4677 = vmatpush1.xpose.msra.mxu0 %v4587
    %4678 = vmatprep.subr.mxu0 0.0
    %4679 = vmatpush1.xpose.msra.mxu0 %v4583
    %4680 = vmatprep.subr.mxu0 0.0
    %4681 = vmatpush2.xpose.msra.mxu0 0.0
    %4682 = vmatprep.subr.mxu0 0.0
    %4683 = vmatpush2.xpose.msra.mxu0 0.0
    %4684 = vmatprep.subr.mxu0 0.0
    %4685 = vmatpush2.xpose.msra.mxu0 0.0
    %4686 = vmatprep.subr.mxu0 0.0
    %4687 = vmatpush2.xpose.msra.mxu0 0.0
    %4688 = vmatprep.subr.mxu0 0.0
    %4689 = vmatpush2.xpose.msra.mxu0 0.0
    %4690 = vmatprep.subr.mxu0 0.0
    %4691 = vmatpush2.xpose.msra.mxu0 0.0
    %4692 = vmatprep.subr.mxu0 0.0
    %4693 = vmatpush2.xpose.msra.mxu0 0.0
    %4694 = vmatprep.subr.mxu0 0.0
    %4695 = vmatpush2.xpose.msra.mxu0 0.0
    %4696 = vmatprep.subr.mxu0 0.0
    %4697 = vmatpush2.xpose.msra.mxu0 0.0
    %4698 = vmatprep.subr.mxu0 0.0
    %4699 = vmatpush2.xpose.msra.mxu0 0.0
    %4700 = vmatprep.subr.mxu0 0.0
    %4701 = vmatpush2.xpose.msra.mxu0 0.0
    %4702 = vmatprep.subr.mxu0 0.0
    %4703 = vmatpush2.xpose.msra.mxu0 0.0
    %4704 = vmatprep.subr.mxu0 0.0
    %4705 = vmatpush2.xpose.msra.mxu0 0.0
    %4706 = vmatprep.subr.mxu0 0.0
    %4707 = vmatpush2.xpose.msra.mxu0 0.0
    %4708 = vmatprep.subr.mxu0 0.0
    %4709 = vmatpush2.xpose.msra.mxu0 0.0
    %4710 = vmatprep.subr.mxu0 0.0
    %4711 = vmatpush2.xpose.msra.mxu0 0.0
    %4712 = vmatprep.mubr.f32.mxu0 0.0
    %4713 = vmatmul.mubr.f32.gmra.mxu0 %v4581
    %v4714 = vpop.f32.mrf.mxu0
    %v4715 = vadd.f32 0.0, %v4714
    %v4716 = vpop.f32.mrf.mxu0
    %4717 = vmatprep.mubr.f32.mxu0 0.0
    %4718 = vmatmul.mubr.f32.gmra.mxu0 %v4585
    %v4719 = vpop.f32.mrf.mxu0
    %v4720 = vadd.f32 0.0, %v4719
    %v4721 = vpop.f32.mrf.mxu0
    %4722 = vdwg.mxu0
    %4723 = vmatprep.subr.mxu0 0.0
    %4724 = vmatpush1.xpose.msra.mxu0 0.0
    %4725 = vmatprep.subr.mxu0 0.0
    %4726 = vmatpush1.xpose.msra.mxu0 0.0
    %4727 = vmatprep.subr.mxu0 0.0
    %4728 = vmatpush1.xpose.msra.mxu0 0.0
    %4729 = vmatprep.subr.mxu0 0.0
    %4730 = vmatpush1.xpose.msra.mxu0 0.0
    %4731 = vmatprep.subr.mxu0 0.0
    %4732 = vmatpush1.xpose.msra.mxu0 0.0
    %4733 = vmatprep.subr.mxu0 0.0
    %4734 = vmatpush1.xpose.msra.mxu0 0.0
    %4735 = vmatprep.subr.mxu0 0.0
    %4736 = vmatpush1.xpose.msra.mxu0 0.0
    %4737 = vmatprep.subr.mxu0 0.0
    %4738 = vmatpush1.xpose.msra.mxu0 0.0
    %4739 = vmatprep.subr.mxu0 0.0
    %4740 = vmatpush1.xpose.msra.mxu0 0.0
    %4741 = vmatprep.subr.mxu0 0.0
    %4742 = vmatpush1.xpose.msra.mxu0 0.0
    %4743 = vmatprep.subr.mxu0 0.0
    %4744 = vmatpush1.xpose.msra.mxu0 0.0
    %4745 = vmatprep.subr.mxu0 0.0
    %4746 = vmatpush1.xpose.msra.mxu0 0.0
    %4747 = vmatprep.subr.mxu0 0.0
    %4748 = vmatpush1.xpose.msra.mxu0 0.0
    %4749 = vmatprep.subr.mxu0 0.0
    %4750 = vmatpush1.xpose.msra.mxu0 0.0
    %4751 = vmatprep.subr.mxu0 0.0
    %4752 = vmatpush1.xpose.msra.mxu0 %v4597
    %4753 = vmatprep.subr.mxu0 0.0
    %4754 = vmatpush1.xpose.msra.mxu0 %v4593
    %4755 = vmatprep.subr.mxu0 0.0
    %4756 = vmatpush2.xpose.msra.mxu0 0.0
    %4757 = vmatprep.subr.mxu0 0.0
    %4758 = vmatpush2.xpose.msra.mxu0 0.0
    %4759 = vmatprep.subr.mxu0 0.0
    %4760 = vmatpush2.xpose.msra.mxu0 0.0
    %4761 = vmatprep.subr.mxu0 0.0
    %4762 = vmatpush2.xpose.msra.mxu0 0.0
    %4763 = vmatprep.subr.mxu0 0.0
    %4764 = vmatpush2.xpose.msra.mxu0 0.0
    %4765 = vmatprep.subr.mxu0 0.0
    %4766 = vmatpush2.xpose.msra.mxu0 0.0
    %4767 = vmatprep.subr.mxu0 0.0
    %4768 = vmatpush2.xpose.msra.mxu0 0.0
    %4769 = vmatprep.subr.mxu0 0.0
    %4770 = vmatpush2.xpose.msra.mxu0 0.0
    %4771 = vmatprep.subr.mxu0 0.0
    %4772 = vmatpush2.xpose.msra.mxu0 0.0
    %4773 = vmatprep.subr.mxu0 0.0
    %4774 = vmatpush2.xpose.msra.mxu0 0.0
    %4775 = vmatprep.subr.mxu0 0.0
    %4776 = vmatpush2.xpose.msra.mxu0 0.0
    %4777 = vmatprep.subr.mxu0 0.0
    %4778 = vmatpush2.xpose.msra.mxu0 0.0
    %4779 = vmatprep.subr.mxu0 0.0
    %4780 = vmatpush2.xpose.msra.mxu0 0.0
    %4781 = vmatprep.subr.mxu0 0.0
    %4782 = vmatpush2.xpose.msra.mxu0 0.0
    %4783 = vmatprep.subr.mxu0 0.0
    %4784 = vmatpush2.xpose.msra.mxu0 0.0
    %4785 = vmatprep.subr.mxu0 0.0
    %4786 = vmatpush2.xpose.msra.mxu0 0.0
    %4787 = vmatprep.mubr.f32.mxu0 0.0
    %4788 = vmatmul.mubr.f32.gmra.mxu0 %v4591
    %v4789 = vpop.f32.mrf.mxu0
    %v4790 = vadd.f32 0.0, %v4789
    %v4791 = vpop.f32.mrf.mxu0
    %4792 = vmatprep.mubr.f32.mxu0 0.0
    %4793 = vmatmul.mubr.f32.gmra.mxu0 %v4595
    %v4794 = vpop.f32.mrf.mxu0
    %v4795 = vadd.f32 0.0, %v4794
    %v4796 = vpop.f32.mrf.mxu0
    %4797 = vdwg.mxu0
    %v4798 = vsel %vm782, %v4715, -1e+30
    %v4799 = vsel %vm782, %v4720, -1e+30
    %v4800 = vsel %vm782, %v4790, -1e+30
    %v4801 = vsel %vm782, %v4795, -1e+30
    %v4802 = vsel %vm787, %v4798, -inf
    %4803 = vmax.xlane.f32.xlu0 %v4802
    %v4804 = vpop.xlane.xlu0 %4803
    %v4805 = vsel %vm787, %v4799, -inf
    %4806 = vmax.xlane.f32.xlu0 %v4805
    %v4807 = vpop.xlane.xlu0 %4806
    %v4808 = vsel %vm787, %v4800, -inf
    %4809 = vmax.xlane.f32.xlu0 %v4808
    %v4810 = vpop.xlane.xlu0 %4809
    %v4811 = vsel %vm787, %v4801, -inf
    %4812 = vmax.xlane.f32.xlu0 %v4811
    %v4813 = vpop.xlane.xlu0 %4812
    %v4814 = vsub.f32 %v4798, %v4804
    %v4815 = vsub.f32 %v4799, %v4807
    %v4816 = vsub.f32 %v4800, %v4810
    %v4817 = vsub.f32 %v4801, %v4813
    %v4818 = vmul.f32 %v4814, 1.442695
    %v4819 = vpow.pop %v4818
    %v4820 = vmul.f32 %v4815, 1.442695
    %v4821 = vpow.pop %v4820
    %v4822 = vmul.f32 %v4816, 1.442695
    %v4823 = vpow.pop %v4822
    %v4824 = vmul.f32 %v4817, 1.442695
    %v4825 = vpow.pop %v4824
    %v4826 = vsel %vm787, %v4819, 0.0
    %4827 = vadd.xlane.f32.xlu0 %v4826
    %v4828 = vpop.xlane.xlu0 %4827
    %v4829 = vsel %vm787, %v4821, 0.0
    %4830 = vadd.xlane.f32.xlu0 %v4829
    %v4831 = vpop.xlane.xlu0 %4830
    %v4832 = vsel %vm787, %v4823, 0.0
    %4833 = vadd.xlane.f32.xlu0 %v4832
    %v4834 = vpop.xlane.xlu0 %4833
    %v4835 = vsel %vm787, %v4825, 0.0
    %4836 = vadd.xlane.f32.xlu0 %v4835
    %v4837 = vpop.xlane.xlu0 %4836
    %v4838 = vrcp.pop %v4828
    %v4839 = vrcp.pop %v4831
    %v4840 = vrcp.pop %v4834
    %v4841 = vrcp.pop %v4837
    %v4842 = vmul.f32 %v4819, %v4838
    %v4843 = vmul.f32 %v4821, %v4839
    %v4844 = vmul.f32 %v4823, %v4840
    %v4845 = vmul.f32 %v4825, %v4841
    %v4847 = vsel %vm787, %v4842, 0
    %v4850 = vsel %vm787, %v4843, 0
    %4852 = vmatprep.subr.mxu0 0.0
    %4853 = vmatpush1.msra.mxu0 0.0
    %4854 = vmatprep.subr.mxu0 0.0
    %4855 = vmatpush1.msra.mxu0 0.0
    %4856 = vmatprep.subr.mxu0 0.0
    %4857 = vmatpush1.msra.mxu0 0.0
    %4858 = vmatprep.subr.mxu0 0.0
    %4859 = vmatpush1.msra.mxu0 0.0
    %4860 = vmatprep.subr.mxu0 0.0
    %4861 = vmatpush1.msra.mxu0 0.0
    %4862 = vmatprep.subr.mxu0 0.0
    %4863 = vmatpush1.msra.mxu0 0.0
    %4864 = vmatprep.subr.mxu0 0.0
    %4865 = vmatpush1.msra.mxu0 0.0
    %4866 = vmatprep.subr.mxu0 0.0
    %4867 = vmatpush1.msra.mxu0 0.0
    %4868 = vmatprep.subr.mxu0 0.0
    %4869 = vmatpush1.msra.mxu0 0.0
    %4870 = vmatprep.subr.mxu0 0.0
    %4871 = vmatpush1.msra.mxu0 0.0
    %4872 = vmatprep.subr.mxu0 0.0
    %4873 = vmatpush1.msra.mxu0 0.0
    %4874 = vmatprep.subr.mxu0 0.0
    %4875 = vmatpush1.msra.mxu0 0.0
    %4876 = vmatprep.subr.mxu0 0.0
    %4877 = vmatpush1.msra.mxu0 0.0
    %4878 = vmatprep.subr.mxu0 0.0
    %4879 = vmatpush1.msra.mxu0 0.0
    %4880 = vmatprep.subr.mxu0 0.0
    %4881 = vmatpush1.msra.mxu0 %v4637
    %4882 = vmatprep.subr.mxu0 0.0
    %4883 = vmatpush1.msra.mxu0 %v4634
    %4884 = vmatprep.subr.mxu0 0.0
    %4885 = vmatpush2.msra.mxu0 0.0
    %4886 = vmatprep.subr.mxu0 0.0
    %4887 = vmatpush2.msra.mxu0 0.0
    %4888 = vmatprep.subr.mxu0 0.0
    %4889 = vmatpush2.msra.mxu0 0.0
    %4890 = vmatprep.subr.mxu0 0.0
    %4891 = vmatpush2.msra.mxu0 0.0
    %4892 = vmatprep.subr.mxu0 0.0
    %4893 = vmatpush2.msra.mxu0 0.0
    %4894 = vmatprep.subr.mxu0 0.0
    %4895 = vmatpush2.msra.mxu0 0.0
    %4896 = vmatprep.subr.mxu0 0.0
    %4897 = vmatpush2.msra.mxu0 0.0
    %4898 = vmatprep.subr.mxu0 0.0
    %4899 = vmatpush2.msra.mxu0 0.0
    %4900 = vmatprep.subr.mxu0 0.0
    %4901 = vmatpush2.msra.mxu0 0.0
    %4902 = vmatprep.subr.mxu0 0.0
    %4903 = vmatpush2.msra.mxu0 0.0
    %4904 = vmatprep.subr.mxu0 0.0
    %4905 = vmatpush2.msra.mxu0 0.0
    %4906 = vmatprep.subr.mxu0 0.0
    %4907 = vmatpush2.msra.mxu0 0.0
    %4908 = vmatprep.subr.mxu0 0.0
    %4909 = vmatpush2.msra.mxu0 0.0
    %4910 = vmatprep.subr.mxu0 0.0
    %4911 = vmatpush2.msra.mxu0 0.0
    %4912 = vmatprep.subr.mxu0 0.0
    %4913 = vmatpush2.msra.mxu0 0.0
    %4914 = vmatprep.subr.mxu0 0.0
    %4915 = vmatpush2.msra.mxu0 0.0
    %4916 = vmatprep.mubr.f32.mxu0 0.0
    %4917 = vmatmul.mubr.f32.gmra.mxu0 %v4847
    %v4918 = vpop.f32.mrf.mxu0
    %v4919 = vadd.f32 0.0, %v4918
    %v4920 = vpop.f32.mrf.mxu0
    %4921 = vmatprep.mubr.f32.mxu0 0.0
    %4922 = vmatmul.mubr.f32.gmra.mxu0 %v4850
    %v4923 = vpop.f32.mrf.mxu0
    %v4924 = vadd.f32 0.0, %v4923
    %v4925 = vpop.f32.mrf.mxu0
    %4926 = vdwg.mxu0
    %v4928 = vsel %vm787, %v4844, 0
    %v4931 = vsel %vm787, %v4845, 0
    %4933 = vmatprep.subr.mxu0 0.0
    %4934 = vmatpush1.msra.mxu0 0.0
    %4935 = vmatprep.subr.mxu0 0.0
    %4936 = vmatpush1.msra.mxu0 0.0
    %4937 = vmatprep.subr.mxu0 0.0
    %4938 = vmatpush1.msra.mxu0 0.0
    %4939 = vmatprep.subr.mxu0 0.0
    %4940 = vmatpush1.msra.mxu0 0.0
    %4941 = vmatprep.subr.mxu0 0.0
    %4942 = vmatpush1.msra.mxu0 0.0
    %4943 = vmatprep.subr.mxu0 0.0
    %4944 = vmatpush1.msra.mxu0 0.0
    %4945 = vmatprep.subr.mxu0 0.0
    %4946 = vmatpush1.msra.mxu0 0.0
    %4947 = vmatprep.subr.mxu0 0.0
    %4948 = vmatpush1.msra.mxu0 0.0
    %4949 = vmatprep.subr.mxu0 0.0
    %4950 = vmatpush1.msra.mxu0 0.0
    %4951 = vmatprep.subr.mxu0 0.0
    %4952 = vmatpush1.msra.mxu0 0.0
    %4953 = vmatprep.subr.mxu0 0.0
    %4954 = vmatpush1.msra.mxu0 0.0
    %4955 = vmatprep.subr.mxu0 0.0
    %4956 = vmatpush1.msra.mxu0 0.0
    %4957 = vmatprep.subr.mxu0 0.0
    %4958 = vmatpush1.msra.mxu0 0.0
    %4959 = vmatprep.subr.mxu0 0.0
    %4960 = vmatpush1.msra.mxu0 0.0
    %4961 = vmatprep.subr.mxu0 0.0
    %4962 = vmatpush1.msra.mxu0 %v4645
    %4963 = vmatprep.subr.mxu0 0.0
    %4964 = vmatpush1.msra.mxu0 %v4642
    %4965 = vmatprep.subr.mxu0 0.0
    %4966 = vmatpush2.msra.mxu0 0.0
    %4967 = vmatprep.subr.mxu0 0.0
    %4968 = vmatpush2.msra.mxu0 0.0
    %4969 = vmatprep.subr.mxu0 0.0
    %4970 = vmatpush2.msra.mxu0 0.0
    %4971 = vmatprep.subr.mxu0 0.0
    %4972 = vmatpush2.msra.mxu0 0.0
    %4973 = vmatprep.subr.mxu0 0.0
    %4974 = vmatpush2.msra.mxu0 0.0
    %4975 = vmatprep.subr.mxu0 0.0
    %4976 = vmatpush2.msra.mxu0 0.0
    %4977 = vmatprep.subr.mxu0 0.0
    %4978 = vmatpush2.msra.mxu0 0.0
    %4979 = vmatprep.subr.mxu0 0.0
    %4980 = vmatpush2.msra.mxu0 0.0
    %4981 = vmatprep.subr.mxu0 0.0
    %4982 = vmatpush2.msra.mxu0 0.0
    %4983 = vmatprep.subr.mxu0 0.0
    %4984 = vmatpush2.msra.mxu0 0.0
    %4985 = vmatprep.subr.mxu0 0.0
    %4986 = vmatpush2.msra.mxu0 0.0
    %4987 = vmatprep.subr.mxu0 0.0
    %4988 = vmatpush2.msra.mxu0 0.0
    %4989 = vmatprep.subr.mxu0 0.0
    %4990 = vmatpush2.msra.mxu0 0.0
    %4991 = vmatprep.subr.mxu0 0.0
    %4992 = vmatpush2.msra.mxu0 0.0
    %4993 = vmatprep.subr.mxu0 0.0
    %4994 = vmatpush2.msra.mxu0 0.0
    %4995 = vmatprep.subr.mxu0 0.0
    %4996 = vmatpush2.msra.mxu0 0.0
    %4997 = vmatprep.mubr.f32.mxu0 0.0
    %4998 = vmatmul.mubr.f32.gmra.mxu0 %v4928
    %v4999 = vpop.f32.mrf.mxu0
    %v5000 = vadd.f32 0.0, %v4999
    %v5001 = vpop.f32.mrf.mxu0
    %5002 = vmatprep.mubr.f32.mxu0 0.0
    %5003 = vmatmul.mubr.f32.gmra.mxu0 %v4931
    %v5004 = vpop.f32.mrf.mxu0
    %v5005 = vadd.f32 0.0, %v5004
    %v5006 = vpop.f32.mrf.mxu0
    %5007 = vdwg.mxu0
    %v5008 = vadd.f32 %v4311, %v4919
    %v5009 = vadd.f32 %v4312, %v4924
    %v5010 = vadd.f32 %v4313, %v5000
    %v5011 = vadd.f32 %v4314, %v5005
    %s5012 = scalar_lea.vmem [#allocation10], 3
    %v5013 = vld [vmem:[%s5012] sm:$0x1]
    %s5014 = scalar_lea.vmem [#allocation11], 3
    %v5015 = vld [vmem:[%s5014] sm:$0x1]
    %5016 = vadd.xlane.f32.xlu0 %v5008
    %v5017 = vpop.xlane.xlu0 %5016
    %5018 = vadd.xlane.f32.xlu0 %v5009
    %v5019 = vpop.xlane.xlu0 %5018
    %5020 = vadd.xlane.f32.xlu0 %v5010
    %v5021 = vpop.xlane.xlu0 %5020
    %5022 = vadd.xlane.f32.xlu0 %v5011
    %v5023 = vpop.xlane.xlu0 %5022
    %v5024 = vmul.f32 %v5017, %v310
    %v5025 = vmul.f32 %v5019, %v310
    %v5026 = vmul.f32 %v5021, %v310
    %v5027 = vmul.f32 %v5023, %v310
    %v5028 = vsub.f32 %v5008, %v5024
    %v5029 = vsub.f32 %v5009, %v5025
    %v5030 = vsub.f32 %v5010, %v5026
    %v5031 = vsub.f32 %v5011, %v5027
    %v5032 = vmul.f32 %v5028, %v5028
    %v5033 = vmul.f32 %v5029, %v5029
    %v5034 = vmul.f32 %v5030, %v5030
    %v5035 = vmul.f32 %v5031, %v5031
    %5036 = vadd.xlane.f32.xlu0 %v5032
    %v5037 = vpop.xlane.xlu0 %5036
    %5038 = vadd.xlane.f32.xlu0 %v5033
    %v5039 = vpop.xlane.xlu0 %5038
    %5040 = vadd.xlane.f32.xlu0 %v5034
    %v5041 = vpop.xlane.xlu0 %5040
    %5042 = vadd.xlane.f32.xlu0 %v5035
    %v5043 = vpop.xlane.xlu0 %5042
    %v5044 = vmul.f32 %v5037, %v310
    %v5045 = vmul.f32 %v5039, %v310
    %v5046 = vmul.f32 %v5041, %v310
    %v5047 = vmul.f32 %v5043, %v310
    %v5048 = vadd.f32 %v5044, 1e-05
    %v5049 = vadd.f32 %v5045, 1e-05
    %v5050 = vadd.f32 %v5046, 1e-05
    %v5051 = vadd.f32 %v5047, 1e-05
    %v5052 = vrsqrt.pop %v5048
    %v5053 = vrsqrt.pop %v5049
    %v5054 = vrsqrt.pop %v5050
    %v5055 = vrsqrt.pop %v5051
    %v5056 = vmul.f32 %v5028, %v5052
    %v5057 = vmul.f32 %v5029, %v5053
    %v5058 = vmul.f32 %v5030, %v5054
    %v5059 = vmul.f32 %v5031, %v5055
    %v5061 = vlaneseq
    %v5062 = vshrl.u32 %v5061, 7
    %v5063 = vsub.s32 0, %v5062
    %v5064 = vrot.slane %v5013, %v5063
    %v5066 = vmul.f32 %v5056, %v5064
    %v5067 = vmul.f32 %v5057, %v5064
    %v5068 = vmul.f32 %v5058, %v5064
    %v5069 = vmul.f32 %v5059, %v5064
    %v5071 = vlaneseq
    %v5072 = vshrl.u32 %v5071, 7
    %v5073 = vsub.s32 0, %v5072
    %v5074 = vrot.slane %v5015, %v5073
    %v5076 = vadd.f32 %v5066, %v5074
    %v5077 = vadd.f32 %v5067, %v5074
    %v5078 = vadd.f32 %v5068, %v5074
    %v5079 = vadd.f32 %v5069, %v5074
    %v5080 = vpack.c.bf16 %v5077, %v5076
    %v5081 = vpack.c.bf16 %v5079, %v5078
    %s5082 = scalar_lea.vmem [#allocation13], 384
    %v5083 = vld [vmem:[%s5082] sm:$0xff]
    %v5084 = vld [vmem:[%s5082 + $0x8] sm:$0xff]
    %v5085 = vld [vmem:[%s5082 + $0x10] sm:$0xff]
    %v5086 = vld [vmem:[%s5082 + $0x18] sm:$0xff]
    %v5087 = vld [vmem:[%s5082 + $0x20] sm:$0xff]
    %v5088 = vld [vmem:[%s5082 + $0x28] sm:$0xff]
    %v5089 = vld [vmem:[%s5082 + $0x30] sm:$0xff]
    %v5090 = vld [vmem:[%s5082 + $0x38] sm:$0xff]
    %v5091 = vld [vmem:[%s5082 + $0x40] sm:$0xff]
    %v5092 = vld [vmem:[%s5082 + $0x48] sm:$0xff]
    %v5093 = vld [vmem:[%s5082 + $0x50] sm:$0xff]
    %v5094 = vld [vmem:[%s5082 + $0x58] sm:$0xff]
    %v5095 = vld [vmem:[%s5082 + $0x60] sm:$0xff]
    %v5096 = vld [vmem:[%s5082 + $0x68] sm:$0xff]
    %v5097 = vld [vmem:[%s5082 + $0x70] sm:$0xff]
    %v5098 = vld [vmem:[%s5082 + $0x78] sm:$0xff]
    %s5099 = scalar_lea.vmem %s8, 6
    %v5100 = vld [vmem:[%s5099] sm:$0x3]
    %v5102 = vlaneseq
    %v5103 = vshrl.u32 %v5102, 7
    %v5104 = vsub.s32 0, %v5103
    %v5105 = vrot.slane %v5100, %v5104
    %v5106 = vlaneseq
    %v5107 = vshrl.u32 %v5106, 7
    %v5108 = vsub.s32 1, %v5107
    %v5109 = vrot.slane %v5100, %v5108
    %v5128 = vunpack.c.l.b16 %v5083
    %v5129 = vunpack.c.h.b16 %v5083
    %v5130 = vunpack.c.l.b16 %v5084
    %v5131 = vunpack.c.h.b16 %v5084
    %v5132 = vunpack.c.l.b16 %v5085
    %v5133 = vunpack.c.h.b16 %v5085
    %v5134 = vunpack.c.l.b16 %v5086
    %v5135 = vunpack.c.h.b16 %v5086
    %v5136 = vunpack.c.l.b16 %v5087
    %v5137 = vunpack.c.h.b16 %v5087
    %v5138 = vunpack.c.l.b16 %v5088
    %v5139 = vunpack.c.h.b16 %v5088
    %v5140 = vunpack.c.l.b16 %v5089
    %v5141 = vunpack.c.h.b16 %v5089
    %v5142 = vunpack.c.l.b16 %v5090
    %v5143 = vunpack.c.h.b16 %v5090
    %v5144 = vunpack.c.l.b16 %v5091
    %v5145 = vunpack.c.h.b16 %v5091
    %v5146 = vunpack.c.l.b16 %v5092
    %v5147 = vunpack.c.h.b16 %v5092
    %v5148 = vunpack.c.l.b16 %v5093
    %v5149 = vunpack.c.h.b16 %v5093
    %v5150 = vunpack.c.l.b16 %v5094
    %v5151 = vunpack.c.h.b16 %v5094
    %v5152 = vunpack.c.l.b16 %v5095
    %v5153 = vunpack.c.h.b16 %v5095
    %v5154 = vunpack.c.l.b16 %v5096
    %v5155 = vunpack.c.h.b16 %v5096
    %v5156 = vunpack.c.l.b16 %v5097
    %v5157 = vunpack.c.h.b16 %v5097
    %v5158 = vunpack.c.l.b16 %v5098
    %v5159 = vunpack.c.h.b16 %v5098
    %v5160 = vpack.c.b16 %v5130, %v5128
    %v5161 = vpack.c.b16 %v5131, %v5129
    %v5162 = vpack.c.b16 %v5134, %v5132
    %v5163 = vpack.c.b16 %v5135, %v5133
    %v5164 = vpack.c.b16 %v5138, %v5136
    %v5165 = vpack.c.b16 %v5139, %v5137
    %v5166 = vpack.c.b16 %v5142, %v5140
    %v5167 = vpack.c.b16 %v5143, %v5141
    %v5168 = vpack.c.b16 %v5146, %v5144
    %v5169 = vpack.c.b16 %v5147, %v5145
    %v5170 = vpack.c.b16 %v5150, %v5148
    %v5171 = vpack.c.b16 %v5151, %v5149
    %v5172 = vpack.c.b16 %v5154, %v5152
    %v5173 = vpack.c.b16 %v5155, %v5153
    %v5174 = vpack.c.b16 %v5158, %v5156
    %v5175 = vpack.c.b16 %v5159, %v5157
    %5192 = vmatprep.subr.bf16.mxu0 %v5175
    %5193 = vmatpush1.bf16.msra.mxu0 %v5174
    %5194 = vmatprep.subr.bf16.mxu0 %v5173
    %5195 = vmatpush1.bf16.msra.mxu0 %v5172
    %5196 = vmatprep.subr.bf16.mxu0 %v5171
    %5197 = vmatpush1.bf16.msra.mxu0 %v5170
    %5198 = vmatprep.subr.bf16.mxu0 %v5169
    %5199 = vmatpush1.bf16.msra.mxu0 %v5168
    %5200 = vmatprep.subr.bf16.mxu0 %v5167
    %5201 = vmatpush1.bf16.msra.mxu0 %v5166
    %5202 = vmatprep.subr.bf16.mxu0 %v5165
    %5203 = vmatpush1.bf16.msra.mxu0 %v5164
    %5204 = vmatprep.subr.bf16.mxu0 %v5163
    %5205 = vmatpush1.bf16.msra.mxu0 %v5162
    %5206 = vmatprep.subr.bf16.mxu0 %v5161
    %5207 = vmatpush1.bf16.msra.mxu0 %v5160
    %5208 = vmatprep.subr.bf16.mxu0 0
    %5209 = vmatpush2.bf16.msra.mxu0 0
    %5210 = vmatprep.subr.bf16.mxu0 0
    %5211 = vmatpush2.bf16.msra.mxu0 0
    %5212 = vmatprep.subr.bf16.mxu0 0
    %5213 = vmatpush2.bf16.msra.mxu0 0
    %5214 = vmatprep.subr.bf16.mxu0 0
    %5215 = vmatpush2.bf16.msra.mxu0 0
    %5216 = vmatprep.subr.bf16.mxu0 0
    %5217 = vmatpush2.bf16.msra.mxu0 0
    %5218 = vmatprep.subr.bf16.mxu0 0
    %5219 = vmatpush2.bf16.msra.mxu0 0
    %5220 = vmatprep.subr.bf16.mxu0 0
    %5221 = vmatpush2.bf16.msra.mxu0 0
    %5222 = vmatprep.subr.bf16.mxu0 0
    %5223 = vmatpush2.bf16.msra.mxu0 0
    %5224 = vmatprep.mubr.bf16.mxu0 0
    %5225 = vmatmul.mubr.bf16.gmra.mxu0 %v5080
    %v5226 = vpop.f32.mrf.mxu0
    %v5227 = vadd.f32 %v5105, %v5226
    %v5228 = vpop.f32.mrf.mxu0
    %v5229 = vadd.f32 %v5109, %v5228
    %v5230 = vpop.f32.mrf.mxu0
    %v5231 = vadd.f32 %v5105, %v5230
    %v5232 = vpop.f32.mrf.mxu0
    %v5233 = vadd.f32 %v5109, %v5232
    %5234 = vmatprep.mubr.bf16.mxu0 0
    %5235 = vmatmul.mubr.bf16.gmra.mxu0 %v5081
    %v5236 = vpop.f32.mrf.mxu0
    %v5237 = vadd.f32 %v5105, %v5236
    %v5238 = vpop.f32.mrf.mxu0
    %v5239 = vadd.f32 %v5109, %v5238
    %v5240 = vpop.f32.mrf.mxu0
    %v5241 = vadd.f32 %v5105, %v5240
    %v5242 = vpop.f32.mrf.mxu0
    %v5243 = vadd.f32 %v5109, %v5242
    %5244 = vdwg.mxu0
    %v5245 = vmul.f32 %v5227, 0.5
    %v5246 = vmul.f32 %v5229, 0.5
    %v5247 = vmul.f32 %v5231, 0.5
    %v5248 = vmul.f32 %v5233, 0.5
    %v5249 = vmul.f32 %v5237, 0.5
    %v5250 = vmul.f32 %v5239, 0.5
    %v5251 = vmul.f32 %v5241, 0.5
    %v5252 = vmul.f32 %v5243, 0.5
    %v5253 = vmul.f32 %v5227, 0.70710677
    %v5254 = vmul.f32 %v5229, 0.70710677
    %v5255 = vmul.f32 %v5231, 0.70710677
    %v5256 = vmul.f32 %v5233, 0.70710677
    %v5257 = vmul.f32 %v5237, 0.70710677
    %v5258 = vmul.f32 %v5239, 0.70710677
    %v5259 = vmul.f32 %v5241, 0.70710677
    %v5260 = vmul.f32 %v5243, 0.70710677
    %vm5261 = vcmp.ge.f32.partialorder %v5253, 0.0
    %vm5262 = vcmp.ge.f32.partialorder %v5254, 0.0
    %vm5263 = vcmp.ge.f32.partialorder %v5255, 0.0
    %vm5264 = vcmp.ge.f32.partialorder %v5256, 0.0
    %vm5265 = vcmp.ge.f32.partialorder %v5257, 0.0
    %vm5266 = vcmp.ge.f32.partialorder %v5258, 0.0
    %vm5267 = vcmp.ge.f32.partialorder %v5259, 0.0
    %vm5268 = vcmp.ge.f32.partialorder %v5260, 0.0
    %v5269 = vsel %vm5261, 1.0, -1.0
    %v5270 = vsel %vm5262, 1.0, -1.0
    %v5271 = vsel %vm5263, 1.0, -1.0
    %v5272 = vsel %vm5264, 1.0, -1.0
    %v5273 = vsel %vm5265, 1.0, -1.0
    %v5274 = vsel %vm5266, 1.0, -1.0
    %v5275 = vsel %vm5267, 1.0, -1.0
    %v5276 = vsel %vm5268, 1.0, -1.0
    %v5277 = vand.u32 2147483647, %v5253
    %v5278 = vand.u32 2147483647, %v5254
    %v5279 = vand.u32 2147483647, %v5255
    %v5280 = vand.u32 2147483647, %v5256
    %v5281 = vand.u32 2147483647, %v5257
    %v5282 = vand.u32 2147483647, %v5258
    %v5283 = vand.u32 2147483647, %v5259
    %v5284 = vand.u32 2147483647, %v5260
    %v5285 = vmul.f32 %v5277, 0.3275911
    %v5286 = vmul.f32 %v5278, 0.3275911
    %v5287 = vmul.f32 %v5279, 0.3275911
    %v5288 = vmul.f32 %v5280, 0.3275911
    %v5289 = vmul.f32 %v5281, 0.3275911
    %v5290 = vmul.f32 %v5282, 0.3275911
    %v5291 = vmul.f32 %v5283, 0.3275911
    %v5292 = vmul.f32 %v5284, 0.3275911
    %v5293 = vadd.f32 %v5285, 1.0
    %v5294 = vadd.f32 %v5286, 1.0
    %v5295 = vadd.f32 %v5287, 1.0
    %v5296 = vadd.f32 %v5288, 1.0
    %v5297 = vadd.f32 %v5289, 1.0
    %v5298 = vadd.f32 %v5290, 1.0
    %v5299 = vadd.f32 %v5291, 1.0
    %v5300 = vadd.f32 %v5292, 1.0
    %v5301 = vrcp.pop %v5293
    %v5302 = vmul.f32 1.0, %v5301
    %v5303 = vrcp.pop %v5294
    %v5304 = vmul.f32 1.0, %v5303
    %v5305 = vrcp.pop %v5295
    %v5306 = vmul.f32 1.0, %v5305
    %v5307 = vrcp.pop %v5296
    %v5308 = vmul.f32 1.0, %v5307
    %v5309 = vrcp.pop %v5297
    %v5310 = vmul.f32 1.0, %v5309
    %v5311 = vrcp.pop %v5298
    %v5312 = vmul.f32 1.0, %v5311
    %v5313 = vrcp.pop %v5299
    %v5314 = vmul.f32 1.0, %v5313
    %v5315 = vrcp.pop %v5300
    %v5316 = vmul.f32 1.0, %v5315
    %v5317 = vmul.f32 %v5302, 1.0614054
    %v5318 = vmul.f32 %v5304, 1.0614054
    %v5319 = vmul.f32 %v5306, 1.0614054
    %v5320 = vmul.f32 %v5308, 1.0614054
    %v5321 = vmul.f32 %v5310, 1.0614054
    %v5322 = vmul.f32 %v5312, 1.0614054
    %v5323 = vmul.f32 %v5314, 1.0614054
    %v5324 = vmul.f32 %v5316, 1.0614054
    %v5325 = vadd.f32 %v5317, -1.4531521
    %v5326 = vadd.f32 %v5318, -1.4531521
    %v5327 = vadd.f32 %v5319, -1.4531521
    %v5328 = vadd.f32 %v5320, -1.4531521
    %v5329 = vadd.f32 %v5321, -1.4531521
    %v5330 = vadd.f32 %v5322, -1.4531521
    %v5331 = vadd.f32 %v5323, -1.4531521
    %v5332 = vadd.f32 %v5324, -1.4531521
    %v5333 = vmul.f32 %v5325, %v5302
    %v5334 = vmul.f32 %v5326, %v5304
    %v5335 = vmul.f32 %v5327, %v5306
    %v5336 = vmul.f32 %v5328, %v5308
    %v5337 = vmul.f32 %v5329, %v5310
    %v5338 = vmul.f32 %v5330, %v5312
    %v5339 = vmul.f32 %v5331, %v5314
    %v5340 = vmul.f32 %v5332, %v5316
    %v5341 = vadd.f32 %v5333, 1.4214138
    %v5342 = vadd.f32 %v5334, 1.4214138
    %v5343 = vadd.f32 %v5335, 1.4214138
    %v5344 = vadd.f32 %v5336, 1.4214138
    %v5345 = vadd.f32 %v5337, 1.4214138
    %v5346 = vadd.f32 %v5338, 1.4214138
    %v5347 = vadd.f32 %v5339, 1.4214138
    %v5348 = vadd.f32 %v5340, 1.4214138
    %v5349 = vmul.f32 %v5341, %v5302
    %v5350 = vmul.f32 %v5342, %v5304
    %v5351 = vmul.f32 %v5343, %v5306
    %v5352 = vmul.f32 %v5344, %v5308
    %v5353 = vmul.f32 %v5345, %v5310
    %v5354 = vmul.f32 %v5346, %v5312
    %v5355 = vmul.f32 %v5347, %v5314
    %v5356 = vmul.f32 %v5348, %v5316
    %v5357 = vadd.f32 %v5349, -0.28449672
    %v5358 = vadd.f32 %v5350, -0.28449672
    %v5359 = vadd.f32 %v5351, -0.28449672
    %v5360 = vadd.f32 %v5352, -0.28449672
    %v5361 = vadd.f32 %v5353, -0.28449672
    %v5362 = vadd.f32 %v5354, -0.28449672
    %v5363 = vadd.f32 %v5355, -0.28449672
    %v5364 = vadd.f32 %v5356, -0.28449672
    %v5365 = vmul.f32 %v5357, %v5302
    %v5366 = vmul.f32 %v5358, %v5304
    %v5367 = vmul.f32 %v5359, %v5306
    %v5368 = vmul.f32 %v5360, %v5308
    %v5369 = vmul.f32 %v5361, %v5310
    %v5370 = vmul.f32 %v5362, %v5312
    %v5371 = vmul.f32 %v5363, %v5314
    %v5372 = vmul.f32 %v5364, %v5316
    %v5373 = vadd.f32 %v5365, 0.2548296
    %v5374 = vadd.f32 %v5366, 0.2548296
    %v5375 = vadd.f32 %v5367, 0.2548296
    %v5376 = vadd.f32 %v5368, 0.2548296
    %v5377 = vadd.f32 %v5369, 0.2548296
    %v5378 = vadd.f32 %v5370, 0.2548296
    %v5379 = vadd.f32 %v5371, 0.2548296
    %v5380 = vadd.f32 %v5372, 0.2548296
    %v5381 = vmul.f32 %v5373, %v5302
    %v5382 = vmul.f32 %v5374, %v5304
    %v5383 = vmul.f32 %v5375, %v5306
    %v5384 = vmul.f32 %v5376, %v5308
    %v5385 = vmul.f32 %v5377, %v5310
    %v5386 = vmul.f32 %v5378, %v5312
    %v5387 = vmul.f32 %v5379, %v5314
    %v5388 = vmul.f32 %v5380, %v5316
    %v5389 = vsub.f32 0.0, %v5277
    %v5390 = vsub.f32 0.0, %v5278
    %v5391 = vsub.f32 0.0, %v5279
    %v5392 = vsub.f32 0.0, %v5280
    %v5393 = vsub.f32 0.0, %v5281
    %v5394 = vsub.f32 0.0, %v5282
    %v5395 = vsub.f32 0.0, %v5283
    %v5396 = vsub.f32 0.0, %v5284
    %v5397 = vmul.f32 %v5389, %v5277
    %v5398 = vmul.f32 %v5390, %v5278
    %v5399 = vmul.f32 %v5391, %v5279
    %v5400 = vmul.f32 %v5392, %v5280
    %v5401 = vmul.f32 %v5393, %v5281
    %v5402 = vmul.f32 %v5394, %v5282
    %v5403 = vmul.f32 %v5395, %v5283
    %v5404 = vmul.f32 %v5396, %v5284
    %v5405 = vmul.f32 %v5397, 1.442695
    %v5406 = vpow.pop %v5405
    %v5407 = vmul.f32 %v5398, 1.442695
    %v5408 = vpow.pop %v5407
    %v5409 = vmul.f32 %v5399, 1.442695
    %v5410 = vpow.pop %v5409
    %v5411 = vmul.f32 %v5400, 1.442695
    %v5412 = vpow.pop %v5411
    %v5413 = vmul.f32 %v5401, 1.442695
    %v5414 = vpow.pop %v5413
    %v5415 = vmul.f32 %v5402, 1.442695
    %v5416 = vpow.pop %v5415
    %v5417 = vmul.f32 %v5403, 1.442695
    %v5418 = vpow.pop %v5417
    %v5419 = vmul.f32 %v5404, 1.442695
    %v5420 = vpow.pop %v5419
    %v5421 = vmul.f32 %v5381, %v5406
    %v5422 = vmul.f32 %v5382, %v5408
    %v5423 = vmul.f32 %v5383, %v5410
    %v5424 = vmul.f32 %v5384, %v5412
    %v5425 = vmul.f32 %v5385, %v5414
    %v5426 = vmul.f32 %v5386, %v5416
    %v5427 = vmul.f32 %v5387, %v5418
    %v5428 = vmul.f32 %v5388, %v5420
    %v5429 = vsub.f32 1.0, %v5421
    %v5430 = vsub.f32 1.0, %v5422
    %v5431 = vsub.f32 1.0, %v5423
    %v5432 = vsub.f32 1.0, %v5424
    %v5433 = vsub.f32 1.0, %v5425
    %v5434 = vsub.f32 1.0, %v5426
    %v5435 = vsub.f32 1.0, %v5427
    %v5436 = vsub.f32 1.0, %v5428
    %v5437 = vmul.f32 %v5269, %v5429
    %v5438 = vmul.f32 %v5270, %v5430
    %v5439 = vmul.f32 %v5271, %v5431
    %v5440 = vmul.f32 %v5272, %v5432
    %v5441 = vmul.f32 %v5273, %v5433
    %v5442 = vmul.f32 %v5274, %v5434
    %v5443 = vmul.f32 %v5275, %v5435
    %v5444 = vmul.f32 %v5276, %v5436
    %v5445 = vadd.f32 %v5437, 1.0
    %v5446 = vadd.f32 %v5438, 1.0
    %v5447 = vadd.f32 %v5439, 1.0
    %v5448 = vadd.f32 %v5440, 1.0
    %v5449 = vadd.f32 %v5441, 1.0
    %v5450 = vadd.f32 %v5442, 1.0
    %v5451 = vadd.f32 %v5443, 1.0
    %v5452 = vadd.f32 %v5444, 1.0
    %v5453 = vmul.f32 %v5245, %v5445
    %v5454 = vmul.f32 %v5246, %v5446
    %v5455 = vmul.f32 %v5247, %v5447
    %v5456 = vmul.f32 %v5248, %v5448
    %v5457 = vmul.f32 %v5249, %v5449
    %v5458 = vmul.f32 %v5250, %v5450
    %v5459 = vmul.f32 %v5251, %v5451
    %v5460 = vmul.f32 %v5252, %v5452
    %v5461 = vpack.c.bf16 %v5455, %v5453
    %v5462 = vpack.c.bf16 %v5456, %v5454
    %v5463 = vpack.c.bf16 %v5459, %v5457
    %v5464 = vpack.c.bf16 %v5460, %v5458
    %s5465 = scalar_lea.vmem [#allocation14], 384
    %v5466 = vld [vmem:[%s5465] sm:$0xf]
    %v5467 = vld [vmem:[%s5465 + $0x4] sm:$0xf]
    %v5468 = vld [vmem:[%s5465 + $0x8] sm:$0xf]
    %v5469 = vld [vmem:[%s5465 + $0xc] sm:$0xf]
    %v5470 = vld [vmem:[%s5465 + $0x10] sm:$0xf]
    %v5471 = vld [vmem:[%s5465 + $0x14] sm:$0xf]
    %v5472 = vld [vmem:[%s5465 + $0x18] sm:$0xf]
    %v5473 = vld [vmem:[%s5465 + $0x1c] sm:$0xf]
    %v5474 = vld [vmem:[%s5465 + $0x20] sm:$0xf]
    %v5475 = vld [vmem:[%s5465 + $0x24] sm:$0xf]
    %v5476 = vld [vmem:[%s5465 + $0x28] sm:$0xf]
    %v5477 = vld [vmem:[%s5465 + $0x2c] sm:$0xf]
    %v5478 = vld [vmem:[%s5465 + $0x30] sm:$0xf]
    %v5479 = vld [vmem:[%s5465 + $0x34] sm:$0xf]
    %v5480 = vld [vmem:[%s5465 + $0x38] sm:$0xf]
    %v5481 = vld [vmem:[%s5465 + $0x3c] sm:$0xf]
    %v5482 = vld [vmem:[%s5465 + $0x40] sm:$0xf]
    %v5483 = vld [vmem:[%s5465 + $0x44] sm:$0xf]
    %v5484 = vld [vmem:[%s5465 + $0x48] sm:$0xf]
    %v5485 = vld [vmem:[%s5465 + $0x4c] sm:$0xf]
    %v5486 = vld [vmem:[%s5465 + $0x50] sm:$0xf]
    %v5487 = vld [vmem:[%s5465 + $0x54] sm:$0xf]
    %v5488 = vld [vmem:[%s5465 + $0x58] sm:$0xf]
    %v5489 = vld [vmem:[%s5465 + $0x5c] sm:$0xf]
    %v5490 = vld [vmem:[%s5465 + $0x60] sm:$0xf]
    %v5491 = vld [vmem:[%s5465 + $0x64] sm:$0xf]
    %v5492 = vld [vmem:[%s5465 + $0x68] sm:$0xf]
    %v5493 = vld [vmem:[%s5465 + $0x6c] sm:$0xf]
    %v5494 = vld [vmem:[%s5465 + $0x70] sm:$0xf]
    %v5495 = vld [vmem:[%s5465 + $0x74] sm:$0xf]
    %v5496 = vld [vmem:[%s5465 + $0x78] sm:$0xf]
    %v5497 = vld [vmem:[%s5465 + $0x7c] sm:$0xf]
    %s5498 = scalar_lea.vmem %s10, 3
    %v5499 = vld [vmem:[%s5498] sm:$0x1]
    %v5501 = vlaneseq
    %v5502 = vshrl.u32 %v5501, 7
    %v5503 = vsub.s32 0, %v5502
    %v5504 = vrot.slane %v5499, %v5503
    %v5538 = vunpack.c.l.b16 %v5466
    %v5539 = vunpack.c.l.b16 %v5467
    %v5540 = vunpack.c.l.b16 %v5468
    %v5541 = vunpack.c.l.b16 %v5469
    %v5542 = vunpack.c.l.b16 %v5470
    %v5543 = vunpack.c.l.b16 %v5471
    %v5544 = vunpack.c.l.b16 %v5472
    %v5545 = vunpack.c.l.b16 %v5473
    %v5546 = vunpack.c.l.b16 %v5474
    %v5547 = vunpack.c.l.b16 %v5475
    %v5548 = vunpack.c.l.b16 %v5476
    %v5549 = vunpack.c.l.b16 %v5477
    %v5550 = vunpack.c.l.b16 %v5478
    %v5551 = vunpack.c.l.b16 %v5479
    %v5552 = vunpack.c.l.b16 %v5480
    %v5553 = vunpack.c.l.b16 %v5481
    %v5554 = vunpack.c.l.b16 %v5482
    %v5555 = vunpack.c.l.b16 %v5483
    %v5556 = vunpack.c.l.b16 %v5484
    %v5557 = vunpack.c.l.b16 %v5485
    %v5558 = vunpack.c.l.b16 %v5486
    %v5559 = vunpack.c.l.b16 %v5487
    %v5560 = vunpack.c.l.b16 %v5488
    %v5561 = vunpack.c.l.b16 %v5489
    %v5562 = vunpack.c.l.b16 %v5490
    %v5563 = vunpack.c.l.b16 %v5491
    %v5564 = vunpack.c.l.b16 %v5492
    %v5565 = vunpack.c.l.b16 %v5493
    %v5566 = vunpack.c.l.b16 %v5494
    %v5567 = vunpack.c.l.b16 %v5495
    %v5568 = vunpack.c.l.b16 %v5496
    %v5569 = vunpack.c.l.b16 %v5497
    %v5570 = vpack.c.b16 %v5539, %v5538
    %v5571 = vpack.c.b16 %v5541, %v5540
    %v5572 = vpack.c.b16 %v5543, %v5542
    %v5573 = vpack.c.b16 %v5545, %v5544
    %v5574 = vpack.c.b16 %v5547, %v5546
    %v5575 = vpack.c.b16 %v5549, %v5548
    %v5576 = vpack.c.b16 %v5551, %v5550
    %v5577 = vpack.c.b16 %v5553, %v5552
    %v5578 = vpack.c.b16 %v5555, %v5554
    %v5579 = vpack.c.b16 %v5557, %v5556
    %v5580 = vpack.c.b16 %v5559, %v5558
    %v5581 = vpack.c.b16 %v5561, %v5560
    %v5582 = vpack.c.b16 %v5563, %v5562
    %v5583 = vpack.c.b16 %v5565, %v5564
    %v5584 = vpack.c.b16 %v5567, %v5566
    %v5585 = vpack.c.b16 %v5569, %v5568
    %5602 = vmatprep.subr.bf16.mxu0 0
    %5603 = vmatpush1.bf16.msra.mxu0 %v5577
    %5604 = vmatprep.subr.bf16.mxu0 0
    %5605 = vmatpush1.bf16.msra.mxu0 %v5576
    %5606 = vmatprep.subr.bf16.mxu0 0
    %5607 = vmatpush1.bf16.msra.mxu0 %v5575
    %5608 = vmatprep.subr.bf16.mxu0 0
    %5609 = vmatpush1.bf16.msra.mxu0 %v5574
    %5610 = vmatprep.subr.bf16.mxu0 0
    %5611 = vmatpush1.bf16.msra.mxu0 %v5573
    %5612 = vmatprep.subr.bf16.mxu0 0
    %5613 = vmatpush1.bf16.msra.mxu0 %v5572
    %5614 = vmatprep.subr.bf16.mxu0 0
    %5615 = vmatpush1.bf16.msra.mxu0 %v5571
    %5616 = vmatprep.subr.bf16.mxu0 0
    %5617 = vmatpush1.bf16.msra.mxu0 %v5570
    %5618 = vmatprep.subr.bf16.mxu0 0
    %5619 = vmatpush2.bf16.msra.mxu0 %v5585
    %5620 = vmatprep.subr.bf16.mxu0 0
    %5621 = vmatpush2.bf16.msra.mxu0 %v5584
    %5622 = vmatprep.subr.bf16.mxu0 0
    %5623 = vmatpush2.bf16.msra.mxu0 %v5583
    %5624 = vmatprep.subr.bf16.mxu0 0
    %5625 = vmatpush2.bf16.msra.mxu0 %v5582
    %5626 = vmatprep.subr.bf16.mxu0 0
    %5627 = vmatpush2.bf16.msra.mxu0 %v5581
    %5628 = vmatprep.subr.bf16.mxu0 0
    %5629 = vmatpush2.bf16.msra.mxu0 %v5580
    %5630 = vmatprep.subr.bf16.mxu0 0
    %5631 = vmatpush2.bf16.msra.mxu0 %v5579
    %5632 = vmatprep.subr.bf16.mxu0 0
    %5633 = vmatpush2.bf16.msra.mxu0 %v5578
    %5634 = vmatprep.mubr.bf16.mxu0 %v5462
    %5635 = vmatmul.mubr.bf16.gmra.mxu0 %v5461
    %v5636 = vpop.f32.mrf.mxu0
    %v5637 = vadd.f32 %v5504, %v5636
    %v5638 = vpop.f32.mrf.mxu0
    %v5639 = vpop.f32.mrf.mxu0
    %v5640 = vadd.f32 %v5504, %v5639
    %v5641 = vpop.f32.mrf.mxu0
    %5642 = vmatprep.mubr.bf16.mxu0 %v5464
    %5643 = vmatmul.mubr.bf16.gmra.mxu0 %v5463
    %v5644 = vpop.f32.mrf.mxu0
    %v5645 = vadd.f32 %v5504, %v5644
    %v5646 = vpop.f32.mrf.mxu0
    %v5647 = vpop.f32.mrf.mxu0
    %v5648 = vadd.f32 %v5504, %v5647
    %v5649 = vpop.f32.mrf.mxu0
    %5650 = vdwg.mxu0
    %v5651 = vadd.f32 %v5008, %v5637
    %v5652 = vadd.f32 %v5009, %v5640
    %v5653 = vadd.f32 %v5010, %v5645
    %v5654 = vadd.f32 %v5011, %v5648
    %v5655 = vpack.c.bf16 %v5652, %v5651
    %v5656 = vpack.c.bf16 %v5654, %v5653
    %v5657 = vld [vmem:[#allocation16] sm:$0xf]
    %v5658 = vld [vmem:[#allocation16 + $0x4] sm:$0xf]
    %v5659 = vld [vmem:[#allocation16 + $0x8] sm:$0xf]
    %v5660 = vld [vmem:[#allocation16 + $0xc] sm:$0xf]
    %v5661 = vld [vmem:[#allocation16 + $0x10] sm:$0xf]
    %v5662 = vld [vmem:[#allocation16 + $0x14] sm:$0xf]
    %v5663 = vld [vmem:[#allocation16 + $0x18] sm:$0xf]
    %v5664 = vld [vmem:[#allocation16 + $0x1c] sm:$0xf]
    %v5665 = vld [vmem:[#allocation16 + $0x20] sm:$0xf]
    %v5666 = vld [vmem:[#allocation16 + $0x24] sm:$0xf]
    %v5667 = vld [vmem:[#allocation16 + $0x28] sm:$0xf]
    %v5668 = vld [vmem:[#allocation16 + $0x2c] sm:$0xf]
    %v5669 = vld [vmem:[#allocation16 + $0x30] sm:$0xf]
    %v5670 = vld [vmem:[#allocation16 + $0x34] sm:$0xf]
    %v5671 = vld [vmem:[#allocation16 + $0x38] sm:$0xf]
    %v5672 = vld [vmem:[#allocation16 + $0x3c] sm:$0xf]
    %v5673 = vld [vmem:[%s12] sm:$0x1]
    %v5675 = vlaneseq
    %v5676 = vshrl.u32 %v5675, 7
    %v5677 = vsub.s32 0, %v5676
    %v5678 = vrot.slane %v5673, %v5677
    %v5696 = vunpack.c.l.b16 %v5657
    %v5697 = vunpack.c.l.b16 %v5658
    %v5698 = vunpack.c.l.b16 %v5659
    %v5699 = vunpack.c.l.b16 %v5660
    %v5700 = vunpack.c.l.b16 %v5661
    %v5701 = vunpack.c.l.b16 %v5662
    %v5702 = vunpack.c.l.b16 %v5663
    %v5703 = vunpack.c.l.b16 %v5664
    %v5704 = vunpack.c.l.b16 %v5665
    %v5705 = vunpack.c.l.b16 %v5666
    %v5706 = vunpack.c.l.b16 %v5667
    %v5707 = vunpack.c.l.b16 %v5668
    %v5708 = vunpack.c.l.b16 %v5669
    %v5709 = vunpack.c.l.b16 %v5670
    %v5710 = vunpack.c.l.b16 %v5671
    %v5711 = vunpack.c.l.b16 %v5672
    %v5712 = vpack.c.b16 %v5697, %v5696
    %v5713 = vpack.c.b16 %v5699, %v5698
    %v5714 = vpack.c.b16 %v5701, %v5700
    %v5715 = vpack.c.b16 %v5703, %v5702
    %v5716 = vpack.c.b16 %v5705, %v5704
    %v5717 = vpack.c.b16 %v5707, %v5706
    %v5718 = vpack.c.b16 %v5709, %v5708
    %v5719 = vpack.c.b16 %v5711, %v5710
    %5728 = vmatprep.subr.bf16.mxu0 0
    %5729 = vmatpush1.bf16.msra.mxu0 %v5719
    %5730 = vmatprep.subr.bf16.mxu0 0
    %5731 = vmatpush1.bf16.msra.mxu0 %v5718
    %5732 = vmatprep.subr.bf16.mxu0 0
    %5733 = vmatpush1.bf16.msra.mxu0 %v5717
    %5734 = vmatprep.subr.bf16.mxu0 0
    %5735 = vmatpush1.bf16.msra.mxu0 %v5716
    %5736 = vmatprep.subr.bf16.mxu0 0
    %5737 = vmatpush1.bf16.msra.mxu0 %v5715
    %5738 = vmatprep.subr.bf16.mxu0 0
    %5739 = vmatpush1.bf16.msra.mxu0 %v5714
    %5740 = vmatprep.subr.bf16.mxu0 0
    %5741 = vmatpush1.bf16.msra.mxu0 %v5713
    %5742 = vmatprep.subr.bf16.mxu0 0
    %5743 = vmatpush1.bf16.msra.mxu0 %v5712
    %5744 = vmatprep.subr.bf16.mxu0 0
    %5745 = vmatpush2.bf16.msra.mxu0 0
    %5746 = vmatprep.subr.bf16.mxu0 0
    %5747 = vmatpush2.bf16.msra.mxu0 0
    %5748 = vmatprep.subr.bf16.mxu0 0
    %5749 = vmatpush2.bf16.msra.mxu0 0
    %5750 = vmatprep.subr.bf16.mxu0 0
    %5751 = vmatpush2.bf16.msra.mxu0 0
    %5752 = vmatprep.subr.bf16.mxu0 0
    %5753 = vmatpush2.bf16.msra.mxu0 0
    %5754 = vmatprep.subr.bf16.mxu0 0
    %5755 = vmatpush2.bf16.msra.mxu0 0
    %5756 = vmatprep.subr.bf16.mxu0 0
    %5757 = vmatpush2.bf16.msra.mxu0 0
    %5758 = vmatprep.subr.bf16.mxu0 0
    %5759 = vmatpush2.bf16.msra.mxu0 0
    %5760 = vmatprep.mubr.bf16.mxu0 0
    %5761 = vmatmul.mubr.bf16.gmra.mxu0 %v5655
    %v5762 = vpop.f32.mrf.mxu0
    %v5763 = vadd.f32 %v5678, %v5762
    %v5764 = vpop.f32.mrf.mxu0
    %v5765 = vpop.f32.mrf.mxu0
    %v5766 = vadd.f32 %v5678, %v5765
    %v5767 = vpop.f32.mrf.mxu0
    %5768 = vmatprep.mubr.bf16.mxu0 0
    %5769 = vmatmul.mubr.bf16.gmra.mxu0 %v5656
    %v5770 = vpop.f32.mrf.mxu0
    %v5771 = vadd.f32 %v5678, %v5770
    %v5772 = vpop.f32.mrf.mxu0
    %v5773 = vpop.f32.mrf.mxu0
    %v5774 = vadd.f32 %v5678, %v5773
    %v5775 = vpop.f32.mrf.mxu0
    %5776 = vdwg.mxu0
    %5777 = vst [vmem:[#allocation17] sm:$0xff] %v5763
    %5778 = vst [vmem:[#allocation17 + $0x8] sm:$0xff] %v5766
    %5779 = vst [vmem:[#allocation17 + $0x10] sm:$0xff] %v5771
    %5780 = vst [vmem:[#allocation17 + $0x18] sm:$0xff] %v5774
    // Predicated region
    $region90: #{tpu_custom_call.1} parent=1 // pred_check
      _
    $region91: #{tpu_custom_call.1} parent=1 // pred_check_branch
      %5782 = sbr.rel (0) target = $region93
    $region92: #{tpu_custom_call.1} parent=1 // pred_region
      %s5784 = ssub.s32 512, 512
      %5785 = vsyncadd [#allocation4], %s5784
      %s5786 = sshll.u32 [#allocation17], 4
      %s5787 = int_to_ptr.vmem [resolvable:$true] %s5786
      %5792 = dma.vmem_to_hbm [thread:$0]  %s5787, 512, %s13, [#allocation4], 128, 128, 8
    $region93: #{tpu_custom_call.1} parent=1 // pred_fallthru
      _
    // Predicated region
    $region94: #{tpu_custom_call.1} parent=1 // pred_check
      _
    $region95: #{tpu_custom_call.1} parent=1 // pred_check_branch
      %5794 = sbr.rel (0) target = $region97
    $region96: #{tpu_custom_call.1} parent=1 // pred_region
      %5795 = dma.done [#allocation4], 512
    $region97: #{tpu_custom_call.1} parent=1 // pred_fallthru
      _
    %5796 = vsyncpa [#allocation3], 1
    %5797 = vsyncpa [#allocation6], 1
    %5798 = vsyncpa [#allocation9], 1
    %5799 = vsyncpa [#allocation12], 1
    %5800 = vsyncpa [#allocation15], 1
    %5801 = vsyncpa [#allocation4], 1

</llo_original>
